<compile_context>
chip_gen: v7x
topology: tpu7x:2x2x1
jax: 0.10.0
libtpu: 0.0.40
codegen_flags: <defaults>
</compile_context>

<pallas_src>
import jax
import jax.numpy as jnp
from jax import lax
from jax.experimental import pallas as pl
from jax.experimental.pallas import tpu as pltpu

REAL_HID = 50     # true latent width of the PyTorch model
HID = 64          # lane-padded latent width
HID2 = 256        # 200-wide hidden layers padded to 256 lanes
FBN_OUT = 10      # true FBN feature width
FBN_PAD = 16      # lane-padded FBN width
PACK = 128        # lane-dense packed-output width


# --------------------------------------------------------------------------
# Kernel 1: encoders, decoders, FBN feature, packed embeddings (batch-tiled)
# --------------------------------------------------------------------------
def encdec_kernel(
    # inputs
    xq_ref, xk_ref, S_ref,
    re_w1, re_b1, re_w2, re_b2, re_w3, re_b3,   # RNASeq encoder
    rd_w1, rd_b1, rd_w2, rd_b2, rd_w3, rd_b3,   # RNASeq decoder
    me_w1, me_b1, me_w2, me_b2, me_w3, me_b3,   # miRNA encoder
    md_w1, md_b1, md_w2, md_b2, md_w3, md_b3,   # miRNA decoder
    rl_w, rl_b, ml_w, ml_b,                     # FBN linears
    # outputs
    rna_new_ref, mirna_new_ref, qk_ref, emb_ref,
):
    def lin(x_bf16, w_ref, b_ref):
        # bf16 operands on the MXU, f32 accumulation, f32 bias add.
        return jnp.dot(x_bf16, w_ref[...], preferred_element_type=jnp.float32) + b_ref[...]

    def lin_relu(x_bf16, w_ref, b_ref):
        return jnp.maximum(lin(x_bf16, w_ref, b_ref), 0.0).astype(jnp.bfloat16)

    # hoisted bf16 casts (done once per operand)
    xq = xq_ref[...].astype(jnp.bfloat16)
    xk = xk_ref[...].astype(jnp.bfloat16)

    # --- RNASeq encoding -> q (tm, HID); padded lanes >= 50 are exactly zero ---
    h = lin_relu(xq, re_w1, re_b1)
    h = lin_relu(h, re_w2, re_b2)
    q = lin(h, re_w3, re_b3)                       # f32
    q_bf = q.astype(jnp.bfloat16)

    # --- RNASeq decoding -> RNA_new ---
    h = lin_relu(q_bf, rd_w1, rd_b1)
    h = lin_relu(h, rd_w2, rd_b2)
    rna_new_ref[...] = jax.nn.sigmoid(lin(h, rd_w3, rd_b3)).astype(rna_new_ref.dtype)

    # --- miRNA encoding -> k ---
    h = lin_relu(xk, me_w1, me_b1)
    h = lin_relu(h, me_w2, me_b2)
    k = lin(h, me_w3, me_b3)
    k_bf = k.astype(jnp.bfloat16)

    # --- miRNA decoding -> miRNA_new ---
    h = lin_relu(k_bf, md_w1, md_b1)
    h = lin_relu(h, md_w2, md_b2)
    mirna_new_ref[...] = jax.nn.sigmoid(lin(h, md_w3, md_b3)).astype(mirna_new_ref.dtype)

    # lane-dense bf16 [q | k] slab feeding the similarity kernel.
    qk_ref[...] = jnp.concatenate([q_bf, k_bf], axis=1)           # (tm, 128) bf16

    # --- FBN bilinear feature (dropout identity in eval mode) ---
    # sum over 5 groups of 10 == one matmul with the 0/1 block-sum matrix S.
    rq = lin(q_bf, rl_w, rl_b)
    rm = lin(k_bf, ml_w, ml_b)
    temp = jnp.dot((rq * rm).astype(jnp.bfloat16), S_ref[...],
                   preferred_element_type=jnp.float32)            # (tm, FBN_PAD)
    fbn = jnp.where(temp < 0, -1.0, 1.0) * jnp.sqrt(jnp.abs(temp))  # signed sqrt

    # --- packed f32 slab: [normalize(q+k) | fbn | l_pos | 0] ---
    s = q + k
    inv_norm = lax.rsqrt(jnp.maximum(jnp.sum(s * s, axis=1, keepdims=True), 1e-24))
    l_pos = jnp.sum(q * k, axis=1, keepdims=True)                 # f32 positive logit
    pad = jnp.zeros((s.shape[0], PACK - HID - FBN_PAD - 1), jnp.float32)
    emb_ref[...] = jnp.concatenate([s * inv_norm, fbn, l_pos, pad], axis=1)


# --------------------------------------------------------------------------
# Kernel 2: contrastive similarities, 2-D tiled over the (N, N) outputs.
# RHS is a pre-transposed bf16 slab (no per-tile XLU transpose); 1/T is folded
# into the f32 MXU result (free VPU slot). The same bf16 LHS row tile is
# streamed into both dots, so a literal [q^T | k^T] column-merge buys nothing
# extra in this output-DMA-bound kernel.
# --------------------------------------------------------------------------
def _make_similarity_kernel(inv_t):
    def similarity_kernel(q_ref, qt_ref, kt_ref, a_ref, b_ref):
        q = q_ref[...]                                            # (ts_m, HID) bf16
        a_ref[...] = jnp.dot(q, qt_ref[...],                      # q_i @ q_j^T / T
                             preferred_element_type=jnp.float32) * inv_t
        b_ref[...] = jnp.dot(q, kt_ref[...],                      # q_i @ k_j^T / T
                             preferred_element_type=jnp.float32) * inv_t
    return similarity_kernel


# --------------------------------------------------------------------------
# Hardware / tiling helpers
# --------------------------------------------------------------------------
_ROW_CANDS = (512, 256, 128, 64, 32, 16, 8)


def _physical_vmem_bytes():
    try:
        info = pltpu.get_tpu_info()
        for attr in ("vmem_capacity_bytes", "vmem_bytes", "vmem_size_bytes"):
            v = getattr(info, attr, None)
            if v:
                return int(v)
    except Exception:
        pass
    return 64 << 20     # conservative default: v7x per-TensorCore VMEM


def _divisor_tile(n, candidates):
    for c in candidates:
        if c <= n and n % c == 0:
            return c
    return n


# --------------------------------------------------------------------------
# Forward wrapper
# --------------------------------------------------------------------------
def pclsurv_forward(omics_q, omics_k, params, S, *, T=0.2, is_eval=False,
                    batch_tile=None, sim_row_tile=None, sim_col_tile=None,
                    recon_dtype=jnp.float32):
    N, rna_dim = omics_q.shape
    mirna_dim = omics_k.shape[1]
    inv_t = 1.0 / T
    recon_bytes = jnp.dtype(recon_dtype).itemsize   # use jnp.bfloat16 to halve writes

    phys = _physical_vmem_bytes()
    budget = int(phys * 0.85)                        # never exceed physical VMEM
    param_bytes = sum(int(p.size) * p.dtype.itemsize for p in (S, *params))

    def tile_bytes(tm):
        io = (tm * (rna_dim + mirna_dim) * 4                      # f32 input tiles
              + tm * (rna_dim + mirna_dim) * recon_bytes          # reconstruction tiles
              + tm * PACK * (2 + 4))                              # qk (bf16) + emb (f32)
        return 2 * io + tm * HID2 * 16                            # double-buffered + slack

    # --- batch tile selection (fits the generation's VMEM budget) ---
    divs = [c for c in _ROW_CANDS if N % c == 0]
    if batch_tile is not None:
        tm = batch_tile
    else:
        fits = [c for c in divs if param_bytes + tile_bytes(c) + (4 << 20) <= budget]
        tm = fits[0] if fits else (divs[0] if divs else N)
        if N // tm < 2:                     # keep >=2 row tiles for v7x megacore
            for c in _ROW_CANDS:
                if c < tm and N % c == 0:
                    tm = c
                    break
    assert N % tm == 0, "batch tile must divide the batch"

    row = lambda i: (i, 0)
    const = lambda i: (0, 0)
    out_shape = (
        jax.ShapeDtypeStruct((N, rna_dim), recon_dtype),          # RNA_new
        jax.ShapeDtypeStruct((N, mirna_dim), recon_dtype),        # miRNA_new
        jax.ShapeDtypeStruct((N, PACK), jnp.bfloat16),            # [q | k] bf16
        jax.ShapeDtypeStruct((N, PACK), jnp.float32),             # [normed|fbn|l_pos|0]
    )
    out_specs = (
        pl.BlockSpec((tm, rna_dim), row),
        pl.BlockSpec((tm, mirna_dim), row),
        pl.BlockSpec((tm, PACK), row),
        pl.BlockSpec((tm, PACK), row),
    )

    def run_encdec(single_buffer_consts):
        const_kw = {"pipeline_mode": pl.Buffered(1)} if single_buffer_consts else {}
        in_specs = ([pl.BlockSpec((tm, rna_dim), row),
                     pl.BlockSpec((tm, mirna_dim), row),
                     pl.BlockSpec(S.shape, const, **const_kw)]
                    + [pl.BlockSpec(p.shape, const, **const_kw) for p in params])
        pf = 1 if single_buffer_consts else 2        # param buffering factor
        vmem_limit = int(max(16 << 20,
                             min(budget, pf * param_bytes + tile_bytes(tm) + (4 << 20))))
        return pl.pallas_call(
            encdec_kernel,
            grid=(N // tm,),
            in_specs=in_specs,
            out_specs=out_specs,
            out_shape=out_shape,
            compiler_params=pltpu.CompilerParams(
                dimension_semantics=("parallel",),
                vmem_limit_bytes=vmem_limit),
        )(omics_q, omics_k, S, *params)

    try:
        rna_new, mirna_new, qk_pack, emb = run_encdec(True)
    except Exception:
        # Fallback if single-buffered constants are not supported by this jax build.
        rna_new, mirna_new, qk_pack, emb = run_encdec(False)

    # unpack the lane-dense embedding slab
    X = jnp.concatenate([emb[:, :REAL_HID], emb[:, HID:HID + FBN_OUT]], axis=1)
    if is_eval:
        return X
    l_pos = emb[:, HID + FBN_PAD:HID + FBN_PAD + 1] * inv_t       # (N, 1), already /T

    # ---- similarity kernel: 2-D grid over (N, N) output tiles ----
    # One tiny XLA transpose builds the (2, HID, N) bf16 RHS slab [q^T ; k^T];
    # kernel 2 then never touches the XLU.
    q_lhs = qk_pack[:, :HID]                                      # (N, HID) bf16
    qk_t = jnp.transpose(qk_pack).reshape(2, HID, N)              # (2, HID, N) bf16

    ts_n = sim_col_tile if sim_col_tile is not None else _divisor_tile(
        N, (1024, 512, 256, 128))
    if sim_row_tile is not None:
        ts_m = sim_row_tile
    else:
        def sim_bytes(m):
            return 2 * (m * HID * 2 + 2 * HID * ts_n * 2 + 2 * m * ts_n * 4) + (2 << 20)
        fits = [c for c in divs if sim_bytes(c) <= budget]
        ts_m = fits[0] if fits else (divs[0] if divs else N)
        if N // ts_m < 2:                   # keep >=2 row tiles for v7x megacore
            for c in _ROW_CANDS:
                if c < ts_m and N % c == 0:
                    ts_m = c
                    break
    assert N % ts_m == 0 and N % ts_n == 0

    sim_vmem = int(max(16 << 20,
                       min(budget,
                           2 * (ts_m * HID * 2 + 2 * HID * ts_n * 2
                                + 2 * ts_m * ts_n * 4) + (4 << 20))))
    sim_shape = jax.ShapeDtypeStruct((N, N), jnp.float32)
    l_neg_a, l_neg_b = pl.pallas_call(
        _make_similarity_kernel(inv_t),
        grid=(N // ts_m, N // ts_n),
        in_specs=[pl.BlockSpec((ts_m, HID), lambda i, j: (i, 0)),         # q rows
                  pl.BlockSpec((None, HID, ts_n), lambda i, j: (0, 0, j)),  # q^T cols
                  pl.BlockSpec((None, HID, ts_n), lambda i, j: (1, 0, j))],  # k^T cols
        out_specs=(pl.BlockSpec((ts_m, ts_n), lambda i, j: (i, j)),
                   pl.BlockSpec((ts_m, ts_n), lambda i, j: (i, j))),
        out_shape=(sim_shape, sim_shape),
        compiler_params=pltpu.CompilerParams(
            dimension_semantics=("parallel", "parallel"),
            vmem_limit_bytes=sim_vmem),
    )(q_lhs, qk_t, qk_t)

    # Glue: drop the diagonal of each (N, N) similarity -> (N, N-1); row order
    # matches torch's l_neg[~eye].reshape(N, -1). Kept in XLA to preserve the
    # exact (N, 2N-1) logits shape of the original module.
    cols = jnp.arange(N - 1, dtype=jnp.int32)[None, :]
    rows = jnp.arange(N, dtype=jnp.int32)[:, None]
    idx = cols + (cols >= rows).astype(jnp.int32)
    neg_a = jnp.take_along_axis(l_neg_a, idx, axis=1)
    neg_b = jnp.take_along_axis(l_neg_b, idx, axis=1)

    logits = jnp.concatenate([l_pos, neg_a, neg_b], axis=1)       # already scaled by 1/T
    labels = jnp.zeros((N,), dtype=jnp.int32)                     # torch.long -> int32
    return rna_new, mirna_new, logits, labels, X


# --------------------------------------------------------------------------
# Parameter preparation (PyTorch-equivalent init; 50->64 and 200->256 lane pads)
# --------------------------------------------------------------------------
def _init_layer(key, fan_in, fan_out, pad_in, pad_out):
    kw, kb = jax.random.split(key)
    bound = 1.0 / (fan_in ** 0.5)
    w = jax.random.uniform(kw, (fan_in, fan_out), jnp.float32, -bound, bound)
    b = jax.random.uniform(kb, (1, fan_out), jnp.float32, -bound, bound)
    w = jnp.pad(w, ((0, pad_in - fan_in), (0, pad_out - fan_out))).astype(jnp.bfloat16)
    b = jnp.pad(b, ((0, 0), (0, pad_out - fan_out)))   # biases stay f32
    return w, b


def init_params(key, rna_dim, mirna_dim):
    H, RH, H2 = HID, REAL_HID, HID2
    dims = [
        # RNASeq encoding
        (rna_dim, 200, rna_dim, H2), (200, RH, H2, H), (RH, RH, H, H),
        # RNASeq decoding
        (RH, RH, H, H), (RH, 200, H, H2), (200, rna_dim, H2, rna_dim),
        # miRNA encoding
        (mirna_dim, 200, mirna_dim, H2), (200, RH, H2, H), (RH, RH, H, H),
        # miRNA decoding
        (RH, RH, H, H), (RH, 200, H, H2), (200, mirna_dim, H2, mirna_dim),
        # RNASeq_linear, miRNA_linear (FBN)
        (RH, RH, H, H), (RH, RH, H, H),
    ]
    keys = jax.random.split(key, len(dims))
    params = []
    for k, (fi, fo, pi, po) in zip(keys, dims):
        w, b = _init_layer(k, fi, fo, pi, po)
        params.extend([w, b])
    return params


def make_fbn_sum_matrix():
    # (HID, FBN_PAD) 0/1 block-sum matrix: column j sums lanes {j, j+10, ..., j+40}.
    r = jnp.arange(HID)[:, None]
    c = jnp.arange(FBN_PAD)[None, :]
    return ((r < REAL_HID) & ((r % FBN_OUT) == c)).astype(jnp.bfloat16)


# --------------------------------------------------------------------------
# Pure-JAX reference (same padded bf16 weights / same math) for validation
# --------------------------------------------------------------------------
def pclsurv_reference(xq, xk, params, S, T=0.2):
    relu = lambda v: jnp.maximum(v, 0.0)

    def lin(x, w, b):
        return jnp.dot(x.astype(jnp.bfloat16), w,
                       preferred_element_type=jnp.float32) + b

    (re_w1, re_b1, re_w2, re_b2, re_w3, re_b3,
     rd_w1, rd_b1, rd_w2, rd_b2, rd_w3, rd_b3,
     me_w1, me_b1, me_w2, me_b2, me_w3, me_b3,
     md_w1, md_b1, md_w2, md_b2, md_w3, md_b3,
     rl_w, rl_b, ml_w, ml_b) = params

    h = relu(lin(xq, re_w1, re_b1)); h = relu(lin(h, re_w2, re_b2))
    q = lin(h, re_w3, re_b3)
    h = relu(lin(q, rd_w1, rd_b1)); h = relu(lin(h, rd_w2, rd_b2))
    rna_new = jax.nn.sigmoid(lin(h, rd_w3, rd_b3))
    h = relu(lin(xk, me_w1, me_b1)); h = relu(lin(h, me_w2, me_b2))
    k = lin(h, me_w3, me_b3)
    h = relu(lin(k, md_w1, md_b1)); h = relu(lin(h, md_w2, md_b2))
    mirna_new = jax.nn.sigmoid(lin(h, md_w3, md_b3))

    rq = lin(q, rl_w, rl_b); rm = lin(k, ml_w, ml_b)
    temp = jnp.dot((rq * rm).astype(jnp.bfloat16), S,
                   preferred_element_type=jnp.float32)
    fbn = jnp.where(temp < 0, -1.0, 1.0) * jnp.sqrt(jnp.abs(temp))
    s = q + k
    normed = s * lax.rsqrt(jnp.maximum(jnp.sum(s * s, axis=1, keepdims=True), 1e-24))
    X = jnp.concatenate([normed[:, :REAL_HID], fbn[:, :FBN_OUT]], axis=1)
    l_pos = jnp.sum(q * k, axis=1, keepdims=True)

    qb, kb = q.astype(jnp.bfloat16), k.astype(jnp.bfloat16)
    A = jnp.dot(qb, qb.T, preferred_element_type=jnp.float32)
    B = jnp.dot(qb, kb.T, preferred_element_type=jnp.float32)
    N = xq.shape[0]
    cols = jnp.arange(N - 1, dtype=jnp.int32)[None, :]
    rows = jnp.arange(N, dtype=jnp.int32)[:, None]
    idx = cols + (cols >= rows).astype(jnp.int32)
    neg_a = jnp.take_along_axis(A, idx, axis=1)
    neg_b = jnp.take_along_axis(B, idx, axis=1)
    logits = jnp.concatenate([l_pos, neg_a, neg_b], axis=1) / T
    return rna_new, mirna_new, logits, X


if __name__ == "__main__":
    N, RNA_DIM, MIRNA_DIM = 32, 256, 128

    root = jax.random.PRNGKey(0)
    k_params, k_q, k_k = jax.random.split(root, 3)

    params = init_params(k_params, RNA_DIM, MIRNA_DIM)
    S = make_fbn_sum_matrix()
    omics_q = jax.random.uniform(k_q, (N, RNA_DIM), jnp.float32)
    omics_k = jax.random.uniform(k_k, (N, MIRNA_DIM), jnp.float32)

    # Default tile selection picks tm=16 / ts_m=16 here -> multi-step grids.
    rna_new, mirna_new, logits, labels, X = pclsurv_forward(
        omics_q, omics_k, params, S)
    jax.block_until_ready((rna_new, mirna_new, logits, labels, X))

    assert rna_new.shape == (N, RNA_DIM)
    assert mirna_new.shape == (N, MIRNA_DIM)
    assert logits.shape == (N, 2 * N - 1)
    assert labels.shape == (N,)
    assert X.shape == (N, 60)

    # eval path returns only the embedding X
    X_eval = pclsurv_forward(omics_q, omics_k, params, S, is_eval=True)
    jax.block_until_ready(X_eval)
    assert X_eval.shape == (N, 60)

    # numerical check vs a pure-JAX reference using the identical padded weights
    ref_rna, ref_mirna, ref_logits, ref_X = pclsurv_reference(
        omics_q, omics_k, params, S)
    assert jnp.allclose(rna_new, ref_rna, rtol=2e-2, atol=2e-2), "RNA_new mismatch"
    assert jnp.allclose(mirna_new, ref_mirna, rtol=2e-2, atol=2e-2), "miRNA_new mismatch"
    assert jnp.allclose(X, ref_X, rtol=2e-2, atol=2e-2), "X mismatch"
    assert jnp.allclose(X_eval, ref_X, rtol=2e-2, atol=2e-2), "X (eval) mismatch"
    assert jnp.allclose(logits, ref_logits, rtol=2e-2, atol=1e-1), "logits mismatch"

    print("KERNEL_OK")
</pallas_src>

<mosaic_0001>
module attributes {stable_mosaic.version = 11 : i64} {
  func.func @encdec_kernel(%arg0: i32, %arg1: memref<16x256xf32, #tpu.memory_space<vmem>>, %arg2: memref<16x128xf32, #tpu.memory_space<vmem>>, %arg3: memref<64x16xbf16, #tpu.memory_space<vmem>>, %arg4: memref<256x256xbf16, #tpu.memory_space<vmem>>, %arg5: memref<1x256xf32, #tpu.memory_space<vmem>>, %arg6: memref<256x64xbf16, #tpu.memory_space<vmem>>, %arg7: memref<1x64xf32, #tpu.memory_space<vmem>>, %arg8: memref<64x64xbf16, #tpu.memory_space<vmem>>, %arg9: memref<1x64xf32, #tpu.memory_space<vmem>>, %arg10: memref<64x64xbf16, #tpu.memory_space<vmem>>, %arg11: memref<1x64xf32, #tpu.memory_space<vmem>>, %arg12: memref<64x256xbf16, #tpu.memory_space<vmem>>, %arg13: memref<1x256xf32, #tpu.memory_space<vmem>>, %arg14: memref<256x256xbf16, #tpu.memory_space<vmem>>, %arg15: memref<1x256xf32, #tpu.memory_space<vmem>>, %arg16: memref<128x256xbf16, #tpu.memory_space<vmem>>, %arg17: memref<1x256xf32, #tpu.memory_space<vmem>>, %arg18: memref<256x64xbf16, #tpu.memory_space<vmem>>, %arg19: memref<1x64xf32, #tpu.memory_space<vmem>>, %arg20: memref<64x64xbf16, #tpu.memory_space<vmem>>, %arg21: memref<1x64xf32, #tpu.memory_space<vmem>>, %arg22: memref<64x64xbf16, #tpu.memory_space<vmem>>, %arg23: memref<1x64xf32, #tpu.memory_space<vmem>>, %arg24: memref<64x256xbf16, #tpu.memory_space<vmem>>, %arg25: memref<1x256xf32, #tpu.memory_space<vmem>>, %arg26: memref<256x128xbf16, #tpu.memory_space<vmem>>, %arg27: memref<1x128xf32, #tpu.memory_space<vmem>>, %arg28: memref<64x64xbf16, #tpu.memory_space<vmem>>, %arg29: memref<1x64xf32, #tpu.memory_space<vmem>>, %arg30: memref<64x64xbf16, #tpu.memory_space<vmem>>, %arg31: memref<1x64xf32, #tpu.memory_space<vmem>>, %arg32: memref<16x256xf32, #tpu.memory_space<vmem>>, %arg33: memref<16x128xf32, #tpu.memory_space<vmem>>, %arg34: memref<16x128xbf16, #tpu.memory_space<vmem>>, %arg35: memref<16x128xf32, #tpu.memory_space<vmem>>) attributes {dimension_semantics = [#tpu.dimension_semantics<parallel>], iteration_bounds = array<i64: 2>, scalar_prefetch = 0 : i64, scratch_operands = 0 : i64, tpu.core_type = #tpu.core_type<tc>, window_params = [{transform_indices = @transform_0, window_bounds = array<i64: 16, 256>}, {transform_indices = @transform_1, window_bounds = array<i64: 16, 128>}, {pipeline_mode = #tpu.pipeline_mode<synchronous>, transform_indices = @transform_2, window_bounds = array<i64: 64, 16>}, {pipeline_mode = #tpu.pipeline_mode<synchronous>, transform_indices = @transform_3, window_bounds = array<i64: 256, 256>}, {pipeline_mode = #tpu.pipeline_mode<synchronous>, transform_indices = @transform_4, window_bounds = array<i64: 1, 256>}, {pipeline_mode = #tpu.pipeline_mode<synchronous>, transform_indices = @transform_5, window_bounds = array<i64: 256, 64>}, {pipeline_mode = #tpu.pipeline_mode<synchronous>, transform_indices = @transform_6, window_bounds = array<i64: 1, 64>}, {pipeline_mode = #tpu.pipeline_mode<synchronous>, transform_indices = @transform_7, window_bounds = array<i64: 64, 64>}, {pipeline_mode = #tpu.pipeline_mode<synchronous>, transform_indices = @transform_8, window_bounds = array<i64: 1, 64>}, {pipeline_mode = #tpu.pipeline_mode<synchronous>, transform_indices = @transform_9, window_bounds = array<i64: 64, 64>}, {pipeline_mode = #tpu.pipeline_mode<synchronous>, transform_indices = @transform_10, window_bounds = array<i64: 1, 64>}, {pipeline_mode = #tpu.pipeline_mode<synchronous>, transform_indices = @transform_11, window_bounds = array<i64: 64, 256>}, {pipeline_mode = #tpu.pipeline_mode<synchronous>, transform_indices = @transform_12, window_bounds = array<i64: 1, 256>}, {pipeline_mode = #tpu.pipeline_mode<synchronous>, transform_indices = @transform_13, window_bounds = array<i64: 256, 256>}, {pipeline_mode = #tpu.pipeline_mode<synchronous>, transform_indices = @transform_14, window_bounds = array<i64: 1, 256>}, {pipeline_mode = #tpu.pipeline_mode<synchronous>, transform_indices = @transform_15, window_bounds = array<i64: 128, 256>}, {pipeline_mode = #tpu.pipeline_mode<synchronous>, transform_indices = @transform_16, window_bounds = array<i64: 1, 256>}, {pipeline_mode = #tpu.pipeline_mode<synchronous>, transform_indices = @transform_17, window_bounds = array<i64: 256, 64>}, {pipeline_mode = #tpu.pipeline_mode<synchronous>, transform_indices = @transform_18, window_bounds = array<i64: 1, 64>}, {pipeline_mode = #tpu.pipeline_mode<synchronous>, transform_indices = @transform_19, window_bounds = array<i64: 64, 64>}, {pipeline_mode = #tpu.pipeline_mode<synchronous>, transform_indices = @transform_20, window_bounds = array<i64: 1, 64>}, {pipeline_mode = #tpu.pipeline_mode<synchronous>, transform_indices = @transform_21, window_bounds = array<i64: 64, 64>}, {pipeline_mode = #tpu.pipeline_mode<synchronous>, transform_indices = @transform_22, window_bounds = array<i64: 1, 64>}, {pipeline_mode = #tpu.pipeline_mode<synchronous>, transform_indices = @transform_23, window_bounds = array<i64: 64, 256>}, {pipeline_mode = #tpu.pipeline_mode<synchronous>, transform_indices = @transform_24, window_bounds = array<i64: 1, 256>}, {pipeline_mode = #tpu.pipeline_mode<synchronous>, transform_indices = @transform_25, window_bounds = array<i64: 256, 128>}, {pipeline_mode = #tpu.pipeline_mode<synchronous>, transform_indices = @transform_26, window_bounds = array<i64: 1, 128>}, {pipeline_mode = #tpu.pipeline_mode<synchronous>, transform_indices = @transform_27, window_bounds = array<i64: 64, 64>}, {pipeline_mode = #tpu.pipeline_mode<synchronous>, transform_indices = @transform_28, window_bounds = array<i64: 1, 64>}, {pipeline_mode = #tpu.pipeline_mode<synchronous>, transform_indices = @transform_29, window_bounds = array<i64: 64, 64>}, {pipeline_mode = #tpu.pipeline_mode<synchronous>, transform_indices = @transform_30, window_bounds = array<i64: 1, 64>}, {transform_indices = @transform_31, window_bounds = array<i64: 16, 256>}, {transform_indices = @transform_32, window_bounds = array<i64: 16, 128>}, {transform_indices = @transform_33, window_bounds = array<i64: 16, 128>}, {transform_indices = @transform_34, window_bounds = array<i64: 16, 128>}]} {
    %c0 = arith.constant 0 : index
    %c0_0 = arith.constant 0 : index
    %0 = vector.load %arg1[%c0, %c0_0] : memref<16x256xf32, #tpu.memory_space<vmem>>, vector<16x256xf32>
    %1 = arith.truncf %0 : vector<16x256xf32> to vector<16x256xbf16>
    %c0_1 = arith.constant 0 : index
    %c0_2 = arith.constant 0 : index
    %2 = vector.load %arg2[%c0_1, %c0_2] : memref<16x128xf32, #tpu.memory_space<vmem>>, vector<16x128xf32>
    %3 = arith.truncf %2 : vector<16x128xf32> to vector<16x128xbf16>
    %c0_3 = arith.constant 0 : index
    %c0_4 = arith.constant 0 : index
    %4 = vector.load %arg4[%c0_3, %c0_4] : memref<256x256xbf16, #tpu.memory_space<vmem>>, vector<256x256xbf16>
    %cst = arith.constant dense<0.000000e+00> : vector<16x256xf32>
    %5 = tpu.matmul %1, %4, %cst {dimension_numbers = #tpu.dot_dimension_numbers<[1], [0], [0], [1], [0, 0, 1, 1], [], []>} : vector<16x256xbf16>, vector<256x256xbf16>, vector<16x256xf32> -> vector<16x256xf32>
    %c0_5 = arith.constant 0 : index
    %c0_6 = arith.constant 0 : index
    %6 = vector.load %arg5[%c0_5, %c0_6] : memref<1x256xf32, #tpu.memory_space<vmem>>, vector<1x256xf32>
    %7 = vector.broadcast %6 : vector<1x256xf32> to vector<16x256xf32>
    %8 = arith.addf %5, %7 : vector<16x256xf32>
    %cst_7 = arith.constant 0.000000e+00 : f32
    %9 = vector.broadcast %cst_7 : f32 to vector<16x256xf32>
    %10 = arith.maximumf %8, %9 : vector<16x256xf32>
    %11 = arith.truncf %10 : vector<16x256xf32> to vector<16x256xbf16>
    %c0_8 = arith.constant 0 : index
    %c0_9 = arith.constant 0 : index
    %12 = vector.load %arg6[%c0_8, %c0_9] : memref<256x64xbf16, #tpu.memory_space<vmem>>, vector<256x64xbf16>
    %cst_10 = arith.constant dense<0.000000e+00> : vector<16x64xf32>
    %13 = tpu.matmul %11, %12, %cst_10 {dimension_numbers = #tpu.dot_dimension_numbers<[1], [0], [0], [1], [0, 0, 1, 1], [], []>} : vector<16x256xbf16>, vector<256x64xbf16>, vector<16x64xf32> -> vector<16x64xf32>
    %c0_11 = arith.constant 0 : index
    %c0_12 = arith.constant 0 : index
    %14 = vector.load %arg7[%c0_11, %c0_12] : memref<1x64xf32, #tpu.memory_space<vmem>>, vector<1x64xf32>
    %15 = vector.broadcast %14 : vector<1x64xf32> to vector<16x64xf32>
    %16 = arith.addf %13, %15 : vector<16x64xf32>
    %cst_13 = arith.constant 0.000000e+00 : f32
    %17 = vector.broadcast %cst_13 : f32 to vector<16x64xf32>
    %18 = arith.maximumf %16, %17 : vector<16x64xf32>
    %19 = arith.truncf %18 : vector<16x64xf32> to vector<16x64xbf16>
    %c0_14 = arith.constant 0 : index
    %c0_15 = arith.constant 0 : index
    %20 = vector.load %arg8[%c0_14, %c0_15] : memref<64x64xbf16, #tpu.memory_space<vmem>>, vector<64x64xbf16>
    %cst_16 = arith.constant dense<0.000000e+00> : vector<16x64xf32>
    %21 = tpu.matmul %19, %20, %cst_16 {dimension_numbers = #tpu.dot_dimension_numbers<[1], [0], [0], [1], [0, 0, 1, 1], [], []>} : vector<16x64xbf16>, vector<64x64xbf16>, vector<16x64xf32> -> vector<16x64xf32>
    %c0_17 = arith.constant 0 : index
    %c0_18 = arith.constant 0 : index
    %22 = vector.load %arg9[%c0_17, %c0_18] : memref<1x64xf32, #tpu.memory_space<vmem>>, vector<1x64xf32>
    %23 = vector.broadcast %22 : vector<1x64xf32> to vector<16x64xf32>
    %24 = arith.addf %21, %23 : vector<16x64xf32>
    %25 = arith.truncf %24 : vector<16x64xf32> to vector<16x64xbf16>
    %c0_19 = arith.constant 0 : index
    %c0_20 = arith.constant 0 : index
    %26 = vector.load %arg10[%c0_19, %c0_20] : memref<64x64xbf16, #tpu.memory_space<vmem>>, vector<64x64xbf16>
    %cst_21 = arith.constant dense<0.000000e+00> : vector<16x64xf32>
    %27 = tpu.matmul %25, %26, %cst_21 {dimension_numbers = #tpu.dot_dimension_numbers<[1], [0], [0], [1], [0, 0, 1, 1], [], []>} : vector<16x64xbf16>, vector<64x64xbf16>, vector<16x64xf32> -> vector<16x64xf32>
    %c0_22 = arith.constant 0 : index
    %c0_23 = arith.constant 0 : index
    %28 = vector.load %arg11[%c0_22, %c0_23] : memref<1x64xf32, #tpu.memory_space<vmem>>, vector<1x64xf32>
    %29 = vector.broadcast %28 : vector<1x64xf32> to vector<16x64xf32>
    %30 = arith.addf %27, %29 : vector<16x64xf32>
    %cst_24 = arith.constant 0.000000e+00 : f32
    %31 = vector.broadcast %cst_24 : f32 to vector<16x64xf32>
    %32 = arith.maximumf %30, %31 : vector<16x64xf32>
    %33 = arith.truncf %32 : vector<16x64xf32> to vector<16x64xbf16>
    %c0_25 = arith.constant 0 : index
    %c0_26 = arith.constant 0 : index
    %34 = vector.load %arg12[%c0_25, %c0_26] : memref<64x256xbf16, #tpu.memory_space<vmem>>, vector<64x256xbf16>
    %cst_27 = arith.constant dense<0.000000e+00> : vector<16x256xf32>
    %35 = tpu.matmul %33, %34, %cst_27 {dimension_numbers = #tpu.dot_dimension_numbers<[1], [0], [0], [1], [0, 0, 1, 1], [], []>} : vector<16x64xbf16>, vector<64x256xbf16>, vector<16x256xf32> -> vector<16x256xf32>
    %c0_28 = arith.constant 0 : index
    %c0_29 = arith.constant 0 : index
    %36 = vector.load %arg13[%c0_28, %c0_29] : memref<1x256xf32, #tpu.memory_space<vmem>>, vector<1x256xf32>
    %37 = vector.broadcast %36 : vector<1x256xf32> to vector<16x256xf32>
    %38 = arith.addf %35, %37 : vector<16x256xf32>
    %cst_30 = arith.constant 0.000000e+00 : f32
    %39 = vector.broadcast %cst_30 : f32 to vector<16x256xf32>
    %40 = arith.maximumf %38, %39 : vector<16x256xf32>
    %41 = arith.truncf %40 : vector<16x256xf32> to vector<16x256xbf16>
    %c0_31 = arith.constant 0 : index
    %c0_32 = arith.constant 0 : index
    %42 = vector.load %arg14[%c0_31, %c0_32] : memref<256x256xbf16, #tpu.memory_space<vmem>>, vector<256x256xbf16>
    %cst_33 = arith.constant dense<0.000000e+00> : vector<16x256xf32>
    %43 = tpu.matmul %41, %42, %cst_33 {dimension_numbers = #tpu.dot_dimension_numbers<[1], [0], [0], [1], [0, 0, 1, 1], [], []>} : vector<16x256xbf16>, vector<256x256xbf16>, vector<16x256xf32> -> vector<16x256xf32>
    %c0_34 = arith.constant 0 : index
    %c0_35 = arith.constant 0 : index
    %44 = vector.load %arg15[%c0_34, %c0_35] : memref<1x256xf32, #tpu.memory_space<vmem>>, vector<1x256xf32>
    %45 = vector.broadcast %44 : vector<1x256xf32> to vector<16x256xf32>
    %46 = arith.addf %43, %45 : vector<16x256xf32>
    %47 = arith.negf %46 : vector<16x256xf32>
    %48 = math.exp %47 : vector<16x256xf32>
    %cst_36 = arith.constant 1.000000e+00 : f32
    %49 = vector.broadcast %cst_36 : f32 to vector<16x256xf32>
    %50 = arith.addf %49, %48 : vector<16x256xf32>
    %51 = arith.divf %49, %50 : vector<16x256xf32>
    %c0_37 = arith.constant 0 : index
    %c0_38 = arith.constant 0 : index
    %52 = vector.load %arg32[%c0_37, %c0_38] : memref<16x256xf32, #tpu.memory_space<vmem>>, vector<16x256xf32>
    tpu.vector_store %arg32[%c0_37, %c0_38], %51 {strides = array<i32>} : memref<16x256xf32, #tpu.memory_space<vmem>>, vector<16x256xf32>,
    %c0_39 = arith.constant 0 : index
    %c0_40 = arith.constant 0 : index
    %53 = vector.load %arg16[%c0_39, %c0_40] : memref<128x256xbf16, #tpu.memory_space<vmem>>, vector<128x256xbf16>
    %cst_41 = arith.constant dense<0.000000e+00> : vector<16x256xf32>
    %54 = tpu.matmul %3, %53, %cst_41 {dimension_numbers = #tpu.dot_dimension_numbers<[1], [0], [0], [1], [0, 0, 1, 1], [], []>} : vector<16x128xbf16>, vector<128x256xbf16>, vector<16x256xf32> -> vector<16x256xf32>
    %c0_42 = arith.constant 0 : index
    %c0_43 = arith.constant 0 : index
    %55 = vector.load %arg17[%c0_42, %c0_43] : memref<1x256xf32, #tpu.memory_space<vmem>>, vector<1x256xf32>
    %56 = vector.broadcast %55 : vector<1x256xf32> to vector<16x256xf32>
    %57 = arith.addf %54, %56 : vector<16x256xf32>
    %cst_44 = arith.constant 0.000000e+00 : f32
    %58 = vector.broadcast %cst_44 : f32 to vector<16x256xf32>
    %59 = arith.maximumf %57, %58 : vector<16x256xf32>
    %60 = arith.truncf %59 : vector<16x256xf32> to vector<16x256xbf16>
    %c0_45 = arith.constant 0 : index
    %c0_46 = arith.constant 0 : index
    %61 = vector.load %arg18[%c0_45, %c0_46] : memref<256x64xbf16, #tpu.memory_space<vmem>>, vector<256x64xbf16>
    %cst_47 = arith.constant dense<0.000000e+00> : vector<16x64xf32>
    %62 = tpu.matmul %60, %61, %cst_47 {dimension_numbers = #tpu.dot_dimension_numbers<[1], [0], [0], [1], [0, 0, 1, 1], [], []>} : vector<16x256xbf16>, vector<256x64xbf16>, vector<16x64xf32> -> vector<16x64xf32>
    %c0_48 = arith.constant 0 : index
    %c0_49 = arith.constant 0 : index
    %63 = vector.load %arg19[%c0_48, %c0_49] : memref<1x64xf32, #tpu.memory_space<vmem>>, vector<1x64xf32>
    %64 = vector.broadcast %63 : vector<1x64xf32> to vector<16x64xf32>
    %65 = arith.addf %62, %64 : vector<16x64xf32>
    %cst_50 = arith.constant 0.000000e+00 : f32
    %66 = vector.broadcast %cst_50 : f32 to vector<16x64xf32>
    %67 = arith.maximumf %65, %66 : vector<16x64xf32>
    %68 = arith.truncf %67 : vector<16x64xf32> to vector<16x64xbf16>
    %c0_51 = arith.constant 0 : index
    %c0_52 = arith.constant 0 : index
    %69 = vector.load %arg20[%c0_51, %c0_52] : memref<64x64xbf16, #tpu.memory_space<vmem>>, vector<64x64xbf16>
    %cst_53 = arith.constant dense<0.000000e+00> : vector<16x64xf32>
    %70 = tpu.matmul %68, %69, %cst_53 {dimension_numbers = #tpu.dot_dimension_numbers<[1], [0], [0], [1], [0, 0, 1, 1], [], []>} : vector<16x64xbf16>, vector<64x64xbf16>, vector<16x64xf32> -> vector<16x64xf32>
    %c0_54 = arith.constant 0 : index
    %c0_55 = arith.constant 0 : index
    %71 = vector.load %arg21[%c0_54, %c0_55] : memref<1x64xf32, #tpu.memory_space<vmem>>, vector<1x64xf32>
    %72 = vector.broadcast %71 : vector<1x64xf32> to vector<16x64xf32>
    %73 = arith.addf %70, %72 : vector<16x64xf32>
    %74 = arith.truncf %73 : vector<16x64xf32> to vector<16x64xbf16>
    %c0_56 = arith.constant 0 : index
    %c0_57 = arith.constant 0 : index
    %75 = vector.load %arg22[%c0_56, %c0_57] : memref<64x64xbf16, #tpu.memory_space<vmem>>, vector<64x64xbf16>
    %cst_58 = arith.constant dense<0.000000e+00> : vector<16x64xf32>
    %76 = tpu.matmul %74, %75, %cst_58 {dimension_numbers = #tpu.dot_dimension_numbers<[1], [0], [0], [1], [0, 0, 1, 1], [], []>} : vector<16x64xbf16>, vector<64x64xbf16>, vector<16x64xf32> -> vector<16x64xf32>
    %c0_59 = arith.constant 0 : index
    %c0_60 = arith.constant 0 : index
    %77 = vector.load %arg23[%c0_59, %c0_60] : memref<1x64xf32, #tpu.memory_space<vmem>>, vector<1x64xf32>
    %78 = vector.broadcast %77 : vector<1x64xf32> to vector<16x64xf32>
    %79 = arith.addf %76, %78 : vector<16x64xf32>
    %cst_61 = arith.constant 0.000000e+00 : f32
    %80 = vector.broadcast %cst_61 : f32 to vector<16x64xf32>
    %81 = arith.maximumf %79, %80 : vector<16x64xf32>
    %82 = arith.truncf %81 : vector<16x64xf32> to vector<16x64xbf16>
    %c0_62 = arith.constant 0 : index
    %c0_63 = arith.constant 0 : index
    %83 = vector.load %arg24[%c0_62, %c0_63] : memref<64x256xbf16, #tpu.memory_space<vmem>>, vector<64x256xbf16>
    %cst_64 = arith.constant dense<0.000000e+00> : vector<16x256xf32>
    %84 = tpu.matmul %82, %83, %cst_64 {dimension_numbers = #tpu.dot_dimension_numbers<[1], [0], [0], [1], [0, 0, 1, 1], [], []>} : vector<16x64xbf16>, vector<64x256xbf16>, vector<16x256xf32> -> vector<16x256xf32>
    %c0_65 = arith.constant 0 : index
    %c0_66 = arith.constant 0 : index
    %85 = vector.load %arg25[%c0_65, %c0_66] : memref<1x256xf32, #tpu.memory_space<vmem>>, vector<1x256xf32>
    %86 = vector.broadcast %85 : vector<1x256xf32> to vector<16x256xf32>
    %87 = arith.addf %84, %86 : vector<16x256xf32>
    %cst_67 = arith.constant 0.000000e+00 : f32
    %88 = vector.broadcast %cst_67 : f32 to vector<16x256xf32>
    %89 = arith.maximumf %87, %88 : vector<16x256xf32>
    %90 = arith.truncf %89 : vector<16x256xf32> to vector<16x256xbf16>
    %c0_68 = arith.constant 0 : index
    %c0_69 = arith.constant 0 : index
    %91 = vector.load %arg26[%c0_68, %c0_69] : memref<256x128xbf16, #tpu.memory_space<vmem>>, vector<256x128xbf16>
    %cst_70 = arith.constant dense<0.000000e+00> : vector<16x128xf32>
    %92 = tpu.matmul %90, %91, %cst_70 {dimension_numbers = #tpu.dot_dimension_numbers<[1], [0], [0], [1], [0, 0, 1, 1], [], []>} : vector<16x256xbf16>, vector<256x128xbf16>, vector<16x128xf32> -> vector<16x128xf32>
    %c0_71 = arith.constant 0 : index
    %c0_72 = arith.constant 0 : index
    %93 = vector.load %arg27[%c0_71, %c0_72] : memref<1x128xf32, #tpu.memory_space<vmem>>, vector<1x128xf32>
    %94 = vector.broadcast %93 : vector<1x128xf32> to vector<16x128xf32>
    %95 = arith.addf %92, %94 : vector<16x128xf32>
    %96 = arith.negf %95 : vector<16x128xf32>
    %97 = math.exp %96 : vector<16x128xf32>
    %cst_73 = arith.constant 1.000000e+00 : f32
    %98 = vector.broadcast %cst_73 : f32 to vector<16x128xf32>
    %99 = arith.addf %98, %97 : vector<16x128xf32>
    %100 = arith.divf %98, %99 : vector<16x128xf32>
    %c0_74 = arith.constant 0 : index
    %c0_75 = arith.constant 0 : index
    %101 = vector.load %arg33[%c0_74, %c0_75] : memref<16x128xf32, #tpu.memory_space<vmem>>, vector<16x128xf32>
    tpu.vector_store %arg33[%c0_74, %c0_75], %100 {strides = array<i32>} : memref<16x128xf32, #tpu.memory_space<vmem>>, vector<16x128xf32>,
    %102 = tpu.concatenate %25, %74 in 1 : vector<16x64xbf16>, vector<16x64xbf16> -> vector<16x128xbf16>
    %c0_76 = arith.constant 0 : index
    %c0_77 = arith.constant 0 : index
    %103 = vector.load %arg34[%c0_76, %c0_77] : memref<16x128xbf16, #tpu.memory_space<vmem>>, vector<16x128xbf16>
    tpu.vector_store %arg34[%c0_76, %c0_77], %102 {strides = array<i32>} : memref<16x128xbf16, #tpu.memory_space<vmem>>, vector<16x128xbf16>,
    %c0_78 = arith.constant 0 : index
    %c0_79 = arith.constant 0 : index
    %104 = vector.load %arg28[%c0_78, %c0_79] : memref<64x64xbf16, #tpu.memory_space<vmem>>, vector<64x64xbf16>
    %cst_80 = arith.constant dense<0.000000e+00> : vector<16x64xf32>
    %105 = tpu.matmul %25, %104, %cst_80 {dimension_numbers = #tpu.dot_dimension_numbers<[1], [0], [0], [1], [0, 0, 1, 1], [], []>} : vector<16x64xbf16>, vector<64x64xbf16>, vector<16x64xf32> -> vector<16x64xf32>
    %c0_81 = arith.constant 0 : index
    %c0_82 = arith.constant 0 : index
    %106 = vector.load %arg29[%c0_81, %c0_82] : memref<1x64xf32, #tpu.memory_space<vmem>>, vector<1x64xf32>
    %107 = vector.broadcast %106 : vector<1x64xf32> to vector<16x64xf32>
    %108 = arith.addf %105, %107 : vector<16x64xf32>
    %c0_83 = arith.constant 0 : index
    %c0_84 = arith.constant 0 : index
    %109 = vector.load %arg30[%c0_83, %c0_84] : memref<64x64xbf16, #tpu.memory_space<vmem>>, vector<64x64xbf16>
    %cst_85 = arith.constant dense<0.000000e+00> : vector<16x64xf32>
    %110 = tpu.matmul %74, %109, %cst_85 {dimension_numbers = #tpu.dot_dimension_numbers<[1], [0], [0], [1], [0, 0, 1, 1], [], []>} : vector<16x64xbf16>, vector<64x64xbf16>, vector<16x64xf32> -> vector<16x64xf32>
    %c0_86 = arith.constant 0 : index
    %c0_87 = arith.constant 0 : index
    %111 = vector.load %arg31[%c0_86, %c0_87] : memref<1x64xf32, #tpu.memory_space<vmem>>, vector<1x64xf32>
    %112 = vector.broadcast %111 : vector<1x64xf32> to vector<16x64xf32>
    %113 = arith.addf %110, %112 : vector<16x64xf32>
    %114 = arith.mulf %108, %113 : vector<16x64xf32>
    %115 = arith.truncf %114 : vector<16x64xf32> to vector<16x64xbf16>
    %c0_88 = arith.constant 0 : index
    %c0_89 = arith.constant 0 : index
    %116 = vector.load %arg3[%c0_88, %c0_89] : memref<64x16xbf16, #tpu.memory_space<vmem>>, vector<64x16xbf16>
    %cst_90 = arith.constant dense<0.000000e+00> : vector<16x16xf32>
    %117 = tpu.matmul %115, %116, %cst_90 {dimension_numbers = #tpu.dot_dimension_numbers<[1], [0], [0], [1], [0, 0, 1, 1], [], []>} : vector<16x64xbf16>, vector<64x16xbf16>, vector<16x16xf32> -> vector<16x16xf32>
    %cst_91 = arith.constant 0.000000e+00 : f32
    %118 = vector.broadcast %cst_91 : f32 to vector<16x16xf32>
    %119 = arith.cmpf olt, %117, %118 : vector<16x16xf32>
    %cst_92 = arith.constant -1.000000e+00 : f32
    %cst_93 = arith.constant 1.000000e+00 : f32
    %120 = vector.broadcast %cst_92 : f32 to vector<16x16xf32>
    %121 = vector.broadcast %cst_93 : f32 to vector<16x16xf32>
    %122 = arith.select %119, %120, %121 : vector<16x16xi1>, vector<16x16xf32>
    %123 = math.absf %117 : vector<16x16xf32>
    %124 = math.sqrt %123 : vector<16x16xf32>
    %125 = arith.mulf %122, %124 : vector<16x16xf32>
    %126 = arith.addf %24, %73 : vector<16x64xf32>
    %127 = arith.mulf %126, %126 : vector<16x64xf32>
    %cst_94 = arith.constant dense<0.000000e+00> : vector<16xf32>
    %128 = vector.multi_reduction <add>, %127, %cst_94 [1] : vector<16x64xf32> to vector<16xf32>
    %129 = vector.shape_cast %128 : vector<16xf32> to vector<16x1xf32>
    %cst_95 = arith.constant 1.000000e-24 : f32
    %130 = vector.broadcast %cst_95 : f32 to vector<16x1xf32>
    %131 = arith.maximumf %129, %130 : vector<16x1xf32>
    %132 = math.rsqrt %131 : vector<16x1xf32>
    %133 = arith.mulf %24, %73 : vector<16x64xf32>
    %cst_96 = arith.constant dense<0.000000e+00> : vector<16xf32>
    %134 = vector.multi_reduction <add>, %133, %cst_96 [1] : vector<16x64xf32> to vector<16xf32>
    %135 = vector.shape_cast %134 : vector<16xf32> to vector<16x1xf32>
    %cst_97 = arith.constant 0.000000e+00 : f32
    %136 = vector.broadcast %cst_97 : f32 to vector<16x47xf32>
    %137 = vector.broadcast %132 : vector<16x1xf32> to vector<16x64xf32>
    %138 = arith.mulf %126, %137 : vector<16x64xf32>
    %139 = tpu.concatenate %138, %125, %135, %136 in 1 : vector<16x64xf32>, vector<16x16xf32>, vector<16x1xf32>, vector<16x47xf32> -> vector<16x128xf32>
    %c0_98 = arith.constant 0 : index
    %c0_99 = arith.constant 0 : index
    %140 = vector.load %arg35[%c0_98, %c0_99] : memref<16x128xf32, #tpu.memory_space<vmem>>, vector<16x128xf32>
    tpu.vector_store %arg35[%c0_98, %c0_99], %139 {strides = array<i32>} : memref<16x128xf32, #tpu.memory_space<vmem>>, vector<16x128xf32>,
    return
  }
  func.func @transform_0(%arg0: i32) -> (i32, i32) {
    %c0_i32 = arith.constant 0 : i32
    %c0_i32_0 = arith.constant 0 : i32
    return %arg0, %c0_i32 : i32, i32
  }
  func.func @transform_1(%arg0: i32) -> (i32, i32) {
    %c0_i32 = arith.constant 0 : i32
    %c0_i32_0 = arith.constant 0 : i32
    return %arg0, %c0_i32 : i32, i32
  }
  func.func @transform_2(%arg0: i32) -> (i32, i32) {
    %c0_i32 = arith.constant 0 : i32
    %c0_i32_0 = arith.constant 0 : i32
    %c0_i32_1 = arith.constant 0 : i32
    return %c0_i32, %c0_i32_0 : i32, i32
  }
  func.func @transform_3(%arg0: i32) -> (i32, i32) {
    %c0_i32 = arith.constant 0 : i32
    %c0_i32_0 = arith.constant 0 : i32
    %c0_i32_1 = arith.constant 0 : i32
    return %c0_i32, %c0_i32_0 : i32, i32
  }
  func.func @transform_4(%arg0: i32) -> (i32, i32) {
    %c0_i32 = arith.constant 0 : i32
    %c0_i32_0 = arith.constant 0 : i32
    %c0_i32_1 = arith.constant 0 : i32
    return %c0_i32, %c0_i32_0 : i32, i32
  }
  func.func @transform_5(%arg0: i32) -> (i32, i32) {
    %c0_i32 = arith.constant 0 : i32
    %c0_i32_0 = arith.constant 0 : i32
    %c0_i32_1 = arith.constant 0 : i32
    return %c0_i32, %c0_i32_0 : i32, i32
  }
  func.func @transform_6(%arg0: i32) -> (i32, i32) {
    %c0_i32 = arith.constant 0 : i32
    %c0_i32_0 = arith.constant 0 : i32
    %c0_i32_1 = arith.constant 0 : i32
    return %c0_i32, %c0_i32_0 : i32, i32
  }
  func.func @transform_7(%arg0: i32) -> (i32, i32) {
    %c0_i32 = arith.constant 0 : i32
    %c0_i32_0 = arith.constant 0 : i32
    %c0_i32_1 = arith.constant 0 : i32
    return %c0_i32, %c0_i32_0 : i32, i32
  }
  func.func @transform_8(%arg0: i32) -> (i32, i32) {
    %c0_i32 = arith.constant 0 : i32
    %c0_i32_0 = arith.constant 0 : i32
    %c0_i32_1 = arith.constant 0 : i32
    return %c0_i32, %c0_i32_0 : i32, i32
  }
  func.func @transform_9(%arg0: i32) -> (i32, i32) {
    %c0_i32 = arith.constant 0 : i32
    %c0_i32_0 = arith.constant 0 : i32
    %c0_i32_1 = arith.constant 0 : i32
    return %c0_i32, %c0_i32_0 : i32, i32
  }
  func.func @transform_10(%arg0: i32) -> (i32, i32) {
    %c0_i32 = arith.constant 0 : i32
    %c0_i32_0 = arith.constant 0 : i32
    %c0_i32_1 = arith.constant 0 : i32
    return %c0_i32, %c0_i32_0 : i32, i32
  }
  func.func @transform_11(%arg0: i32) -> (i32, i32) {
    %c0_i32 = arith.constant 0 : i32
    %c0_i32_0 = arith.constant 0 : i32
    %c0_i32_1 = arith.constant 0 : i32
    return %c0_i32, %c0_i32_0 : i32, i32
  }
  func.func @transform_12(%arg0: i32) -> (i32, i32) {
    %c0_i32 = arith.constant 0 : i32
    %c0_i32_0 = arith.constant 0 : i32
    %c0_i32_1 = arith.constant 0 : i32
    return %c0_i32, %c0_i32_0 : i32, i32
  }
  func.func @transform_13(%arg0: i32) -> (i32, i32) {
    %c0_i32 = arith.constant 0 : i32
    %c0_i32_0 = arith.constant 0 : i32
    %c0_i32_1 = arith.constant 0 : i32
    return %c0_i32, %c0_i32_0 : i32, i32
  }
  func.func @transform_14(%arg0: i32) -> (i32, i32) {
    %c0_i32 = arith.constant 0 : i32
    %c0_i32_0 = arith.constant 0 : i32
    %c0_i32_1 = arith.constant 0 : i32
    return %c0_i32, %c0_i32_0 : i32, i32
  }
  func.func @transform_15(%arg0: i32) -> (i32, i32) {
    %c0_i32 = arith.constant 0 : i32
    %c0_i32_0 = arith.constant 0 : i32
    %c0_i32_1 = arith.constant 0 : i32
    return %c0_i32, %c0_i32_0 : i32, i32
  }
  func.func @transform_16(%arg0: i32) -> (i32, i32) {
    %c0_i32 = arith.constant 0 : i32
    %c0_i32_0 = arith.constant 0 : i32
    %c0_i32_1 = arith.constant 0 : i32
    return %c0_i32, %c0_i32_0 : i32, i32
  }
  func.func @transform_17(%arg0: i32) -> (i32, i32) {
    %c0_i32 = arith.constant 0 : i32
    %c0_i32_0 = arith.constant 0 : i32
    %c0_i32_1 = arith.constant 0 : i32
    return %c0_i32, %c0_i32_0 : i32, i32
  }
  func.func @transform_18(%arg0: i32) -> (i32, i32) {
    %c0_i32 = arith.constant 0 : i32
    %c0_i32_0 = arith.constant 0 : i32
    %c0_i32_1 = arith.constant 0 : i32
    return %c0_i32, %c0_i32_0 : i32, i32
  }
  func.func @transform_19(%arg0: i32) -> (i32, i32) {
    %c0_i32 = arith.constant 0 : i32
    %c0_i32_0 = arith.constant 0 : i32
    %c0_i32_1 = arith.constant 0 : i32
    return %c0_i32, %c0_i32_0 : i32, i32
  }
  func.func @transform_20(%arg0: i32) -> (i32, i32) {
    %c0_i32 = arith.constant 0 : i32
    %c0_i32_0 = arith.constant 0 : i32
    %c0_i32_1 = arith.constant 0 : i32
    return %c0_i32, %c0_i32_0 : i32, i32
  }
  func.func @transform_21(%arg0: i32) -> (i32, i32) {
    %c0_i32 = arith.constant 0 : i32
    %c0_i32_0 = arith.constant 0 : i32
    %c0_i32_1 = arith.constant 0 : i32
    return %c0_i32, %c0_i32_0 : i32, i32
  }
  func.func @transform_22(%arg0: i32) -> (i32, i32) {
    %c0_i32 = arith.constant 0 : i32
    %c0_i32_0 = arith.constant 0 : i32
    %c0_i32_1 = arith.constant 0 : i32
    return %c0_i32, %c0_i32_0 : i32, i32
  }
  func.func @transform_23(%arg0: i32) -> (i32, i32) {
    %c0_i32 = arith.constant 0 : i32
    %c0_i32_0 = arith.constant 0 : i32
    %c0_i32_1 = arith.constant 0 : i32
    return %c0_i32, %c0_i32_0 : i32, i32
  }
  func.func @transform_24(%arg0: i32) -> (i32, i32) {
    %c0_i32 = arith.constant 0 : i32
    %c0_i32_0 = arith.constant 0 : i32
    %c0_i32_1 = arith.constant 0 : i32
    return %c0_i32, %c0_i32_0 : i32, i32
  }
  func.func @transform_25(%arg0: i32) -> (i32, i32) {
    %c0_i32 = arith.constant 0 : i32
    %c0_i32_0 = arith.constant 0 : i32
    %c0_i32_1 = arith.constant 0 : i32
    return %c0_i32, %c0_i32_0 : i32, i32
  }
  func.func @transform_26(%arg0: i32) -> (i32, i32) {
    %c0_i32 = arith.constant 0 : i32
    %c0_i32_0 = arith.constant 0 : i32
    %c0_i32_1 = arith.constant 0 : i32
    return %c0_i32, %c0_i32_0 : i32, i32
  }
  func.func @transform_27(%arg0: i32) -> (i32, i32) {
    %c0_i32 = arith.constant 0 : i32
    %c0_i32_0 = arith.constant 0 : i32
    %c0_i32_1 = arith.constant 0 : i32
    return %c0_i32, %c0_i32_0 : i32, i32
  }
  func.func @transform_28(%arg0: i32) -> (i32, i32) {
    %c0_i32 = arith.constant 0 : i32
    %c0_i32_0 = arith.constant 0 : i32
    %c0_i32_1 = arith.constant 0 : i32
    return %c0_i32, %c0_i32_0 : i32, i32
  }
  func.func @transform_29(%arg0: i32) -> (i32, i32) {
    %c0_i32 = arith.constant 0 : i32
    %c0_i32_0 = arith.constant 0 : i32
    %c0_i32_1 = arith.constant 0 : i32
    return %c0_i32, %c0_i32_0 : i32, i32
  }
  func.func @transform_30(%arg0: i32) -> (i32, i32) {
    %c0_i32 = arith.constant 0 : i32
    %c0_i32_0 = arith.constant 0 : i32
    %c0_i32_1 = arith.constant 0 : i32
    return %c0_i32, %c0_i32_0 : i32, i32
  }
  func.func @transform_31(%arg0: i32) -> (i32, i32) {
    %c0_i32 = arith.constant 0 : i32
    %c0_i32_0 = arith.constant 0 : i32
    return %arg0, %c0_i32 : i32, i32
  }
  func.func @transform_32(%arg0: i32) -> (i32, i32) {
    %c0_i32 = arith.constant 0 : i32
    %c0_i32_0 = arith.constant 0 : i32
    return %arg0, %c0_i32 : i32, i32
  }
  func.func @transform_33(%arg0: i32) -> (i32, i32) {
    %c0_i32 = arith.constant 0 : i32
    %c0_i32_0 = arith.constant 0 : i32
    return %arg0, %c0_i32 : i32, i32
  }
  func.func @transform_34(%arg0: i32) -> (i32, i32) {
    %c0_i32 = arith.constant 0 : i32
    %c0_i32_0 = arith.constant 0 : i32
    return %arg0, %c0_i32 : i32, i32
  }
}

module attributes {stable_mosaic.version = 11 : i64} {
  func.func @encdec_kernel(%arg0: i32, %arg1: memref<16x256xf32, #tpu.memory_space<vmem>>, %arg2: memref<16x128xf32, #tpu.memory_space<vmem>>, %arg3: memref<64x16xbf16, #tpu.memory_space<vmem>>, %arg4: memref<256x256xbf16, #tpu.memory_space<vmem>>, %arg5: memref<1x256xf32, #tpu.memory_space<vmem>>, %arg6: memref<256x64xbf16, #tpu.memory_space<vmem>>, %arg7: memref<1x64xf32, #tpu.memory_space<vmem>>, %arg8: memref<64x64xbf16, #tpu.memory_space<vmem>>, %arg9: memref<1x64xf32, #tpu.memory_space<vmem>>, %arg10: memref<64x64xbf16, #tpu.memory_space<vmem>>, %arg11: memref<1x64xf32, #tpu.memory_space<vmem>>, %arg12: memref<64x256xbf16, #tpu.memory_space<vmem>>, %arg13: memref<1x256xf32, #tpu.memory_space<vmem>>, %arg14: memref<256x256xbf16, #tpu.memory_space<vmem>>, %arg15: memref<1x256xf32, #tpu.memory_space<vmem>>, %arg16: memref<128x256xbf16, #tpu.memory_space<vmem>>, %arg17: memref<1x256xf32, #tpu.memory_space<vmem>>, %arg18: memref<256x64xbf16, #tpu.memory_space<vmem>>, %arg19: memref<1x64xf32, #tpu.memory_space<vmem>>, %arg20: memref<64x64xbf16, #tpu.memory_space<vmem>>, %arg21: memref<1x64xf32, #tpu.memory_space<vmem>>, %arg22: memref<64x64xbf16, #tpu.memory_space<vmem>>, %arg23: memref<1x64xf32, #tpu.memory_space<vmem>>, %arg24: memref<64x256xbf16, #tpu.memory_space<vmem>>, %arg25: memref<1x256xf32, #tpu.memory_space<vmem>>, %arg26: memref<256x128xbf16, #tpu.memory_space<vmem>>, %arg27: memref<1x128xf32, #tpu.memory_space<vmem>>, %arg28: memref<64x64xbf16, #tpu.memory_space<vmem>>, %arg29: memref<1x64xf32, #tpu.memory_space<vmem>>, %arg30: memref<64x64xbf16, #tpu.memory_space<vmem>>, %arg31: memref<1x64xf32, #tpu.memory_space<vmem>>, %arg32: memref<16x256xf32, #tpu.memory_space<vmem>>, %arg33: memref<16x128xf32, #tpu.memory_space<vmem>>, %arg34: memref<16x128xbf16, #tpu.memory_space<vmem>>, %arg35: memref<16x128xf32, #tpu.memory_space<vmem>>) attributes {dimension_semantics = [#tpu.dimension_semantics<parallel>], iteration_bounds = array<i64: 2>, scalar_prefetch = 0 : i64, scratch_operands = 0 : i64, tpu.core_type = #tpu.core_type<tc>, window_params = [{transform_indices = @transform_0, window_bounds = array<i64: 16, 256>}, {transform_indices = @transform_1, window_bounds = array<i64: 16, 128>}, {pipeline_mode = #tpu.pipeline_mode<synchronous>, transform_indices = @transform_2, window_bounds = array<i64: 64, 16>}, {pipeline_mode = #tpu.pipeline_mode<synchronous>, transform_indices = @transform_3, window_bounds = array<i64: 256, 256>}, {pipeline_mode = #tpu.pipeline_mode<synchronous>, transform_indices = @transform_4, window_bounds = array<i64: 1, 256>}, {pipeline_mode = #tpu.pipeline_mode<synchronous>, transform_indices = @transform_5, window_bounds = array<i64: 256, 64>}, {pipeline_mode = #tpu.pipeline_mode<synchronous>, transform_indices = @transform_6, window_bounds = array<i64: 1, 64>}, {pipeline_mode = #tpu.pipeline_mode<synchronous>, transform_indices = @transform_7, window_bounds = array<i64: 64, 64>}, {pipeline_mode = #tpu.pipeline_mode<synchronous>, transform_indices = @transform_8, window_bounds = array<i64: 1, 64>}, {pipeline_mode = #tpu.pipeline_mode<synchronous>, transform_indices = @transform_9, window_bounds = array<i64: 64, 64>}, {pipeline_mode = #tpu.pipeline_mode<synchronous>, transform_indices = @transform_10, window_bounds = array<i64: 1, 64>}, {pipeline_mode = #tpu.pipeline_mode<synchronous>, transform_indices = @transform_11, window_bounds = array<i64: 64, 256>}, {pipeline_mode = #tpu.pipeline_mode<synchronous>, transform_indices = @transform_12, window_bounds = array<i64: 1, 256>}, {pipeline_mode = #tpu.pipeline_mode<synchronous>, transform_indices = @transform_13, window_bounds = array<i64: 256, 256>}, {pipeline_mode = #tpu.pipeline_mode<synchronous>, transform_indices = @transform_14, window_bounds = array<i64: 1, 256>}, {pipeline_mode = #tpu.pipeline_mode<synchronous>, transform_indices = @transform_15, window_bounds = array<i64: 128, 256>}, {pipeline_mode = #tpu.pipeline_mode<synchronous>, transform_indices = @transform_16, window_bounds = array<i64: 1, 256>}, {pipeline_mode = #tpu.pipeline_mode<synchronous>, transform_indices = @transform_17, window_bounds = array<i64: 256, 64>}, {pipeline_mode = #tpu.pipeline_mode<synchronous>, transform_indices = @transform_18, window_bounds = array<i64: 1, 64>}, {pipeline_mode = #tpu.pipeline_mode<synchronous>, transform_indices = @transform_19, window_bounds = array<i64: 64, 64>}, {pipeline_mode = #tpu.pipeline_mode<synchronous>, transform_indices = @transform_20, window_bounds = array<i64: 1, 64>}, {pipeline_mode = #tpu.pipeline_mode<synchronous>, transform_indices = @transform_21, window_bounds = array<i64: 64, 64>}, {pipeline_mode = #tpu.pipeline_mode<synchronous>, transform_indices = @transform_22, window_bounds = array<i64: 1, 64>}, {pipeline_mode = #tpu.pipeline_mode<synchronous>, transform_indices = @transform_23, window_bounds = array<i64: 64, 256>}, {pipeline_mode = #tpu.pipeline_mode<synchronous>, transform_indices = @transform_24, window_bounds = array<i64: 1, 256>}, {pipeline_mode = #tpu.pipeline_mode<synchronous>, transform_indices = @transform_25, window_bounds = array<i64: 256, 128>}, {pipeline_mode = #tpu.pipeline_mode<synchronous>, transform_indices = @transform_26, window_bounds = array<i64: 1, 128>}, {pipeline_mode = #tpu.pipeline_mode<synchronous>, transform_indices = @transform_27, window_bounds = array<i64: 64, 64>}, {pipeline_mode = #tpu.pipeline_mode<synchronous>, transform_indices = @transform_28, window_bounds = array<i64: 1, 64>}, {pipeline_mode = #tpu.pipeline_mode<synchronous>, transform_indices = @transform_29, window_bounds = array<i64: 64, 64>}, {pipeline_mode = #tpu.pipeline_mode<synchronous>, transform_indices = @transform_30, window_bounds = array<i64: 1, 64>}, {transform_indices = @transform_31, window_bounds = array<i64: 16, 256>}, {transform_indices = @transform_32, window_bounds = array<i64: 16, 128>}, {transform_indices = @transform_33, window_bounds = array<i64: 16, 128>}, {transform_indices = @transform_34, window_bounds = array<i64: 16, 128>}]} {
    %c0 = arith.constant 0 : index
    %c0_0 = arith.constant 0 : index
    %0 = vector.load %arg1[%c0, %c0_0] : memref<16x256xf32, #tpu.memory_space<vmem>>, vector<16x256xf32>
    %1 = arith.truncf %0 : vector<16x256xf32> to vector<16x256xbf16>
    %c0_1 = arith.constant 0 : index
    %c0_2 = arith.constant 0 : index
    %2 = vector.load %arg2[%c0_1, %c0_2] : memref<16x128xf32, #tpu.memory_space<vmem>>, vector<16x128xf32>
    %3 = arith.truncf %2 : vector<16x128xf32> to vector<16x128xbf16>
    %c0_3 = arith.constant 0 : index
    %c0_4 = arith.constant 0 : index
    %4 = vector.load %arg4[%c0_3, %c0_4] : memref<256x256xbf16, #tpu.memory_space<vmem>>, vector<256x256xbf16>
    %cst = arith.constant dense<0.000000e+00> : vector<16x256xf32>
    %5 = tpu.matmul %1, %4, %cst {dimension_numbers = #tpu.dot_dimension_numbers<[1], [0], [0], [1], [0, 0, 1, 1], [], []>} : vector<16x256xbf16>, vector<256x256xbf16>, vector<16x256xf32> -> vector<16x256xf32>
    %c0_5 = arith.constant 0 : index
    %c0_6 = arith.constant 0 : index
    %6 = vector.load %arg5[%c0_5, %c0_6] : memref<1x256xf32, #tpu.memory_space<vmem>>, vector<1x256xf32>
    %7 = vector.broadcast %6 : vector<1x256xf32> to vector<16x256xf32>
    %8 = arith.addf %5, %7 : vector<16x256xf32>
    %cst_7 = arith.constant 0.000000e+00 : f32
    %9 = vector.broadcast %cst_7 : f32 to vector<16x256xf32>
    %10 = arith.maximumf %8, %9 : vector<16x256xf32>
    %11 = arith.truncf %10 : vector<16x256xf32> to vector<16x256xbf16>
    %c0_8 = arith.constant 0 : index
    %c0_9 = arith.constant 0 : index
    %12 = vector.load %arg6[%c0_8, %c0_9] : memref<256x64xbf16, #tpu.memory_space<vmem>>, vector<256x64xbf16>
    %cst_10 = arith.constant dense<0.000000e+00> : vector<16x64xf32>
    %13 = tpu.matmul %11, %12, %cst_10 {dimension_numbers = #tpu.dot_dimension_numbers<[1], [0], [0], [1], [0, 0, 1, 1], [], []>} : vector<16x256xbf16>, vector<256x64xbf16>, vector<16x64xf32> -> vector<16x64xf32>
    %c0_11 = arith.constant 0 : index
    %c0_12 = arith.constant 0 : index
    %14 = vector.load %arg7[%c0_11, %c0_12] : memref<1x64xf32, #tpu.memory_space<vmem>>, vector<1x64xf32>
    %15 = vector.broadcast %14 : vector<1x64xf32> to vector<16x64xf32>
    %16 = arith.addf %13, %15 : vector<16x64xf32>
    %cst_13 = arith.constant 0.000000e+00 : f32
    %17 = vector.broadcast %cst_13 : f32 to vector<16x64xf32>
    %18 = arith.maximumf %16, %17 : vector<16x64xf32>
    %19 = arith.truncf %18 : vector<16x64xf32> to vector<16x64xbf16>
    %c0_14 = arith.constant 0 : index
    %c0_15 = arith.constant 0 : index
    %20 = vector.load %arg8[%c0_14, %c0_15] : memref<64x64xbf16, #tpu.memory_space<vmem>>, vector<64x64xbf16>
    %cst_16 = arith.constant dense<0.000000e+00> : vector<16x64xf32>
    %21 = tpu.matmul %19, %20, %cst_16 {dimension_numbers = #tpu.dot_dimension_numbers<[1], [0], [0], [1], [0, 0, 1, 1], [], []>} : vector<16x64xbf16>, vector<64x64xbf16>, vector<16x64xf32> -> vector<16x64xf32>
    %c0_17 = arith.constant 0 : index
    %c0_18 = arith.constant 0 : index
    %22 = vector.load %arg9[%c0_17, %c0_18] : memref<1x64xf32, #tpu.memory_space<vmem>>, vector<1x64xf32>
    %23 = vector.broadcast %22 : vector<1x64xf32> to vector<16x64xf32>
    %24 = arith.addf %21, %23 : vector<16x64xf32>
    %25 = arith.truncf %24 : vector<16x64xf32> to vector<16x64xbf16>
    %c0_19 = arith.constant 0 : index
    %c0_20 = arith.constant 0 : index
    %26 = vector.load %arg10[%c0_19, %c0_20] : memref<64x64xbf16, #tpu.memory_space<vmem>>, vector<64x64xbf16>
    %cst_21 = arith.constant dense<0.000000e+00> : vector<16x64xf32>
    %27 = tpu.matmul %25, %26, %cst_21 {dimension_numbers = #tpu.dot_dimension_numbers<[1], [0], [0], [1], [0, 0, 1, 1], [], []>} : vector<16x64xbf16>, vector<64x64xbf16>, vector<16x64xf32> -> vector<16x64xf32>
    %c0_22 = arith.constant 0 : index
    %c0_23 = arith.constant 0 : index
    %28 = vector.load %arg11[%c0_22, %c0_23] : memref<1x64xf32, #tpu.memory_space<vmem>>, vector<1x64xf32>
    %29 = vector.broadcast %28 : vector<1x64xf32> to vector<16x64xf32>
    %30 = arith.addf %27, %29 : vector<16x64xf32>
    %cst_24 = arith.constant 0.000000e+00 : f32
    %31 = vector.broadcast %cst_24 : f32 to vector<16x64xf32>
    %32 = arith.maximumf %30, %31 : vector<16x64xf32>
    %33 = arith.truncf %32 : vector<16x64xf32> to vector<16x64xbf16>
    %c0_25 = arith.constant 0 : index
    %c0_26 = arith.constant 0 : index
    %34 = vector.load %arg12[%c0_25, %c0_26] : memref<64x256xbf16, #tpu.memory_space<vmem>>, vector<64x256xbf16>
    %cst_27 = arith.constant dense<0.000000e+00> : vector<16x256xf32>
    %35 = tpu.matmul %33, %34, %cst_27 {dimension_numbers = #tpu.dot_dimension_numbers<[1], [0], [0], [1], [0, 0, 1, 1], [], []>} : vector<16x64xbf16>, vector<64x256xbf16>, vector<16x256xf32> -> vector<16x256xf32>
    %c0_28 = arith.constant 0 : index
    %c0_29 = arith.constant 0 : index
    %36 = vector.load %arg13[%c0_28, %c0_29] : memref<1x256xf32, #tpu.memory_space<vmem>>, vector<1x256xf32>
    %37 = vector.broadcast %36 : vector<1x256xf32> to vector<16x256xf32>
    %38 = arith.addf %35, %37 : vector<16x256xf32>
    %cst_30 = arith.constant 0.000000e+00 : f32
    %39 = vector.broadcast %cst_30 : f32 to vector<16x256xf32>
    %40 = arith.maximumf %38, %39 : vector<16x256xf32>
    %41 = arith.truncf %40 : vector<16x256xf32> to vector<16x256xbf16>
    %c0_31 = arith.constant 0 : index
    %c0_32 = arith.constant 0 : index
    %42 = vector.load %arg14[%c0_31, %c0_32] : memref<256x256xbf16, #tpu.memory_space<vmem>>, vector<256x256xbf16>
    %cst_33 = arith.constant dense<0.000000e+00> : vector<16x256xf32>
    %43 = tpu.matmul %41, %42, %cst_33 {dimension_numbers = #tpu.dot_dimension_numbers<[1], [0], [0], [1], [0, 0, 1, 1], [], []>} : vector<16x256xbf16>, vector<256x256xbf16>, vector<16x256xf32> -> vector<16x256xf32>
    %c0_34 = arith.constant 0 : index
    %c0_35 = arith.constant 0 : index
    %44 = vector.load %arg15[%c0_34, %c0_35] : memref<1x256xf32, #tpu.memory_space<vmem>>, vector<1x256xf32>
    %45 = vector.broadcast %44 : vector<1x256xf32> to vector<16x256xf32>
    %46 = arith.addf %43, %45 : vector<16x256xf32>
    %47 = arith.negf %46 : vector<16x256xf32>
    %48 = math.exp %47 : vector<16x256xf32>
    %cst_36 = arith.constant 1.000000e+00 : f32
    %49 = vector.broadcast %cst_36 : f32 to vector<16x256xf32>
    %50 = arith.addf %49, %48 : vector<16x256xf32>
    %51 = arith.divf %49, %50 : vector<16x256xf32>
    %c0_37 = arith.constant 0 : index
    %c0_38 = arith.constant 0 : index
    %52 = vector.load %arg32[%c0_37, %c0_38] : memref<16x256xf32, #tpu.memory_space<vmem>>, vector<16x256xf32>
    tpu.vector_store %arg32[%c0_37, %c0_38], %51 {strides = array<i32>} : memref<16x256xf32, #tpu.memory_space<vmem>>, vector<16x256xf32>,
    %c0_39 = arith.constant 0 : index
    %c0_40 = arith.constant 0 : index
    %53 = vector.load %arg16[%c0_39, %c0_40] : memref<128x256xbf16, #tpu.memory_space<vmem>>, vector<128x256xbf16>
    %cst_41 = arith.constant dense<0.000000e+00> : vector<16x256xf32>
    %54 = tpu.matmul %3, %53, %cst_41 {dimension_numbers = #tpu.dot_dimension_numbers<[1], [0], [0], [1], [0, 0, 1, 1], [], []>} : vector<16x128xbf16>, vector<128x256xbf16>, vector<16x256xf32> -> vector<16x256xf32>
    %c0_42 = arith.constant 0 : index
    %c0_43 = arith.constant 0 : index
    %55 = vector.load %arg17[%c0_42, %c0_43] : memref<1x256xf32, #tpu.memory_space<vmem>>, vector<1x256xf32>
    %56 = vector.broadcast %55 : vector<1x256xf32> to vector<16x256xf32>
    %57 = arith.addf %54, %56 : vector<16x256xf32>
    %cst_44 = arith.constant 0.000000e+00 : f32
    %58 = vector.broadcast %cst_44 : f32 to vector<16x256xf32>
    %59 = arith.maximumf %57, %58 : vector<16x256xf32>
    %60 = arith.truncf %59 : vector<16x256xf32> to vector<16x256xbf16>
    %c0_45 = arith.constant 0 : index
    %c0_46 = arith.constant 0 : index
    %61 = vector.load %arg18[%c0_45, %c0_46] : memref<256x64xbf16, #tpu.memory_space<vmem>>, vector<256x64xbf16>
    %cst_47 = arith.constant dense<0.000000e+00> : vector<16x64xf32>
    %62 = tpu.matmul %60, %61, %cst_47 {dimension_numbers = #tpu.dot_dimension_numbers<[1], [0], [0], [1], [0, 0, 1, 1], [], []>} : vector<16x256xbf16>, vector<256x64xbf16>, vector<16x64xf32> -> vector<16x64xf32>
    %c0_48 = arith.constant 0 : index
    %c0_49 = arith.constant 0 : index
    %63 = vector.load %arg19[%c0_48, %c0_49] : memref<1x64xf32, #tpu.memory_space<vmem>>, vector<1x64xf32>
    %64 = vector.broadcast %63 : vector<1x64xf32> to vector<16x64xf32>
    %65 = arith.addf %62, %64 : vector<16x64xf32>
    %cst_50 = arith.constant 0.000000e+00 : f32
    %66 = vector.broadcast %cst_50 : f32 to vector<16x64xf32>
    %67 = arith.maximumf %65, %66 : vector<16x64xf32>
    %68 = arith.truncf %67 : vector<16x64xf32> to vector<16x64xbf16>
    %c0_51 = arith.constant 0 : index
    %c0_52 = arith.constant 0 : index
    %69 = vector.load %arg20[%c0_51, %c0_52] : memref<64x64xbf16, #tpu.memory_space<vmem>>, vector<64x64xbf16>
    %cst_53 = arith.constant dense<0.000000e+00> : vector<16x64xf32>
    %70 = tpu.matmul %68, %69, %cst_53 {dimension_numbers = #tpu.dot_dimension_numbers<[1], [0], [0], [1], [0, 0, 1, 1], [], []>} : vector<16x64xbf16>, vector<64x64xbf16>, vector<16x64xf32> -> vector<16x64xf32>
    %c0_54 = arith.constant 0 : index
    %c0_55 = arith.constant 0 : index
    %71 = vector.load %arg21[%c0_54, %c0_55] : memref<1x64xf32, #tpu.memory_space<vmem>>, vector<1x64xf32>
    %72 = vector.broadcast %71 : vector<1x64xf32> to vector<16x64xf32>
    %73 = arith.addf %70, %72 : vector<16x64xf32>
    %74 = arith.truncf %73 : vector<16x64xf32> to vector<16x64xbf16>
    %c0_56 = arith.constant 0 : index
    %c0_57 = arith.constant 0 : index
    %75 = vector.load %arg22[%c0_56, %c0_57] : memref<64x64xbf16, #tpu.memory_space<vmem>>, vector<64x64xbf16>
    %cst_58 = arith.constant dense<0.000000e+00> : vector<16x64xf32>
    %76 = tpu.matmul %74, %75, %cst_58 {dimension_numbers = #tpu.dot_dimension_numbers<[1], [0], [0], [1], [0, 0, 1, 1], [], []>} : vector<16x64xbf16>, vector<64x64xbf16>, vector<16x64xf32> -> vector<16x64xf32>
    %c0_59 = arith.constant 0 : index
    %c0_60 = arith.constant 0 : index
    %77 = vector.load %arg23[%c0_59, %c0_60] : memref<1x64xf32, #tpu.memory_space<vmem>>, vector<1x64xf32>
    %78 = vector.broadcast %77 : vector<1x64xf32> to vector<16x64xf32>
    %79 = arith.addf %76, %78 : vector<16x64xf32>
    %cst_61 = arith.constant 0.000000e+00 : f32
    %80 = vector.broadcast %cst_61 : f32 to vector<16x64xf32>
    %81 = arith.maximumf %79, %80 : vector<16x64xf32>
    %82 = arith.truncf %81 : vector<16x64xf32> to vector<16x64xbf16>
    %c0_62 = arith.constant 0 : index
    %c0_63 = arith.constant 0 : index
    %83 = vector.load %arg24[%c0_62, %c0_63] : memref<64x256xbf16, #tpu.memory_space<vmem>>, vector<64x256xbf16>
    %cst_64 = arith.constant dense<0.000000e+00> : vector<16x256xf32>
    %84 = tpu.matmul %82, %83, %cst_64 {dimension_numbers = #tpu.dot_dimension_numbers<[1], [0], [0], [1], [0, 0, 1, 1], [], []>} : vector<16x64xbf16>, vector<64x256xbf16>, vector<16x256xf32> -> vector<16x256xf32>
    %c0_65 = arith.constant 0 : index
    %c0_66 = arith.constant 0 : index
    %85 = vector.load %arg25[%c0_65, %c0_66] : memref<1x256xf32, #tpu.memory_space<vmem>>, vector<1x256xf32>
    %86 = vector.broadcast %85 : vector<1x256xf32> to vector<16x256xf32>
    %87 = arith.addf %84, %86 : vector<16x256xf32>
    %cst_67 = arith.constant 0.000000e+00 : f32
    %88 = vector.broadcast %cst_67 : f32 to vector<16x256xf32>
    %89 = arith.maximumf %87, %88 : vector<16x256xf32>
    %90 = arith.truncf %89 : vector<16x256xf32> to vector<16x256xbf16>
    %c0_68 = arith.constant 0 : index
    %c0_69 = arith.constant 0 : index
    %91 = vector.load %arg26[%c0_68, %c0_69] : memref<256x128xbf16, #tpu.memory_space<vmem>>, vector<256x128xbf16>
    %cst_70 = arith.constant dense<0.000000e+00> : vector<16x128xf32>
    %92 = tpu.matmul %90, %91, %cst_70 {dimension_numbers = #tpu.dot_dimension_numbers<[1], [0], [0], [1], [0, 0, 1, 1], [], []>} : vector<16x256xbf16>, vector<256x128xbf16>, vector<16x128xf32> -> vector<16x128xf32>
    %c0_71 = arith.constant 0 : index
    %c0_72 = arith.constant 0 : index
    %93 = vector.load %arg27[%c0_71, %c0_72] : memref<1x128xf32, #tpu.memory_space<vmem>>, vector<1x128xf32>
    %94 = vector.broadcast %93 : vector<1x128xf32> to vector<16x128xf32>
    %95 = arith.addf %92, %94 : vector<16x128xf32>
    %96 = arith.negf %95 : vector<16x128xf32>
    %97 = math.exp %96 : vector<16x128xf32>
    %cst_73 = arith.constant 1.000000e+00 : f32
    %98 = vector.broadcast %cst_73 : f32 to vector<16x128xf32>
    %99 = arith.addf %98, %97 : vector<16x128xf32>
    %100 = arith.divf %98, %99 : vector<16x128xf32>
    %c0_74 = arith.constant 0 : index
    %c0_75 = arith.constant 0 : index
    %101 = vector.load %arg33[%c0_74, %c0_75] : memref<16x128xf32, #tpu.memory_space<vmem>>, vector<16x128xf32>
    tpu.vector_store %arg33[%c0_74, %c0_75], %100 {strides = array<i32>} : memref<16x128xf32, #tpu.memory_space<vmem>>, vector<16x128xf32>,
    %102 = tpu.concatenate %25, %74 in 1 : vector<16x64xbf16>, vector<16x64xbf16> -> vector<16x128xbf16>
    %c0_76 = arith.constant 0 : index
    %c0_77 = arith.constant 0 : index
    %103 = vector.load %arg34[%c0_76, %c0_77] : memref<16x128xbf16, #tpu.memory_space<vmem>>, vector<16x128xbf16>
    tpu.vector_store %arg34[%c0_76, %c0_77], %102 {strides = array<i32>} : memref<16x128xbf16, #tpu.memory_space<vmem>>, vector<16x128xbf16>,
    %c0_78 = arith.constant 0 : index
    %c0_79 = arith.constant 0 : index
    %104 = vector.load %arg28[%c0_78, %c0_79] : memref<64x64xbf16, #tpu.memory_space<vmem>>, vector<64x64xbf16>
    %cst_80 = arith.constant dense<0.000000e+00> : vector<16x64xf32>
    %105 = tpu.matmul %25, %104, %cst_80 {dimension_numbers = #tpu.dot_dimension_numbers<[1], [0], [0], [1], [0, 0, 1, 1], [], []>} : vector<16x64xbf16>, vector<64x64xbf16>, vector<16x64xf32> -> vector<16x64xf32>
    %c0_81 = arith.constant 0 : index
    %c0_82 = arith.constant 0 : index
    %106 = vector.load %arg29[%c0_81, %c0_82] : memref<1x64xf32, #tpu.memory_space<vmem>>, vector<1x64xf32>
    %107 = vector.broadcast %106 : vector<1x64xf32> to vector<16x64xf32>
    %108 = arith.addf %105, %107 : vector<16x64xf32>
    %c0_83 = arith.constant 0 : index
    %c0_84 = arith.constant 0 : index
    %109 = vector.load %arg30[%c0_83, %c0_84] : memref<64x64xbf16, #tpu.memory_space<vmem>>, vector<64x64xbf16>
    %cst_85 = arith.constant dense<0.000000e+00> : vector<16x64xf32>
    %110 = tpu.matmul %74, %109, %cst_85 {dimension_numbers = #tpu.dot_dimension_numbers<[1], [0], [0], [1], [0, 0, 1, 1], [], []>} : vector<16x64xbf16>, vector<64x64xbf16>, vector<16x64xf32> -> vector<16x64xf32>
    %c0_86 = arith.constant 0 : index
    %c0_87 = arith.constant 0 : index
    %111 = vector.load %arg31[%c0_86, %c0_87] : memref<1x64xf32, #tpu.memory_space<vmem>>, vector<1x64xf32>
    %112 = vector.broadcast %111 : vector<1x64xf32> to vector<16x64xf32>
    %113 = arith.addf %110, %112 : vector<16x64xf32>
    %114 = arith.mulf %108, %113 : vector<16x64xf32>
    %115 = arith.truncf %114 : vector<16x64xf32> to vector<16x64xbf16>
    %c0_88 = arith.constant 0 : index
    %c0_89 = arith.constant 0 : index
    %116 = vector.load %arg3[%c0_88, %c0_89] : memref<64x16xbf16, #tpu.memory_space<vmem>>, vector<64x16xbf16>
    %cst_90 = arith.constant dense<0.000000e+00> : vector<16x16xf32>
    %117 = tpu.matmul %115, %116, %cst_90 {dimension_numbers = #tpu.dot_dimension_numbers<[1], [0], [0], [1], [0, 0, 1, 1], [], []>} : vector<16x64xbf16>, vector<64x16xbf16>, vector<16x16xf32> -> vector<16x16xf32>
    %cst_91 = arith.constant 0.000000e+00 : f32
    %118 = vector.broadcast %cst_91 : f32 to vector<16x16xf32>
    %119 = arith.cmpf olt, %117, %118 : vector<16x16xf32>
    %cst_92 = arith.constant -1.000000e+00 : f32
    %cst_93 = arith.constant 1.000000e+00 : f32
    %120 = vector.broadcast %cst_92 : f32 to vector<16x16xf32>
    %121 = vector.broadcast %cst_93 : f32 to vector<16x16xf32>
    %122 = arith.select %119, %120, %121 : vector<16x16xi1>, vector<16x16xf32>
    %123 = math.absf %117 : vector<16x16xf32>
    %124 = math.sqrt %123 : vector<16x16xf32>
    %125 = arith.mulf %122, %124 : vector<16x16xf32>
    %126 = arith.addf %24, %73 : vector<16x64xf32>
    %127 = arith.mulf %126, %126 : vector<16x64xf32>
    %cst_94 = arith.constant dense<0.000000e+00> : vector<16xf32>
    %128 = vector.multi_reduction <add>, %127, %cst_94 [1] : vector<16x64xf32> to vector<16xf32>
    %129 = vector.shape_cast %128 : vector<16xf32> to vector<16x1xf32>
    %cst_95 = arith.constant 1.000000e-24 : f32
    %130 = vector.broadcast %cst_95 : f32 to vector<16x1xf32>
    %131 = arith.maximumf %129, %130 : vector<16x1xf32>
    %132 = math.rsqrt %131 : vector<16x1xf32>
    %133 = arith.mulf %24, %73 : vector<16x64xf32>
    %cst_96 = arith.constant dense<0.000000e+00> : vector<16xf32>
    %134 = vector.multi_reduction <add>, %133, %cst_96 [1] : vector<16x64xf32> to vector<16xf32>
    %135 = vector.shape_cast %134 : vector<16xf32> to vector<16x1xf32>
    %cst_97 = arith.constant 0.000000e+00 : f32
    %136 = vector.broadcast %cst_97 : f32 to vector<16x47xf32>
    %137 = vector.broadcast %132 : vector<16x1xf32> to vector<16x64xf32>
    %138 = arith.mulf %126, %137 : vector<16x64xf32>
    %139 = tpu.concatenate %138, %125, %135, %136 in 1 : vector<16x64xf32>, vector<16x16xf32>, vector<16x1xf32>, vector<16x47xf32> -> vector<16x128xf32>
    %c0_98 = arith.constant 0 : index
    %c0_99 = arith.constant 0 : index
    %140 = vector.load %arg35[%c0_98, %c0_99] : memref<16x128xf32, #tpu.memory_space<vmem>>, vector<16x128xf32>
    tpu.vector_store %arg35[%c0_98, %c0_99], %139 {strides = array<i32>} : memref<16x128xf32, #tpu.memory_space<vmem>>, vector<16x128xf32>,
    return
  }
  func.func @transform_0(%arg0: i32) -> (i32, i32) {
    %c0_i32 = arith.constant 0 : i32
    %c0_i32_0 = arith.constant 0 : i32
    return %arg0, %c0_i32 : i32, i32
  }
  func.func @transform_1(%arg0: i32) -> (i32, i32) {
    %c0_i32 = arith.constant 0 : i32
    %c0_i32_0 = arith.constant 0 : i32
    return %arg0, %c0_i32 : i32, i32
  }
  func.func @transform_2(%arg0: i32) -> (i32, i32) {
    %c0_i32 = arith.constant 0 : i32
    %c0_i32_0 = arith.constant 0 : i32
    %c0_i32_1 = arith.constant 0 : i32
    return %c0_i32, %c0_i32_0 : i32, i32
  }
  func.func @transform_3(%arg0: i32) -> (i32, i32) {
    %c0_i32 = arith.constant 0 : i32
    %c0_i32_0 = arith.constant 0 : i32
    %c0_i32_1 = arith.constant 0 : i32
    return %c0_i32, %c0_i32_0 : i32, i32
  }
  func.func @transform_4(%arg0: i32) -> (i32, i32) {
    %c0_i32 = arith.constant 0 : i32
    %c0_i32_0 = arith.constant 0 : i32
    %c0_i32_1 = arith.constant 0 : i32
    return %c0_i32, %c0_i32_0 : i32, i32
  }
  func.func @transform_5(%arg0: i32) -> (i32, i32) {
    %c0_i32 = arith.constant 0 : i32
    %c0_i32_0 = arith.constant 0 : i32
    %c0_i32_1 = arith.constant 0 : i32
    return %c0_i32, %c0_i32_0 : i32, i32
  }
  func.func @transform_6(%arg0: i32) -> (i32, i32) {
    %c0_i32 = arith.constant 0 : i32
    %c0_i32_0 = arith.constant 0 : i32
    %c0_i32_1 = arith.constant 0 : i32
    return %c0_i32, %c0_i32_0 : i32, i32
  }
  func.func @transform_7(%arg0: i32) -> (i32, i32) {
    %c0_i32 = arith.constant 0 : i32
    %c0_i32_0 = arith.constant 0 : i32
    %c0_i32_1 = arith.constant 0 : i32
    return %c0_i32, %c0_i32_0 : i32, i32
  }
  func.func @transform_8(%arg0: i32) -> (i32, i32) {
    %c0_i32 = arith.constant 0 : i32
    %c0_i32_0 = arith.constant 0 : i32
    %c0_i32_1 = arith.constant 0 : i32
    return %c0_i32, %c0_i32_0 : i32, i32
  }
  func.func @transform_9(%arg0: i32) -> (i32, i32) {
    %c0_i32 = arith.constant 0 : i32
    %c0_i32_0 = arith.constant 0 : i32
    %c0_i32_1 = arith.constant 0 : i32
    return %c0_i32, %c0_i32_0 : i32, i32
  }
  func.func @transform_10(%arg0: i32) -> (i32, i32) {
    %c0_i32 = arith.constant 0 : i32
    %c0_i32_0 = arith.constant 0 : i32
    %c0_i32_1 = arith.constant 0 : i32
    return %c0_i32, %c0_i32_0 : i32, i32
  }
  func.func @transform_11(%arg0: i32) -> (i32, i32) {
    %c0_i32 = arith.constant 0 : i32
    %c0_i32_0 = arith.constant 0 : i32
    %c0_i32_1 = arith.constant 0 : i32
    return %c0_i32, %c0_i32_0 : i32, i32
  }
  func.func @transform_12(%arg0: i32) -> (i32, i32) {
    %c0_i32 = arith.constant 0 : i32
    %c0_i32_0 = arith.constant 0 : i32
    %c0_i32_1 = arith.constant 0 : i32
    return %c0_i32, %c0_i32_0 : i32, i32
  }
  func.func @transform_13(%arg0: i32) -> (i32, i32) {
    %c0_i32 = arith.constant 0 : i32
    %c0_i32_0 = arith.constant 0 : i32
    %c0_i32_1 = arith.constant 0 : i32
    return %c0_i32, %c0_i32_0 : i32, i32
  }
  func.func @transform_14(%arg0: i32) -> (i32, i32) {
    %c0_i32 = arith.constant 0 : i32
    %c0_i32_0 = arith.constant 0 : i32
    %c0_i32_1 = arith.constant 0 : i32
    return %c0_i32, %c0_i32_0 : i32, i32
  }
  func.func @transform_15(%arg0: i32) -> (i32, i32) {
    %c0_i32 = arith.constant 0 : i32
    %c0_i32_0 = arith.constant 0 : i32
    %c0_i32_1 = arith.constant 0 : i32
    return %c0_i32, %c0_i32_0 : i32, i32
  }
  func.func @transform_16(%arg0: i32) -> (i32, i32) {
    %c0_i32 = arith.constant 0 : i32
    %c0_i32_0 = arith.constant 0 : i32
    %c0_i32_1 = arith.constant 0 : i32
    return %c0_i32, %c0_i32_0 : i32, i32
  }
  func.func @transform_17(%arg0: i32) -> (i32, i32) {
    %c0_i32 = arith.constant 0 : i32
    %c0_i32_0 = arith.constant 0 : i32
    %c0_i32_1 = arith.constant 0 : i32
    return %c0_i32, %c0_i32_0 : i32, i32
  }
  func.func @transform_18(%arg0: i32) -> (i32, i32) {
    %c0_i32 = arith.constant 0 : i32
    %c0_i32_0 = arith.constant 0 : i32
    %c0_i32_1 = arith.constant 0 : i32
    return %c0_i32, %c0_i32_0 : i32, i32
  }
  func.func @transform_19(%arg0: i32) -> (i32, i32) {
    %c0_i32 = arith.constant 0 : i32
    %c0_i32_0 = arith.constant 0 : i32
    %c0_i32_1 = arith.constant 0 : i32
    return %c0_i32, %c0_i32_0 : i32, i32
  }
  func.func @transform_20(%arg0: i32) -> (i32, i32) {
    %c0_i32 = arith.constant 0 : i32
    %c0_i32_0 = arith.constant 0 : i32
    %c0_i32_1 = arith.constant 0 : i32
    return %c0_i32, %c0_i32_0 : i32, i32
  }
  func.func @transform_21(%arg0: i32) -> (i32, i32) {
    %c0_i32 = arith.constant 0 : i32
    %c0_i32_0 = arith.constant 0 : i32
    %c0_i32_1 = arith.constant 0 : i32
    return %c0_i32, %c0_i32_0 : i32, i32
  }
  func.func @transform_22(%arg0: i32) -> (i32, i32) {
    %c0_i32 = arith.constant 0 : i32
    %c0_i32_0 = arith.constant 0 : i32
    %c0_i32_1 = arith.constant 0 : i32
    return %c0_i32, %c0_i32_0 : i32, i32
  }
  func.func @transform_23(%arg0: i32) -> (i32, i32) {
    %c0_i32 = arith.constant 0 : i32
    %c0_i32_0 = arith.constant 0 : i32
    %c0_i32_1 = arith.constant 0 : i32
    return %c0_i32, %c0_i32_0 : i32, i32
  }
  func.func @transform_24(%arg0: i32) -> (i32, i32) {
    %c0_i32 = arith.constant 0 : i32
    %c0_i32_0 = arith.constant 0 : i32
    %c0_i32_1 = arith.constant 0 : i32
    return %c0_i32, %c0_i32_0 : i32, i32
  }
  func.func @transform_25(%arg0: i32) -> (i32, i32) {
    %c0_i32 = arith.constant 0 : i32
    %c0_i32_0 = arith.constant 0 : i32
    %c0_i32_1 = arith.constant 0 : i32
    return %c0_i32, %c0_i32_0 : i32, i32
  }
  func.func @transform_26(%arg0: i32) -> (i32, i32) {
    %c0_i32 = arith.constant 0 : i32
    %c0_i32_0 = arith.constant 0 : i32
    %c0_i32_1 = arith.constant 0 : i32
    return %c0_i32, %c0_i32_0 : i32, i32
  }
  func.func @transform_27(%arg0: i32) -> (i32, i32) {
    %c0_i32 = arith.constant 0 : i32
    %c0_i32_0 = arith.constant 0 : i32
    %c0_i32_1 = arith.constant 0 : i32
    return %c0_i32, %c0_i32_0 : i32, i32
  }
  func.func @transform_28(%arg0: i32) -> (i32, i32) {
    %c0_i32 = arith.constant 0 : i32
    %c0_i32_0 = arith.constant 0 : i32
    %c0_i32_1 = arith.constant 0 : i32
    return %c0_i32, %c0_i32_0 : i32, i32
  }
  func.func @transform_29(%arg0: i32) -> (i32, i32) {
    %c0_i32 = arith.constant 0 : i32
    %c0_i32_0 = arith.constant 0 : i32
    %c0_i32_1 = arith.constant 0 : i32
    return %c0_i32, %c0_i32_0 : i32, i32
  }
  func.func @transform_30(%arg0: i32) -> (i32, i32) {
    %c0_i32 = arith.constant 0 : i32
    %c0_i32_0 = arith.constant 0 : i32
    %c0_i32_1 = arith.constant 0 : i32
    return %c0_i32, %c0_i32_0 : i32, i32
  }
  func.func @transform_31(%arg0: i32) -> (i32, i32) {
    %c0_i32 = arith.constant 0 : i32
    %c0_i32_0 = arith.constant 0 : i32
    return %arg0, %c0_i32 : i32, i32
  }
  func.func @transform_32(%arg0: i32) -> (i32, i32) {
    %c0_i32 = arith.constant 0 : i32
    %c0_i32_0 = arith.constant 0 : i32
    return %arg0, %c0_i32 : i32, i32
  }
  func.func @transform_33(%arg0: i32) -> (i32, i32) {
    %c0_i32 = arith.constant 0 : i32
    %c0_i32_0 = arith.constant 0 : i32
    return %arg0, %c0_i32 : i32, i32
  }
  func.func @transform_34(%arg0: i32) -> (i32, i32) {
    %c0_i32 = arith.constant 0 : i32
    %c0_i32_0 = arith.constant 0 : i32
    return %arg0, %c0_i32 : i32, i32
  }
}

</mosaic_0001>

<llo_original>
// kernel: tpu_custom_call.1
$region0: #{tpu_custom_call.1}
  #allocation0 [shape = 'u32[]', space=smem, size = 0x4, offset = 0x4, fixed_abs, tag = 'smem constant byte address 0x4 - core index']
  #allocation1 [shape = 'u32[144,128]{1,0:T(1,128)}', space=vmem, size = 0x12000, scoped, tag = 'internal scratch']
  %s0 = inlined_call_operand.smem [shape: u32[35], index: -1, kind: input, shape index: {}]
  %s1 = sld [smem:[%s0]]
  %s2 = scalar_lea.smem %s0, 1
  %s3 = sld [smem:[%s2]]
  %s4 = scalar_lea.smem %s0, 2
  %s5 = sld [smem:[%s4]]
  %s6 = scalar_lea.smem %s0, 3
  %s7 = sld [smem:[%s6]]
  %s8 = scalar_lea.smem %s0, 4
  %s9 = sld [smem:[%s8]]
  %s10 = scalar_lea.smem %s0, 5
  %s11 = sld [smem:[%s10]]
  %s12 = scalar_lea.smem %s0, 6
  %s13 = sld [smem:[%s12]]
  %s14 = scalar_lea.smem %s0, 7
  %s15 = sld [smem:[%s14]]
  %s16 = scalar_lea.smem %s0, 8
  %s17 = sld [smem:[%s16]]
  %s18 = scalar_lea.smem %s0, 9
  %s19 = sld [smem:[%s18]]
  %s20 = scalar_lea.smem %s0, 10
  %s21 = sld [smem:[%s20]]
  %s22 = scalar_lea.smem %s0, 11
  %s23 = sld [smem:[%s22]]
  %s24 = scalar_lea.smem %s0, 12
  %s25 = sld [smem:[%s24]]
  %s26 = scalar_lea.smem %s0, 13
  %s27 = sld [smem:[%s26]]
  %s28 = scalar_lea.smem %s0, 14
  %s29 = sld [smem:[%s28]]
  %s30 = scalar_lea.smem %s0, 15
  %s31 = sld [smem:[%s30]]
  %s32 = scalar_lea.smem %s0, 16
  %s33 = sld [smem:[%s32]]
  %s34 = scalar_lea.smem %s0, 17
  %s35 = sld [smem:[%s34]]
  %s36 = scalar_lea.smem %s0, 18
  %s37 = sld [smem:[%s36]]
  %s38 = scalar_lea.smem %s0, 19
  %s39 = sld [smem:[%s38]]
  %s40 = scalar_lea.smem %s0, 20
  %s41 = sld [smem:[%s40]]
  %s42 = scalar_lea.smem %s0, 21
  %s43 = sld [smem:[%s42]]
  %s44 = scalar_lea.smem %s0, 22
  %s45 = sld [smem:[%s44]]
  %s46 = scalar_lea.smem %s0, 23
  %s47 = sld [smem:[%s46]]
  %s48 = scalar_lea.smem %s0, 24
  %s49 = sld [smem:[%s48]]
  %s50 = scalar_lea.smem %s0, 25
  %s51 = sld [smem:[%s50]]
  %s52 = scalar_lea.smem %s0, 26
  %s53 = sld [smem:[%s52]]
  %s54 = scalar_lea.smem %s0, 27
  %s55 = sld [smem:[%s54]]
  %s56 = scalar_lea.smem %s0, 28
  %s57 = sld [smem:[%s56]]
  %s58 = scalar_lea.smem %s0, 29
  %s59 = sld [smem:[%s58]]
  %s60 = scalar_lea.smem %s0, 30
  %s61 = sld [smem:[%s60]]
  %s62 = scalar_lea.smem %s0, 31
  %s63 = sld [smem:[%s62]]
  %s64 = scalar_lea.smem %s0, 32
  %s65 = sld [smem:[%s64]]
  %s66 = scalar_lea.smem %s0, 33
  %s67 = sld [smem:[%s66]]
  %s68 = scalar_lea.smem %s0, 34
  %s69 = sld [smem:[%s68]]
  %70 = xla_tuple %s63, %s65, %s67, %s69
  %s71 = sld [smem:[#allocation0]]
  $region265: #{tpu_custom_call.1} parent=0
    _
  %s73 = ssub.s32 1, %s71
  %s74 = scalar_select 0, %s73, %s71
  $region1: #{tpu_custom_call.1} parent=0
    #allocation2 [shape = 'u8[32768]{0}', space=vmem, size = 0x8000, scoped, tag = 'input window, operand 0']
    #allocation3 [shape = 's32[2]{0}', space=sflag, size = 0x8, scoped, tag = 'scoped memory for tpu_custom_call.1']
    #allocation4 [shape = 's32[2]{0}', space=sflag, size = 0x8, scoped, tag = 'scoped memory for tpu_custom_call.1']
    #allocation5 [shape = 'u8[16384]{0}', space=vmem, size = 0x4000, scoped, tag = 'input window, operand 1']
    #allocation6 [shape = 's32[2]{0}', space=sflag, size = 0x8, scoped, tag = 'scoped memory for tpu_custom_call.1']
    #allocation7 [shape = 'u8[512]{0}', space=vmem, size = 0x400, scoped, tag = 'input window, operand 6, single buffered']
    #allocation8 [shape = 'u8[16384]{0}', space=vmem, size = 0x4000, scoped, tag = 'input window, operand 7, single buffered']
    #allocation9 [shape = 's32[1]{0}', space=sflag, size = 0x4, scoped, tag = 'scoped memory for tpu_custom_call.1']
    #allocation10 [shape = 'u8[512]{0}', space=vmem, size = 0x400, scoped, tag = 'input window, operand 8, single buffered']
    #allocation11 [shape = 'u8[16384]{0}', space=vmem, size = 0x4000, scoped, tag = 'input window, operand 9, single buffered']
    #allocation12 [shape = 's32[1]{0}', space=sflag, size = 0x4, scoped, tag = 'scoped memory for tpu_custom_call.1']
    #allocation13 [shape = 'u8[512]{0}', space=vmem, size = 0x400, scoped, tag = 'input window, operand 10, single buffered']
    #allocation14 [shape = 'u8[32768]{0}', space=vmem, size = 0x8000, scoped, tag = 'input window, operand 11, single buffered']
    #allocation15 [shape = 's32[1]{0}', space=sflag, size = 0x4, scoped, tag = 'scoped memory for tpu_custom_call.1']
    #allocation16 [shape = 'u8[1024]{0}', space=vmem, size = 0x400, scoped, tag = 'input window, operand 12, single buffered']
    #allocation17 [shape = 'u8[131072]{0}', space=vmem, size = 0x20000, scoped, tag = 'input window, operand 13, single buffered']
    #allocation18 [shape = 's32[1]{0}', space=sflag, size = 0x4, scoped, tag = 'scoped memory for tpu_custom_call.1']
    #allocation19 [shape = 'u8[1024]{0}', space=vmem, size = 0x400, scoped, tag = 'input window, operand 14, single buffered']
    #allocation20 [shape = 'u8[1024]{0}', space=vmem, size = 0x400, scoped, tag = 'input window, operand 16, single buffered']
    #allocation21 [shape = 's32[1]{0}', space=sflag, size = 0x4, scoped, tag = 'scoped memory for tpu_custom_call.1']
    #allocation22 [shape = 'u8[512]{0}', space=vmem, size = 0x400, scoped, tag = 'input window, operand 18, single buffered']
    #allocation23 [shape = 'u8[16384]{0}', space=vmem, size = 0x4000, scoped, tag = 'input window, operand 19, single buffered']
    #allocation24 [shape = 's32[1]{0}', space=sflag, size = 0x4, scoped, tag = 'scoped memory for tpu_custom_call.1']
    #allocation25 [shape = 'u8[512]{0}', space=vmem, size = 0x400, scoped, tag = 'input window, operand 20, single buffered']
    #allocation26 [shape = 'u8[16384]{0}', space=vmem, size = 0x4000, scoped, tag = 'input window, operand 21, single buffered']
    #allocation27 [shape = 's32[1]{0}', space=sflag, size = 0x4, scoped, tag = 'scoped memory for tpu_custom_call.1']
    #allocation28 [shape = 'u8[512]{0}', space=vmem, size = 0x400, scoped, tag = 'input window, operand 22, single buffered']
    #allocation29 [shape = 'u8[32768]{0}', space=vmem, size = 0x8000, scoped, tag = 'input window, operand 23, single buffered']
    #allocation30 [shape = 's32[1]{0}', space=sflag, size = 0x4, scoped, tag = 'scoped memory for tpu_custom_call.1']
    #allocation31 [shape = 'u8[1024]{0}', space=vmem, size = 0x400, scoped, tag = 'input window, operand 24, single buffered']
    #allocation32 [shape = 'u8[16384]{0}', space=vmem, size = 0x4000, scoped, tag = 'input window, operand 27, single buffered']
    #allocation33 [shape = 's32[1]{0}', space=sflag, size = 0x4, scoped, tag = 'scoped memory for tpu_custom_call.1']
    #allocation34 [shape = 'u8[16384]{0}', space=vmem, size = 0x4000, scoped, tag = 'input window, operand 29, single buffered']
    #allocation35 [shape = 'u8[32768]{0}', space=vmem, size = 0x8000, scoped, tag = 'output window, operand 0']
    #allocation36 [shape = 'u8[16384]{0}', space=vmem, size = 0x4000, scoped, tag = 'output window, operand 1']
    #allocation37 [shape = 's32[2]{0}', space=sflag, size = 0x8, scoped, tag = 'scoped memory for tpu_custom_call.1']
    #allocation38 [shape = 'u8[8192]{0}', space=vmem, size = 0x2000, scoped, tag = 'output window, operand 2']
    #allocation39 [shape = 'u8[16384]{0}', space=vmem, size = 0x4000, scoped, tag = 'output window, operand 3']
    #allocation40 [shape = 's32[2]{0}', space=sflag, size = 0x8, scoped, tag = 'scoped memory for tpu_custom_call.1']
    %75 = vsyncpa [#allocation3], 0
    %s76 = scalar_lea.sflag [#allocation3], 1
    %77 = vsyncpa %s76, 0
    %78 = vsyncpa [#allocation6], 0
    %s79 = scalar_lea.sflag [#allocation6], 1
    %80 = vsyncpa %s79, 0
    %81 = vsyncpa [#allocation9], 0
    %82 = vsyncpa [#allocation12], 0
    %83 = vsyncpa [#allocation15], 0
    %84 = vsyncpa [#allocation18], 0
    %85 = vsyncpa [#allocation21], 0
    %86 = vsyncpa [#allocation24], 0
    %87 = vsyncpa [#allocation27], 0
    %88 = vsyncpa [#allocation30], 0
    %89 = vsyncpa [#allocation33], 0
    %90 = vsyncpa [#allocation4], 0
    %s91 = scalar_lea.sflag [#allocation4], 1
    %92 = vsyncpa %s91, 0
    %93 = vsyncpa [#allocation37], 0
    %s94 = scalar_lea.sflag [#allocation37], 1
    %95 = vsyncpa %s94, 0
    %96 = vsyncpa [#allocation40], 0
    %s97 = scalar_lea.sflag [#allocation40], 1
    %98 = vsyncpa %s97, 0
    loop: start=0, step=1, limit=4
    $region2: #{tpu_custom_call.1} parent=1 // loop_pre_header
      _
    $region3: #{tpu_custom_call.1} parent=1 // loop_header
      %s100 = sphi 0, %s104
      %p101 = scmp.ge.s32.totalorder %s100, 4
      %s110 = sphi 0, %s112
      %s113 = sphi 0, %s110
      %s114 = sphi 0, %s113
      %s130 = sphi 0, %s114
      %s136 = sphi 0, %s138
      %s139 = sphi 0, %s136
      %s140 = sphi 0, %s139
      %s156 = sphi 0, %s140
      %s160 = sphi 0, %s160
      %s162 = sphi 0, %s160
      %s163 = sphi 0, %s162
      %s177 = sphi 0, %s163
      %s181 = sphi 0, %s181
      %s183 = sphi 0, %s181
      %s184 = sphi 0, %s183
      %s198 = sphi 0, %s184
      %s202 = sphi 0, %s202
      %s204 = sphi 0, %s202
      %s205 = sphi 0, %s204
      %s219 = sphi 0, %s205
      %s223 = sphi 0, %s223
      %s225 = sphi 0, %s223
      %s226 = sphi 0, %s225
      %s240 = sphi 0, %s226
      %s244 = sphi 0, %s244
      %s246 = sphi 0, %s244
      %s247 = sphi 0, %s246
      %s261 = sphi 0, %s247
      %s265 = sphi 0, %s265
      %s267 = sphi 0, %s265
      %s268 = sphi 0, %s267
      %s282 = sphi 0, %s268
      %s286 = sphi 0, %s286
      %s288 = sphi 0, %s286
      %s289 = sphi 0, %s288
      %s303 = sphi 0, %s289
      %s307 = sphi 0, %s307
      %s309 = sphi 0, %s307
      %s310 = sphi 0, %s309
      %s324 = sphi 0, %s310
      %s328 = sphi 0, %s328
      %s330 = sphi 0, %s328
      %s331 = sphi 0, %s330
      %s345 = sphi 0, %s331
      %s349 = sphi 0, %s349
      %s351 = sphi 0, %s349
      %s352 = sphi 0, %s351
      %s366 = sphi 0, %s352
      %s370 = sphi 0, %s370
      %s372 = sphi 0, %s370
      %s373 = sphi 0, %s372
      %s387 = sphi 0, %s373
      %s391 = sphi 0, %s391
      %s393 = sphi 0, %s391
      %s394 = sphi 0, %s393
      %s408 = sphi 0, %s394
      %s412 = sphi 0, %s412
      %s414 = sphi 0, %s412
      %s415 = sphi 0, %s414
      %s429 = sphi 0, %s415
      %s433 = sphi 0, %s433
      %s435 = sphi 0, %s433
      %s436 = sphi 0, %s435
      %s450 = sphi 0, %s436
      %s454 = sphi 0, %s454
      %s456 = sphi 0, %s454
      %s457 = sphi 0, %s456
      %s471 = sphi 0, %s457
      %s475 = sphi 0, %s475
      %s477 = sphi 0, %s475
      %s478 = sphi 0, %s477
      %s492 = sphi 0, %s478
      %s496 = sphi 0, %s496
      %s498 = sphi 0, %s496
      %s499 = sphi 0, %s498
      %s513 = sphi 0, %s499
      %s517 = sphi 0, %s517
      %s519 = sphi 0, %s517
      %s520 = sphi 0, %s519
      %s534 = sphi 0, %s520
      %s538 = sphi 0, %s538
      %s540 = sphi 0, %s538
      %s541 = sphi 0, %s540
      %s555 = sphi 0, %s541
      %s559 = sphi 0, %s559
      %s561 = sphi 0, %s559
      %s562 = sphi 0, %s561
      %s576 = sphi 0, %s562
      %s580 = sphi 0, %s580
      %s582 = sphi 0, %s580
      %s583 = sphi 0, %s582
      %s597 = sphi 0, %s583
      %s601 = sphi 0, %s601
      %s603 = sphi 0, %s601
      %s604 = sphi 0, %s603
      %s618 = sphi 0, %s604
      %s622 = sphi 0, %s622
      %s624 = sphi 0, %s622
      %s625 = sphi 0, %s624
      %s639 = sphi 0, %s625
      %s643 = sphi 0, %s643
      %s645 = sphi 0, %s643
      %s646 = sphi 0, %s645
      %s660 = sphi 0, %s646
      %s664 = sphi 0, %s664
      %s666 = sphi 0, %s664
      %s667 = sphi 0, %s666
      %s681 = sphi 0, %s667
      %s685 = sphi 0, %s685
      %s687 = sphi 0, %s685
      %s688 = sphi 0, %s687
      %s702 = sphi 0, %s688
      %s706 = sphi 0, %s706
      %s708 = sphi 0, %s706
      %s709 = sphi 0, %s708
      %s723 = sphi 0, %s709
      %s727 = sphi 0, %s727
      %s729 = sphi 0, %s727
      %s730 = sphi 0, %s729
      %s744 = sphi 0, %s730
      %s748 = sphi 0, %s748
      %s750 = sphi 0, %s748
      %s751 = sphi 0, %s750
      %s765 = sphi 0, %s751
      %s771 = sphi 0, %s773
      %s774 = sphi 0, %s771
      %s775 = sphi 0, %s774
      %s791 = sphi 0, %s775
      %s797 = sphi 0, %s799
      %s800 = sphi 0, %s797
      %s801 = sphi 0, %s800
      %s817 = sphi 0, %s801
      %s823 = sphi 0, %s825
      %s826 = sphi 0, %s823
      %s827 = sphi 0, %s826
      %s843 = sphi 0, %s827
      %s849 = sphi 0, %s851
      %s852 = sphi 0, %s849
      %s853 = sphi 0, %s852
      %s869 = sphi 0, %s853
    $region4: #{tpu_custom_call.1} parent=1 // loop_header_branch
      %103 = sbr.rel (%p101) target = $region8
    $region5: #{tpu_custom_call.1} parent=1 // loop_body
      %s105 = ssub.s32 %s100, 1
      %s106 = ssub.s32 %s100, 2
      %s107 = sadd.s32 %s100, 1
      %s108 = ssub.s32 %s100, %s107
      %p109 = scmp.eq.s32.totalorder %s108, 0
      %s111 = sadd.s32 %s110, 1
      %s112 = scalar_select %p109, %s110, %s111
      %p115 = pneg %p109
      %p116 = scmp.eq.s32.totalorder %s100, 1
      %p117 = por %p115, %p116
      %p118 = scmp.ne.s32.totalorder %s110, %s113
      %p119 = scmp.eq.s32.totalorder %s100, 0
      %p120 = por %p118, %p119
      %p121 = scmp.ne.s32.totalorder %s110, %s113
      %p122 = scmp.eq.s32.totalorder %s105, 1
      %p123 = por %p121, %p122
      %p124 = scmp.ne.s32.totalorder %s113, %s114
      %p125 = scmp.eq.s32.totalorder %s105, 0
      %p126 = por %p124, %p125
      %p127 = scmp.ne.s32.totalorder %s113, %s114
      %p128 = scmp.eq.s32.totalorder %s106, 1
      %p129 = por %p127, %p128
      %p131 = scmp.ne.s32.totalorder %s114, %s130
      %p132 = scmp.eq.s32.totalorder %s106, 0
      %p133 = por %p131, %p132
      %s134 = ssub.s32 %s100, %s107
      %p135 = scmp.eq.s32.totalorder %s134, 0
      %s137 = sadd.s32 %s136, 1
      %s138 = scalar_select %p135, %s136, %s137
      %p141 = pneg %p135
      %p142 = scmp.eq.s32.totalorder %s100, 1
      %p143 = por %p141, %p142
      %p144 = scmp.ne.s32.totalorder %s136, %s139
      %p145 = scmp.eq.s32.totalorder %s100, 0
      %p146 = por %p144, %p145
      %p147 = scmp.ne.s32.totalorder %s136, %s139
      %p148 = scmp.eq.s32.totalorder %s105, 1
      %p149 = por %p147, %p148
      %p150 = scmp.ne.s32.totalorder %s139, %s140
      %p151 = scmp.eq.s32.totalorder %s105, 0
      %p152 = por %p150, %p151
      %p153 = scmp.ne.s32.totalorder %s139, %s140
      %p154 = scmp.eq.s32.totalorder %s106, 1
      %p155 = por %p153, %p154
      %p157 = scmp.ne.s32.totalorder %s140, %s156
      %p158 = scmp.eq.s32.totalorder %s106, 0
      %p159 = por %p157, %p158
      %s161 = sadd.s32 %s160, 1
      %p164 = scmp.eq.s32.totalorder %s100, 1
      %p165 = scmp.ne.s32.totalorder %s160, %s162
      %p166 = scmp.eq.s32.totalorder %s100, 0
      %p167 = por %p165, %p166
      %p168 = scmp.ne.s32.totalorder %s160, %s162
      %p169 = scmp.eq.s32.totalorder %s105, 1
      %p170 = por %p168, %p169
      %p171 = scmp.ne.s32.totalorder %s162, %s163
      %p172 = scmp.eq.s32.totalorder %s105, 0
      %p173 = por %p171, %p172
      %p174 = scmp.ne.s32.totalorder %s162, %s163
      %p175 = scmp.eq.s32.totalorder %s106, 1
      %p176 = por %p174, %p175
      %p178 = scmp.ne.s32.totalorder %s163, %s177
      %p179 = scmp.eq.s32.totalorder %s106, 0
      %p180 = por %p178, %p179
      %s182 = sadd.s32 %s181, 1
      %p185 = scmp.eq.s32.totalorder %s100, 1
      %p186 = scmp.ne.s32.totalorder %s181, %s183
      %p187 = scmp.eq.s32.totalorder %s100, 0
      %p188 = por %p186, %p187
      %p189 = scmp.ne.s32.totalorder %s181, %s183
      %p190 = scmp.eq.s32.totalorder %s105, 1
      %p191 = por %p189, %p190
      %p192 = scmp.ne.s32.totalorder %s183, %s184
      %p193 = scmp.eq.s32.totalorder %s105, 0
      %p194 = por %p192, %p193
      %p195 = scmp.ne.s32.totalorder %s183, %s184
      %p196 = scmp.eq.s32.totalorder %s106, 1
      %p197 = por %p195, %p196
      %p199 = scmp.ne.s32.totalorder %s184, %s198
      %p200 = scmp.eq.s32.totalorder %s106, 0
      %p201 = por %p199, %p200
      %s203 = sadd.s32 %s202, 1
      %p206 = scmp.eq.s32.totalorder %s100, 1
      %p207 = scmp.ne.s32.totalorder %s202, %s204
      %p208 = scmp.eq.s32.totalorder %s100, 0
      %p209 = por %p207, %p208
      %p210 = scmp.ne.s32.totalorder %s202, %s204
      %p211 = scmp.eq.s32.totalorder %s105, 1
      %p212 = por %p210, %p211
      %p213 = scmp.ne.s32.totalorder %s204, %s205
      %p214 = scmp.eq.s32.totalorder %s105, 0
      %p215 = por %p213, %p214
      %p216 = scmp.ne.s32.totalorder %s204, %s205
      %p217 = scmp.eq.s32.totalorder %s106, 1
      %p218 = por %p216, %p217
      %p220 = scmp.ne.s32.totalorder %s205, %s219
      %p221 = scmp.eq.s32.totalorder %s106, 0
      %p222 = por %p220, %p221
      %s224 = sadd.s32 %s223, 1
      %p227 = scmp.eq.s32.totalorder %s100, 1
      %p228 = scmp.ne.s32.totalorder %s223, %s225
      %p229 = scmp.eq.s32.totalorder %s100, 0
      %p230 = por %p228, %p229
      %p231 = scmp.ne.s32.totalorder %s223, %s225
      %p232 = scmp.eq.s32.totalorder %s105, 1
      %p233 = por %p231, %p232
      %p234 = scmp.ne.s32.totalorder %s225, %s226
      %p235 = scmp.eq.s32.totalorder %s105, 0
      %p236 = por %p234, %p235
      %p237 = scmp.ne.s32.totalorder %s225, %s226
      %p238 = scmp.eq.s32.totalorder %s106, 1
      %p239 = por %p237, %p238
      %p241 = scmp.ne.s32.totalorder %s226, %s240
      %p242 = scmp.eq.s32.totalorder %s106, 0
      %p243 = por %p241, %p242
      %s245 = sadd.s32 %s244, 1
      %p248 = scmp.eq.s32.totalorder %s100, 1
      %p249 = scmp.ne.s32.totalorder %s244, %s246
      %p250 = scmp.eq.s32.totalorder %s100, 0
      %p251 = por %p249, %p250
      %p252 = scmp.ne.s32.totalorder %s244, %s246
      %p253 = scmp.eq.s32.totalorder %s105, 1
      %p254 = por %p252, %p253
      %p255 = scmp.ne.s32.totalorder %s246, %s247
      %p256 = scmp.eq.s32.totalorder %s105, 0
      %p257 = por %p255, %p256
      %p258 = scmp.ne.s32.totalorder %s246, %s247
      %p259 = scmp.eq.s32.totalorder %s106, 1
      %p260 = por %p258, %p259
      %p262 = scmp.ne.s32.totalorder %s247, %s261
      %p263 = scmp.eq.s32.totalorder %s106, 0
      %p264 = por %p262, %p263
      %s266 = sadd.s32 %s265, 1
      %p269 = scmp.eq.s32.totalorder %s100, 1
      %p270 = scmp.ne.s32.totalorder %s265, %s267
      %p271 = scmp.eq.s32.totalorder %s100, 0
      %p272 = por %p270, %p271
      %p273 = scmp.ne.s32.totalorder %s265, %s267
      %p274 = scmp.eq.s32.totalorder %s105, 1
      %p275 = por %p273, %p274
      %p276 = scmp.ne.s32.totalorder %s267, %s268
      %p277 = scmp.eq.s32.totalorder %s105, 0
      %p278 = por %p276, %p277
      %p279 = scmp.ne.s32.totalorder %s267, %s268
      %p280 = scmp.eq.s32.totalorder %s106, 1
      %p281 = por %p279, %p280
      %p283 = scmp.ne.s32.totalorder %s268, %s282
      %p284 = scmp.eq.s32.totalorder %s106, 0
      %p285 = por %p283, %p284
      %s287 = sadd.s32 %s286, 1
      %p290 = scmp.eq.s32.totalorder %s100, 1
      %p291 = scmp.ne.s32.totalorder %s286, %s288
      %p292 = scmp.eq.s32.totalorder %s100, 0
      %p293 = por %p291, %p292
      %p294 = scmp.ne.s32.totalorder %s286, %s288
      %p295 = scmp.eq.s32.totalorder %s105, 1
      %p296 = por %p294, %p295
      %p297 = scmp.ne.s32.totalorder %s288, %s289
      %p298 = scmp.eq.s32.totalorder %s105, 0
      %p299 = por %p297, %p298
      %p300 = scmp.ne.s32.totalorder %s288, %s289
      %p301 = scmp.eq.s32.totalorder %s106, 1
      %p302 = por %p300, %p301
      %p304 = scmp.ne.s32.totalorder %s289, %s303
      %p305 = scmp.eq.s32.totalorder %s106, 0
      %p306 = por %p304, %p305
      %s308 = sadd.s32 %s307, 1
      %p311 = scmp.eq.s32.totalorder %s100, 1
      %p312 = scmp.ne.s32.totalorder %s307, %s309
      %p313 = scmp.eq.s32.totalorder %s100, 0
      %p314 = por %p312, %p313
      %p315 = scmp.ne.s32.totalorder %s307, %s309
      %p316 = scmp.eq.s32.totalorder %s105, 1
      %p317 = por %p315, %p316
      %p318 = scmp.ne.s32.totalorder %s309, %s310
      %p319 = scmp.eq.s32.totalorder %s105, 0
      %p320 = por %p318, %p319
      %p321 = scmp.ne.s32.totalorder %s309, %s310
      %p322 = scmp.eq.s32.totalorder %s106, 1
      %p323 = por %p321, %p322
      %p325 = scmp.ne.s32.totalorder %s310, %s324
      %p326 = scmp.eq.s32.totalorder %s106, 0
      %p327 = por %p325, %p326
      %s329 = sadd.s32 %s328, 1
      %p332 = scmp.eq.s32.totalorder %s100, 1
      %p333 = scmp.ne.s32.totalorder %s328, %s330
      %p334 = scmp.eq.s32.totalorder %s100, 0
      %p335 = por %p333, %p334
      %p336 = scmp.ne.s32.totalorder %s328, %s330
      %p337 = scmp.eq.s32.totalorder %s105, 1
      %p338 = por %p336, %p337
      %p339 = scmp.ne.s32.totalorder %s330, %s331
      %p340 = scmp.eq.s32.totalorder %s105, 0
      %p341 = por %p339, %p340
      %p342 = scmp.ne.s32.totalorder %s330, %s331
      %p343 = scmp.eq.s32.totalorder %s106, 1
      %p344 = por %p342, %p343
      %p346 = scmp.ne.s32.totalorder %s331, %s345
      %p347 = scmp.eq.s32.totalorder %s106, 0
      %p348 = por %p346, %p347
      %s350 = sadd.s32 %s349, 1
      %p353 = scmp.eq.s32.totalorder %s100, 1
      %p354 = scmp.ne.s32.totalorder %s349, %s351
      %p355 = scmp.eq.s32.totalorder %s100, 0
      %p356 = por %p354, %p355
      %p357 = scmp.ne.s32.totalorder %s349, %s351
      %p358 = scmp.eq.s32.totalorder %s105, 1
      %p359 = por %p357, %p358
      %p360 = scmp.ne.s32.totalorder %s351, %s352
      %p361 = scmp.eq.s32.totalorder %s105, 0
      %p362 = por %p360, %p361
      %p363 = scmp.ne.s32.totalorder %s351, %s352
      %p364 = scmp.eq.s32.totalorder %s106, 1
      %p365 = por %p363, %p364
      %p367 = scmp.ne.s32.totalorder %s352, %s366
      %p368 = scmp.eq.s32.totalorder %s106, 0
      %p369 = por %p367, %p368
      %s371 = sadd.s32 %s370, 1
      %p374 = scmp.eq.s32.totalorder %s100, 1
      %p375 = scmp.ne.s32.totalorder %s370, %s372
      %p376 = scmp.eq.s32.totalorder %s100, 0
      %p377 = por %p375, %p376
      %p378 = scmp.ne.s32.totalorder %s370, %s372
      %p379 = scmp.eq.s32.totalorder %s105, 1
      %p380 = por %p378, %p379
      %p381 = scmp.ne.s32.totalorder %s372, %s373
      %p382 = scmp.eq.s32.totalorder %s105, 0
      %p383 = por %p381, %p382
      %p384 = scmp.ne.s32.totalorder %s372, %s373
      %p385 = scmp.eq.s32.totalorder %s106, 1
      %p386 = por %p384, %p385
      %p388 = scmp.ne.s32.totalorder %s373, %s387
      %p389 = scmp.eq.s32.totalorder %s106, 0
      %p390 = por %p388, %p389
      %s392 = sadd.s32 %s391, 1
      %p395 = scmp.eq.s32.totalorder %s100, 1
      %p396 = scmp.ne.s32.totalorder %s391, %s393
      %p397 = scmp.eq.s32.totalorder %s100, 0
      %p398 = por %p396, %p397
      %p399 = scmp.ne.s32.totalorder %s391, %s393
      %p400 = scmp.eq.s32.totalorder %s105, 1
      %p401 = por %p399, %p400
      %p402 = scmp.ne.s32.totalorder %s393, %s394
      %p403 = scmp.eq.s32.totalorder %s105, 0
      %p404 = por %p402, %p403
      %p405 = scmp.ne.s32.totalorder %s393, %s394
      %p406 = scmp.eq.s32.totalorder %s106, 1
      %p407 = por %p405, %p406
      %p409 = scmp.ne.s32.totalorder %s394, %s408
      %p410 = scmp.eq.s32.totalorder %s106, 0
      %p411 = por %p409, %p410
      %s413 = sadd.s32 %s412, 1
      %p416 = scmp.eq.s32.totalorder %s100, 1
      %p417 = scmp.ne.s32.totalorder %s412, %s414
      %p418 = scmp.eq.s32.totalorder %s100, 0
      %p419 = por %p417, %p418
      %p420 = scmp.ne.s32.totalorder %s412, %s414
      %p421 = scmp.eq.s32.totalorder %s105, 1
      %p422 = por %p420, %p421
      %p423 = scmp.ne.s32.totalorder %s414, %s415
      %p424 = scmp.eq.s32.totalorder %s105, 0
      %p425 = por %p423, %p424
      %p426 = scmp.ne.s32.totalorder %s414, %s415
      %p427 = scmp.eq.s32.totalorder %s106, 1
      %p428 = por %p426, %p427
      %p430 = scmp.ne.s32.totalorder %s415, %s429
      %p431 = scmp.eq.s32.totalorder %s106, 0
      %p432 = por %p430, %p431
      %s434 = sadd.s32 %s433, 1
      %p437 = scmp.eq.s32.totalorder %s100, 1
      %p438 = scmp.ne.s32.totalorder %s433, %s435
      %p439 = scmp.eq.s32.totalorder %s100, 0
      %p440 = por %p438, %p439
      %p441 = scmp.ne.s32.totalorder %s433, %s435
      %p442 = scmp.eq.s32.totalorder %s105, 1
      %p443 = por %p441, %p442
      %p444 = scmp.ne.s32.totalorder %s435, %s436
      %p445 = scmp.eq.s32.totalorder %s105, 0
      %p446 = por %p444, %p445
      %p447 = scmp.ne.s32.totalorder %s435, %s436
      %p448 = scmp.eq.s32.totalorder %s106, 1
      %p449 = por %p447, %p448
      %p451 = scmp.ne.s32.totalorder %s436, %s450
      %p452 = scmp.eq.s32.totalorder %s106, 0
      %p453 = por %p451, %p452
      %s455 = sadd.s32 %s454, 1
      %p458 = scmp.eq.s32.totalorder %s100, 1
      %p459 = scmp.ne.s32.totalorder %s454, %s456
      %p460 = scmp.eq.s32.totalorder %s100, 0
      %p461 = por %p459, %p460
      %p462 = scmp.ne.s32.totalorder %s454, %s456
      %p463 = scmp.eq.s32.totalorder %s105, 1
      %p464 = por %p462, %p463
      %p465 = scmp.ne.s32.totalorder %s456, %s457
      %p466 = scmp.eq.s32.totalorder %s105, 0
      %p467 = por %p465, %p466
      %p468 = scmp.ne.s32.totalorder %s456, %s457
      %p469 = scmp.eq.s32.totalorder %s106, 1
      %p470 = por %p468, %p469
      %p472 = scmp.ne.s32.totalorder %s457, %s471
      %p473 = scmp.eq.s32.totalorder %s106, 0
      %p474 = por %p472, %p473
      %s476 = sadd.s32 %s475, 1
      %p479 = scmp.eq.s32.totalorder %s100, 1
      %p480 = scmp.ne.s32.totalorder %s475, %s477
      %p481 = scmp.eq.s32.totalorder %s100, 0
      %p482 = por %p480, %p481
      %p483 = scmp.ne.s32.totalorder %s475, %s477
      %p484 = scmp.eq.s32.totalorder %s105, 1
      %p485 = por %p483, %p484
      %p486 = scmp.ne.s32.totalorder %s477, %s478
      %p487 = scmp.eq.s32.totalorder %s105, 0
      %p488 = por %p486, %p487
      %p489 = scmp.ne.s32.totalorder %s477, %s478
      %p490 = scmp.eq.s32.totalorder %s106, 1
      %p491 = por %p489, %p490
      %p493 = scmp.ne.s32.totalorder %s478, %s492
      %p494 = scmp.eq.s32.totalorder %s106, 0
      %p495 = por %p493, %p494
      %s497 = sadd.s32 %s496, 1
      %p500 = scmp.eq.s32.totalorder %s100, 1
      %p501 = scmp.ne.s32.totalorder %s496, %s498
      %p502 = scmp.eq.s32.totalorder %s100, 0
      %p503 = por %p501, %p502
      %p504 = scmp.ne.s32.totalorder %s496, %s498
      %p505 = scmp.eq.s32.totalorder %s105, 1
      %p506 = por %p504, %p505
      %p507 = scmp.ne.s32.totalorder %s498, %s499
      %p508 = scmp.eq.s32.totalorder %s105, 0
      %p509 = por %p507, %p508
      %p510 = scmp.ne.s32.totalorder %s498, %s499
      %p511 = scmp.eq.s32.totalorder %s106, 1
      %p512 = por %p510, %p511
      %p514 = scmp.ne.s32.totalorder %s499, %s513
      %p515 = scmp.eq.s32.totalorder %s106, 0
      %p516 = por %p514, %p515
      %s518 = sadd.s32 %s517, 1
      %p521 = scmp.eq.s32.totalorder %s100, 1
      %p522 = scmp.ne.s32.totalorder %s517, %s519
      %p523 = scmp.eq.s32.totalorder %s100, 0
      %p524 = por %p522, %p523
      %p525 = scmp.ne.s32.totalorder %s517, %s519
      %p526 = scmp.eq.s32.totalorder %s105, 1
      %p527 = por %p525, %p526
      %p528 = scmp.ne.s32.totalorder %s519, %s520
      %p529 = scmp.eq.s32.totalorder %s105, 0
      %p530 = por %p528, %p529
      %p531 = scmp.ne.s32.totalorder %s519, %s520
      %p532 = scmp.eq.s32.totalorder %s106, 1
      %p533 = por %p531, %p532
      %p535 = scmp.ne.s32.totalorder %s520, %s534
      %p536 = scmp.eq.s32.totalorder %s106, 0
      %p537 = por %p535, %p536
      %s539 = sadd.s32 %s538, 1
      %p542 = scmp.eq.s32.totalorder %s100, 1
      %p543 = scmp.ne.s32.totalorder %s538, %s540
      %p544 = scmp.eq.s32.totalorder %s100, 0
      %p545 = por %p543, %p544
      %p546 = scmp.ne.s32.totalorder %s538, %s540
      %p547 = scmp.eq.s32.totalorder %s105, 1
      %p548 = por %p546, %p547
      %p549 = scmp.ne.s32.totalorder %s540, %s541
      %p550 = scmp.eq.s32.totalorder %s105, 0
      %p551 = por %p549, %p550
      %p552 = scmp.ne.s32.totalorder %s540, %s541
      %p553 = scmp.eq.s32.totalorder %s106, 1
      %p554 = por %p552, %p553
      %p556 = scmp.ne.s32.totalorder %s541, %s555
      %p557 = scmp.eq.s32.totalorder %s106, 0
      %p558 = por %p556, %p557
      %s560 = sadd.s32 %s559, 1
      %p563 = scmp.eq.s32.totalorder %s100, 1
      %p564 = scmp.ne.s32.totalorder %s559, %s561
      %p565 = scmp.eq.s32.totalorder %s100, 0
      %p566 = por %p564, %p565
      %p567 = scmp.ne.s32.totalorder %s559, %s561
      %p568 = scmp.eq.s32.totalorder %s105, 1
      %p569 = por %p567, %p568
      %p570 = scmp.ne.s32.totalorder %s561, %s562
      %p571 = scmp.eq.s32.totalorder %s105, 0
      %p572 = por %p570, %p571
      %p573 = scmp.ne.s32.totalorder %s561, %s562
      %p574 = scmp.eq.s32.totalorder %s106, 1
      %p575 = por %p573, %p574
      %p577 = scmp.ne.s32.totalorder %s562, %s576
      %p578 = scmp.eq.s32.totalorder %s106, 0
      %p579 = por %p577, %p578
      %s581 = sadd.s32 %s580, 1
      %p584 = scmp.eq.s32.totalorder %s100, 1
      %p585 = scmp.ne.s32.totalorder %s580, %s582
      %p586 = scmp.eq.s32.totalorder %s100, 0
      %p587 = por %p585, %p586
      %p588 = scmp.ne.s32.totalorder %s580, %s582
      %p589 = scmp.eq.s32.totalorder %s105, 1
      %p590 = por %p588, %p589
      %p591 = scmp.ne.s32.totalorder %s582, %s583
      %p592 = scmp.eq.s32.totalorder %s105, 0
      %p593 = por %p591, %p592
      %p594 = scmp.ne.s32.totalorder %s582, %s583
      %p595 = scmp.eq.s32.totalorder %s106, 1
      %p596 = por %p594, %p595
      %p598 = scmp.ne.s32.totalorder %s583, %s597
      %p599 = scmp.eq.s32.totalorder %s106, 0
      %p600 = por %p598, %p599
      %s602 = sadd.s32 %s601, 1
      %p605 = scmp.eq.s32.totalorder %s100, 1
      %p606 = scmp.ne.s32.totalorder %s601, %s603
      %p607 = scmp.eq.s32.totalorder %s100, 0
      %p608 = por %p606, %p607
      %p609 = scmp.ne.s32.totalorder %s601, %s603
      %p610 = scmp.eq.s32.totalorder %s105, 1
      %p611 = por %p609, %p610
      %p612 = scmp.ne.s32.totalorder %s603, %s604
      %p613 = scmp.eq.s32.totalorder %s105, 0
      %p614 = por %p612, %p613
      %p615 = scmp.ne.s32.totalorder %s603, %s604
      %p616 = scmp.eq.s32.totalorder %s106, 1
      %p617 = por %p615, %p616
      %p619 = scmp.ne.s32.totalorder %s604, %s618
      %p620 = scmp.eq.s32.totalorder %s106, 0
      %p621 = por %p619, %p620
      %s623 = sadd.s32 %s622, 1
      %p626 = scmp.eq.s32.totalorder %s100, 1
      %p627 = scmp.ne.s32.totalorder %s622, %s624
      %p628 = scmp.eq.s32.totalorder %s100, 0
      %p629 = por %p627, %p628
      %p630 = scmp.ne.s32.totalorder %s622, %s624
      %p631 = scmp.eq.s32.totalorder %s105, 1
      %p632 = por %p630, %p631
      %p633 = scmp.ne.s32.totalorder %s624, %s625
      %p634 = scmp.eq.s32.totalorder %s105, 0
      %p635 = por %p633, %p634
      %p636 = scmp.ne.s32.totalorder %s624, %s625
      %p637 = scmp.eq.s32.totalorder %s106, 1
      %p638 = por %p636, %p637
      %p640 = scmp.ne.s32.totalorder %s625, %s639
      %p641 = scmp.eq.s32.totalorder %s106, 0
      %p642 = por %p640, %p641
      %s644 = sadd.s32 %s643, 1
      %p647 = scmp.eq.s32.totalorder %s100, 1
      %p648 = scmp.ne.s32.totalorder %s643, %s645
      %p649 = scmp.eq.s32.totalorder %s100, 0
      %p650 = por %p648, %p649
      %p651 = scmp.ne.s32.totalorder %s643, %s645
      %p652 = scmp.eq.s32.totalorder %s105, 1
      %p653 = por %p651, %p652
      %p654 = scmp.ne.s32.totalorder %s645, %s646
      %p655 = scmp.eq.s32.totalorder %s105, 0
      %p656 = por %p654, %p655
      %p657 = scmp.ne.s32.totalorder %s645, %s646
      %p658 = scmp.eq.s32.totalorder %s106, 1
      %p659 = por %p657, %p658
      %p661 = scmp.ne.s32.totalorder %s646, %s660
      %p662 = scmp.eq.s32.totalorder %s106, 0
      %p663 = por %p661, %p662
      %s665 = sadd.s32 %s664, 1
      %p668 = scmp.eq.s32.totalorder %s100, 1
      %p669 = scmp.ne.s32.totalorder %s664, %s666
      %p670 = scmp.eq.s32.totalorder %s100, 0
      %p671 = por %p669, %p670
      %p672 = scmp.ne.s32.totalorder %s664, %s666
      %p673 = scmp.eq.s32.totalorder %s105, 1
      %p674 = por %p672, %p673
      %p675 = scmp.ne.s32.totalorder %s666, %s667
      %p676 = scmp.eq.s32.totalorder %s105, 0
      %p677 = por %p675, %p676
      %p678 = scmp.ne.s32.totalorder %s666, %s667
      %p679 = scmp.eq.s32.totalorder %s106, 1
      %p680 = por %p678, %p679
      %p682 = scmp.ne.s32.totalorder %s667, %s681
      %p683 = scmp.eq.s32.totalorder %s106, 0
      %p684 = por %p682, %p683
      %s686 = sadd.s32 %s685, 1
      %p689 = scmp.eq.s32.totalorder %s100, 1
      %p690 = scmp.ne.s32.totalorder %s685, %s687
      %p691 = scmp.eq.s32.totalorder %s100, 0
      %p692 = por %p690, %p691
      %p693 = scmp.ne.s32.totalorder %s685, %s687
      %p694 = scmp.eq.s32.totalorder %s105, 1
      %p695 = por %p693, %p694
      %p696 = scmp.ne.s32.totalorder %s687, %s688
      %p697 = scmp.eq.s32.totalorder %s105, 0
      %p698 = por %p696, %p697
      %p699 = scmp.ne.s32.totalorder %s687, %s688
      %p700 = scmp.eq.s32.totalorder %s106, 1
      %p701 = por %p699, %p700
      %p703 = scmp.ne.s32.totalorder %s688, %s702
      %p704 = scmp.eq.s32.totalorder %s106, 0
      %p705 = por %p703, %p704
      %s707 = sadd.s32 %s706, 1
      %p710 = scmp.eq.s32.totalorder %s100, 1
      %p711 = scmp.ne.s32.totalorder %s706, %s708
      %p712 = scmp.eq.s32.totalorder %s100, 0
      %p713 = por %p711, %p712
      %p714 = scmp.ne.s32.totalorder %s706, %s708
      %p715 = scmp.eq.s32.totalorder %s105, 1
      %p716 = por %p714, %p715
      %p717 = scmp.ne.s32.totalorder %s708, %s709
      %p718 = scmp.eq.s32.totalorder %s105, 0
      %p719 = por %p717, %p718
      %p720 = scmp.ne.s32.totalorder %s708, %s709
      %p721 = scmp.eq.s32.totalorder %s106, 1
      %p722 = por %p720, %p721
      %p724 = scmp.ne.s32.totalorder %s709, %s723
      %p725 = scmp.eq.s32.totalorder %s106, 0
      %p726 = por %p724, %p725
      %s728 = sadd.s32 %s727, 1
      %p731 = scmp.eq.s32.totalorder %s100, 1
      %p732 = scmp.ne.s32.totalorder %s727, %s729
      %p733 = scmp.eq.s32.totalorder %s100, 0
      %p734 = por %p732, %p733
      %p735 = scmp.ne.s32.totalorder %s727, %s729
      %p736 = scmp.eq.s32.totalorder %s105, 1
      %p737 = por %p735, %p736
      %p738 = scmp.ne.s32.totalorder %s729, %s730
      %p739 = scmp.eq.s32.totalorder %s105, 0
      %p740 = por %p738, %p739
      %p741 = scmp.ne.s32.totalorder %s729, %s730
      %p742 = scmp.eq.s32.totalorder %s106, 1
      %p743 = por %p741, %p742
      %p745 = scmp.ne.s32.totalorder %s730, %s744
      %p746 = scmp.eq.s32.totalorder %s106, 0
      %p747 = por %p745, %p746
      %s749 = sadd.s32 %s748, 1
      %p752 = scmp.eq.s32.totalorder %s100, 1
      %p753 = scmp.ne.s32.totalorder %s748, %s750
      %p754 = scmp.eq.s32.totalorder %s100, 0
      %p755 = por %p753, %p754
      %p756 = scmp.ne.s32.totalorder %s748, %s750
      %p757 = scmp.eq.s32.totalorder %s105, 1
      %p758 = por %p756, %p757
      %p759 = scmp.ne.s32.totalorder %s750, %s751
      %p760 = scmp.eq.s32.totalorder %s105, 0
      %p761 = por %p759, %p760
      %p762 = scmp.ne.s32.totalorder %s750, %s751
      %p763 = scmp.eq.s32.totalorder %s106, 1
      %p764 = por %p762, %p763
      %p766 = scmp.ne.s32.totalorder %s751, %s765
      %p767 = scmp.eq.s32.totalorder %s106, 0
      %p768 = por %p766, %p767
      %s769 = ssub.s32 %s100, %s107
      %p770 = scmp.eq.s32.totalorder %s769, 0
      %s772 = sadd.s32 %s771, 1
      %s773 = scalar_select %p770, %s771, %s772
      %p776 = pneg %p770
      %p777 = scmp.eq.s32.totalorder %s100, 1
      %p778 = por %p776, %p777
      %p779 = scmp.ne.s32.totalorder %s771, %s774
      %p780 = scmp.eq.s32.totalorder %s100, 0
      %p781 = por %p779, %p780
      %p782 = scmp.ne.s32.totalorder %s771, %s774
      %p783 = scmp.eq.s32.totalorder %s105, 1
      %p784 = por %p782, %p783
      %p785 = scmp.ne.s32.totalorder %s774, %s775
      %p786 = scmp.eq.s32.totalorder %s105, 0
      %p787 = por %p785, %p786
      %p788 = scmp.ne.s32.totalorder %s774, %s775
      %p789 = scmp.eq.s32.totalorder %s106, 1
      %p790 = por %p788, %p789
      %p792 = scmp.ne.s32.totalorder %s775, %s791
      %p793 = scmp.eq.s32.totalorder %s106, 0
      %p794 = por %p792, %p793
      %s795 = ssub.s32 %s100, %s107
      %p796 = scmp.eq.s32.totalorder %s795, 0
      %s798 = sadd.s32 %s797, 1
      %s799 = scalar_select %p796, %s797, %s798
      %p802 = pneg %p796
      %p803 = scmp.eq.s32.totalorder %s100, 1
      %p804 = por %p802, %p803
      %p805 = scmp.ne.s32.totalorder %s797, %s800
      %p806 = scmp.eq.s32.totalorder %s100, 0
      %p807 = por %p805, %p806
      %p808 = scmp.ne.s32.totalorder %s797, %s800
      %p809 = scmp.eq.s32.totalorder %s105, 1
      %p810 = por %p808, %p809
      %p811 = scmp.ne.s32.totalorder %s800, %s801
      %p812 = scmp.eq.s32.totalorder %s105, 0
      %p813 = por %p811, %p812
      %p814 = scmp.ne.s32.totalorder %s800, %s801
      %p815 = scmp.eq.s32.totalorder %s106, 1
      %p816 = por %p814, %p815
      %p818 = scmp.ne.s32.totalorder %s801, %s817
      %p819 = scmp.eq.s32.totalorder %s106, 0
      %p820 = por %p818, %p819
      %s821 = ssub.s32 %s100, %s107
      %p822 = scmp.eq.s32.totalorder %s821, 0
      %s824 = sadd.s32 %s823, 1
      %s825 = scalar_select %p822, %s823, %s824
      %p828 = pneg %p822
      %p829 = scmp.eq.s32.totalorder %s100, 1
      %p830 = por %p828, %p829
      %p831 = scmp.ne.s32.totalorder %s823, %s826
      %p832 = scmp.eq.s32.totalorder %s100, 0
      %p833 = por %p831, %p832
      %p834 = scmp.ne.s32.totalorder %s823, %s826
      %p835 = scmp.eq.s32.totalorder %s105, 1
      %p836 = por %p834, %p835
      %p837 = scmp.ne.s32.totalorder %s826, %s827
      %p838 = scmp.eq.s32.totalorder %s105, 0
      %p839 = por %p837, %p838
      %p840 = scmp.ne.s32.totalorder %s826, %s827
      %p841 = scmp.eq.s32.totalorder %s106, 1
      %p842 = por %p840, %p841
      %p844 = scmp.ne.s32.totalorder %s827, %s843
      %p845 = scmp.eq.s32.totalorder %s106, 0
      %p846 = por %p844, %p845
      %s847 = ssub.s32 %s100, %s107
      %p848 = scmp.eq.s32.totalorder %s847, 0
      %s850 = sadd.s32 %s849, 1
      %s851 = scalar_select %p848, %s849, %s850
      %p854 = pneg %p848
      %p855 = scmp.eq.s32.totalorder %s100, 1
      %p856 = por %p854, %p855
      %p857 = scmp.ne.s32.totalorder %s849, %s852
      %p858 = scmp.eq.s32.totalorder %s100, 0
      %p859 = por %p857, %p858
      %p860 = scmp.ne.s32.totalorder %s849, %s852
      %p861 = scmp.eq.s32.totalorder %s105, 1
      %p862 = por %p860, %p861
      %p863 = scmp.ne.s32.totalorder %s852, %s853
      %p864 = scmp.eq.s32.totalorder %s105, 0
      %p865 = por %p863, %p864
      %p866 = scmp.ne.s32.totalorder %s852, %s853
      %p867 = scmp.eq.s32.totalorder %s106, 1
      %p868 = por %p866, %p867
      %p870 = scmp.ne.s32.totalorder %s853, %s869
      %p871 = scmp.eq.s32.totalorder %s106, 0
      %p872 = por %p870, %p871
      %p873 = scmp.le.s32.totalorder 1, %s100
      %p874 = scmp.lt.s32.totalorder %s100, 3
      %p875 = pnand %p873, %p874
      %p876 = pneg %p875
      // Predicated region
      $region9: #{tpu_custom_call.1} parent=5 // pred_check
        _
      $region10: #{tpu_custom_call.1} parent=5 // pred_check_branch
        %878 = sbr.rel (%p875) target = $region12
      $region11: #{tpu_custom_call.1} parent=5 // pred_region
        %s879 = ssub.s32 %s100, 1
        // Predicated region
        $region13: #{tpu_custom_call.1} parent=11 // pred_check
          %p880 = pneg %p173
        $region14: #{tpu_custom_call.1} parent=11 // pred_check_branch
          %882 = sbr.rel (%p880) target = $region16
        $region15: #{tpu_custom_call.1} parent=11 // pred_region
          _
        $region16: #{tpu_custom_call.1} parent=11 // pred_fallthru
          _
        // Predicated region
        $region17: #{tpu_custom_call.1} parent=11 // pred_check
          %p883 = pneg %p194
        $region18: #{tpu_custom_call.1} parent=11 // pred_check_branch
          %885 = sbr.rel (%p883) target = $region20
        $region19: #{tpu_custom_call.1} parent=11 // pred_region
          _
        $region20: #{tpu_custom_call.1} parent=11 // pred_fallthru
          _
        // Predicated region
        $region21: #{tpu_custom_call.1} parent=11 // pred_check
          %p886 = pneg %p215
        $region22: #{tpu_custom_call.1} parent=11 // pred_check_branch
          %888 = sbr.rel (%p886) target = $region24
        $region23: #{tpu_custom_call.1} parent=11 // pred_region
          _
        $region24: #{tpu_custom_call.1} parent=11 // pred_fallthru
          _
        // Predicated region
        $region25: #{tpu_custom_call.1} parent=11 // pred_check
          %p889 = pneg %p236
        $region26: #{tpu_custom_call.1} parent=11 // pred_check_branch
          %891 = sbr.rel (%p889) target = $region28
        $region27: #{tpu_custom_call.1} parent=11 // pred_region
          _
        $region28: #{tpu_custom_call.1} parent=11 // pred_fallthru
          _
        // Predicated region
        $region29: #{tpu_custom_call.1} parent=11 // pred_check
          %p892 = pneg %p257
        $region30: #{tpu_custom_call.1} parent=11 // pred_check_branch
          %894 = sbr.rel (%p892) target = $region32
        $region31: #{tpu_custom_call.1} parent=11 // pred_region
          %s896 = ssub.s32 16, 16
          %897 = vsyncadd [#allocation6], %s896
          %s899 = sshll.u32 [#allocation7], 4
          %s900 = int_to_ptr.vmem [resolvable:$true] %s899
          %902 = dma.hbm_to_vmem [thread:$0]  %s13, 16, %s900, [#allocation6]
        $region32: #{tpu_custom_call.1} parent=11 // pred_fallthru
          _
        // Predicated region
        $region33: #{tpu_custom_call.1} parent=11 // pred_check
          %p903 = pneg %p278
        $region34: #{tpu_custom_call.1} parent=11 // pred_check_branch
          %905 = sbr.rel (%p903) target = $region36
        $region35: #{tpu_custom_call.1} parent=11 // pred_region
          %s907 = ssub.s32 512, 512
          %908 = vsyncadd [#allocation9], %s907
          %s909 = sshll.u32 [#allocation8], 4
          %s910 = int_to_ptr.vmem [resolvable:$true] %s909
          %915 = dma.hbm_to_vmem [thread:$0]  %s15, 512, %s910, [#allocation9], 64, 64, 4
        $region36: #{tpu_custom_call.1} parent=11 // pred_fallthru
          _
        // Predicated region
        $region37: #{tpu_custom_call.1} parent=11 // pred_check
          %p916 = pneg %p299
        $region38: #{tpu_custom_call.1} parent=11 // pred_check_branch
          %918 = sbr.rel (%p916) target = $region40
        $region39: #{tpu_custom_call.1} parent=11 // pred_region
          %s920 = ssub.s32 16, 16
          %921 = vsyncadd [#allocation9], %s920
          %s923 = sshll.u32 [#allocation10], 4
          %s924 = int_to_ptr.vmem [resolvable:$true] %s923
          %926 = dma.hbm_to_vmem [thread:$0]  %s17, 16, %s924, [#allocation9]
        $region40: #{tpu_custom_call.1} parent=11 // pred_fallthru
          _
        // Predicated region
        $region41: #{tpu_custom_call.1} parent=11 // pred_check
          %p927 = pneg %p320
        $region42: #{tpu_custom_call.1} parent=11 // pred_check_branch
          %929 = sbr.rel (%p927) target = $region44
        $region43: #{tpu_custom_call.1} parent=11 // pred_region
          %s931 = ssub.s32 512, 512
          %932 = vsyncadd [#allocation12], %s931
          %s933 = sshll.u32 [#allocation11], 4
          %s934 = int_to_ptr.vmem [resolvable:$true] %s933
          %939 = dma.hbm_to_vmem [thread:$0]  %s19, 512, %s934, [#allocation12], 64, 64, 4
        $region44: #{tpu_custom_call.1} parent=11 // pred_fallthru
          _
        // Predicated region
        $region45: #{tpu_custom_call.1} parent=11 // pred_check
          %p940 = pneg %p341
        $region46: #{tpu_custom_call.1} parent=11 // pred_check_branch
          %942 = sbr.rel (%p940) target = $region48
        $region47: #{tpu_custom_call.1} parent=11 // pred_region
          %s944 = ssub.s32 16, 16
          %945 = vsyncadd [#allocation12], %s944
          %s947 = sshll.u32 [#allocation13], 4
          %s948 = int_to_ptr.vmem [resolvable:$true] %s947
          %950 = dma.hbm_to_vmem [thread:$0]  %s21, 16, %s948, [#allocation12]
        $region48: #{tpu_custom_call.1} parent=11 // pred_fallthru
          _
        // Predicated region
        $region49: #{tpu_custom_call.1} parent=11 // pred_check
          %p951 = pneg %p362
        $region50: #{tpu_custom_call.1} parent=11 // pred_check_branch
          %953 = sbr.rel (%p951) target = $region52
        $region51: #{tpu_custom_call.1} parent=11 // pred_region
          %s955 = ssub.s32 1024, 1024
          %956 = vsyncadd [#allocation15], %s955
          %s957 = sshll.u32 [#allocation14], 4
          %s958 = int_to_ptr.vmem [resolvable:$true] %s957
          %963 = dma.hbm_to_vmem [thread:$0]  %s23, 1024, %s958, [#allocation15], 128, 128, 8
        $region52: #{tpu_custom_call.1} parent=11 // pred_fallthru
          _
        // Predicated region
        $region53: #{tpu_custom_call.1} parent=11 // pred_check
          %p964 = pneg %p383
        $region54: #{tpu_custom_call.1} parent=11 // pred_check_branch
          %966 = sbr.rel (%p964) target = $region56
        $region55: #{tpu_custom_call.1} parent=11 // pred_region
          %s968 = ssub.s32 32, 32
          %969 = vsyncadd [#allocation15], %s968
          %s971 = sshll.u32 [#allocation16], 4
          %s972 = int_to_ptr.vmem [resolvable:$true] %s971
          %974 = dma.hbm_to_vmem [thread:$0]  %s25, 32, %s972, [#allocation15]
        $region56: #{tpu_custom_call.1} parent=11 // pred_fallthru
          _
        // Predicated region
        $region57: #{tpu_custom_call.1} parent=11 // pred_check
          %p975 = pneg %p404
        $region58: #{tpu_custom_call.1} parent=11 // pred_check_branch
          %977 = sbr.rel (%p975) target = $region60
        $region59: #{tpu_custom_call.1} parent=11 // pred_region
          %s979 = ssub.s32 4096, 4096
          %980 = vsyncadd [#allocation18], %s979
          %s981 = sshll.u32 [#allocation17], 4
          %s982 = int_to_ptr.vmem [resolvable:$true] %s981
          %987 = dma.hbm_to_vmem [thread:$0]  %s27, 4096, %s982, [#allocation18], 128, 128, 8
        $region60: #{tpu_custom_call.1} parent=11 // pred_fallthru
          _
        // Predicated region
        $region61: #{tpu_custom_call.1} parent=11 // pred_check
          %p988 = pneg %p425
        $region62: #{tpu_custom_call.1} parent=11 // pred_check_branch
          %990 = sbr.rel (%p988) target = $region64
        $region63: #{tpu_custom_call.1} parent=11 // pred_region
          %s992 = ssub.s32 32, 32
          %993 = vsyncadd [#allocation18], %s992
          %s995 = sshll.u32 [#allocation19], 4
          %s996 = int_to_ptr.vmem [resolvable:$true] %s995
          %998 = dma.hbm_to_vmem [thread:$0]  %s29, 32, %s996, [#allocation18]
        $region64: #{tpu_custom_call.1} parent=11 // pred_fallthru
          _
        // Predicated region
        $region65: #{tpu_custom_call.1} parent=11 // pred_check
          %p999 = pneg %p446
        $region66: #{tpu_custom_call.1} parent=11 // pred_check_branch
          %1001 = sbr.rel (%p999) target = $region68
        $region67: #{tpu_custom_call.1} parent=11 // pred_region
          _
        $region68: #{tpu_custom_call.1} parent=11 // pred_fallthru
          _
        // Predicated region
        $region69: #{tpu_custom_call.1} parent=11 // pred_check
          %p1002 = pneg %p467
        $region70: #{tpu_custom_call.1} parent=11 // pred_check_branch
          %1004 = sbr.rel (%p1002) target = $region72
        $region71: #{tpu_custom_call.1} parent=11 // pred_region
          %s1006 = ssub.s32 32, 32
          %1007 = vsyncadd [#allocation21], %s1006
          %s1009 = sshll.u32 [#allocation20], 4
          %s1010 = int_to_ptr.vmem [resolvable:$true] %s1009
          %1012 = dma.hbm_to_vmem [thread:$0]  %s33, 32, %s1010, [#allocation21]
        $region72: #{tpu_custom_call.1} parent=11 // pred_fallthru
          _
        // Predicated region
        $region73: #{tpu_custom_call.1} parent=11 // pred_check
          %p1013 = pneg %p488
        $region74: #{tpu_custom_call.1} parent=11 // pred_check_branch
          %1015 = sbr.rel (%p1013) target = $region76
        $region75: #{tpu_custom_call.1} parent=11 // pred_region
          _
        $region76: #{tpu_custom_call.1} parent=11 // pred_fallthru
          _
        // Predicated region
        $region77: #{tpu_custom_call.1} parent=11 // pred_check
          %p1016 = pneg %p509
        $region78: #{tpu_custom_call.1} parent=11 // pred_check_branch
          %1018 = sbr.rel (%p1016) target = $region80
        $region79: #{tpu_custom_call.1} parent=11 // pred_region
          %s1020 = ssub.s32 16, 16
          %1021 = vsyncadd [#allocation21], %s1020
          %s1023 = sshll.u32 [#allocation22], 4
          %s1024 = int_to_ptr.vmem [resolvable:$true] %s1023
          %1026 = dma.hbm_to_vmem [thread:$0]  %s37, 16, %s1024, [#allocation21]
        $region80: #{tpu_custom_call.1} parent=11 // pred_fallthru
          _
        // Predicated region
        $region81: #{tpu_custom_call.1} parent=11 // pred_check
          %p1027 = pneg %p530
        $region82: #{tpu_custom_call.1} parent=11 // pred_check_branch
          %1029 = sbr.rel (%p1027) target = $region84
        $region83: #{tpu_custom_call.1} parent=11 // pred_region
          %s1031 = ssub.s32 512, 512
          %1032 = vsyncadd [#allocation24], %s1031
          %s1033 = sshll.u32 [#allocation23], 4
          %s1034 = int_to_ptr.vmem [resolvable:$true] %s1033
          %1039 = dma.hbm_to_vmem [thread:$0]  %s39, 512, %s1034, [#allocation24], 64, 64, 4
        $region84: #{tpu_custom_call.1} parent=11 // pred_fallthru
          _
        // Predicated region
        $region85: #{tpu_custom_call.1} parent=11 // pred_check
          %p1040 = pneg %p551
        $region86: #{tpu_custom_call.1} parent=11 // pred_check_branch
          %1042 = sbr.rel (%p1040) target = $region88
        $region87: #{tpu_custom_call.1} parent=11 // pred_region
          %s1044 = ssub.s32 16, 16
          %1045 = vsyncadd [#allocation24], %s1044
          %s1047 = sshll.u32 [#allocation25], 4
          %s1048 = int_to_ptr.vmem [resolvable:$true] %s1047
          %1050 = dma.hbm_to_vmem [thread:$0]  %s41, 16, %s1048, [#allocation24]
        $region88: #{tpu_custom_call.1} parent=11 // pred_fallthru
          _
        // Predicated region
        $region89: #{tpu_custom_call.1} parent=11 // pred_check
          %p1051 = pneg %p572
        $region90: #{tpu_custom_call.1} parent=11 // pred_check_branch
          %1053 = sbr.rel (%p1051) target = $region92
        $region91: #{tpu_custom_call.1} parent=11 // pred_region
          %s1055 = ssub.s32 512, 512
          %1056 = vsyncadd [#allocation27], %s1055
          %s1057 = sshll.u32 [#allocation26], 4
          %s1058 = int_to_ptr.vmem [resolvable:$true] %s1057
          %1063 = dma.hbm_to_vmem [thread:$0]  %s43, 512, %s1058, [#allocation27], 64, 64, 4
        $region92: #{tpu_custom_call.1} parent=11 // pred_fallthru
          _
        // Predicated region
        $region93: #{tpu_custom_call.1} parent=11 // pred_check
          %p1064 = pneg %p593
        $region94: #{tpu_custom_call.1} parent=11 // pred_check_branch
          %1066 = sbr.rel (%p1064) target = $region96
        $region95: #{tpu_custom_call.1} parent=11 // pred_region
          %s1068 = ssub.s32 16, 16
          %1069 = vsyncadd [#allocation27], %s1068
          %s1071 = sshll.u32 [#allocation28], 4
          %s1072 = int_to_ptr.vmem [resolvable:$true] %s1071
          %1074 = dma.hbm_to_vmem [thread:$0]  %s45, 16, %s1072, [#allocation27]
        $region96: #{tpu_custom_call.1} parent=11 // pred_fallthru
          _
        // Predicated region
        $region97: #{tpu_custom_call.1} parent=11 // pred_check
          %p1075 = pneg %p614
        $region98: #{tpu_custom_call.1} parent=11 // pred_check_branch
          %1077 = sbr.rel (%p1075) target = $region100
        $region99: #{tpu_custom_call.1} parent=11 // pred_region
          %s1079 = ssub.s32 1024, 1024
          %1080 = vsyncadd [#allocation30], %s1079
          %s1081 = sshll.u32 [#allocation29], 4
          %s1082 = int_to_ptr.vmem [resolvable:$true] %s1081
          %1087 = dma.hbm_to_vmem [thread:$0]  %s47, 1024, %s1082, [#allocation30], 128, 128, 8
        $region100: #{tpu_custom_call.1} parent=11 // pred_fallthru
          _
        // Predicated region
        $region101: #{tpu_custom_call.1} parent=11 // pred_check
          %p1088 = pneg %p635
        $region102: #{tpu_custom_call.1} parent=11 // pred_check_branch
          %1090 = sbr.rel (%p1088) target = $region104
        $region103: #{tpu_custom_call.1} parent=11 // pred_region
          %s1092 = ssub.s32 32, 32
          %1093 = vsyncadd [#allocation30], %s1092
          %s1095 = sshll.u32 [#allocation31], 4
          %s1096 = int_to_ptr.vmem [resolvable:$true] %s1095
          %1098 = dma.hbm_to_vmem [thread:$0]  %s49, 32, %s1096, [#allocation30]
        $region104: #{tpu_custom_call.1} parent=11 // pred_fallthru
          _
        // Predicated region
        $region105: #{tpu_custom_call.1} parent=11 // pred_check
          %p1099 = pneg %p656
        $region106: #{tpu_custom_call.1} parent=11 // pred_check_branch
          %1101 = sbr.rel (%p1099) target = $region108
        $region107: #{tpu_custom_call.1} parent=11 // pred_region
          _
        $region108: #{tpu_custom_call.1} parent=11 // pred_fallthru
          _
        // Predicated region
        $region109: #{tpu_custom_call.1} parent=11 // pred_check
          %p1102 = pneg %p677
        $region110: #{tpu_custom_call.1} parent=11 // pred_check_branch
          %1104 = sbr.rel (%p1102) target = $region112
        $region111: #{tpu_custom_call.1} parent=11 // pred_region
          _
        $region112: #{tpu_custom_call.1} parent=11 // pred_fallthru
          _
        // Predicated region
        $region113: #{tpu_custom_call.1} parent=11 // pred_check
          %p1105 = pneg %p698
        $region114: #{tpu_custom_call.1} parent=11 // pred_check_branch
          %1107 = sbr.rel (%p1105) target = $region116
        $region115: #{tpu_custom_call.1} parent=11 // pred_region
          %s1109 = ssub.s32 512, 512
          %1110 = vsyncadd [#allocation33], %s1109
          %s1111 = sshll.u32 [#allocation32], 4
          %s1112 = int_to_ptr.vmem [resolvable:$true] %s1111
          %1117 = dma.hbm_to_vmem [thread:$0]  %s55, 512, %s1112, [#allocation33], 64, 64, 4
        $region116: #{tpu_custom_call.1} parent=11 // pred_fallthru
          _
        // Predicated region
        $region117: #{tpu_custom_call.1} parent=11 // pred_check
          %p1118 = pneg %p719
        $region118: #{tpu_custom_call.1} parent=11 // pred_check_branch
          %1120 = sbr.rel (%p1118) target = $region120
        $region119: #{tpu_custom_call.1} parent=11 // pred_region
          _
        $region120: #{tpu_custom_call.1} parent=11 // pred_fallthru
          _
        // Predicated region
        $region121: #{tpu_custom_call.1} parent=11 // pred_check
          %p1121 = pneg %p740
        $region122: #{tpu_custom_call.1} parent=11 // pred_check_branch
          %1123 = sbr.rel (%p1121) target = $region124
        $region123: #{tpu_custom_call.1} parent=11 // pred_region
          %s1125 = ssub.s32 512, 512
          %1126 = vsyncadd [#allocation33], %s1125
          %s1127 = sshll.u32 [#allocation34], 4
          %s1128 = int_to_ptr.vmem [resolvable:$true] %s1127
          %1133 = dma.hbm_to_vmem [thread:$0]  %s59, 512, %s1128, [#allocation33], 64, 64, 4
        $region124: #{tpu_custom_call.1} parent=11 // pred_fallthru
          _
        // Predicated region
        $region125: #{tpu_custom_call.1} parent=11 // pred_check
          %p1134 = pneg %p761
        $region126: #{tpu_custom_call.1} parent=11 // pred_check_branch
          %1136 = sbr.rel (%p1134) target = $region128
        $region127: #{tpu_custom_call.1} parent=11 // pred_region
          _
        $region128: #{tpu_custom_call.1} parent=11 // pred_fallthru
          _
      $region12: #{tpu_custom_call.1} parent=5 // pred_fallthru
        _
      %p1137 = scmp.lt.s32.totalorder %s100, 2
      // Predicated region
      $region129: #{tpu_custom_call.1} parent=5 // pred_check
        %p1138 = pneg %p1137
      $region130: #{tpu_custom_call.1} parent=5 // pred_check_branch
        %1140 = sbr.rel (%p1138) target = $region132
      $region131: #{tpu_custom_call.1} parent=5 // pred_region
        // Predicated region
        $region133: #{tpu_custom_call.1} parent=131 // pred_check
          %p1141 = pneg %p120
        $region134: #{tpu_custom_call.1} parent=131 // pred_check_branch
          %1143 = sbr.rel (%p1141) target = $region136
        $region135: #{tpu_custom_call.1} parent=131 // pred_region
          %s1144 = sand.u32 %s110, 1
          %s1145 = scalar_lea.sflag [#allocation3], %s1144
          %s1146 = sand.u32 %s110, 1
          %s1147 = smul.addr %s1146, 32
          %s1148 = scalar_lea.vmem [#allocation2], %s1147
          %s1149 = smul.u32 2, %s100
          %s1151 = ssub.s32 512, 512
          %1152 = vsyncadd %s1145, %s1151
          %s1153 = smul.addr %s1149, 2
          %s1154 = smul.addr %s1153, 128
          %s1155 = scalar_lea.hbm %s1, %s1154
          %s1156 = sshll.u32 %s1148, 4
          %s1157 = int_to_ptr.vmem [resolvable:$true] %s1156
          %1162 = dma.hbm_to_vmem [thread:$0]  %s1155, 512, %s1157, %s1145, 256, 256, 16
        $region136: #{tpu_custom_call.1} parent=131 // pred_fallthru
          _
        // Predicated region
        $region137: #{tpu_custom_call.1} parent=131 // pred_check
          %p1163 = pneg %p146
        $region138: #{tpu_custom_call.1} parent=131 // pred_check_branch
          %1165 = sbr.rel (%p1163) target = $region140
        $region139: #{tpu_custom_call.1} parent=131 // pred_region
          %s1166 = sand.u32 %s100, 1
          %s1167 = scalar_lea.sflag [#allocation6], %s1166
          %s1168 = sand.u32 %s136, 1
          %s1169 = smul.addr %s1168, 16
          %s1170 = scalar_lea.vmem [#allocation5], %s1169
          %s1171 = smul.u32 2, %s100
          %s1173 = ssub.s32 256, 256
          %1174 = vsyncadd %s1167, %s1173
          %s1175 = smul.addr %s1171, 128
          %s1176 = scalar_lea.hbm %s3, %s1175
          %s1177 = sshll.u32 %s1170, 4
          %s1178 = int_to_ptr.vmem [resolvable:$true] %s1177
          %1183 = dma.hbm_to_vmem [thread:$0]  %s1176, 256, %s1178, %s1167, 128, 128, 8
        $region140: #{tpu_custom_call.1} parent=131 // pred_fallthru
          _
      $region132: #{tpu_custom_call.1} parent=5 // pred_fallthru
        _
      %p1184 = scmp.le.s32.totalorder 1, %s100
      %p1185 = scmp.lt.s32.totalorder %s100, 3
      %p1186 = pnand %p1184, %p1185
      %p1187 = pneg %p1186
      // Predicated region
      $region141: #{tpu_custom_call.1} parent=5 // pred_check
        _
      $region142: #{tpu_custom_call.1} parent=5 // pred_check_branch
        %1189 = sbr.rel (%p1186) target = $region144
      $region143: #{tpu_custom_call.1} parent=5 // pred_region
        %s1190 = ssub.s32 %s100, 1
        %s1191 = sand.u32 %s113, 1
        %s1192 = scalar_lea.sflag [#allocation3], %s1191
        %s1193 = sand.u32 %s113, 1
        %s1194 = smul.addr %s1193, 32
        %s1195 = scalar_lea.vmem [#allocation2], %s1194
        // Predicated region
        $region145: #{tpu_custom_call.1} parent=143 // pred_check
          %p1196 = pneg %p126
        $region146: #{tpu_custom_call.1} parent=143 // pred_check_branch
          %1198 = sbr.rel (%p1196) target = $region148
        $region147: #{tpu_custom_call.1} parent=143 // pred_region
          %1199 = dma.done %s1192, 512
        $region148: #{tpu_custom_call.1} parent=143 // pred_fallthru
          _
        %s1200 = sand.u32 %s105, 1
        %s1201 = scalar_lea.sflag [#allocation6], %s1200
        %s1202 = sand.u32 %s139, 1
        %s1203 = smul.addr %s1202, 16
        %s1204 = scalar_lea.vmem [#allocation5], %s1203
        // Predicated region
        $region149: #{tpu_custom_call.1} parent=143 // pred_check
          %p1205 = pneg %p152
        $region150: #{tpu_custom_call.1} parent=143 // pred_check_branch
          %1207 = sbr.rel (%p1205) target = $region152
        $region151: #{tpu_custom_call.1} parent=143 // pred_region
          %1208 = dma.done %s1201, 256
        $region152: #{tpu_custom_call.1} parent=143 // pred_fallthru
          _
        // Predicated region
        $region153: #{tpu_custom_call.1} parent=143 // pred_check
          %p1209 = pneg %p257
        $region154: #{tpu_custom_call.1} parent=143 // pred_check_branch
          %1211 = sbr.rel (%p1209) target = $region156
        $region155: #{tpu_custom_call.1} parent=143 // pred_region
          %1212 = dma.done [#allocation6], 16
        $region156: #{tpu_custom_call.1} parent=143 // pred_fallthru
          _
        // Predicated region
        $region157: #{tpu_custom_call.1} parent=143 // pred_check
          %p1213 = pneg %p278
        $region158: #{tpu_custom_call.1} parent=143 // pred_check_branch
          %1215 = sbr.rel (%p1213) target = $region160
        $region159: #{tpu_custom_call.1} parent=143 // pred_region
          %1216 = dma.done [#allocation9], 512
        $region160: #{tpu_custom_call.1} parent=143 // pred_fallthru
          _
        // Predicated region
        $region161: #{tpu_custom_call.1} parent=143 // pred_check
          %p1217 = pneg %p299
        $region162: #{tpu_custom_call.1} parent=143 // pred_check_branch
          %1219 = sbr.rel (%p1217) target = $region164
        $region163: #{tpu_custom_call.1} parent=143 // pred_region
          %1220 = dma.done [#allocation9], 16
        $region164: #{tpu_custom_call.1} parent=143 // pred_fallthru
          _
        // Predicated region
        $region165: #{tpu_custom_call.1} parent=143 // pred_check
          %p1221 = pneg %p320
        $region166: #{tpu_custom_call.1} parent=143 // pred_check_branch
          %1223 = sbr.rel (%p1221) target = $region168
        $region167: #{tpu_custom_call.1} parent=143 // pred_region
          %1224 = dma.done [#allocation12], 512
        $region168: #{tpu_custom_call.1} parent=143 // pred_fallthru
          _
        // Predicated region
        $region169: #{tpu_custom_call.1} parent=143 // pred_check
          %p1225 = pneg %p341
        $region170: #{tpu_custom_call.1} parent=143 // pred_check_branch
          %1227 = sbr.rel (%p1225) target = $region172
        $region171: #{tpu_custom_call.1} parent=143 // pred_region
          %1228 = dma.done [#allocation12], 16
        $region172: #{tpu_custom_call.1} parent=143 // pred_fallthru
          _
        // Predicated region
        $region173: #{tpu_custom_call.1} parent=143 // pred_check
          %p1229 = pneg %p362
        $region174: #{tpu_custom_call.1} parent=143 // pred_check_branch
          %1231 = sbr.rel (%p1229) target = $region176
        $region175: #{tpu_custom_call.1} parent=143 // pred_region
          %1232 = dma.done [#allocation15], 1024
        $region176: #{tpu_custom_call.1} parent=143 // pred_fallthru
          _
        // Predicated region
        $region177: #{tpu_custom_call.1} parent=143 // pred_check
          %p1233 = pneg %p383
        $region178: #{tpu_custom_call.1} parent=143 // pred_check_branch
          %1235 = sbr.rel (%p1233) target = $region180
        $region179: #{tpu_custom_call.1} parent=143 // pred_region
          %1236 = dma.done [#allocation15], 32
        $region180: #{tpu_custom_call.1} parent=143 // pred_fallthru
          _
        // Predicated region
        $region181: #{tpu_custom_call.1} parent=143 // pred_check
          %p1237 = pneg %p404
        $region182: #{tpu_custom_call.1} parent=143 // pred_check_branch
          %1239 = sbr.rel (%p1237) target = $region184
        $region183: #{tpu_custom_call.1} parent=143 // pred_region
          %1240 = dma.done [#allocation18], 4096
        $region184: #{tpu_custom_call.1} parent=143 // pred_fallthru
          _
        // Predicated region
        $region185: #{tpu_custom_call.1} parent=143 // pred_check
          %p1241 = pneg %p425
        $region186: #{tpu_custom_call.1} parent=143 // pred_check_branch
          %1243 = sbr.rel (%p1241) target = $region188
        $region187: #{tpu_custom_call.1} parent=143 // pred_region
          %1244 = dma.done [#allocation18], 32
        $region188: #{tpu_custom_call.1} parent=143 // pred_fallthru
          _
        // Predicated region
        $region189: #{tpu_custom_call.1} parent=143 // pred_check
          %p1245 = pneg %p467
        $region190: #{tpu_custom_call.1} parent=143 // pred_check_branch
          %1247 = sbr.rel (%p1245) target = $region192
        $region191: #{tpu_custom_call.1} parent=143 // pred_region
          %1248 = dma.done [#allocation21], 32
        $region192: #{tpu_custom_call.1} parent=143 // pred_fallthru
          _
        // Predicated region
        $region193: #{tpu_custom_call.1} parent=143 // pred_check
          %p1249 = pneg %p509
        $region194: #{tpu_custom_call.1} parent=143 // pred_check_branch
          %1251 = sbr.rel (%p1249) target = $region196
        $region195: #{tpu_custom_call.1} parent=143 // pred_region
          %1252 = dma.done [#allocation21], 16
        $region196: #{tpu_custom_call.1} parent=143 // pred_fallthru
          _
        // Predicated region
        $region197: #{tpu_custom_call.1} parent=143 // pred_check
          %p1253 = pneg %p530
        $region198: #{tpu_custom_call.1} parent=143 // pred_check_branch
          %1255 = sbr.rel (%p1253) target = $region200
        $region199: #{tpu_custom_call.1} parent=143 // pred_region
          %1256 = dma.done [#allocation24], 512
        $region200: #{tpu_custom_call.1} parent=143 // pred_fallthru
          _
        // Predicated region
        $region201: #{tpu_custom_call.1} parent=143 // pred_check
          %p1257 = pneg %p551
        $region202: #{tpu_custom_call.1} parent=143 // pred_check_branch
          %1259 = sbr.rel (%p1257) target = $region204
        $region203: #{tpu_custom_call.1} parent=143 // pred_region
          %1260 = dma.done [#allocation24], 16
        $region204: #{tpu_custom_call.1} parent=143 // pred_fallthru
          _
        // Predicated region
        $region205: #{tpu_custom_call.1} parent=143 // pred_check
          %p1261 = pneg %p572
        $region206: #{tpu_custom_call.1} parent=143 // pred_check_branch
          %1263 = sbr.rel (%p1261) target = $region208
        $region207: #{tpu_custom_call.1} parent=143 // pred_region
          %1264 = dma.done [#allocation27], 512
        $region208: #{tpu_custom_call.1} parent=143 // pred_fallthru
          _
        // Predicated region
        $region209: #{tpu_custom_call.1} parent=143 // pred_check
          %p1265 = pneg %p593
        $region210: #{tpu_custom_call.1} parent=143 // pred_check_branch
          %1267 = sbr.rel (%p1265) target = $region212
        $region211: #{tpu_custom_call.1} parent=143 // pred_region
          %1268 = dma.done [#allocation27], 16
        $region212: #{tpu_custom_call.1} parent=143 // pred_fallthru
          _
        // Predicated region
        $region213: #{tpu_custom_call.1} parent=143 // pred_check
          %p1269 = pneg %p614
        $region214: #{tpu_custom_call.1} parent=143 // pred_check_branch
          %1271 = sbr.rel (%p1269) target = $region216
        $region215: #{tpu_custom_call.1} parent=143 // pred_region
          %1272 = dma.done [#allocation30], 1024
        $region216: #{tpu_custom_call.1} parent=143 // pred_fallthru
          _
        // Predicated region
        $region217: #{tpu_custom_call.1} parent=143 // pred_check
          %p1273 = pneg %p635
        $region218: #{tpu_custom_call.1} parent=143 // pred_check_branch
          %1275 = sbr.rel (%p1273) target = $region220
        $region219: #{tpu_custom_call.1} parent=143 // pred_region
          %1276 = dma.done [#allocation30], 32
        $region220: #{tpu_custom_call.1} parent=143 // pred_fallthru
          _
        // Predicated region
        $region221: #{tpu_custom_call.1} parent=143 // pred_check
          %p1277 = pneg %p698
        $region222: #{tpu_custom_call.1} parent=143 // pred_check_branch
          %1279 = sbr.rel (%p1277) target = $region224
        $region223: #{tpu_custom_call.1} parent=143 // pred_region
          %1280 = dma.done [#allocation33], 512
        $region224: #{tpu_custom_call.1} parent=143 // pred_fallthru
          _
        // Predicated region
        $region225: #{tpu_custom_call.1} parent=143 // pred_check
          %p1281 = pneg %p740
        $region226: #{tpu_custom_call.1} parent=143 // pred_check_branch
          %1283 = sbr.rel (%p1281) target = $region228
        $region227: #{tpu_custom_call.1} parent=143 // pred_region
          %1284 = dma.done [#allocation33], 512
        $region228: #{tpu_custom_call.1} parent=143 // pred_fallthru
          _
        %s1285 = sand.u32 %s113, 1
        %s1286 = scalar_lea.sflag [#allocation3], %s1285
        %s1287 = sand.u32 %s113, 1
        %s1288 = smul.addr %s1287, 32
        %s1289 = scalar_lea.vmem [#allocation2], %s1288
        %p1290 = pneg %p126
        %p1291 = pneg %p123
        %s1292 = sand.u32 %s105, 1
        %s1293 = scalar_lea.sflag [#allocation6], %s1292
        %s1294 = sand.u32 %s139, 1
        %s1295 = smul.addr %s1294, 16
        %s1296 = scalar_lea.vmem [#allocation5], %s1295
        %p1297 = pneg %p152
        %p1298 = pneg %p149
        %p1299 = pneg %p173
        %p1300 = pneg %p170
        %p1301 = pneg %p194
        %p1302 = pneg %p191
        %p1303 = pneg %p215
        %p1304 = pneg %p212
        %p1305 = pneg %p236
        %p1306 = pneg %p233
        %p1307 = pneg %p257
        %p1308 = pneg %p254
        %p1309 = pneg %p278
        %p1310 = pneg %p275
        %p1311 = pneg %p299
        %p1312 = pneg %p296
        %p1313 = pneg %p320
        %p1314 = pneg %p317
        %p1315 = pneg %p341
        %p1316 = pneg %p338
        %p1317 = pneg %p362
        %p1318 = pneg %p359
        %p1319 = pneg %p383
        %p1320 = pneg %p380
        %p1321 = pneg %p404
        %p1322 = pneg %p401
        %p1323 = pneg %p425
        %p1324 = pneg %p422
        %p1325 = pneg %p446
        %p1326 = pneg %p443
        %p1327 = pneg %p467
        %p1328 = pneg %p464
        %p1329 = pneg %p488
        %p1330 = pneg %p485
        %p1331 = pneg %p509
        %p1332 = pneg %p506
        %p1333 = pneg %p530
        %p1334 = pneg %p527
        %p1335 = pneg %p551
        %p1336 = pneg %p548
        %p1337 = pneg %p572
        %p1338 = pneg %p569
        %p1339 = pneg %p593
        %p1340 = pneg %p590
        %p1341 = pneg %p614
        %p1342 = pneg %p611
        %p1343 = pneg %p635
        %p1344 = pneg %p632
        %p1345 = pneg %p656
        %p1346 = pneg %p653
        %p1347 = pneg %p677
        %p1348 = pneg %p674
        %p1349 = pneg %p698
        %p1350 = pneg %p695
        %p1351 = pneg %p719
        %p1352 = pneg %p716
        %p1353 = pneg %p740
        %p1354 = pneg %p737
        %p1355 = pneg %p761
        %p1356 = pneg %p758
        %p1357 = pneg %p787
        %p1358 = pneg %p784
        %s1359 = sand.u32 %s774, 1
        %s1360 = scalar_lea.sflag [#allocation4], %s1359
        %s1361 = sand.u32 %s774, 1
        %s1362 = smul.addr %s1361, 32
        %s1363 = scalar_lea.vmem [#allocation35], %s1362
        %p1364 = pneg %p813
        %p1365 = pneg %p810
        %s1366 = sand.u32 %s105, 1
        %s1367 = scalar_lea.sflag [#allocation37], %s1366
        %s1368 = sand.u32 %s800, 1
        %s1369 = smul.addr %s1368, 16
        %s1370 = scalar_lea.vmem [#allocation36], %s1369
        %p1371 = pneg %p839
        %p1372 = pneg %p836
        %s1373 = sand.u32 %s105, 1
        %s1374 = scalar_lea.sflag [#allocation37], %s1373
        %s1375 = sand.u32 %s826, 1
        %s1376 = smul.addr %s1375, 8
        %s1377 = scalar_lea.vmem [#allocation38], %s1376
        %p1378 = pneg %p865
        %p1379 = pneg %p862
        %s1380 = sand.u32 %s852, 1
        %s1381 = scalar_lea.sflag [#allocation40], %s1380
        %s1382 = sand.u32 %s852, 1
        %s1383 = smul.addr %s1382, 16
        %s1384 = scalar_lea.vmem [#allocation39], %s1383
        %s1385 = smul.u32 2, %s105
        %s1386 = smul.u32 2, %s105
        %s1387 = smul.u32 2, %s105
        %s1388 = smul.u32 2, %s105
        %s1389 = smul.u32 2, %s105
        %s1390 = smul.u32 2, %s105
        %v1392 = vld [vmem:[%s1195] sm:$0xff]
        %v1393 = vld [vmem:[%s1195 + $0x8] sm:$0xff]
        %v1394 = vld [vmem:[%s1195 + $0x10] sm:$0xff]
        %v1395 = vld [vmem:[%s1195 + $0x18] sm:$0xff]
        %v1396 = vpack.c.bf16 %v1394, %v1392
        %v1397 = vpack.c.bf16 %v1395, %v1393
        %v1398 = vld [vmem:[%s1204] sm:$0xff]
        %v1399 = vld [vmem:[%s1204 + $0x8] sm:$0xff]
        %v1400 = vpack.c.bf16 %v1399, %v1398
        %v1401 = vld [vmem:[%s7] sm:$0xff]
        %v1402 = vld [vmem:[%s7 + $0x8] sm:$0xff]
        %v1403 = vld [vmem:[%s7 + $0x10] sm:$0xff]
        %v1404 = vld [vmem:[%s7 + $0x18] sm:$0xff]
        %v1405 = vld [vmem:[%s7 + $0x20] sm:$0xff]
        %v1406 = vld [vmem:[%s7 + $0x28] sm:$0xff]
        %v1407 = vld [vmem:[%s7 + $0x30] sm:$0xff]
        %v1408 = vld [vmem:[%s7 + $0x38] sm:$0xff]
        %v1409 = vld [vmem:[%s7 + $0x40] sm:$0xff]
        %v1410 = vld [vmem:[%s7 + $0x48] sm:$0xff]
        %v1411 = vld [vmem:[%s7 + $0x50] sm:$0xff]
        %v1412 = vld [vmem:[%s7 + $0x58] sm:$0xff]
        %v1413 = vld [vmem:[%s7 + $0x60] sm:$0xff]
        %v1414 = vld [vmem:[%s7 + $0x68] sm:$0xff]
        %v1415 = vld [vmem:[%s7 + $0x70] sm:$0xff]
        %v1416 = vld [vmem:[%s7 + $0x78] sm:$0xff]
        %v1417 = vld [vmem:[%s7 + $0x80] sm:$0xff]
        %v1418 = vld [vmem:[%s7 + $0x88] sm:$0xff]
        %v1419 = vld [vmem:[%s7 + $0x90] sm:$0xff]
        %v1420 = vld [vmem:[%s7 + $0x98] sm:$0xff]
        %v1421 = vld [vmem:[%s7 + $0xa0] sm:$0xff]
        %v1422 = vld [vmem:[%s7 + $0xa8] sm:$0xff]
        %v1423 = vld [vmem:[%s7 + $0xb0] sm:$0xff]
        %v1424 = vld [vmem:[%s7 + $0xb8] sm:$0xff]
        %v1425 = vld [vmem:[%s7 + $0xc0] sm:$0xff]
        %v1426 = vld [vmem:[%s7 + $0xc8] sm:$0xff]
        %v1427 = vld [vmem:[%s7 + $0xd0] sm:$0xff]
        %v1428 = vld [vmem:[%s7 + $0xd8] sm:$0xff]
        %v1429 = vld [vmem:[%s7 + $0xe0] sm:$0xff]
        %v1430 = vld [vmem:[%s7 + $0xe8] sm:$0xff]
        %v1431 = vld [vmem:[%s7 + $0xf0] sm:$0xff]
        %v1432 = vld [vmem:[%s7 + $0xf8] sm:$0xff]
        %v1433 = vld [vmem:[%s9] sm:$0x3]
        %v1435 = vlaneseq
        %v1436 = vshrl.u32 %v1435, 7
        %v1437 = vsub.s32 0, %v1436
        %v1438 = vrot.slane %v1433, %v1437
        %v1439 = vlaneseq
        %v1440 = vshrl.u32 %v1439, 7
        %v1441 = vsub.s32 1, %v1440
        %v1442 = vrot.slane %v1433, %v1441
        %v1477 = vunpack.c.l.b16 %v1401
        %v1478 = vunpack.c.h.b16 %v1401
        %v1479 = vunpack.c.l.b16 %v1402
        %v1480 = vunpack.c.h.b16 %v1402
        %v1481 = vunpack.c.l.b16 %v1403
        %v1482 = vunpack.c.h.b16 %v1403
        %v1483 = vunpack.c.l.b16 %v1404
        %v1484 = vunpack.c.h.b16 %v1404
        %v1485 = vunpack.c.l.b16 %v1405
        %v1486 = vunpack.c.h.b16 %v1405
        %v1487 = vunpack.c.l.b16 %v1406
        %v1488 = vunpack.c.h.b16 %v1406
        %v1489 = vunpack.c.l.b16 %v1407
        %v1490 = vunpack.c.h.b16 %v1407
        %v1491 = vunpack.c.l.b16 %v1408
        %v1492 = vunpack.c.h.b16 %v1408
        %v1493 = vunpack.c.l.b16 %v1409
        %v1494 = vunpack.c.h.b16 %v1409
        %v1495 = vunpack.c.l.b16 %v1410
        %v1496 = vunpack.c.h.b16 %v1410
        %v1497 = vunpack.c.l.b16 %v1411
        %v1498 = vunpack.c.h.b16 %v1411
        %v1499 = vunpack.c.l.b16 %v1412
        %v1500 = vunpack.c.h.b16 %v1412
        %v1501 = vunpack.c.l.b16 %v1413
        %v1502 = vunpack.c.h.b16 %v1413
        %v1503 = vunpack.c.l.b16 %v1414
        %v1504 = vunpack.c.h.b16 %v1414
        %v1505 = vunpack.c.l.b16 %v1415
        %v1506 = vunpack.c.h.b16 %v1415
        %v1507 = vunpack.c.l.b16 %v1416
        %v1508 = vunpack.c.h.b16 %v1416
        %v1509 = vunpack.c.l.b16 %v1417
        %v1510 = vunpack.c.h.b16 %v1417
        %v1511 = vunpack.c.l.b16 %v1418
        %v1512 = vunpack.c.h.b16 %v1418
        %v1513 = vunpack.c.l.b16 %v1419
        %v1514 = vunpack.c.h.b16 %v1419
        %v1515 = vunpack.c.l.b16 %v1420
        %v1516 = vunpack.c.h.b16 %v1420
        %v1517 = vunpack.c.l.b16 %v1421
        %v1518 = vunpack.c.h.b16 %v1421
        %v1519 = vunpack.c.l.b16 %v1422
        %v1520 = vunpack.c.h.b16 %v1422
        %v1521 = vunpack.c.l.b16 %v1423
        %v1522 = vunpack.c.h.b16 %v1423
        %v1523 = vunpack.c.l.b16 %v1424
        %v1524 = vunpack.c.h.b16 %v1424
        %v1525 = vunpack.c.l.b16 %v1425
        %v1526 = vunpack.c.h.b16 %v1425
        %v1527 = vunpack.c.l.b16 %v1426
        %v1528 = vunpack.c.h.b16 %v1426
        %v1529 = vunpack.c.l.b16 %v1427
        %v1530 = vunpack.c.h.b16 %v1427
        %v1531 = vunpack.c.l.b16 %v1428
        %v1532 = vunpack.c.h.b16 %v1428
        %v1533 = vunpack.c.l.b16 %v1429
        %v1534 = vunpack.c.h.b16 %v1429
        %v1535 = vunpack.c.l.b16 %v1430
        %v1536 = vunpack.c.h.b16 %v1430
        %v1537 = vunpack.c.l.b16 %v1431
        %v1538 = vunpack.c.h.b16 %v1431
        %v1539 = vunpack.c.l.b16 %v1432
        %v1540 = vunpack.c.h.b16 %v1432
        %v1541 = vpack.c.b16 %v1479, %v1477
        %v1542 = vpack.c.b16 %v1480, %v1478
        %v1543 = vpack.c.b16 %v1483, %v1481
        %v1544 = vpack.c.b16 %v1484, %v1482
        %v1545 = vpack.c.b16 %v1487, %v1485
        %v1546 = vpack.c.b16 %v1488, %v1486
        %v1547 = vpack.c.b16 %v1491, %v1489
        %v1548 = vpack.c.b16 %v1492, %v1490
        %v1549 = vpack.c.b16 %v1495, %v1493
        %v1550 = vpack.c.b16 %v1496, %v1494
        %v1551 = vpack.c.b16 %v1499, %v1497
        %v1552 = vpack.c.b16 %v1500, %v1498
        %v1553 = vpack.c.b16 %v1503, %v1501
        %v1554 = vpack.c.b16 %v1504, %v1502
        %v1555 = vpack.c.b16 %v1507, %v1505
        %v1556 = vpack.c.b16 %v1508, %v1506
        %v1557 = vpack.c.b16 %v1511, %v1509
        %v1558 = vpack.c.b16 %v1512, %v1510
        %v1559 = vpack.c.b16 %v1515, %v1513
        %v1560 = vpack.c.b16 %v1516, %v1514
        %v1561 = vpack.c.b16 %v1519, %v1517
        %v1562 = vpack.c.b16 %v1520, %v1518
        %v1563 = vpack.c.b16 %v1523, %v1521
        %v1564 = vpack.c.b16 %v1524, %v1522
        %v1565 = vpack.c.b16 %v1527, %v1525
        %v1566 = vpack.c.b16 %v1528, %v1526
        %v1567 = vpack.c.b16 %v1531, %v1529
        %v1568 = vpack.c.b16 %v1532, %v1530
        %v1569 = vpack.c.b16 %v1535, %v1533
        %v1570 = vpack.c.b16 %v1536, %v1534
        %v1571 = vpack.c.b16 %v1539, %v1537
        %v1572 = vpack.c.b16 %v1540, %v1538
        %1605 = vmatprep.subr.bf16.mxu0 %v1542
        %1606 = vmatpush1.bf16.msra.mxu0 %v1541
        %1607 = vmatprep.subr.bf16.mxu0 %v1544
        %1608 = vmatpush1.bf16.msra.mxu0 %v1543
        %1609 = vmatprep.subr.bf16.mxu0 %v1546
        %1610 = vmatpush1.bf16.msra.mxu0 %v1545
        %1611 = vmatprep.subr.bf16.mxu0 %v1548
        %1612 = vmatpush1.bf16.msra.mxu0 %v1547
        %1613 = vmatprep.subr.bf16.mxu0 %v1550
        %1614 = vmatpush1.bf16.msra.mxu0 %v1549
        %1615 = vmatprep.subr.bf16.mxu0 %v1552
        %1616 = vmatpush1.bf16.msra.mxu0 %v1551
        %1617 = vmatprep.subr.bf16.mxu0 %v1554
        %1618 = vmatpush1.bf16.msra.mxu0 %v1553
        %1619 = vmatprep.subr.bf16.mxu0 %v1556
        %1620 = vmatpush1.bf16.msra.mxu0 %v1555
        %1621 = vmatprep.subr.bf16.mxu0 %v1558
        %1622 = vmatpush1.bf16.msra.mxu0 %v1557
        %1623 = vmatprep.subr.bf16.mxu0 %v1560
        %1624 = vmatpush1.bf16.msra.mxu0 %v1559
        %1625 = vmatprep.subr.bf16.mxu0 %v1562
        %1626 = vmatpush1.bf16.msra.mxu0 %v1561
        %1627 = vmatprep.subr.bf16.mxu0 %v1564
        %1628 = vmatpush1.bf16.msra.mxu0 %v1563
        %1629 = vmatprep.subr.bf16.mxu0 %v1566
        %1630 = vmatpush1.bf16.msra.mxu0 %v1565
        %1631 = vmatprep.subr.bf16.mxu0 %v1568
        %1632 = vmatpush1.bf16.msra.mxu0 %v1567
        %1633 = vmatprep.subr.bf16.mxu0 %v1570
        %1634 = vmatpush1.bf16.msra.mxu0 %v1569
        %1635 = vmatprep.subr.bf16.mxu0 %v1572
        %1636 = vmatpush1.bf16.msra.mxu0 %v1571
        %1637 = vmatprep.mubr.bf16.mxu0 %v1397
        %1638 = vmatmul.mubr.bf16.gmra.mrb[0].mxu0 %v1396
        %v1639 = vpop.f32.mrb[0].mxu0
        %v1640 = vadd.f32 %v1438, %v1639
        %v1641 = vpop.f32.mrb[0].mxu0
        %v1642 = vadd.f32 %v1442, %v1641
        %v1643 = vpop.f32.mrb[0].mxu0
        %v1644 = vadd.f32 %v1438, %v1643
        %v1645 = vpop.f32.mrb[0].mxu0
        %v1646 = vadd.f32 %v1442, %v1645
        %1647 = vdwg.mxu0
        %v1648 = vmax.f32 %v1640, 0.0
        %v1649 = vmax.f32 %v1642, 0.0
        %v1650 = vmax.f32 %v1644, 0.0
        %v1651 = vmax.f32 %v1646, 0.0
        %v1652 = vpack.c.bf16 %v1650, %v1648
        %v1653 = vpack.c.bf16 %v1651, %v1649
        %v1654 = vld [vmem:[%s11] sm:$0xf]
        %v1655 = vld [vmem:[%s11 + $0x4] sm:$0xf]
        %v1656 = vld [vmem:[%s11 + $0x8] sm:$0xf]
        %v1657 = vld [vmem:[%s11 + $0xc] sm:$0xf]
        %v1658 = vld [vmem:[%s11 + $0x10] sm:$0xf]
        %v1659 = vld [vmem:[%s11 + $0x14] sm:$0xf]
        %v1660 = vld [vmem:[%s11 + $0x18] sm:$0xf]
        %v1661 = vld [vmem:[%s11 + $0x1c] sm:$0xf]
        %v1662 = vld [vmem:[%s11 + $0x20] sm:$0xf]
        %v1663 = vld [vmem:[%s11 + $0x24] sm:$0xf]
        %v1664 = vld [vmem:[%s11 + $0x28] sm:$0xf]
        %v1665 = vld [vmem:[%s11 + $0x2c] sm:$0xf]
        %v1666 = vld [vmem:[%s11 + $0x30] sm:$0xf]
        %v1667 = vld [vmem:[%s11 + $0x34] sm:$0xf]
        %v1668 = vld [vmem:[%s11 + $0x38] sm:$0xf]
        %v1669 = vld [vmem:[%s11 + $0x3c] sm:$0xf]
        %v1670 = vld [vmem:[%s11 + $0x40] sm:$0xf]
        %v1671 = vld [vmem:[%s11 + $0x44] sm:$0xf]
        %v1672 = vld [vmem:[%s11 + $0x48] sm:$0xf]
        %v1673 = vld [vmem:[%s11 + $0x4c] sm:$0xf]
        %v1674 = vld [vmem:[%s11 + $0x50] sm:$0xf]
        %v1675 = vld [vmem:[%s11 + $0x54] sm:$0xf]
        %v1676 = vld [vmem:[%s11 + $0x58] sm:$0xf]
        %v1677 = vld [vmem:[%s11 + $0x5c] sm:$0xf]
        %v1678 = vld [vmem:[%s11 + $0x60] sm:$0xf]
        %v1679 = vld [vmem:[%s11 + $0x64] sm:$0xf]
        %v1680 = vld [vmem:[%s11 + $0x68] sm:$0xf]
        %v1681 = vld [vmem:[%s11 + $0x6c] sm:$0xf]
        %v1682 = vld [vmem:[%s11 + $0x70] sm:$0xf]
        %v1683 = vld [vmem:[%s11 + $0x74] sm:$0xf]
        %v1684 = vld [vmem:[%s11 + $0x78] sm:$0xf]
        %v1685 = vld [vmem:[%s11 + $0x7c] sm:$0xf]
        %v1686 = vld [vmem:[#allocation7] sm:$0x1]
        %v1688 = vlaneseq
        %v1689 = vshrl.u32 %v1688, 7
        %v1690 = vsub.s32 0, %v1689
        %v1691 = vrot.slane %v1686, %v1690
        %v1725 = vunpack.c.l.b16 %v1654
        %v1726 = vunpack.c.l.b16 %v1655
        %v1727 = vunpack.c.l.b16 %v1656
        %v1728 = vunpack.c.l.b16 %v1657
        %v1729 = vunpack.c.l.b16 %v1658
        %v1730 = vunpack.c.l.b16 %v1659
        %v1731 = vunpack.c.l.b16 %v1660
        %v1732 = vunpack.c.l.b16 %v1661
        %v1733 = vunpack.c.l.b16 %v1662
        %v1734 = vunpack.c.l.b16 %v1663
        %v1735 = vunpack.c.l.b16 %v1664
        %v1736 = vunpack.c.l.b16 %v1665
        %v1737 = vunpack.c.l.b16 %v1666
        %v1738 = vunpack.c.l.b16 %v1667
        %v1739 = vunpack.c.l.b16 %v1668
        %v1740 = vunpack.c.l.b16 %v1669
        %v1741 = vunpack.c.l.b16 %v1670
        %v1742 = vunpack.c.l.b16 %v1671
        %v1743 = vunpack.c.l.b16 %v1672
        %v1744 = vunpack.c.l.b16 %v1673
        %v1745 = vunpack.c.l.b16 %v1674
        %v1746 = vunpack.c.l.b16 %v1675
        %v1747 = vunpack.c.l.b16 %v1676
        %v1748 = vunpack.c.l.b16 %v1677
        %v1749 = vunpack.c.l.b16 %v1678
        %v1750 = vunpack.c.l.b16 %v1679
        %v1751 = vunpack.c.l.b16 %v1680
        %v1752 = vunpack.c.l.b16 %v1681
        %v1753 = vunpack.c.l.b16 %v1682
        %v1754 = vunpack.c.l.b16 %v1683
        %v1755 = vunpack.c.l.b16 %v1684
        %v1756 = vunpack.c.l.b16 %v1685
        %v1757 = vpack.c.b16 %v1726, %v1725
        %v1758 = vpack.c.b16 %v1728, %v1727
        %v1759 = vpack.c.b16 %v1730, %v1729
        %v1760 = vpack.c.b16 %v1732, %v1731
        %v1761 = vpack.c.b16 %v1734, %v1733
        %v1762 = vpack.c.b16 %v1736, %v1735
        %v1763 = vpack.c.b16 %v1738, %v1737
        %v1764 = vpack.c.b16 %v1740, %v1739
        %v1765 = vpack.c.b16 %v1742, %v1741
        %v1766 = vpack.c.b16 %v1744, %v1743
        %v1767 = vpack.c.b16 %v1746, %v1745
        %v1768 = vpack.c.b16 %v1748, %v1747
        %v1769 = vpack.c.b16 %v1750, %v1749
        %v1770 = vpack.c.b16 %v1752, %v1751
        %v1771 = vpack.c.b16 %v1754, %v1753
        %v1772 = vpack.c.b16 %v1756, %v1755
        %1789 = vmatprep.subr.bf16.mxu0 0
        %1790 = vmatpush1.bf16.msra.mxu0 %v1757
        %1791 = vmatprep.subr.bf16.mxu0 0
        %1792 = vmatpush1.bf16.msra.mxu0 %v1758
        %1793 = vmatprep.subr.bf16.mxu0 0
        %1794 = vmatpush1.bf16.msra.mxu0 %v1759
        %1795 = vmatprep.subr.bf16.mxu0 0
        %1796 = vmatpush1.bf16.msra.mxu0 %v1760
        %1797 = vmatprep.subr.bf16.mxu0 0
        %1798 = vmatpush1.bf16.msra.mxu0 %v1761
        %1799 = vmatprep.subr.bf16.mxu0 0
        %1800 = vmatpush1.bf16.msra.mxu0 %v1762
        %1801 = vmatprep.subr.bf16.mxu0 0
        %1802 = vmatpush1.bf16.msra.mxu0 %v1763
        %1803 = vmatprep.subr.bf16.mxu0 0
        %1804 = vmatpush1.bf16.msra.mxu0 %v1764
        %1805 = vmatprep.subr.bf16.mxu0 0
        %1806 = vmatpush1.bf16.msra.mxu0 %v1765
        %1807 = vmatprep.subr.bf16.mxu0 0
        %1808 = vmatpush1.bf16.msra.mxu0 %v1766
        %1809 = vmatprep.subr.bf16.mxu0 0
        %1810 = vmatpush1.bf16.msra.mxu0 %v1767
        %1811 = vmatprep.subr.bf16.mxu0 0
        %1812 = vmatpush1.bf16.msra.mxu0 %v1768
        %1813 = vmatprep.subr.bf16.mxu0 0
        %1814 = vmatpush1.bf16.msra.mxu0 %v1769
        %1815 = vmatprep.subr.bf16.mxu0 0
        %1816 = vmatpush1.bf16.msra.mxu0 %v1770
        %1817 = vmatprep.subr.bf16.mxu0 0
        %1818 = vmatpush1.bf16.msra.mxu0 %v1771
        %1819 = vmatprep.subr.bf16.mxu0 0
        %1820 = vmatpush1.bf16.msra.mxu0 %v1772
        %1821 = vmatprep.mubr.bf16.mxu0 %v1653
        %1822 = vmatmul.mubr.bf16.gmra.mrb[0].mxu0 %v1652
        %v1823 = vpop.f32.mrb[0].mxu0
        %v1824 = vadd.f32 %v1691, %v1823
        %v1825 = vpop.f32.mrb[0].mxu0
        %v1826 = vpop.f32.mrb[0].mxu0
        %v1827 = vadd.f32 %v1691, %v1826
        %v1828 = vpop.f32.mrb[0].mxu0
        %1829 = vdwg.mxu0
        %v1830 = vmax.f32 %v1824, 0.0
        %v1831 = vmax.f32 %v1827, 0.0
        %v1832 = vpack.c.bf16 %v1831, %v1830
        %v1833 = vld [vmem:[#allocation8] sm:$0xf]
        %v1834 = vld [vmem:[#allocation8 + $0x4] sm:$0xf]
        %v1835 = vld [vmem:[#allocation8 + $0x8] sm:$0xf]
        %v1836 = vld [vmem:[#allocation8 + $0xc] sm:$0xf]
        %v1837 = vld [vmem:[#allocation8 + $0x10] sm:$0xf]
        %v1838 = vld [vmem:[#allocation8 + $0x14] sm:$0xf]
        %v1839 = vld [vmem:[#allocation8 + $0x18] sm:$0xf]
        %v1840 = vld [vmem:[#allocation8 + $0x1c] sm:$0xf]
        %v1841 = vld [vmem:[#allocation10] sm:$0x1]
        %v1843 = vlaneseq
        %v1844 = vshrl.u32 %v1843, 7
        %v1845 = vsub.s32 0, %v1844
        %v1846 = vrot.slane %v1841, %v1845
        %v1856 = vunpack.c.l.b16 %v1833
        %v1857 = vunpack.c.l.b16 %v1834
        %v1858 = vunpack.c.l.b16 %v1835
        %v1859 = vunpack.c.l.b16 %v1836
        %v1860 = vunpack.c.l.b16 %v1837
        %v1861 = vunpack.c.l.b16 %v1838
        %v1862 = vunpack.c.l.b16 %v1839
        %v1863 = vunpack.c.l.b16 %v1840
        %v1864 = vpack.c.b16 %v1857, %v1856
        %v1865 = vpack.c.b16 %v1859, %v1858
        %v1866 = vpack.c.b16 %v1861, %v1860
        %v1867 = vpack.c.b16 %v1863, %v1862
        %vm1872 = vcmask 523264
        %v1874 = vsel %vm1872, %v1832, 0
        %1876 = vmatprep.subr.bf16.mxu0 0
        %1877 = vmatpush1.bf16.msra.mxu0 %v1864
        %1878 = vmatprep.subr.bf16.mxu0 0
        %1879 = vmatpush1.bf16.msra.mxu0 %v1865
        %1880 = vmatprep.subr.bf16.mxu0 0
        %1881 = vmatpush1.bf16.msra.mxu0 %v1866
        %1882 = vmatprep.subr.bf16.mxu0 0
        %1883 = vmatpush1.bf16.msra.mxu0 %v1867
        %1884 = vmatprep.subr.bf16.mxu0 0
        %1885 = vmatpush1.bf16.msra.mxu0 0
        %1886 = vmatprep.subr.bf16.mxu0 0
        %1887 = vmatpush1.bf16.msra.mxu0 0
        %1888 = vmatprep.subr.bf16.mxu0 0
        %1889 = vmatpush1.bf16.msra.mxu0 0
        %1890 = vmatprep.subr.bf16.mxu0 0
        %1891 = vmatpush1.bf16.msra.mxu0 0
        %1892 = vmatprep.subr.bf16.mxu0 0
        %1893 = vmatpush1.bf16.msra.mxu0 0
        %1894 = vmatprep.subr.bf16.mxu0 0
        %1895 = vmatpush1.bf16.msra.mxu0 0
        %1896 = vmatprep.subr.bf16.mxu0 0
        %1897 = vmatpush1.bf16.msra.mxu0 0
        %1898 = vmatprep.subr.bf16.mxu0 0
        %1899 = vmatpush1.bf16.msra.mxu0 0
        %1900 = vmatprep.subr.bf16.mxu0 0
        %1901 = vmatpush1.bf16.msra.mxu0 0
        %1902 = vmatprep.subr.bf16.mxu0 0
        %1903 = vmatpush1.bf16.msra.mxu0 0
        %1904 = vmatprep.subr.bf16.mxu0 0
        %1905 = vmatpush1.bf16.msra.mxu0 0
        %1906 = vmatprep.subr.bf16.mxu0 0
        %1907 = vmatpush1.bf16.msra.mxu0 0
        %1908 = vmatprep.mubr.bf16.mxu0 0
        %1909 = vmatmul.mubr.bf16.gmra.mrb[0].mxu0 %v1874
        %v1910 = vpop.f32.mrb[0].mxu0
        %v1911 = vadd.f32 %v1846, %v1910
        %v1912 = vpop.f32.mrb[0].mxu0
        %v1913 = vpop.f32.mrb[0].mxu0
        %v1914 = vadd.f32 %v1846, %v1913
        %v1915 = vpop.f32.mrb[0].mxu0
        %1916 = vdwg.mxu0
        %v1917 = vpack.c.bf16 %v1914, %v1911
        %v1918 = vld [vmem:[#allocation11] sm:$0xf]
        %v1919 = vld [vmem:[#allocation11 + $0x4] sm:$0xf]
        %v1920 = vld [vmem:[#allocation11 + $0x8] sm:$0xf]
        %v1921 = vld [vmem:[#allocation11 + $0xc] sm:$0xf]
        %v1922 = vld [vmem:[#allocation11 + $0x10] sm:$0xf]
        %v1923 = vld [vmem:[#allocation11 + $0x14] sm:$0xf]
        %v1924 = vld [vmem:[#allocation11 + $0x18] sm:$0xf]
        %v1925 = vld [vmem:[#allocation11 + $0x1c] sm:$0xf]
        %v1926 = vld [vmem:[#allocation13] sm:$0x1]
        %v1928 = vlaneseq
        %v1929 = vshrl.u32 %v1928, 7
        %v1930 = vsub.s32 0, %v1929
        %v1931 = vrot.slane %v1926, %v1930
        %v1941 = vunpack.c.l.b16 %v1918
        %v1942 = vunpack.c.l.b16 %v1919
        %v1943 = vunpack.c.l.b16 %v1920
        %v1944 = vunpack.c.l.b16 %v1921
        %v1945 = vunpack.c.l.b16 %v1922
        %v1946 = vunpack.c.l.b16 %v1923
        %v1947 = vunpack.c.l.b16 %v1924
        %v1948 = vunpack.c.l.b16 %v1925
        %v1949 = vpack.c.b16 %v1942, %v1941
        %v1950 = vpack.c.b16 %v1944, %v1943
        %v1951 = vpack.c.b16 %v1946, %v1945
        %v1952 = vpack.c.b16 %v1948, %v1947
        %v1958 = vsel %vm1872, %v1917, 0
        %1960 = vmatprep.subr.bf16.mxu0 0
        %1961 = vmatpush1.bf16.msra.mxu0 %v1949
        %1962 = vmatprep.subr.bf16.mxu0 0
        %1963 = vmatpush1.bf16.msra.mxu0 %v1950
        %1964 = vmatprep.subr.bf16.mxu0 0
        %1965 = vmatpush1.bf16.msra.mxu0 %v1951
        %1966 = vmatprep.subr.bf16.mxu0 0
        %1967 = vmatpush1.bf16.msra.mxu0 %v1952
        %1968 = vmatprep.subr.bf16.mxu0 0
        %1969 = vmatpush1.bf16.msra.mxu0 0
        %1970 = vmatprep.subr.bf16.mxu0 0
        %1971 = vmatpush1.bf16.msra.mxu0 0
        %1972 = vmatprep.subr.bf16.mxu0 0
        %1973 = vmatpush1.bf16.msra.mxu0 0
        %1974 = vmatprep.subr.bf16.mxu0 0
        %1975 = vmatpush1.bf16.msra.mxu0 0
        %1976 = vmatprep.subr.bf16.mxu0 0
        %1977 = vmatpush1.bf16.msra.mxu0 0
        %1978 = vmatprep.subr.bf16.mxu0 0
        %1979 = vmatpush1.bf16.msra.mxu0 0
        %1980 = vmatprep.subr.bf16.mxu0 0
        %1981 = vmatpush1.bf16.msra.mxu0 0
        %1982 = vmatprep.subr.bf16.mxu0 0
        %1983 = vmatpush1.bf16.msra.mxu0 0
        %1984 = vmatprep.subr.bf16.mxu0 0
        %1985 = vmatpush1.bf16.msra.mxu0 0
        %1986 = vmatprep.subr.bf16.mxu0 0
        %1987 = vmatpush1.bf16.msra.mxu0 0
        %1988 = vmatprep.subr.bf16.mxu0 0
        %1989 = vmatpush1.bf16.msra.mxu0 0
        %1990 = vmatprep.subr.bf16.mxu0 0
        %1991 = vmatpush1.bf16.msra.mxu0 0
        %1992 = vmatprep.mubr.bf16.mxu0 0
        %1993 = vmatmul.mubr.bf16.gmra.mrb[0].mxu0 %v1958
        %v1994 = vpop.f32.mrb[0].mxu0
        %v1995 = vadd.f32 %v1931, %v1994
        %v1996 = vpop.f32.mrb[0].mxu0
        %v1997 = vpop.f32.mrb[0].mxu0
        %v1998 = vadd.f32 %v1931, %v1997
        %v1999 = vpop.f32.mrb[0].mxu0
        %2000 = vdwg.mxu0
        %v2001 = vmax.f32 %v1995, 0.0
        %v2002 = vmax.f32 %v1998, 0.0
        %v2003 = vpack.c.bf16 %v2002, %v2001
        %v2004 = vld [vmem:[#allocation14] sm:$0xff]
        %v2005 = vld [vmem:[#allocation14 + $0x8] sm:$0xff]
        %v2006 = vld [vmem:[#allocation14 + $0x10] sm:$0xff]
        %v2007 = vld [vmem:[#allocation14 + $0x18] sm:$0xff]
        %v2008 = vld [vmem:[#allocation14 + $0x20] sm:$0xff]
        %v2009 = vld [vmem:[#allocation14 + $0x28] sm:$0xff]
        %v2010 = vld [vmem:[#allocation14 + $0x30] sm:$0xff]
        %v2011 = vld [vmem:[#allocation14 + $0x38] sm:$0xff]
        %v2012 = vld [vmem:[#allocation16] sm:$0x3]
        %v2014 = vlaneseq
        %v2015 = vshrl.u32 %v2014, 7
        %v2016 = vsub.s32 0, %v2015
        %v2017 = vrot.slane %v2012, %v2016
        %v2018 = vlaneseq
        %v2019 = vshrl.u32 %v2018, 7
        %v2020 = vsub.s32 1, %v2019
        %v2021 = vrot.slane %v2012, %v2020
        %v2032 = vunpack.c.l.b16 %v2004
        %v2033 = vunpack.c.h.b16 %v2004
        %v2034 = vunpack.c.l.b16 %v2005
        %v2035 = vunpack.c.h.b16 %v2005
        %v2036 = vunpack.c.l.b16 %v2006
        %v2037 = vunpack.c.h.b16 %v2006
        %v2038 = vunpack.c.l.b16 %v2007
        %v2039 = vunpack.c.h.b16 %v2007
        %v2040 = vunpack.c.l.b16 %v2008
        %v2041 = vunpack.c.h.b16 %v2008
        %v2042 = vunpack.c.l.b16 %v2009
        %v2043 = vunpack.c.h.b16 %v2009
        %v2044 = vunpack.c.l.b16 %v2010
        %v2045 = vunpack.c.h.b16 %v2010
        %v2046 = vunpack.c.l.b16 %v2011
        %v2047 = vunpack.c.h.b16 %v2011
        %v2048 = vpack.c.b16 %v2034, %v2032
        %v2049 = vpack.c.b16 %v2035, %v2033
        %v2050 = vpack.c.b16 %v2038, %v2036
        %v2051 = vpack.c.b16 %v2039, %v2037
        %v2052 = vpack.c.b16 %v2042, %v2040
        %v2053 = vpack.c.b16 %v2043, %v2041
        %v2054 = vpack.c.b16 %v2046, %v2044
        %v2055 = vpack.c.b16 %v2047, %v2045
        %v2065 = vsel %vm1872, %v2003, 0
        %2067 = vmatprep.subr.bf16.mxu0 %v2049
        %2068 = vmatpush1.bf16.msra.mxu0 %v2048
        %2069 = vmatprep.subr.bf16.mxu0 %v2051
        %2070 = vmatpush1.bf16.msra.mxu0 %v2050
        %2071 = vmatprep.subr.bf16.mxu0 %v2053
        %2072 = vmatpush1.bf16.msra.mxu0 %v2052
        %2073 = vmatprep.subr.bf16.mxu0 %v2055
        %2074 = vmatpush1.bf16.msra.mxu0 %v2054
        %2075 = vmatprep.subr.bf16.mxu0 0
        %2076 = vmatpush1.bf16.msra.mxu0 0
        %2077 = vmatprep.subr.bf16.mxu0 0
        %2078 = vmatpush1.bf16.msra.mxu0 0
        %2079 = vmatprep.subr.bf16.mxu0 0
        %2080 = vmatpush1.bf16.msra.mxu0 0
        %2081 = vmatprep.subr.bf16.mxu0 0
        %2082 = vmatpush1.bf16.msra.mxu0 0
        %2083 = vmatprep.subr.bf16.mxu0 0
        %2084 = vmatpush1.bf16.msra.mxu0 0
        %2085 = vmatprep.subr.bf16.mxu0 0
        %2086 = vmatpush1.bf16.msra.mxu0 0
        %2087 = vmatprep.subr.bf16.mxu0 0
        %2088 = vmatpush1.bf16.msra.mxu0 0
        %2089 = vmatprep.subr.bf16.mxu0 0
        %2090 = vmatpush1.bf16.msra.mxu0 0
        %2091 = vmatprep.subr.bf16.mxu0 0
        %2092 = vmatpush1.bf16.msra.mxu0 0
        %2093 = vmatprep.subr.bf16.mxu0 0
        %2094 = vmatpush1.bf16.msra.mxu0 0
        %2095 = vmatprep.subr.bf16.mxu0 0
        %2096 = vmatpush1.bf16.msra.mxu0 0
        %2097 = vmatprep.subr.bf16.mxu0 0
        %2098 = vmatpush1.bf16.msra.mxu0 0
        %2099 = vmatprep.mubr.bf16.mxu0 0
        %2100 = vmatmul.mubr.bf16.gmra.mrb[0].mxu0 %v2065
        %v2101 = vpop.f32.mrb[0].mxu0
        %v2102 = vadd.f32 %v2017, %v2101
        %v2103 = vpop.f32.mrb[0].mxu0
        %v2104 = vadd.f32 %v2021, %v2103
        %v2105 = vpop.f32.mrb[0].mxu0
        %v2106 = vadd.f32 %v2017, %v2105
        %v2107 = vpop.f32.mrb[0].mxu0
        %v2108 = vadd.f32 %v2021, %v2107
        %2109 = vdwg.mxu0
        %v2110 = vmax.f32 %v2102, 0.0
        %v2111 = vmax.f32 %v2104, 0.0
        %v2112 = vmax.f32 %v2106, 0.0
        %v2113 = vmax.f32 %v2108, 0.0
        %v2114 = vpack.c.bf16 %v2112, %v2110
        %v2115 = vpack.c.bf16 %v2113, %v2111
        %v2116 = vld [vmem:[#allocation17] sm:$0xff]
        %v2117 = vld [vmem:[#allocation17 + $0x8] sm:$0xff]
        %v2118 = vld [vmem:[#allocation17 + $0x10] sm:$0xff]
        %v2119 = vld [vmem:[#allocation17 + $0x18] sm:$0xff]
        %v2120 = vld [vmem:[#allocation17 + $0x20] sm:$0xff]
        %v2121 = vld [vmem:[#allocation17 + $0x28] sm:$0xff]
        %v2122 = vld [vmem:[#allocation17 + $0x30] sm:$0xff]
        %v2123 = vld [vmem:[#allocation17 + $0x38] sm:$0xff]
        %v2124 = vld [vmem:[#allocation17 + $0x40] sm:$0xff]
        %v2125 = vld [vmem:[#allocation17 + $0x48] sm:$0xff]
        %v2126 = vld [vmem:[#allocation17 + $0x50] sm:$0xff]
        %v2127 = vld [vmem:[#allocation17 + $0x58] sm:$0xff]
        %v2128 = vld [vmem:[#allocation17 + $0x60] sm:$0xff]
        %v2129 = vld [vmem:[#allocation17 + $0x68] sm:$0xff]
        %v2130 = vld [vmem:[#allocation17 + $0x70] sm:$0xff]
        %v2131 = vld [vmem:[#allocation17 + $0x78] sm:$0xff]
        %v2132 = vld [vmem:[#allocation17 + $0x80] sm:$0xff]
        %v2133 = vld [vmem:[#allocation17 + $0x88] sm:$0xff]
        %v2134 = vld [vmem:[#allocation17 + $0x90] sm:$0xff]
        %v2135 = vld [vmem:[#allocation17 + $0x98] sm:$0xff]
        %v2136 = vld [vmem:[#allocation17 + $0xa0] sm:$0xff]
        %v2137 = vld [vmem:[#allocation17 + $0xa8] sm:$0xff]
        %v2138 = vld [vmem:[#allocation17 + $0xb0] sm:$0xff]
        %v2139 = vld [vmem:[#allocation17 + $0xb8] sm:$0xff]
        %v2140 = vld [vmem:[#allocation17 + $0xc0] sm:$0xff]
        %v2141 = vld [vmem:[#allocation17 + $0xc8] sm:$0xff]
        %v2142 = vld [vmem:[#allocation17 + $0xd0] sm:$0xff]
        %v2143 = vld [vmem:[#allocation17 + $0xd8] sm:$0xff]
        %v2144 = vld [vmem:[#allocation17 + $0xe0] sm:$0xff]
        %v2145 = vld [vmem:[#allocation17 + $0xe8] sm:$0xff]
        %v2146 = vld [vmem:[#allocation17 + $0xf0] sm:$0xff]
        %v2147 = vld [vmem:[#allocation17 + $0xf8] sm:$0xff]
        %v2148 = vld [vmem:[#allocation19] sm:$0x3]
        %v2150 = vlaneseq
        %v2151 = vshrl.u32 %v2150, 7
        %v2152 = vsub.s32 0, %v2151
        %v2153 = vrot.slane %v2148, %v2152
        %v2154 = vlaneseq
        %v2155 = vshrl.u32 %v2154, 7
        %v2156 = vsub.s32 1, %v2155
        %v2157 = vrot.slane %v2148, %v2156
        %v2192 = vunpack.c.l.b16 %v2116
        %v2193 = vunpack.c.h.b16 %v2116
        %v2194 = vunpack.c.l.b16 %v2117
        %v2195 = vunpack.c.h.b16 %v2117
        %v2196 = vunpack.c.l.b16 %v2118
        %v2197 = vunpack.c.h.b16 %v2118
        %v2198 = vunpack.c.l.b16 %v2119
        %v2199 = vunpack.c.h.b16 %v2119
        %v2200 = vunpack.c.l.b16 %v2120
        %v2201 = vunpack.c.h.b16 %v2120
        %v2202 = vunpack.c.l.b16 %v2121
        %v2203 = vunpack.c.h.b16 %v2121
        %v2204 = vunpack.c.l.b16 %v2122
        %v2205 = vunpack.c.h.b16 %v2122
        %v2206 = vunpack.c.l.b16 %v2123
        %v2207 = vunpack.c.h.b16 %v2123
        %v2208 = vunpack.c.l.b16 %v2124
        %v2209 = vunpack.c.h.b16 %v2124
        %v2210 = vunpack.c.l.b16 %v2125
        %v2211 = vunpack.c.h.b16 %v2125
        %v2212 = vunpack.c.l.b16 %v2126
        %v2213 = vunpack.c.h.b16 %v2126
        %v2214 = vunpack.c.l.b16 %v2127
        %v2215 = vunpack.c.h.b16 %v2127
        %v2216 = vunpack.c.l.b16 %v2128
        %v2217 = vunpack.c.h.b16 %v2128
        %v2218 = vunpack.c.l.b16 %v2129
        %v2219 = vunpack.c.h.b16 %v2129
        %v2220 = vunpack.c.l.b16 %v2130
        %v2221 = vunpack.c.h.b16 %v2130
        %v2222 = vunpack.c.l.b16 %v2131
        %v2223 = vunpack.c.h.b16 %v2131
        %v2224 = vunpack.c.l.b16 %v2132
        %v2225 = vunpack.c.h.b16 %v2132
        %v2226 = vunpack.c.l.b16 %v2133
        %v2227 = vunpack.c.h.b16 %v2133
        %v2228 = vunpack.c.l.b16 %v2134
        %v2229 = vunpack.c.h.b16 %v2134
        %v2230 = vunpack.c.l.b16 %v2135
        %v2231 = vunpack.c.h.b16 %v2135
        %v2232 = vunpack.c.l.b16 %v2136
        %v2233 = vunpack.c.h.b16 %v2136
        %v2234 = vunpack.c.l.b16 %v2137
        %v2235 = vunpack.c.h.b16 %v2137
        %v2236 = vunpack.c.l.b16 %v2138
        %v2237 = vunpack.c.h.b16 %v2138
        %v2238 = vunpack.c.l.b16 %v2139
        %v2239 = vunpack.c.h.b16 %v2139
        %v2240 = vunpack.c.l.b16 %v2140
        %v2241 = vunpack.c.h.b16 %v2140
        %v2242 = vunpack.c.l.b16 %v2141
        %v2243 = vunpack.c.h.b16 %v2141
        %v2244 = vunpack.c.l.b16 %v2142
        %v2245 = vunpack.c.h.b16 %v2142
        %v2246 = vunpack.c.l.b16 %v2143
        %v2247 = vunpack.c.h.b16 %v2143
        %v2248 = vunpack.c.l.b16 %v2144
        %v2249 = vunpack.c.h.b16 %v2144
        %v2250 = vunpack.c.l.b16 %v2145
        %v2251 = vunpack.c.h.b16 %v2145
        %v2252 = vunpack.c.l.b16 %v2146
        %v2253 = vunpack.c.h.b16 %v2146
        %v2254 = vunpack.c.l.b16 %v2147
        %v2255 = vunpack.c.h.b16 %v2147
        %v2256 = vpack.c.b16 %v2194, %v2192
        %v2257 = vpack.c.b16 %v2195, %v2193
        %v2258 = vpack.c.b16 %v2198, %v2196
        %v2259 = vpack.c.b16 %v2199, %v2197
        %v2260 = vpack.c.b16 %v2202, %v2200
        %v2261 = vpack.c.b16 %v2203, %v2201
        %v2262 = vpack.c.b16 %v2206, %v2204
        %v2263 = vpack.c.b16 %v2207, %v2205
        %v2264 = vpack.c.b16 %v2210, %v2208
        %v2265 = vpack.c.b16 %v2211, %v2209
        %v2266 = vpack.c.b16 %v2214, %v2212
        %v2267 = vpack.c.b16 %v2215, %v2213
        %v2268 = vpack.c.b16 %v2218, %v2216
        %v2269 = vpack.c.b16 %v2219, %v2217
        %v2270 = vpack.c.b16 %v2222, %v2220
        %v2271 = vpack.c.b16 %v2223, %v2221
        %v2272 = vpack.c.b16 %v2226, %v2224
        %v2273 = vpack.c.b16 %v2227, %v2225
        %v2274 = vpack.c.b16 %v2230, %v2228
        %v2275 = vpack.c.b16 %v2231, %v2229
        %v2276 = vpack.c.b16 %v2234, %v2232
        %v2277 = vpack.c.b16 %v2235, %v2233
        %v2278 = vpack.c.b16 %v2238, %v2236
        %v2279 = vpack.c.b16 %v2239, %v2237
        %v2280 = vpack.c.b16 %v2242, %v2240
        %v2281 = vpack.c.b16 %v2243, %v2241
        %v2282 = vpack.c.b16 %v2246, %v2244
        %v2283 = vpack.c.b16 %v2247, %v2245
        %v2284 = vpack.c.b16 %v2250, %v2248
        %v2285 = vpack.c.b16 %v2251, %v2249
        %v2286 = vpack.c.b16 %v2254, %v2252
        %v2287 = vpack.c.b16 %v2255, %v2253
        %2320 = vmatprep.subr.bf16.mxu0 %v2257
        %2321 = vmatpush1.bf16.msra.mxu0 %v2256
        %2322 = vmatprep.subr.bf16.mxu0 %v2259
        %2323 = vmatpush1.bf16.msra.mxu0 %v2258
        %2324 = vmatprep.subr.bf16.mxu0 %v2261
        %2325 = vmatpush1.bf16.msra.mxu0 %v2260
        %2326 = vmatprep.subr.bf16.mxu0 %v2263
        %2327 = vmatpush1.bf16.msra.mxu0 %v2262
        %2328 = vmatprep.subr.bf16.mxu0 %v2265
        %2329 = vmatpush1.bf16.msra.mxu0 %v2264
        %2330 = vmatprep.subr.bf16.mxu0 %v2267
        %2331 = vmatpush1.bf16.msra.mxu0 %v2266
        %2332 = vmatprep.subr.bf16.mxu0 %v2269
        %2333 = vmatpush1.bf16.msra.mxu0 %v2268
        %2334 = vmatprep.subr.bf16.mxu0 %v2271
        %2335 = vmatpush1.bf16.msra.mxu0 %v2270
        %2336 = vmatprep.subr.bf16.mxu0 %v2273
        %2337 = vmatpush1.bf16.msra.mxu0 %v2272
        %2338 = vmatprep.subr.bf16.mxu0 %v2275
        %2339 = vmatpush1.bf16.msra.mxu0 %v2274
        %2340 = vmatprep.subr.bf16.mxu0 %v2277
        %2341 = vmatpush1.bf16.msra.mxu0 %v2276
        %2342 = vmatprep.subr.bf16.mxu0 %v2279
        %2343 = vmatpush1.bf16.msra.mxu0 %v2278
        %2344 = vmatprep.subr.bf16.mxu0 %v2281
        %2345 = vmatpush1.bf16.msra.mxu0 %v2280
        %2346 = vmatprep.subr.bf16.mxu0 %v2283
        %2347 = vmatpush1.bf16.msra.mxu0 %v2282
        %2348 = vmatprep.subr.bf16.mxu0 %v2285
        %2349 = vmatpush1.bf16.msra.mxu0 %v2284
        %2350 = vmatprep.subr.bf16.mxu0 %v2287
        %2351 = vmatpush1.bf16.msra.mxu0 %v2286
        %2352 = vmatprep.mubr.bf16.mxu0 %v2115
        %2353 = vmatmul.mubr.bf16.gmra.mrb[0].mxu0 %v2114
        %v2354 = vpop.f32.mrb[0].mxu0
        %v2355 = vadd.f32 %v2153, %v2354
        %v2356 = vpop.f32.mrb[0].mxu0
        %v2357 = vadd.f32 %v2157, %v2356
        %v2358 = vpop.f32.mrb[0].mxu0
        %v2359 = vadd.f32 %v2153, %v2358
        %v2360 = vpop.f32.mrb[0].mxu0
        %v2361 = vadd.f32 %v2157, %v2360
        %2362 = vdwg.mxu0
        %v2363 = vxor.u32 %v2355, 2147483648
        %v2364 = vxor.u32 %v2357, 2147483648
        %v2365 = vxor.u32 %v2359, 2147483648
        %v2366 = vxor.u32 %v2361, 2147483648
        %v2367 = vmul.f32 %v2363, 1.442695
        %v2368 = vpow.pop %v2367
        %v2369 = vmul.f32 %v2364, 1.442695
        %v2370 = vpow.pop %v2369
        %v2371 = vmul.f32 %v2365, 1.442695
        %v2372 = vpow.pop %v2371
        %v2373 = vmul.f32 %v2366, 1.442695
        %v2374 = vpow.pop %v2373
        %v2375 = vadd.f32 %v2368, 1.0
        %v2376 = vadd.f32 %v2370, 1.0
        %v2377 = vadd.f32 %v2372, 1.0
        %v2378 = vadd.f32 %v2374, 1.0
        %v2379 = vrcp.pop %v2375
        %v2380 = vmul.f32 1.0, %v2379
        %v2381 = vrcp.pop %v2376
        %v2382 = vmul.f32 1.0, %v2381
        %v2383 = vrcp.pop %v2377
        %v2384 = vmul.f32 1.0, %v2383
        %v2385 = vrcp.pop %v2378
        %v2386 = vmul.f32 1.0, %v2385
        %2387 = vst [vmem:[%s1363] sm:$0xff] %v2380
        %2388 = vst [vmem:[%s1363 + $0x8] sm:$0xff] %v2382
        %2389 = vst [vmem:[%s1363 + $0x10] sm:$0xff] %v2384
        %2390 = vst [vmem:[%s1363 + $0x18] sm:$0xff] %v2386
        %v2391 = vld [vmem:[%s31] sm:$0xff]
        %v2392 = vld [vmem:[%s31 + $0x8] sm:$0xff]
        %v2393 = vld [vmem:[%s31 + $0x10] sm:$0xff]
        %v2394 = vld [vmem:[%s31 + $0x18] sm:$0xff]
        %v2395 = vld [vmem:[%s31 + $0x20] sm:$0xff]
        %v2396 = vld [vmem:[%s31 + $0x28] sm:$0xff]
        %v2397 = vld [vmem:[%s31 + $0x30] sm:$0xff]
        %v2398 = vld [vmem:[%s31 + $0x38] sm:$0xff]
        %v2399 = vld [vmem:[%s31 + $0x40] sm:$0xff]
        %v2400 = vld [vmem:[%s31 + $0x48] sm:$0xff]
        %v2401 = vld [vmem:[%s31 + $0x50] sm:$0xff]
        %v2402 = vld [vmem:[%s31 + $0x58] sm:$0xff]
        %v2403 = vld [vmem:[%s31 + $0x60] sm:$0xff]
        %v2404 = vld [vmem:[%s31 + $0x68] sm:$0xff]
        %v2405 = vld [vmem:[%s31 + $0x70] sm:$0xff]
        %v2406 = vld [vmem:[%s31 + $0x78] sm:$0xff]
        %v2407 = vld [vmem:[#allocation20] sm:$0x3]
        %v2409 = vlaneseq
        %v2410 = vshrl.u32 %v2409, 7
        %v2411 = vsub.s32 0, %v2410
        %v2412 = vrot.slane %v2407, %v2411
        %v2413 = vlaneseq
        %v2414 = vshrl.u32 %v2413, 7
        %v2415 = vsub.s32 1, %v2414
        %v2416 = vrot.slane %v2407, %v2415
        %v2435 = vunpack.c.l.b16 %v2391
        %v2436 = vunpack.c.h.b16 %v2391
        %v2437 = vunpack.c.l.b16 %v2392
        %v2438 = vunpack.c.h.b16 %v2392
        %v2439 = vunpack.c.l.b16 %v2393
        %v2440 = vunpack.c.h.b16 %v2393
        %v2441 = vunpack.c.l.b16 %v2394
        %v2442 = vunpack.c.h.b16 %v2394
        %v2443 = vunpack.c.l.b16 %v2395
        %v2444 = vunpack.c.h.b16 %v2395
        %v2445 = vunpack.c.l.b16 %v2396
        %v2446 = vunpack.c.h.b16 %v2396
        %v2447 = vunpack.c.l.b16 %v2397
        %v2448 = vunpack.c.h.b16 %v2397
        %v2449 = vunpack.c.l.b16 %v2398
        %v2450 = vunpack.c.h.b16 %v2398
        %v2451 = vunpack.c.l.b16 %v2399
        %v2452 = vunpack.c.h.b16 %v2399
        %v2453 = vunpack.c.l.b16 %v2400
        %v2454 = vunpack.c.h.b16 %v2400
        %v2455 = vunpack.c.l.b16 %v2401
        %v2456 = vunpack.c.h.b16 %v2401
        %v2457 = vunpack.c.l.b16 %v2402
        %v2458 = vunpack.c.h.b16 %v2402
        %v2459 = vunpack.c.l.b16 %v2403
        %v2460 = vunpack.c.h.b16 %v2403
        %v2461 = vunpack.c.l.b16 %v2404
        %v2462 = vunpack.c.h.b16 %v2404
        %v2463 = vunpack.c.l.b16 %v2405
        %v2464 = vunpack.c.h.b16 %v2405
        %v2465 = vunpack.c.l.b16 %v2406
        %v2466 = vunpack.c.h.b16 %v2406
        %v2467 = vpack.c.b16 %v2437, %v2435
        %v2468 = vpack.c.b16 %v2438, %v2436
        %v2469 = vpack.c.b16 %v2441, %v2439
        %v2470 = vpack.c.b16 %v2442, %v2440
        %v2471 = vpack.c.b16 %v2445, %v2443
        %v2472 = vpack.c.b16 %v2446, %v2444
        %v2473 = vpack.c.b16 %v2449, %v2447
        %v2474 = vpack.c.b16 %v2450, %v2448
        %v2475 = vpack.c.b16 %v2453, %v2451
        %v2476 = vpack.c.b16 %v2454, %v2452
        %v2477 = vpack.c.b16 %v2457, %v2455
        %v2478 = vpack.c.b16 %v2458, %v2456
        %v2479 = vpack.c.b16 %v2461, %v2459
        %v2480 = vpack.c.b16 %v2462, %v2460
        %v2481 = vpack.c.b16 %v2465, %v2463
        %v2482 = vpack.c.b16 %v2466, %v2464
        %2499 = vmatprep.subr.bf16.mxu0 %v2468
        %2500 = vmatpush1.bf16.msra.mxu0 %v2467
        %2501 = vmatprep.subr.bf16.mxu0 %v2470
        %2502 = vmatpush1.bf16.msra.mxu0 %v2469
        %2503 = vmatprep.subr.bf16.mxu0 %v2472
        %2504 = vmatpush1.bf16.msra.mxu0 %v2471
        %2505 = vmatprep.subr.bf16.mxu0 %v2474
        %2506 = vmatpush1.bf16.msra.mxu0 %v2473
        %2507 = vmatprep.subr.bf16.mxu0 %v2476
        %2508 = vmatpush1.bf16.msra.mxu0 %v2475
        %2509 = vmatprep.subr.bf16.mxu0 %v2478
        %2510 = vmatpush1.bf16.msra.mxu0 %v2477
        %2511 = vmatprep.subr.bf16.mxu0 %v2480
        %2512 = vmatpush1.bf16.msra.mxu0 %v2479
        %2513 = vmatprep.subr.bf16.mxu0 %v2482
        %2514 = vmatpush1.bf16.msra.mxu0 %v2481
        %2515 = vmatprep.subr.bf16.mxu0 0
        %2516 = vmatpush1.bf16.msra.mxu0 0
        %2517 = vmatprep.subr.bf16.mxu0 0
        %2518 = vmatpush1.bf16.msra.mxu0 0
        %2519 = vmatprep.subr.bf16.mxu0 0
        %2520 = vmatpush1.bf16.msra.mxu0 0
        %2521 = vmatprep.subr.bf16.mxu0 0
        %2522 = vmatpush1.bf16.msra.mxu0 0
        %2523 = vmatprep.subr.bf16.mxu0 0
        %2524 = vmatpush1.bf16.msra.mxu0 0
        %2525 = vmatprep.subr.bf16.mxu0 0
        %2526 = vmatpush1.bf16.msra.mxu0 0
        %2527 = vmatprep.subr.bf16.mxu0 0
        %2528 = vmatpush1.bf16.msra.mxu0 0
        %2529 = vmatprep.subr.bf16.mxu0 0
        %2530 = vmatpush1.bf16.msra.mxu0 0
        %2531 = vmatprep.mubr.bf16.mxu0 0
        %2532 = vmatmul.mubr.bf16.gmra.mrb[0].mxu0 %v1400
        %v2533 = vpop.f32.mrb[0].mxu0
        %v2534 = vadd.f32 %v2412, %v2533
        %v2535 = vpop.f32.mrb[0].mxu0
        %v2536 = vadd.f32 %v2416, %v2535
        %v2537 = vpop.f32.mrb[0].mxu0
        %v2538 = vadd.f32 %v2412, %v2537
        %v2539 = vpop.f32.mrb[0].mxu0
        %v2540 = vadd.f32 %v2416, %v2539
        %2541 = vdwg.mxu0
        %v2542 = vmax.f32 %v2534, 0.0
        %v2543 = vmax.f32 %v2536, 0.0
        %v2544 = vmax.f32 %v2538, 0.0
        %v2545 = vmax.f32 %v2540, 0.0
        %v2546 = vpack.c.bf16 %v2544, %v2542
        %v2547 = vpack.c.bf16 %v2545, %v2543
        %v2548 = vld [vmem:[%s35] sm:$0xf]
        %v2549 = vld [vmem:[%s35 + $0x4] sm:$0xf]
        %v2550 = vld [vmem:[%s35 + $0x8] sm:$0xf]
        %v2551 = vld [vmem:[%s35 + $0xc] sm:$0xf]
        %v2552 = vld [vmem:[%s35 + $0x10] sm:$0xf]
        %v2553 = vld [vmem:[%s35 + $0x14] sm:$0xf]
        %v2554 = vld [vmem:[%s35 + $0x18] sm:$0xf]
        %v2555 = vld [vmem:[%s35 + $0x1c] sm:$0xf]
        %v2556 = vld [vmem:[%s35 + $0x20] sm:$0xf]
        %v2557 = vld [vmem:[%s35 + $0x24] sm:$0xf]
        %v2558 = vld [vmem:[%s35 + $0x28] sm:$0xf]
        %v2559 = vld [vmem:[%s35 + $0x2c] sm:$0xf]
        %v2560 = vld [vmem:[%s35 + $0x30] sm:$0xf]
        %v2561 = vld [vmem:[%s35 + $0x34] sm:$0xf]
        %v2562 = vld [vmem:[%s35 + $0x38] sm:$0xf]
        %v2563 = vld [vmem:[%s35 + $0x3c] sm:$0xf]
        %v2564 = vld [vmem:[%s35 + $0x40] sm:$0xf]
        %v2565 = vld [vmem:[%s35 + $0x44] sm:$0xf]
        %v2566 = vld [vmem:[%s35 + $0x48] sm:$0xf]
        %v2567 = vld [vmem:[%s35 + $0x4c] sm:$0xf]
        %v2568 = vld [vmem:[%s35 + $0x50] sm:$0xf]
        %v2569 = vld [vmem:[%s35 + $0x54] sm:$0xf]
        %v2570 = vld [vmem:[%s35 + $0x58] sm:$0xf]
        %v2571 = vld [vmem:[%s35 + $0x5c] sm:$0xf]
        %v2572 = vld [vmem:[%s35 + $0x60] sm:$0xf]
        %v2573 = vld [vmem:[%s35 + $0x64] sm:$0xf]
        %v2574 = vld [vmem:[%s35 + $0x68] sm:$0xf]
        %v2575 = vld [vmem:[%s35 + $0x6c] sm:$0xf]
        %v2576 = vld [vmem:[%s35 + $0x70] sm:$0xf]
        %v2577 = vld [vmem:[%s35 + $0x74] sm:$0xf]
        %v2578 = vld [vmem:[%s35 + $0x78] sm:$0xf]
        %v2579 = vld [vmem:[%s35 + $0x7c] sm:$0xf]
        %v2580 = vld [vmem:[#allocation22] sm:$0x1]
        %v2582 = vlaneseq
        %v2583 = vshrl.u32 %v2582, 7
        %v2584 = vsub.s32 0, %v2583
        %v2585 = vrot.slane %v2580, %v2584
        %v2619 = vunpack.c.l.b16 %v2548
        %v2620 = vunpack.c.l.b16 %v2549
        %v2621 = vunpack.c.l.b16 %v2550
        %v2622 = vunpack.c.l.b16 %v2551
        %v2623 = vunpack.c.l.b16 %v2552
        %v2624 = vunpack.c.l.b16 %v2553
        %v2625 = vunpack.c.l.b16 %v2554
        %v2626 = vunpack.c.l.b16 %v2555
        %v2627 = vunpack.c.l.b16 %v2556
        %v2628 = vunpack.c.l.b16 %v2557
        %v2629 = vunpack.c.l.b16 %v2558
        %v2630 = vunpack.c.l.b16 %v2559
        %v2631 = vunpack.c.l.b16 %v2560
        %v2632 = vunpack.c.l.b16 %v2561
        %v2633 = vunpack.c.l.b16 %v2562
        %v2634 = vunpack.c.l.b16 %v2563
        %v2635 = vunpack.c.l.b16 %v2564
        %v2636 = vunpack.c.l.b16 %v2565
        %v2637 = vunpack.c.l.b16 %v2566
        %v2638 = vunpack.c.l.b16 %v2567
        %v2639 = vunpack.c.l.b16 %v2568
        %v2640 = vunpack.c.l.b16 %v2569
        %v2641 = vunpack.c.l.b16 %v2570
        %v2642 = vunpack.c.l.b16 %v2571
        %v2643 = vunpack.c.l.b16 %v2572
        %v2644 = vunpack.c.l.b16 %v2573
        %v2645 = vunpack.c.l.b16 %v2574
        %v2646 = vunpack.c.l.b16 %v2575
        %v2647 = vunpack.c.l.b16 %v2576
        %v2648 = vunpack.c.l.b16 %v2577
        %v2649 = vunpack.c.l.b16 %v2578
        %v2650 = vunpack.c.l.b16 %v2579
        %v2651 = vpack.c.b16 %v2620, %v2619
        %v2652 = vpack.c.b16 %v2622, %v2621
        %v2653 = vpack.c.b16 %v2624, %v2623
        %v2654 = vpack.c.b16 %v2626, %v2625
        %v2655 = vpack.c.b16 %v2628, %v2627
        %v2656 = vpack.c.b16 %v2630, %v2629
        %v2657 = vpack.c.b16 %v2632, %v2631
        %v2658 = vpack.c.b16 %v2634, %v2633
        %v2659 = vpack.c.b16 %v2636, %v2635
        %v2660 = vpack.c.b16 %v2638, %v2637
        %v2661 = vpack.c.b16 %v2640, %v2639
        %v2662 = vpack.c.b16 %v2642, %v2641
        %v2663 = vpack.c.b16 %v2644, %v2643
        %v2664 = vpack.c.b16 %v2646, %v2645
        %v2665 = vpack.c.b16 %v2648, %v2647
        %v2666 = vpack.c.b16 %v2650, %v2649
        %2683 = vmatprep.subr.bf16.mxu0 0
        %2684 = vmatpush1.bf16.msra.mxu0 %v2651
        %2685 = vmatprep.subr.bf16.mxu0 0
        %2686 = vmatpush1.bf16.msra.mxu0 %v2652
        %2687 = vmatprep.subr.bf16.mxu0 0
        %2688 = vmatpush1.bf16.msra.mxu0 %v2653
        %2689 = vmatprep.subr.bf16.mxu0 0
        %2690 = vmatpush1.bf16.msra.mxu0 %v2654
        %2691 = vmatprep.subr.bf16.mxu0 0
        %2692 = vmatpush1.bf16.msra.mxu0 %v2655
        %2693 = vmatprep.subr.bf16.mxu0 0
        %2694 = vmatpush1.bf16.msra.mxu0 %v2656
        %2695 = vmatprep.subr.bf16.mxu0 0
        %2696 = vmatpush1.bf16.msra.mxu0 %v2657
        %2697 = vmatprep.subr.bf16.mxu0 0
        %2698 = vmatpush1.bf16.msra.mxu0 %v2658
        %2699 = vmatprep.subr.bf16.mxu0 0
        %2700 = vmatpush1.bf16.msra.mxu0 %v2659
        %2701 = vmatprep.subr.bf16.mxu0 0
        %2702 = vmatpush1.bf16.msra.mxu0 %v2660
        %2703 = vmatprep.subr.bf16.mxu0 0
        %2704 = vmatpush1.bf16.msra.mxu0 %v2661
        %2705 = vmatprep.subr.bf16.mxu0 0
        %2706 = vmatpush1.bf16.msra.mxu0 %v2662
        %2707 = vmatprep.subr.bf16.mxu0 0
        %2708 = vmatpush1.bf16.msra.mxu0 %v2663
        %2709 = vmatprep.subr.bf16.mxu0 0
        %2710 = vmatpush1.bf16.msra.mxu0 %v2664
        %2711 = vmatprep.subr.bf16.mxu0 0
        %2712 = vmatpush1.bf16.msra.mxu0 %v2665
        %2713 = vmatprep.subr.bf16.mxu0 0
        %2714 = vmatpush1.bf16.msra.mxu0 %v2666
        %2715 = vmatprep.mubr.bf16.mxu0 %v2547
        %2716 = vmatmul.mubr.bf16.gmra.mrb[0].mxu0 %v2546
        %v2717 = vpop.f32.mrb[0].mxu0
        %v2718 = vadd.f32 %v2585, %v2717
        %v2719 = vpop.f32.mrb[0].mxu0
        %v2720 = vpop.f32.mrb[0].mxu0
        %v2721 = vadd.f32 %v2585, %v2720
        %v2722 = vpop.f32.mrb[0].mxu0
        %2723 = vdwg.mxu0
        %v2724 = vmax.f32 %v2718, 0.0
        %v2725 = vmax.f32 %v2721, 0.0
        %v2726 = vpack.c.bf16 %v2725, %v2724
        %v2727 = vld [vmem:[#allocation23] sm:$0xf]
        %v2728 = vld [vmem:[#allocation23 + $0x4] sm:$0xf]
        %v2729 = vld [vmem:[#allocation23 + $0x8] sm:$0xf]
        %v2730 = vld [vmem:[#allocation23 + $0xc] sm:$0xf]
        %v2731 = vld [vmem:[#allocation23 + $0x10] sm:$0xf]
        %v2732 = vld [vmem:[#allocation23 + $0x14] sm:$0xf]
        %v2733 = vld [vmem:[#allocation23 + $0x18] sm:$0xf]
        %v2734 = vld [vmem:[#allocation23 + $0x1c] sm:$0xf]
        %v2735 = vld [vmem:[#allocation25] sm:$0x1]
        %v2737 = vlaneseq
        %v2738 = vshrl.u32 %v2737, 7
        %v2739 = vsub.s32 0, %v2738
        %v2740 = vrot.slane %v2735, %v2739
        %v2750 = vunpack.c.l.b16 %v2727
        %v2751 = vunpack.c.l.b16 %v2728
        %v2752 = vunpack.c.l.b16 %v2729
        %v2753 = vunpack.c.l.b16 %v2730
        %v2754 = vunpack.c.l.b16 %v2731
        %v2755 = vunpack.c.l.b16 %v2732
        %v2756 = vunpack.c.l.b16 %v2733
        %v2757 = vunpack.c.l.b16 %v2734
        %v2758 = vpack.c.b16 %v2751, %v2750
        %v2759 = vpack.c.b16 %v2753, %v2752
        %v2760 = vpack.c.b16 %v2755, %v2754
        %v2761 = vpack.c.b16 %v2757, %v2756
        %v2767 = vsel %vm1872, %v2726, 0
        %2769 = vmatprep.subr.bf16.mxu0 0
        %2770 = vmatpush1.bf16.msra.mxu0 %v2758
        %2771 = vmatprep.subr.bf16.mxu0 0
        %2772 = vmatpush1.bf16.msra.mxu0 %v2759
        %2773 = vmatprep.subr.bf16.mxu0 0
        %2774 = vmatpush1.bf16.msra.mxu0 %v2760
        %2775 = vmatprep.subr.bf16.mxu0 0
        %2776 = vmatpush1.bf16.msra.mxu0 %v2761
        %2777 = vmatprep.subr.bf16.mxu0 0
        %2778 = vmatpush1.bf16.msra.mxu0 0
        %2779 = vmatprep.subr.bf16.mxu0 0
        %2780 = vmatpush1.bf16.msra.mxu0 0
        %2781 = vmatprep.subr.bf16.mxu0 0
        %2782 = vmatpush1.bf16.msra.mxu0 0
        %2783 = vmatprep.subr.bf16.mxu0 0
        %2784 = vmatpush1.bf16.msra.mxu0 0
        %2785 = vmatprep.subr.bf16.mxu0 0
        %2786 = vmatpush1.bf16.msra.mxu0 0
        %2787 = vmatprep.subr.bf16.mxu0 0
        %2788 = vmatpush1.bf16.msra.mxu0 0
        %2789 = vmatprep.subr.bf16.mxu0 0
        %2790 = vmatpush1.bf16.msra.mxu0 0
        %2791 = vmatprep.subr.bf16.mxu0 0
        %2792 = vmatpush1.bf16.msra.mxu0 0
        %2793 = vmatprep.subr.bf16.mxu0 0
        %2794 = vmatpush1.bf16.msra.mxu0 0
        %2795 = vmatprep.subr.bf16.mxu0 0
        %2796 = vmatpush1.bf16.msra.mxu0 0
        %2797 = vmatprep.subr.bf16.mxu0 0
        %2798 = vmatpush1.bf16.msra.mxu0 0
        %2799 = vmatprep.subr.bf16.mxu0 0
        %2800 = vmatpush1.bf16.msra.mxu0 0
        %2801 = vmatprep.mubr.bf16.mxu0 0
        %2802 = vmatmul.mubr.bf16.gmra.mrb[0].mxu0 %v2767
        %v2803 = vpop.f32.mrb[0].mxu0
        %v2804 = vadd.f32 %v2740, %v2803
        %v2805 = vpop.f32.mrb[0].mxu0
        %v2806 = vpop.f32.mrb[0].mxu0
        %v2807 = vadd.f32 %v2740, %v2806
        %v2808 = vpop.f32.mrb[0].mxu0
        %2809 = vdwg.mxu0
        %v2810 = vpack.c.bf16 %v2807, %v2804
        %v2811 = vld [vmem:[#allocation26] sm:$0xf]
        %v2812 = vld [vmem:[#allocation26 + $0x4] sm:$0xf]
        %v2813 = vld [vmem:[#allocation26 + $0x8] sm:$0xf]
        %v2814 = vld [vmem:[#allocation26 + $0xc] sm:$0xf]
        %v2815 = vld [vmem:[#allocation26 + $0x10] sm:$0xf]
        %v2816 = vld [vmem:[#allocation26 + $0x14] sm:$0xf]
        %v2817 = vld [vmem:[#allocation26 + $0x18] sm:$0xf]
        %v2818 = vld [vmem:[#allocation26 + $0x1c] sm:$0xf]
        %v2819 = vld [vmem:[#allocation28] sm:$0x1]
        %v2821 = vlaneseq
        %v2822 = vshrl.u32 %v2821, 7
        %v2823 = vsub.s32 0, %v2822
        %v2824 = vrot.slane %v2819, %v2823
        %v2834 = vunpack.c.l.b16 %v2811
        %v2835 = vunpack.c.l.b16 %v2812
        %v2836 = vunpack.c.l.b16 %v2813
        %v2837 = vunpack.c.l.b16 %v2814
        %v2838 = vunpack.c.l.b16 %v2815
        %v2839 = vunpack.c.l.b16 %v2816
        %v2840 = vunpack.c.l.b16 %v2817
        %v2841 = vunpack.c.l.b16 %v2818
        %v2842 = vpack.c.b16 %v2835, %v2834
        %v2843 = vpack.c.b16 %v2837, %v2836
        %v2844 = vpack.c.b16 %v2839, %v2838
        %v2845 = vpack.c.b16 %v2841, %v2840
        %v2851 = vsel %vm1872, %v2810, 0
        %2853 = vmatprep.subr.bf16.mxu0 0
        %2854 = vmatpush1.bf16.msra.mxu0 %v2842
        %2855 = vmatprep.subr.bf16.mxu0 0
        %2856 = vmatpush1.bf16.msra.mxu0 %v2843
        %2857 = vmatprep.subr.bf16.mxu0 0
        %2858 = vmatpush1.bf16.msra.mxu0 %v2844
        %2859 = vmatprep.subr.bf16.mxu0 0
        %2860 = vmatpush1.bf16.msra.mxu0 %v2845
        %2861 = vmatprep.subr.bf16.mxu0 0
        %2862 = vmatpush1.bf16.msra.mxu0 0
        %2863 = vmatprep.subr.bf16.mxu0 0
        %2864 = vmatpush1.bf16.msra.mxu0 0
        %2865 = vmatprep.subr.bf16.mxu0 0
        %2866 = vmatpush1.bf16.msra.mxu0 0
        %2867 = vmatprep.subr.bf16.mxu0 0
        %2868 = vmatpush1.bf16.msra.mxu0 0
        %2869 = vmatprep.subr.bf16.mxu0 0
        %2870 = vmatpush1.bf16.msra.mxu0 0
        %2871 = vmatprep.subr.bf16.mxu0 0
        %2872 = vmatpush1.bf16.msra.mxu0 0
        %2873 = vmatprep.subr.bf16.mxu0 0
        %2874 = vmatpush1.bf16.msra.mxu0 0
        %2875 = vmatprep.subr.bf16.mxu0 0
        %2876 = vmatpush1.bf16.msra.mxu0 0
        %2877 = vmatprep.subr.bf16.mxu0 0
        %2878 = vmatpush1.bf16.msra.mxu0 0
        %2879 = vmatprep.subr.bf16.mxu0 0
        %2880 = vmatpush1.bf16.msra.mxu0 0
        %2881 = vmatprep.subr.bf16.mxu0 0
        %2882 = vmatpush1.bf16.msra.mxu0 0
        %2883 = vmatprep.subr.bf16.mxu0 0
        %2884 = vmatpush1.bf16.msra.mxu0 0
        %2885 = vmatprep.mubr.bf16.mxu0 0
        %2886 = vmatmul.mubr.bf16.gmra.mrb[0].mxu0 %v2851
        %v2887 = vpop.f32.mrb[0].mxu0
        %v2888 = vadd.f32 %v2824, %v2887
        %v2889 = vpop.f32.mrb[0].mxu0
        %v2890 = vpop.f32.mrb[0].mxu0
        %v2891 = vadd.f32 %v2824, %v2890
        %v2892 = vpop.f32.mrb[0].mxu0
        %2893 = vdwg.mxu0
        %v2894 = vmax.f32 %v2888, 0.0
        %v2895 = vmax.f32 %v2891, 0.0
        %v2896 = vpack.c.bf16 %v2895, %v2894
        %v2897 = vld [vmem:[#allocation29] sm:$0xff]
        %v2898 = vld [vmem:[#allocation29 + $0x8] sm:$0xff]
        %v2899 = vld [vmem:[#allocation29 + $0x10] sm:$0xff]
        %v2900 = vld [vmem:[#allocation29 + $0x18] sm:$0xff]
        %v2901 = vld [vmem:[#allocation29 + $0x20] sm:$0xff]
        %v2902 = vld [vmem:[#allocation29 + $0x28] sm:$0xff]
        %v2903 = vld [vmem:[#allocation29 + $0x30] sm:$0xff]
        %v2904 = vld [vmem:[#allocation29 + $0x38] sm:$0xff]
        %v2905 = vld [vmem:[#allocation31] sm:$0x3]
        %v2907 = vlaneseq
        %v2908 = vshrl.u32 %v2907, 7
        %v2909 = vsub.s32 0, %v2908
        %v2910 = vrot.slane %v2905, %v2909
        %v2911 = vlaneseq
        %v2912 = vshrl.u32 %v2911, 7
        %v2913 = vsub.s32 1, %v2912
        %v2914 = vrot.slane %v2905, %v2913
        %v2925 = vunpack.c.l.b16 %v2897
        %v2926 = vunpack.c.h.b16 %v2897
        %v2927 = vunpack.c.l.b16 %v2898
        %v2928 = vunpack.c.h.b16 %v2898
        %v2929 = vunpack.c.l.b16 %v2899
        %v2930 = vunpack.c.h.b16 %v2899
        %v2931 = vunpack.c.l.b16 %v2900
        %v2932 = vunpack.c.h.b16 %v2900
        %v2933 = vunpack.c.l.b16 %v2901
        %v2934 = vunpack.c.h.b16 %v2901
        %v2935 = vunpack.c.l.b16 %v2902
        %v2936 = vunpack.c.h.b16 %v2902
        %v2937 = vunpack.c.l.b16 %v2903
        %v2938 = vunpack.c.h.b16 %v2903
        %v2939 = vunpack.c.l.b16 %v2904
        %v2940 = vunpack.c.h.b16 %v2904
        %v2941 = vpack.c.b16 %v2927, %v2925
        %v2942 = vpack.c.b16 %v2928, %v2926
        %v2943 = vpack.c.b16 %v2931, %v2929
        %v2944 = vpack.c.b16 %v2932, %v2930
        %v2945 = vpack.c.b16 %v2935, %v2933
        %v2946 = vpack.c.b16 %v2936, %v2934
        %v2947 = vpack.c.b16 %v2939, %v2937
        %v2948 = vpack.c.b16 %v2940, %v2938
        %v2958 = vsel %vm1872, %v2896, 0
        %2960 = vmatprep.subr.bf16.mxu0 %v2942
        %2961 = vmatpush1.bf16.msra.mxu0 %v2941
        %2962 = vmatprep.subr.bf16.mxu0 %v2944
        %2963 = vmatpush1.bf16.msra.mxu0 %v2943
        %2964 = vmatprep.subr.bf16.mxu0 %v2946
        %2965 = vmatpush1.bf16.msra.mxu0 %v2945
        %2966 = vmatprep.subr.bf16.mxu0 %v2948
        %2967 = vmatpush1.bf16.msra.mxu0 %v2947
        %2968 = vmatprep.subr.bf16.mxu0 0
        %2969 = vmatpush1.bf16.msra.mxu0 0
        %2970 = vmatprep.subr.bf16.mxu0 0
        %2971 = vmatpush1.bf16.msra.mxu0 0
        %2972 = vmatprep.subr.bf16.mxu0 0
        %2973 = vmatpush1.bf16.msra.mxu0 0
        %2974 = vmatprep.subr.bf16.mxu0 0
        %2975 = vmatpush1.bf16.msra.mxu0 0
        %2976 = vmatprep.subr.bf16.mxu0 0
        %2977 = vmatpush1.bf16.msra.mxu0 0
        %2978 = vmatprep.subr.bf16.mxu0 0
        %2979 = vmatpush1.bf16.msra.mxu0 0
        %2980 = vmatprep.subr.bf16.mxu0 0
        %2981 = vmatpush1.bf16.msra.mxu0 0
        %2982 = vmatprep.subr.bf16.mxu0 0
        %2983 = vmatpush1.bf16.msra.mxu0 0
        %2984 = vmatprep.subr.bf16.mxu0 0
        %2985 = vmatpush1.bf16.msra.mxu0 0
        %2986 = vmatprep.subr.bf16.mxu0 0
        %2987 = vmatpush1.bf16.msra.mxu0 0
        %2988 = vmatprep.subr.bf16.mxu0 0
        %2989 = vmatpush1.bf16.msra.mxu0 0
        %2990 = vmatprep.subr.bf16.mxu0 0
        %2991 = vmatpush1.bf16.msra.mxu0 0
        %2992 = vmatprep.mubr.bf16.mxu0 0
        %2993 = vmatmul.mubr.bf16.gmra.mrb[0].mxu0 %v2958
        %v2994 = vpop.f32.mrb[0].mxu0
        %v2995 = vadd.f32 %v2910, %v2994
        %v2996 = vpop.f32.mrb[0].mxu0
        %v2997 = vadd.f32 %v2914, %v2996
        %v2998 = vpop.f32.mrb[0].mxu0
        %v2999 = vadd.f32 %v2910, %v2998
        %v3000 = vpop.f32.mrb[0].mxu0
        %v3001 = vadd.f32 %v2914, %v3000
        %3002 = vdwg.mxu0
        %v3003 = vmax.f32 %v2995, 0.0
        %v3004 = vmax.f32 %v2997, 0.0
        %v3005 = vmax.f32 %v2999, 0.0
        %v3006 = vmax.f32 %v3001, 0.0
        %v3007 = vpack.c.bf16 %v3005, %v3003
        %v3008 = vpack.c.bf16 %v3006, %v3004
        %v3009 = vld [vmem:[%s51] sm:$0xf]
        %v3010 = vld [vmem:[%s51 + $0x4] sm:$0xf]
        %v3011 = vld [vmem:[%s51 + $0x8] sm:$0xf]
        %v3012 = vld [vmem:[%s51 + $0xc] sm:$0xf]
        %v3013 = vld [vmem:[%s51 + $0x10] sm:$0xf]
        %v3014 = vld [vmem:[%s51 + $0x14] sm:$0xf]
        %v3015 = vld [vmem:[%s51 + $0x18] sm:$0xf]
        %v3016 = vld [vmem:[%s51 + $0x1c] sm:$0xf]
        %v3017 = vld [vmem:[%s51 + $0x20] sm:$0xf]
        %v3018 = vld [vmem:[%s51 + $0x24] sm:$0xf]
        %v3019 = vld [vmem:[%s51 + $0x28] sm:$0xf]
        %v3020 = vld [vmem:[%s51 + $0x2c] sm:$0xf]
        %v3021 = vld [vmem:[%s51 + $0x30] sm:$0xf]
        %v3022 = vld [vmem:[%s51 + $0x34] sm:$0xf]
        %v3023 = vld [vmem:[%s51 + $0x38] sm:$0xf]
        %v3024 = vld [vmem:[%s51 + $0x3c] sm:$0xf]
        %v3025 = vld [vmem:[%s51 + $0x40] sm:$0xf]
        %v3026 = vld [vmem:[%s51 + $0x44] sm:$0xf]
        %v3027 = vld [vmem:[%s51 + $0x48] sm:$0xf]
        %v3028 = vld [vmem:[%s51 + $0x4c] sm:$0xf]
        %v3029 = vld [vmem:[%s51 + $0x50] sm:$0xf]
        %v3030 = vld [vmem:[%s51 + $0x54] sm:$0xf]
        %v3031 = vld [vmem:[%s51 + $0x58] sm:$0xf]
        %v3032 = vld [vmem:[%s51 + $0x5c] sm:$0xf]
        %v3033 = vld [vmem:[%s51 + $0x60] sm:$0xf]
        %v3034 = vld [vmem:[%s51 + $0x64] sm:$0xf]
        %v3035 = vld [vmem:[%s51 + $0x68] sm:$0xf]
        %v3036 = vld [vmem:[%s51 + $0x6c] sm:$0xf]
        %v3037 = vld [vmem:[%s51 + $0x70] sm:$0xf]
        %v3038 = vld [vmem:[%s51 + $0x74] sm:$0xf]
        %v3039 = vld [vmem:[%s51 + $0x78] sm:$0xf]
        %v3040 = vld [vmem:[%s51 + $0x7c] sm:$0xf]
        %v3041 = vld [vmem:[%s53] sm:$0x1]
        %v3043 = vlaneseq
        %v3044 = vshrl.u32 %v3043, 7
        %v3045 = vsub.s32 0, %v3044
        %v3046 = vrot.slane %v3041, %v3045
        %v3080 = vunpack.c.l.b16 %v3009
        %v3081 = vunpack.c.l.b16 %v3010
        %v3082 = vunpack.c.l.b16 %v3011
        %v3083 = vunpack.c.l.b16 %v3012
        %v3084 = vunpack.c.l.b16 %v3013
        %v3085 = vunpack.c.l.b16 %v3014
        %v3086 = vunpack.c.l.b16 %v3015
        %v3087 = vunpack.c.l.b16 %v3016
        %v3088 = vunpack.c.l.b16 %v3017
        %v3089 = vunpack.c.l.b16 %v3018
        %v3090 = vunpack.c.l.b16 %v3019
        %v3091 = vunpack.c.l.b16 %v3020
        %v3092 = vunpack.c.l.b16 %v3021
        %v3093 = vunpack.c.l.b16 %v3022
        %v3094 = vunpack.c.l.b16 %v3023
        %v3095 = vunpack.c.l.b16 %v3024
        %v3096 = vunpack.c.l.b16 %v3025
        %v3097 = vunpack.c.l.b16 %v3026
        %v3098 = vunpack.c.l.b16 %v3027
        %v3099 = vunpack.c.l.b16 %v3028
        %v3100 = vunpack.c.l.b16 %v3029
        %v3101 = vunpack.c.l.b16 %v3030
        %v3102 = vunpack.c.l.b16 %v3031
        %v3103 = vunpack.c.l.b16 %v3032
        %v3104 = vunpack.c.l.b16 %v3033
        %v3105 = vunpack.c.l.b16 %v3034
        %v3106 = vunpack.c.l.b16 %v3035
        %v3107 = vunpack.c.l.b16 %v3036
        %v3108 = vunpack.c.l.b16 %v3037
        %v3109 = vunpack.c.l.b16 %v3038
        %v3110 = vunpack.c.l.b16 %v3039
        %v3111 = vunpack.c.l.b16 %v3040
        %v3112 = vpack.c.b16 %v3081, %v3080
        %v3113 = vpack.c.b16 %v3083, %v3082
        %v3114 = vpack.c.b16 %v3085, %v3084
        %v3115 = vpack.c.b16 %v3087, %v3086
        %v3116 = vpack.c.b16 %v3089, %v3088
        %v3117 = vpack.c.b16 %v3091, %v3090
        %v3118 = vpack.c.b16 %v3093, %v3092
        %v3119 = vpack.c.b16 %v3095, %v3094
        %v3120 = vpack.c.b16 %v3097, %v3096
        %v3121 = vpack.c.b16 %v3099, %v3098
        %v3122 = vpack.c.b16 %v3101, %v3100
        %v3123 = vpack.c.b16 %v3103, %v3102
        %v3124 = vpack.c.b16 %v3105, %v3104
        %v3125 = vpack.c.b16 %v3107, %v3106
        %v3126 = vpack.c.b16 %v3109, %v3108
        %v3127 = vpack.c.b16 %v3111, %v3110
        %3144 = vmatprep.subr.bf16.mxu0 0
        %3145 = vmatpush1.bf16.msra.mxu0 %v3112
        %3146 = vmatprep.subr.bf16.mxu0 0
        %3147 = vmatpush1.bf16.msra.mxu0 %v3113
        %3148 = vmatprep.subr.bf16.mxu0 0
        %3149 = vmatpush1.bf16.msra.mxu0 %v3114
        %3150 = vmatprep.subr.bf16.mxu0 0
        %3151 = vmatpush1.bf16.msra.mxu0 %v3115
        %3152 = vmatprep.subr.bf16.mxu0 0
        %3153 = vmatpush1.bf16.msra.mxu0 %v3116
        %3154 = vmatprep.subr.bf16.mxu0 0
        %3155 = vmatpush1.bf16.msra.mxu0 %v3117
        %3156 = vmatprep.subr.bf16.mxu0 0
        %3157 = vmatpush1.bf16.msra.mxu0 %v3118
        %3158 = vmatprep.subr.bf16.mxu0 0
        %3159 = vmatpush1.bf16.msra.mxu0 %v3119
        %3160 = vmatprep.subr.bf16.mxu0 0
        %3161 = vmatpush1.bf16.msra.mxu0 %v3120
        %3162 = vmatprep.subr.bf16.mxu0 0
        %3163 = vmatpush1.bf16.msra.mxu0 %v3121
        %3164 = vmatprep.subr.bf16.mxu0 0
        %3165 = vmatpush1.bf16.msra.mxu0 %v3122
        %3166 = vmatprep.subr.bf16.mxu0 0
        %3167 = vmatpush1.bf16.msra.mxu0 %v3123
        %3168 = vmatprep.subr.bf16.mxu0 0
        %3169 = vmatpush1.bf16.msra.mxu0 %v3124
        %3170 = vmatprep.subr.bf16.mxu0 0
        %3171 = vmatpush1.bf16.msra.mxu0 %v3125
        %3172 = vmatprep.subr.bf16.mxu0 0
        %3173 = vmatpush1.bf16.msra.mxu0 %v3126
        %3174 = vmatprep.subr.bf16.mxu0 0
        %3175 = vmatpush1.bf16.msra.mxu0 %v3127
        %3176 = vmatprep.mubr.bf16.mxu0 %v3008
        %3177 = vmatmul.mubr.bf16.gmra.mrb[0].mxu0 %v3007
        %v3178 = vpop.f32.mrb[0].mxu0
        %v3179 = vadd.f32 %v3046, %v3178
        %v3180 = vpop.f32.mrb[0].mxu0
        %v3181 = vpop.f32.mrb[0].mxu0
        %v3182 = vadd.f32 %v3046, %v3181
        %v3183 = vpop.f32.mrb[0].mxu0
        %3184 = vdwg.mxu0
        %v3185 = vxor.u32 %v3179, 2147483648
        %v3186 = vxor.u32 %v3182, 2147483648
        %v3187 = vmul.f32 %v3185, 1.442695
        %v3188 = vpow.pop %v3187
        %v3189 = vmul.f32 %v3186, 1.442695
        %v3190 = vpow.pop %v3189
        %v3191 = vadd.f32 %v3188, 1.0
        %v3192 = vadd.f32 %v3190, 1.0
        %v3193 = vrcp.pop %v3191
        %v3194 = vmul.f32 1.0, %v3193
        %v3195 = vrcp.pop %v3192
        %v3196 = vmul.f32 1.0, %v3195
        %3197 = vst [vmem:[%s1370] sm:$0xff] %v3194
        %3198 = vst [vmem:[%s1370 + $0x8] sm:$0xff] %v3196
        %3200 = vrot.lane.b32.xlu0 %v2810, 64
        %v3201 = vpop.permute.xlu0 %3200
        %v3203 = vsel %vm1872, %v1917, %v3201
        %v3205 = vunpack.c.l.b16 %v3203
        %v3206 = vunpack.c.h.b16 %v3203
        %v3207 = vpack.c.b16 %v3205, %v3205
        %v3208 = vpack.c.b16 %v3206, %v3206
        %3211 = vst [vmem:[%s1377] sm:$0xf] %v3207
        %3212 = vst [vmem:[%s1377 + $0x4] sm:$0xf] %v3208
        %v3213 = vld [vmem:[#allocation32] sm:$0xf]
        %v3214 = vld [vmem:[#allocation32 + $0x4] sm:$0xf]
        %v3215 = vld [vmem:[#allocation32 + $0x8] sm:$0xf]
        %v3216 = vld [vmem:[#allocation32 + $0xc] sm:$0xf]
        %v3217 = vld [vmem:[#allocation32 + $0x10] sm:$0xf]
        %v3218 = vld [vmem:[#allocation32 + $0x14] sm:$0xf]
        %v3219 = vld [vmem:[#allocation32 + $0x18] sm:$0xf]
        %v3220 = vld [vmem:[#allocation32 + $0x1c] sm:$0xf]
        %v3221 = vld [vmem:[%s57] sm:$0x1]
        %v3223 = vlaneseq
        %v3224 = vshrl.u32 %v3223, 7
        %v3225 = vsub.s32 0, %v3224
        %v3226 = vrot.slane %v3221, %v3225
        %v3236 = vunpack.c.l.b16 %v3213
        %v3237 = vunpack.c.l.b16 %v3214
        %v3238 = vunpack.c.l.b16 %v3215
        %v3239 = vunpack.c.l.b16 %v3216
        %v3240 = vunpack.c.l.b16 %v3217
        %v3241 = vunpack.c.l.b16 %v3218
        %v3242 = vunpack.c.l.b16 %v3219
        %v3243 = vunpack.c.l.b16 %v3220
        %v3244 = vpack.c.b16 %v3237, %v3236
        %v3245 = vpack.c.b16 %v3239, %v3238
        %v3246 = vpack.c.b16 %v3241, %v3240
        %v3247 = vpack.c.b16 %v3243, %v3242
        %3252 = vmatprep.subr.bf16.mxu0 0
        %3253 = vmatpush1.bf16.msra.mxu0 %v3244
        %3254 = vmatprep.subr.bf16.mxu0 0
        %3255 = vmatpush1.bf16.msra.mxu0 %v3245
        %3256 = vmatprep.subr.bf16.mxu0 0
        %3257 = vmatpush1.bf16.msra.mxu0 %v3246
        %3258 = vmatprep.subr.bf16.mxu0 0
        %3259 = vmatpush1.bf16.msra.mxu0 %v3247
        %3260 = vmatprep.subr.bf16.mxu0 0
        %3261 = vmatpush1.bf16.msra.mxu0 0
        %3262 = vmatprep.subr.bf16.mxu0 0
        %3263 = vmatpush1.bf16.msra.mxu0 0
        %3264 = vmatprep.subr.bf16.mxu0 0
        %3265 = vmatpush1.bf16.msra.mxu0 0
        %3266 = vmatprep.subr.bf16.mxu0 0
        %3267 = vmatpush1.bf16.msra.mxu0 0
        %3268 = vmatprep.subr.bf16.mxu0 0
        %3269 = vmatpush1.bf16.msra.mxu0 0
        %3270 = vmatprep.subr.bf16.mxu0 0
        %3271 = vmatpush1.bf16.msra.mxu0 0
        %3272 = vmatprep.subr.bf16.mxu0 0
        %3273 = vmatpush1.bf16.msra.mxu0 0
        %3274 = vmatprep.subr.bf16.mxu0 0
        %3275 = vmatpush1.bf16.msra.mxu0 0
        %3276 = vmatprep.subr.bf16.mxu0 0
        %3277 = vmatpush1.bf16.msra.mxu0 0
        %3278 = vmatprep.subr.bf16.mxu0 0
        %3279 = vmatpush1.bf16.msra.mxu0 0
        %3280 = vmatprep.subr.bf16.mxu0 0
        %3281 = vmatpush1.bf16.msra.mxu0 0
        %3282 = vmatprep.subr.bf16.mxu0 0
        %3283 = vmatpush1.bf16.msra.mxu0 0
        %3284 = vmatprep.mubr.bf16.mxu0 0
        %3285 = vmatmul.mubr.bf16.gmra.mrb[0].mxu0 %v1958
        %v3286 = vpop.f32.mrb[0].mxu0
        %v3287 = vadd.f32 %v3226, %v3286
        %v3288 = vpop.f32.mrb[0].mxu0
        %v3289 = vpop.f32.mrb[0].mxu0
        %v3290 = vadd.f32 %v3226, %v3289
        %v3291 = vpop.f32.mrb[0].mxu0
        %3292 = vdwg.mxu0
        %v3293 = vld [vmem:[#allocation34] sm:$0xf]
        %v3294 = vld [vmem:[#allocation34 + $0x4] sm:$0xf]
        %v3295 = vld [vmem:[#allocation34 + $0x8] sm:$0xf]
        %v3296 = vld [vmem:[#allocation34 + $0xc] sm:$0xf]
        %v3297 = vld [vmem:[#allocation34 + $0x10] sm:$0xf]
        %v3298 = vld [vmem:[#allocation34 + $0x14] sm:$0xf]
        %v3299 = vld [vmem:[#allocation34 + $0x18] sm:$0xf]
        %v3300 = vld [vmem:[#allocation34 + $0x1c] sm:$0xf]
        %v3301 = vld [vmem:[%s61] sm:$0x1]
        %v3303 = vlaneseq
        %v3304 = vshrl.u32 %v3303, 7
        %v3305 = vsub.s32 0, %v3304
        %v3306 = vrot.slane %v3301, %v3305
        %v3316 = vunpack.c.l.b16 %v3293
        %v3317 = vunpack.c.l.b16 %v3294
        %v3318 = vunpack.c.l.b16 %v3295
        %v3319 = vunpack.c.l.b16 %v3296
        %v3320 = vunpack.c.l.b16 %v3297
        %v3321 = vunpack.c.l.b16 %v3298
        %v3322 = vunpack.c.l.b16 %v3299
        %v3323 = vunpack.c.l.b16 %v3300
        %v3324 = vpack.c.b16 %v3317, %v3316
        %v3325 = vpack.c.b16 %v3319, %v3318
        %v3326 = vpack.c.b16 %v3321, %v3320
        %v3327 = vpack.c.b16 %v3323, %v3322
        %3332 = vmatprep.subr.bf16.mxu0 0
        %3333 = vmatpush1.bf16.msra.mxu0 %v3324
        %3334 = vmatprep.subr.bf16.mxu0 0
        %3335 = vmatpush1.bf16.msra.mxu0 %v3325
        %3336 = vmatprep.subr.bf16.mxu0 0
        %3337 = vmatpush1.bf16.msra.mxu0 %v3326
        %3338 = vmatprep.subr.bf16.mxu0 0
        %3339 = vmatpush1.bf16.msra.mxu0 %v3327
        %3340 = vmatprep.subr.bf16.mxu0 0
        %3341 = vmatpush1.bf16.msra.mxu0 0
        %3342 = vmatprep.subr.bf16.mxu0 0
        %3343 = vmatpush1.bf16.msra.mxu0 0
        %3344 = vmatprep.subr.bf16.mxu0 0
        %3345 = vmatpush1.bf16.msra.mxu0 0
        %3346 = vmatprep.subr.bf16.mxu0 0
        %3347 = vmatpush1.bf16.msra.mxu0 0
        %3348 = vmatprep.subr.bf16.mxu0 0
        %3349 = vmatpush1.bf16.msra.mxu0 0
        %3350 = vmatprep.subr.bf16.mxu0 0
        %3351 = vmatpush1.bf16.msra.mxu0 0
        %3352 = vmatprep.subr.bf16.mxu0 0
        %3353 = vmatpush1.bf16.msra.mxu0 0
        %3354 = vmatprep.subr.bf16.mxu0 0
        %3355 = vmatpush1.bf16.msra.mxu0 0
        %3356 = vmatprep.subr.bf16.mxu0 0
        %3357 = vmatpush1.bf16.msra.mxu0 0
        %3358 = vmatprep.subr.bf16.mxu0 0
        %3359 = vmatpush1.bf16.msra.mxu0 0
        %3360 = vmatprep.subr.bf16.mxu0 0
        %3361 = vmatpush1.bf16.msra.mxu0 0
        %3362 = vmatprep.subr.bf16.mxu0 0
        %3363 = vmatpush1.bf16.msra.mxu0 0
        %3364 = vmatprep.mubr.bf16.mxu0 0
        %3365 = vmatmul.mubr.bf16.gmra.mrb[0].mxu0 %v2851
        %v3366 = vpop.f32.mrb[0].mxu0
        %v3367 = vadd.f32 %v3306, %v3366
        %v3368 = vpop.f32.mrb[0].mxu0
        %v3369 = vpop.f32.mrb[0].mxu0
        %v3370 = vadd.f32 %v3306, %v3369
        %v3371 = vpop.f32.mrb[0].mxu0
        %3372 = vdwg.mxu0
        %v3373 = vmul.f32 %v3287, %v3367
        %v3374 = vmul.f32 %v3290, %v3370
        %v3375 = vpack.c.bf16 %v3374, %v3373
        %v3376 = vld [vmem:[%s5] sm:$0xf]
        %v3377 = vld [vmem:[%s5 + $0x4] sm:$0xf]
        %v3378 = vld [vmem:[%s5 + $0x8] sm:$0xf]
        %v3379 = vld [vmem:[%s5 + $0xc] sm:$0xf]
        %v3380 = vld [vmem:[%s5 + $0x10] sm:$0xf]
        %v3381 = vld [vmem:[%s5 + $0x14] sm:$0xf]
        %v3382 = vld [vmem:[%s5 + $0x18] sm:$0xf]
        %v3383 = vld [vmem:[%s5 + $0x1c] sm:$0xf]
        %v3392 = vunpack.c.l.b16 %v3376
        %v3393 = vunpack.c.l.b16 %v3377
        %v3394 = vunpack.c.l.b16 %v3378
        %v3395 = vunpack.c.l.b16 %v3379
        %v3396 = vunpack.c.l.b16 %v3380
        %v3397 = vunpack.c.l.b16 %v3381
        %v3398 = vunpack.c.l.b16 %v3382
        %v3399 = vunpack.c.l.b16 %v3383
        %v3400 = vpack.c.b16 %v3393, %v3392
        %v3401 = vpack.c.b16 %v3395, %v3394
        %v3402 = vpack.c.b16 %v3397, %v3396
        %v3403 = vpack.c.b16 %v3399, %v3398
        %v3409 = vsel %vm1872, %v3375, 0
        %3411 = vmatprep.subr.bf16.mxu0 0
        %3412 = vmatpush1.bf16.msra.mxu0 %v3400
        %3413 = vmatprep.subr.bf16.mxu0 0
        %3414 = vmatpush1.bf16.msra.mxu0 %v3401
        %3415 = vmatprep.subr.bf16.mxu0 0
        %3416 = vmatpush1.bf16.msra.mxu0 %v3402
        %3417 = vmatprep.subr.bf16.mxu0 0
        %3418 = vmatpush1.bf16.msra.mxu0 %v3403
        %3419 = vmatprep.subr.bf16.mxu0 0
        %3420 = vmatpush1.bf16.msra.mxu0 0
        %3421 = vmatprep.subr.bf16.mxu0 0
        %3422 = vmatpush1.bf16.msra.mxu0 0
        %3423 = vmatprep.subr.bf16.mxu0 0
        %3424 = vmatpush1.bf16.msra.mxu0 0
        %3425 = vmatprep.subr.bf16.mxu0 0
        %3426 = vmatpush1.bf16.msra.mxu0 0
        %3427 = vmatprep.subr.bf16.mxu0 0
        %3428 = vmatpush1.bf16.msra.mxu0 0
        %3429 = vmatprep.subr.bf16.mxu0 0
        %3430 = vmatpush1.bf16.msra.mxu0 0
        %3431 = vmatprep.subr.bf16.mxu0 0
        %3432 = vmatpush1.bf16.msra.mxu0 0
        %3433 = vmatprep.subr.bf16.mxu0 0
        %3434 = vmatpush1.bf16.msra.mxu0 0
        %3435 = vmatprep.subr.bf16.mxu0 0
        %3436 = vmatpush1.bf16.msra.mxu0 0
        %3437 = vmatprep.subr.bf16.mxu0 0
        %3438 = vmatpush1.bf16.msra.mxu0 0
        %3439 = vmatprep.subr.bf16.mxu0 0
        %3440 = vmatpush1.bf16.msra.mxu0 0
        %3441 = vmatprep.subr.bf16.mxu0 0
        %3442 = vmatpush1.bf16.msra.mxu0 0
        %3443 = vmatprep.mubr.bf16.mxu0 0
        %3444 = vmatmul.mubr.bf16.gmra.mrb[0].mxu0 %v3409
        %v3445 = vpop.f32.mrb[0].mxu0
        %v3446 = vadd.f32 0.0, %v3445
        %v3447 = vpop.f32.mrb[0].mxu0
        %v3448 = vpop.f32.mrb[0].mxu0
        %v3449 = vadd.f32 0.0, %v3448
        %v3450 = vpop.f32.mrb[0].mxu0
        %3451 = vdwg.mxu0
        %vm3452 = vcmp.lt.f32.partialorder %v3446, 0.0
        %vm3453 = vcmp.lt.f32.partialorder %v3449, 0.0
        %v3454 = vsel %vm3452, -1.0, 1.0
        %v3455 = vsel %vm3453, -1.0, 1.0
        %v3456 = vand.u32 2147483647, %v3446
        %v3457 = vand.u32 2147483647, %v3449
        %v3458 = vrsqrt.pop %v3456
        %v3459 = vmul.f32 %v3456, %v3458
        %vm3460 = vcmp.eq.f32.partialorder %v3456, inf
        %v3461 = vsel %vm3460, %v3456, %v3459
        %vm3462 = vcmp.eq.f32.partialorder %v3456, 0.0
        %v3463 = vand.u32 %v3456, 2147483648
        %v3464 = vsel %vm3462, %v3463, %v3461
        %v3465 = vrsqrt.pop %v3457
        %v3466 = vmul.f32 %v3457, %v3465
        %vm3467 = vcmp.eq.f32.partialorder %v3457, inf
        %v3468 = vsel %vm3467, %v3457, %v3466
        %vm3469 = vcmp.eq.f32.partialorder %v3457, 0.0
        %v3470 = vand.u32 %v3457, 2147483648
        %v3471 = vsel %vm3469, %v3470, %v3468
        %v3472 = vmul.f32 %v3454, %v3464
        %v3473 = vmul.f32 %v3455, %v3471
        %v3474 = vadd.f32 %v1911, %v2804
        %v3475 = vadd.f32 %v1914, %v2807
        %v3476 = vmul.f32 %v3474, %v3474
        %v3477 = vmul.f32 %v3475, %v3475
        %v3478 = vsel %vm1872, %v3476, 0.0
        %3479 = vadd.xlane.f32.xlu0 %v3478
        %v3480 = vpop.xlane.xlu0 %3479
        %v3481 = vsel %vm1872, %v3477, 0.0
        %3482 = vadd.xlane.f32.xlu0 %v3481
        %v3483 = vpop.xlane.xlu0 %3482
        %v3484 = vmax.f32 %v3480, 1e-24
        %v3485 = vmax.f32 %v3483, 1e-24
        %v3486 = vrsqrt.pop %v3484
        %v3487 = vrsqrt.pop %v3485
        %v3488 = vmul.f32 %v1911, %v2804
        %v3489 = vmul.f32 %v1914, %v2807
        %v3490 = vsel %vm1872, %v3488, 0.0
        %3491 = vadd.xlane.f32.xlu0 %v3490
        %v3492 = vpop.xlane.xlu0 %3491
        %v3493 = vsel %vm1872, %v3489, 0.0
        %3494 = vadd.xlane.f32.xlu0 %v3493
        %v3495 = vpop.xlane.xlu0 %3494
        %v3496 = vmul.f32 %v3474, %v3486
        %v3497 = vmul.f32 %v3475, %v3487
        %3500 = vrot.lane.b32.xlu0 %v3472, 64
        %v3501 = vpop.permute.xlu0 %3500
        %3502 = vrot.lane.b32.xlu0 %v3473, 64
        %v3503 = vpop.permute.xlu0 %3502
        %v3506 = vsel %vm1872, %v3496, %v3501
        %v3507 = vsel %vm1872, %v3497, %v3503
        %vm3508 = vcmask 654336
        %v3509 = vsel %vm3508, %v3506, %v3492
        %v3510 = vsel %vm3508, %v3507, %v3495
        %vm3511 = vcmask 662528
        %v3512 = vsel %vm3511, %v3509, 0.0
        %v3513 = vsel %vm3511, %v3510, 0.0
        %3514 = vst [vmem:[%s1384] sm:$0xff] %v3512
        %3515 = vst [vmem:[%s1384 + $0x8] sm:$0xff] %v3513
        %s3516 = sand.u32 %s774, 1
        %s3517 = scalar_lea.sflag [#allocation4], %s3516
        %s3518 = sand.u32 %s774, 1
        %s3519 = smul.addr %s3518, 32
        %s3520 = scalar_lea.vmem [#allocation35], %s3519
        %s3521 = sand.u32 %s105, 1
        %s3522 = scalar_lea.sflag [#allocation37], %s3521
        %s3523 = sand.u32 %s800, 1
        %s3524 = smul.addr %s3523, 16
        %s3525 = scalar_lea.vmem [#allocation36], %s3524
        %s3526 = sand.u32 %s105, 1
        %s3527 = scalar_lea.sflag [#allocation37], %s3526
        %s3528 = sand.u32 %s826, 1
        %s3529 = smul.addr %s3528, 8
        %s3530 = scalar_lea.vmem [#allocation38], %s3529
        %s3531 = sand.u32 %s852, 1
        %s3532 = scalar_lea.sflag [#allocation40], %s3531
        %s3533 = sand.u32 %s852, 1
        %s3534 = smul.addr %s3533, 16
        %s3535 = scalar_lea.vmem [#allocation39], %s3534
        // Predicated region
        $region229: #{tpu_custom_call.1} parent=143 // pred_check
          %p3536 = pneg %p784
        $region230: #{tpu_custom_call.1} parent=143 // pred_check_branch
          %3538 = sbr.rel (%p3536) target = $region232
        $region231: #{tpu_custom_call.1} parent=143 // pred_region
          %s3539 = smul.u32 2, %s105
          %s3541 = ssub.s32 512, 512
          %3542 = vsyncadd %s3517, %s3541
          %s3543 = smul.addr %s3539, 2
          %s3544 = smul.addr %s3543, 128
          %s3545 = scalar_lea.hbm %s63, %s3544
          %s3546 = sshll.u32 %s3520, 4
          %s3547 = int_to_ptr.vmem [resolvable:$true] %s3546
          %3552 = dma.vmem_to_hbm [thread:$0]  %s3547, 512, %s3545, %s3517, 256, 256, 16
        $region232: #{tpu_custom_call.1} parent=143 // pred_fallthru
          _
        // Predicated region
        $region233: #{tpu_custom_call.1} parent=143 // pred_check
          %p3553 = pneg %p810
        $region234: #{tpu_custom_call.1} parent=143 // pred_check_branch
          %3555 = sbr.rel (%p3553) target = $region236
        $region235: #{tpu_custom_call.1} parent=143 // pred_region
          %s3556 = smul.u32 2, %s105
          %s3558 = ssub.s32 256, 256
          %3559 = vsyncadd %s3522, %s3558
          %s3560 = smul.addr %s3556, 128
          %s3561 = scalar_lea.hbm %s65, %s3560
          %s3562 = sshll.u32 %s3525, 4
          %s3563 = int_to_ptr.vmem [resolvable:$true] %s3562
          %3568 = dma.vmem_to_hbm [thread:$0]  %s3563, 256, %s3561, %s3522, 128, 128, 8
        $region236: #{tpu_custom_call.1} parent=143 // pred_fallthru
          _
        // Predicated region
        $region237: #{tpu_custom_call.1} parent=143 // pred_check
          %p3569 = pneg %p836
        $region238: #{tpu_custom_call.1} parent=143 // pred_check_branch
          %3571 = sbr.rel (%p3569) target = $region240
        $region239: #{tpu_custom_call.1} parent=143 // pred_region
          %s3572 = smul.u32 2, %s105
          %s3574 = ssub.s32 128, 128
          %3575 = vsyncadd %s3527, %s3574
          %s3576 = smul.addr %s3572, 64
          %s3577 = scalar_lea.hbm %s67, %s3576
          %s3578 = sshll.u32 %s3530, 4
          %s3579 = int_to_ptr.vmem [resolvable:$true] %s3578
          %3584 = dma.vmem_to_hbm [thread:$0]  %s3579, 128, %s3577, %s3527, 64, 64, 4
        $region240: #{tpu_custom_call.1} parent=143 // pred_fallthru
          _
        // Predicated region
        $region241: #{tpu_custom_call.1} parent=143 // pred_check
          %p3585 = pneg %p862
        $region242: #{tpu_custom_call.1} parent=143 // pred_check_branch
          %3587 = sbr.rel (%p3585) target = $region244
        $region243: #{tpu_custom_call.1} parent=143 // pred_region
          %s3588 = smul.u32 2, %s105
          %s3590 = ssub.s32 256, 256
          %3591 = vsyncadd %s3532, %s3590
          %s3592 = smul.addr %s3588, 128
          %s3593 = scalar_lea.hbm %s69, %s3592
          %s3594 = sshll.u32 %s3535, 4
          %s3595 = int_to_ptr.vmem [resolvable:$true] %s3594
          %3600 = dma.vmem_to_hbm [thread:$0]  %s3595, 256, %s3593, %s3532, 128, 128, 8
        $region244: #{tpu_custom_call.1} parent=143 // pred_fallthru
          _
      $region144: #{tpu_custom_call.1} parent=5 // pred_fallthru
        _
      %p3601 = scmp.le.s32.totalorder 2, %s100
      // Predicated region
      $region245: #{tpu_custom_call.1} parent=5 // pred_check
        %p3602 = pneg %p3601
      $region246: #{tpu_custom_call.1} parent=5 // pred_check_branch
        %3604 = sbr.rel (%p3602) target = $region248
      $region247: #{tpu_custom_call.1} parent=5 // pred_region
        %s3605 = ssub.s32 %s100, 2
        // Predicated region
        $region249: #{tpu_custom_call.1} parent=247 // pred_check
          %p3606 = pneg %p790
        $region250: #{tpu_custom_call.1} parent=247 // pred_check_branch
          %3608 = sbr.rel (%p3606) target = $region252
        $region251: #{tpu_custom_call.1} parent=247 // pred_region
          %s3609 = sand.u32 %s775, 1
          %s3610 = scalar_lea.sflag [#allocation4], %s3609
          %s3611 = sand.u32 %s775, 1
          %s3612 = smul.addr %s3611, 32
          %s3613 = scalar_lea.vmem [#allocation35], %s3612
          %3614 = dma.done %s3610, 512
        $region252: #{tpu_custom_call.1} parent=247 // pred_fallthru
          _
        // Predicated region
        $region253: #{tpu_custom_call.1} parent=247 // pred_check
          %p3615 = pneg %p816
        $region254: #{tpu_custom_call.1} parent=247 // pred_check_branch
          %3617 = sbr.rel (%p3615) target = $region256
        $region255: #{tpu_custom_call.1} parent=247 // pred_region
          %s3618 = sand.u32 %s106, 1
          %s3619 = scalar_lea.sflag [#allocation37], %s3618
          %s3620 = sand.u32 %s801, 1
          %s3621 = smul.addr %s3620, 16
          %s3622 = scalar_lea.vmem [#allocation36], %s3621
          %3623 = dma.done %s3619, 256
        $region256: #{tpu_custom_call.1} parent=247 // pred_fallthru
          _
        // Predicated region
        $region257: #{tpu_custom_call.1} parent=247 // pred_check
          %p3624 = pneg %p842
        $region258: #{tpu_custom_call.1} parent=247 // pred_check_branch
          %3626 = sbr.rel (%p3624) target = $region260
        $region259: #{tpu_custom_call.1} parent=247 // pred_region
          %s3627 = sand.u32 %s106, 1
          %s3628 = scalar_lea.sflag [#allocation37], %s3627
          %s3629 = sand.u32 %s827, 1
          %s3630 = smul.addr %s3629, 8
          %s3631 = scalar_lea.vmem [#allocation38], %s3630
          %3632 = dma.done %s3628, 128
        $region260: #{tpu_custom_call.1} parent=247 // pred_fallthru
          _
        // Predicated region
        $region261: #{tpu_custom_call.1} parent=247 // pred_check
          %p3633 = pneg %p868
        $region262: #{tpu_custom_call.1} parent=247 // pred_check_branch
          %3635 = sbr.rel (%p3633) target = $region264
        $region263: #{tpu_custom_call.1} parent=247 // pred_region
          %s3636 = sand.u32 %s853, 1
          %s3637 = scalar_lea.sflag [#allocation40], %s3636
          %s3638 = sand.u32 %s853, 1
          %s3639 = smul.addr %s3638, 16
          %s3640 = scalar_lea.vmem [#allocation39], %s3639
          %3641 = dma.done %s3637, 256
        $region264: #{tpu_custom_call.1} parent=247 // pred_fallthru
          _
      $region248: #{tpu_custom_call.1} parent=5 // pred_fallthru
        _
    $region6: #{tpu_custom_call.1} parent=1 // loop_footer
      %s104 = sadd.s32 1, %s100
    $region7: #{tpu_custom_call.1} parent=1 // loop_footer_branch
      %99 = sbr.rel target = $region3
    $region8: #{tpu_custom_call.1} parent=1 // loop_exit
      _
    %3642 = vsyncpa [#allocation3], 1
    %s3643 = scalar_lea.sflag [#allocation3], 1
    %3644 = vsyncpa %s3643, 1
    %3645 = vsyncpa [#allocation6], 1
    %s3646 = scalar_lea.sflag [#allocation6], 1
    %3647 = vsyncpa %s3646, 1
    %3648 = vsyncpa [#allocation9], 1
    %3649 = vsyncpa [#allocation12], 1
    %3650 = vsyncpa [#allocation15], 1
    %3651 = vsyncpa [#allocation18], 1
    %3652 = vsyncpa [#allocation21], 1
    %3653 = vsyncpa [#allocation24], 1
    %3654 = vsyncpa [#allocation27], 1
    %3655 = vsyncpa [#allocation30], 1
    %3656 = vsyncpa [#allocation33], 1
    %3657 = vsyncpa [#allocation4], 1
    %s3658 = scalar_lea.sflag [#allocation4], 1
    %3659 = vsyncpa %s3658, 1
    %3660 = vsyncpa [#allocation37], 1
    %s3661 = scalar_lea.sflag [#allocation37], 1
    %3662 = vsyncpa %s3661, 1
    %3663 = vsyncpa [#allocation40], 1
    %s3664 = scalar_lea.sflag [#allocation40], 1
    %3665 = vsyncpa %s3664, 1

// kernel: tpu_custom_call.1
$region0: #{tpu_custom_call.1}
  #allocation0 [shape = 'u32[]', space=smem, size = 0x4, offset = 0x4, fixed_abs, tag = 'smem constant byte address 0x4 - core index']
  #allocation1 [shape = 'u32[144,128]{1,0:T(1,128)}', space=vmem, size = 0x12000, scoped, tag = 'internal scratch']
  %s0 = inlined_call_operand.smem [shape: u32[35], index: -1, kind: input, shape index: {}]
  %s1 = sld [smem:[%s0]]
  %s2 = scalar_lea.smem %s0, 1
  %s3 = sld [smem:[%s2]]
  %s4 = scalar_lea.smem %s0, 2
  %s5 = sld [smem:[%s4]]
  %s6 = scalar_lea.smem %s0, 3
  %s7 = sld [smem:[%s6]]
  %s8 = scalar_lea.smem %s0, 4
  %s9 = sld [smem:[%s8]]
  %s10 = scalar_lea.smem %s0, 5
  %s11 = sld [smem:[%s10]]
  %s12 = scalar_lea.smem %s0, 6
  %s13 = sld [smem:[%s12]]
  %s14 = scalar_lea.smem %s0, 7
  %s15 = sld [smem:[%s14]]
  %s16 = scalar_lea.smem %s0, 8
  %s17 = sld [smem:[%s16]]
  %s18 = scalar_lea.smem %s0, 9
  %s19 = sld [smem:[%s18]]
  %s20 = scalar_lea.smem %s0, 10
  %s21 = sld [smem:[%s20]]
  %s22 = scalar_lea.smem %s0, 11
  %s23 = sld [smem:[%s22]]
  %s24 = scalar_lea.smem %s0, 12
  %s25 = sld [smem:[%s24]]
  %s26 = scalar_lea.smem %s0, 13
  %s27 = sld [smem:[%s26]]
  %s28 = scalar_lea.smem %s0, 14
  %s29 = sld [smem:[%s28]]
  %s30 = scalar_lea.smem %s0, 15
  %s31 = sld [smem:[%s30]]
  %s32 = scalar_lea.smem %s0, 16
  %s33 = sld [smem:[%s32]]
  %s34 = scalar_lea.smem %s0, 17
  %s35 = sld [smem:[%s34]]
  %s36 = scalar_lea.smem %s0, 18
  %s37 = sld [smem:[%s36]]
  %s38 = scalar_lea.smem %s0, 19
  %s39 = sld [smem:[%s38]]
  %s40 = scalar_lea.smem %s0, 20
  %s41 = sld [smem:[%s40]]
  %s42 = scalar_lea.smem %s0, 21
  %s43 = sld [smem:[%s42]]
  %s44 = scalar_lea.smem %s0, 22
  %s45 = sld [smem:[%s44]]
  %s46 = scalar_lea.smem %s0, 23
  %s47 = sld [smem:[%s46]]
  %s48 = scalar_lea.smem %s0, 24
  %s49 = sld [smem:[%s48]]
  %s50 = scalar_lea.smem %s0, 25
  %s51 = sld [smem:[%s50]]
  %s52 = scalar_lea.smem %s0, 26
  %s53 = sld [smem:[%s52]]
  %s54 = scalar_lea.smem %s0, 27
  %s55 = sld [smem:[%s54]]
  %s56 = scalar_lea.smem %s0, 28
  %s57 = sld [smem:[%s56]]
  %s58 = scalar_lea.smem %s0, 29
  %s59 = sld [smem:[%s58]]
  %s60 = scalar_lea.smem %s0, 30
  %s61 = sld [smem:[%s60]]
  %s62 = scalar_lea.smem %s0, 31
  %s63 = sld [smem:[%s62]]
  %s64 = scalar_lea.smem %s0, 32
  %s65 = sld [smem:[%s64]]
  %s66 = scalar_lea.smem %s0, 33
  %s67 = sld [smem:[%s66]]
  %s68 = scalar_lea.smem %s0, 34
  %s69 = sld [smem:[%s68]]
  %70 = xla_tuple %s63, %s65, %s67, %s69
  %s71 = sld [smem:[#allocation0]]
  $region265: #{tpu_custom_call.1} parent=0
    _
  %s73 = ssub.s32 1, %s71
  %s74 = scalar_select 0, %s73, %s71
  $region1: #{tpu_custom_call.1} parent=0
    #allocation2 [shape = 'u8[32768]{0}', space=vmem, size = 0x8000, scoped, tag = 'input window, operand 0']
    #allocation3 [shape = 's32[2]{0}', space=sflag, size = 0x8, scoped, tag = 'scoped memory for tpu_custom_call.1']
    #allocation4 [shape = 's32[2]{0}', space=sflag, size = 0x8, scoped, tag = 'scoped memory for tpu_custom_call.1']
    #allocation5 [shape = 'u8[16384]{0}', space=vmem, size = 0x4000, scoped, tag = 'input window, operand 1']
    #allocation6 [shape = 's32[2]{0}', space=sflag, size = 0x8, scoped, tag = 'scoped memory for tpu_custom_call.1']
    #allocation7 [shape = 'u8[512]{0}', space=vmem, size = 0x400, scoped, tag = 'input window, operand 6, single buffered']
    #allocation8 [shape = 'u8[16384]{0}', space=vmem, size = 0x4000, scoped, tag = 'input window, operand 7, single buffered']
    #allocation9 [shape = 's32[1]{0}', space=sflag, size = 0x4, scoped, tag = 'scoped memory for tpu_custom_call.1']
    #allocation10 [shape = 'u8[512]{0}', space=vmem, size = 0x400, scoped, tag = 'input window, operand 8, single buffered']
    #allocation11 [shape = 'u8[16384]{0}', space=vmem, size = 0x4000, scoped, tag = 'input window, operand 9, single buffered']
    #allocation12 [shape = 's32[1]{0}', space=sflag, size = 0x4, scoped, tag = 'scoped memory for tpu_custom_call.1']
    #allocation13 [shape = 'u8[512]{0}', space=vmem, size = 0x400, scoped, tag = 'input window, operand 10, single buffered']
    #allocation14 [shape = 'u8[32768]{0}', space=vmem, size = 0x8000, scoped, tag = 'input window, operand 11, single buffered']
    #allocation15 [shape = 's32[1]{0}', space=sflag, size = 0x4, scoped, tag = 'scoped memory for tpu_custom_call.1']
    #allocation16 [shape = 'u8[1024]{0}', space=vmem, size = 0x400, scoped, tag = 'input window, operand 12, single buffered']
    #allocation17 [shape = 'u8[131072]{0}', space=vmem, size = 0x20000, scoped, tag = 'input window, operand 13, single buffered']
    #allocation18 [shape = 's32[1]{0}', space=sflag, size = 0x4, scoped, tag = 'scoped memory for tpu_custom_call.1']
    #allocation19 [shape = 'u8[1024]{0}', space=vmem, size = 0x400, scoped, tag = 'input window, operand 14, single buffered']
    #allocation20 [shape = 'u8[1024]{0}', space=vmem, size = 0x400, scoped, tag = 'input window, operand 16, single buffered']
    #allocation21 [shape = 's32[1]{0}', space=sflag, size = 0x4, scoped, tag = 'scoped memory for tpu_custom_call.1']
    #allocation22 [shape = 'u8[512]{0}', space=vmem, size = 0x400, scoped, tag = 'input window, operand 18, single buffered']
    #allocation23 [shape = 'u8[16384]{0}', space=vmem, size = 0x4000, scoped, tag = 'input window, operand 19, single buffered']
    #allocation24 [shape = 's32[1]{0}', space=sflag, size = 0x4, scoped, tag = 'scoped memory for tpu_custom_call.1']
    #allocation25 [shape = 'u8[512]{0}', space=vmem, size = 0x400, scoped, tag = 'input window, operand 20, single buffered']
    #allocation26 [shape = 'u8[16384]{0}', space=vmem, size = 0x4000, scoped, tag = 'input window, operand 21, single buffered']
    #allocation27 [shape = 's32[1]{0}', space=sflag, size = 0x4, scoped, tag = 'scoped memory for tpu_custom_call.1']
    #allocation28 [shape = 'u8[512]{0}', space=vmem, size = 0x400, scoped, tag = 'input window, operand 22, single buffered']
    #allocation29 [shape = 'u8[32768]{0}', space=vmem, size = 0x8000, scoped, tag = 'input window, operand 23, single buffered']
    #allocation30 [shape = 's32[1]{0}', space=sflag, size = 0x4, scoped, tag = 'scoped memory for tpu_custom_call.1']
    #allocation31 [shape = 'u8[1024]{0}', space=vmem, size = 0x400, scoped, tag = 'input window, operand 24, single buffered']
    #allocation32 [shape = 'u8[16384]{0}', space=vmem, size = 0x4000, scoped, tag = 'input window, operand 27, single buffered']
    #allocation33 [shape = 's32[1]{0}', space=sflag, size = 0x4, scoped, tag = 'scoped memory for tpu_custom_call.1']
    #allocation34 [shape = 'u8[16384]{0}', space=vmem, size = 0x4000, scoped, tag = 'input window, operand 29, single buffered']
    #allocation35 [shape = 'u8[32768]{0}', space=vmem, size = 0x8000, scoped, tag = 'output window, operand 0']
    #allocation36 [shape = 'u8[16384]{0}', space=vmem, size = 0x4000, scoped, tag = 'output window, operand 1']
    #allocation37 [shape = 's32[2]{0}', space=sflag, size = 0x8, scoped, tag = 'scoped memory for tpu_custom_call.1']
    #allocation38 [shape = 'u8[8192]{0}', space=vmem, size = 0x2000, scoped, tag = 'output window, operand 2']
    #allocation39 [shape = 'u8[16384]{0}', space=vmem, size = 0x4000, scoped, tag = 'output window, operand 3']
    #allocation40 [shape = 's32[2]{0}', space=sflag, size = 0x8, scoped, tag = 'scoped memory for tpu_custom_call.1']
    %75 = vsyncpa [#allocation3], 0
    %s76 = scalar_lea.sflag [#allocation3], 1
    %77 = vsyncpa %s76, 0
    %78 = vsyncpa [#allocation6], 0
    %s79 = scalar_lea.sflag [#allocation6], 1
    %80 = vsyncpa %s79, 0
    %81 = vsyncpa [#allocation9], 0
    %82 = vsyncpa [#allocation12], 0
    %83 = vsyncpa [#allocation15], 0
    %84 = vsyncpa [#allocation18], 0
    %85 = vsyncpa [#allocation21], 0
    %86 = vsyncpa [#allocation24], 0
    %87 = vsyncpa [#allocation27], 0
    %88 = vsyncpa [#allocation30], 0
    %89 = vsyncpa [#allocation33], 0
    %90 = vsyncpa [#allocation4], 0
    %s91 = scalar_lea.sflag [#allocation4], 1
    %92 = vsyncpa %s91, 0
    %93 = vsyncpa [#allocation37], 0
    %s94 = scalar_lea.sflag [#allocation37], 1
    %95 = vsyncpa %s94, 0
    %96 = vsyncpa [#allocation40], 0
    %s97 = scalar_lea.sflag [#allocation40], 1
    %98 = vsyncpa %s97, 0
    loop: start=0, step=1, limit=4
    $region2: #{tpu_custom_call.1} parent=1 // loop_pre_header
      _
    $region3: #{tpu_custom_call.1} parent=1 // loop_header
      %s100 = sphi 0, %s104
      %p101 = scmp.ge.s32.totalorder %s100, 4
      %s110 = sphi 0, %s112
      %s113 = sphi 0, %s110
      %s114 = sphi 0, %s113
      %s130 = sphi 0, %s114
      %s136 = sphi 0, %s138
      %s139 = sphi 0, %s136
      %s140 = sphi 0, %s139
      %s156 = sphi 0, %s140
      %s160 = sphi 0, %s160
      %s162 = sphi 0, %s160
      %s163 = sphi 0, %s162
      %s177 = sphi 0, %s163
      %s181 = sphi 0, %s181
      %s183 = sphi 0, %s181
      %s184 = sphi 0, %s183
      %s198 = sphi 0, %s184
      %s202 = sphi 0, %s202
      %s204 = sphi 0, %s202
      %s205 = sphi 0, %s204
      %s219 = sphi 0, %s205
      %s223 = sphi 0, %s223
      %s225 = sphi 0, %s223
      %s226 = sphi 0, %s225
      %s240 = sphi 0, %s226
      %s244 = sphi 0, %s244
      %s246 = sphi 0, %s244
      %s247 = sphi 0, %s246
      %s261 = sphi 0, %s247
      %s265 = sphi 0, %s265
      %s267 = sphi 0, %s265
      %s268 = sphi 0, %s267
      %s282 = sphi 0, %s268
      %s286 = sphi 0, %s286
      %s288 = sphi 0, %s286
      %s289 = sphi 0, %s288
      %s303 = sphi 0, %s289
      %s307 = sphi 0, %s307
      %s309 = sphi 0, %s307
      %s310 = sphi 0, %s309
      %s324 = sphi 0, %s310
      %s328 = sphi 0, %s328
      %s330 = sphi 0, %s328
      %s331 = sphi 0, %s330
      %s345 = sphi 0, %s331
      %s349 = sphi 0, %s349
      %s351 = sphi 0, %s349
      %s352 = sphi 0, %s351
      %s366 = sphi 0, %s352
      %s370 = sphi 0, %s370
      %s372 = sphi 0, %s370
      %s373 = sphi 0, %s372
      %s387 = sphi 0, %s373
      %s391 = sphi 0, %s391
      %s393 = sphi 0, %s391
      %s394 = sphi 0, %s393
      %s408 = sphi 0, %s394
      %s412 = sphi 0, %s412
      %s414 = sphi 0, %s412
      %s415 = sphi 0, %s414
      %s429 = sphi 0, %s415
      %s433 = sphi 0, %s433
      %s435 = sphi 0, %s433
      %s436 = sphi 0, %s435
      %s450 = sphi 0, %s436
      %s454 = sphi 0, %s454
      %s456 = sphi 0, %s454
      %s457 = sphi 0, %s456
      %s471 = sphi 0, %s457
      %s475 = sphi 0, %s475
      %s477 = sphi 0, %s475
      %s478 = sphi 0, %s477
      %s492 = sphi 0, %s478
      %s496 = sphi 0, %s496
      %s498 = sphi 0, %s496
      %s499 = sphi 0, %s498
      %s513 = sphi 0, %s499
      %s517 = sphi 0, %s517
      %s519 = sphi 0, %s517
      %s520 = sphi 0, %s519
      %s534 = sphi 0, %s520
      %s538 = sphi 0, %s538
      %s540 = sphi 0, %s538
      %s541 = sphi 0, %s540
      %s555 = sphi 0, %s541
      %s559 = sphi 0, %s559
      %s561 = sphi 0, %s559
      %s562 = sphi 0, %s561
      %s576 = sphi 0, %s562
      %s580 = sphi 0, %s580
      %s582 = sphi 0, %s580
      %s583 = sphi 0, %s582
      %s597 = sphi 0, %s583
      %s601 = sphi 0, %s601
      %s603 = sphi 0, %s601
      %s604 = sphi 0, %s603
      %s618 = sphi 0, %s604
      %s622 = sphi 0, %s622
      %s624 = sphi 0, %s622
      %s625 = sphi 0, %s624
      %s639 = sphi 0, %s625
      %s643 = sphi 0, %s643
      %s645 = sphi 0, %s643
      %s646 = sphi 0, %s645
      %s660 = sphi 0, %s646
      %s664 = sphi 0, %s664
      %s666 = sphi 0, %s664
      %s667 = sphi 0, %s666
      %s681 = sphi 0, %s667
      %s685 = sphi 0, %s685
      %s687 = sphi 0, %s685
      %s688 = sphi 0, %s687
      %s702 = sphi 0, %s688
      %s706 = sphi 0, %s706
      %s708 = sphi 0, %s706
      %s709 = sphi 0, %s708
      %s723 = sphi 0, %s709
      %s727 = sphi 0, %s727
      %s729 = sphi 0, %s727
      %s730 = sphi 0, %s729
      %s744 = sphi 0, %s730
      %s748 = sphi 0, %s748
      %s750 = sphi 0, %s748
      %s751 = sphi 0, %s750
      %s765 = sphi 0, %s751
      %s771 = sphi 0, %s773
      %s774 = sphi 0, %s771
      %s775 = sphi 0, %s774
      %s791 = sphi 0, %s775
      %s797 = sphi 0, %s799
      %s800 = sphi 0, %s797
      %s801 = sphi 0, %s800
      %s817 = sphi 0, %s801
      %s823 = sphi 0, %s825
      %s826 = sphi 0, %s823
      %s827 = sphi 0, %s826
      %s843 = sphi 0, %s827
      %s849 = sphi 0, %s851
      %s852 = sphi 0, %s849
      %s853 = sphi 0, %s852
      %s869 = sphi 0, %s853
    $region4: #{tpu_custom_call.1} parent=1 // loop_header_branch
      %103 = sbr.rel (%p101) target = $region8
    $region5: #{tpu_custom_call.1} parent=1 // loop_body
      %s105 = ssub.s32 %s100, 1
      %s106 = ssub.s32 %s100, 2
      %s107 = sadd.s32 %s100, 1
      %s108 = ssub.s32 %s100, %s107
      %p109 = scmp.eq.s32.totalorder %s108, 0
      %s111 = sadd.s32 %s110, 1
      %s112 = scalar_select %p109, %s110, %s111
      %p115 = pneg %p109
      %p116 = scmp.eq.s32.totalorder %s100, 1
      %p117 = por %p115, %p116
      %p118 = scmp.ne.s32.totalorder %s110, %s113
      %p119 = scmp.eq.s32.totalorder %s100, 0
      %p120 = por %p118, %p119
      %p121 = scmp.ne.s32.totalorder %s110, %s113
      %p122 = scmp.eq.s32.totalorder %s105, 1
      %p123 = por %p121, %p122
      %p124 = scmp.ne.s32.totalorder %s113, %s114
      %p125 = scmp.eq.s32.totalorder %s105, 0
      %p126 = por %p124, %p125
      %p127 = scmp.ne.s32.totalorder %s113, %s114
      %p128 = scmp.eq.s32.totalorder %s106, 1
      %p129 = por %p127, %p128
      %p131 = scmp.ne.s32.totalorder %s114, %s130
      %p132 = scmp.eq.s32.totalorder %s106, 0
      %p133 = por %p131, %p132
      %s134 = ssub.s32 %s100, %s107
      %p135 = scmp.eq.s32.totalorder %s134, 0
      %s137 = sadd.s32 %s136, 1
      %s138 = scalar_select %p135, %s136, %s137
      %p141 = pneg %p135
      %p142 = scmp.eq.s32.totalorder %s100, 1
      %p143 = por %p141, %p142
      %p144 = scmp.ne.s32.totalorder %s136, %s139
      %p145 = scmp.eq.s32.totalorder %s100, 0
      %p146 = por %p144, %p145
      %p147 = scmp.ne.s32.totalorder %s136, %s139
      %p148 = scmp.eq.s32.totalorder %s105, 1
      %p149 = por %p147, %p148
      %p150 = scmp.ne.s32.totalorder %s139, %s140
      %p151 = scmp.eq.s32.totalorder %s105, 0
      %p152 = por %p150, %p151
      %p153 = scmp.ne.s32.totalorder %s139, %s140
      %p154 = scmp.eq.s32.totalorder %s106, 1
      %p155 = por %p153, %p154
      %p157 = scmp.ne.s32.totalorder %s140, %s156
      %p158 = scmp.eq.s32.totalorder %s106, 0
      %p159 = por %p157, %p158
      %s161 = sadd.s32 %s160, 1
      %p164 = scmp.eq.s32.totalorder %s100, 1
      %p165 = scmp.ne.s32.totalorder %s160, %s162
      %p166 = scmp.eq.s32.totalorder %s100, 0
      %p167 = por %p165, %p166
      %p168 = scmp.ne.s32.totalorder %s160, %s162
      %p169 = scmp.eq.s32.totalorder %s105, 1
      %p170 = por %p168, %p169
      %p171 = scmp.ne.s32.totalorder %s162, %s163
      %p172 = scmp.eq.s32.totalorder %s105, 0
      %p173 = por %p171, %p172
      %p174 = scmp.ne.s32.totalorder %s162, %s163
      %p175 = scmp.eq.s32.totalorder %s106, 1
      %p176 = por %p174, %p175
      %p178 = scmp.ne.s32.totalorder %s163, %s177
      %p179 = scmp.eq.s32.totalorder %s106, 0
      %p180 = por %p178, %p179
      %s182 = sadd.s32 %s181, 1
      %p185 = scmp.eq.s32.totalorder %s100, 1
      %p186 = scmp.ne.s32.totalorder %s181, %s183
      %p187 = scmp.eq.s32.totalorder %s100, 0
      %p188 = por %p186, %p187
      %p189 = scmp.ne.s32.totalorder %s181, %s183
      %p190 = scmp.eq.s32.totalorder %s105, 1
      %p191 = por %p189, %p190
      %p192 = scmp.ne.s32.totalorder %s183, %s184
      %p193 = scmp.eq.s32.totalorder %s105, 0
      %p194 = por %p192, %p193
      %p195 = scmp.ne.s32.totalorder %s183, %s184
      %p196 = scmp.eq.s32.totalorder %s106, 1
      %p197 = por %p195, %p196
      %p199 = scmp.ne.s32.totalorder %s184, %s198
      %p200 = scmp.eq.s32.totalorder %s106, 0
      %p201 = por %p199, %p200
      %s203 = sadd.s32 %s202, 1
      %p206 = scmp.eq.s32.totalorder %s100, 1
      %p207 = scmp.ne.s32.totalorder %s202, %s204
      %p208 = scmp.eq.s32.totalorder %s100, 0
      %p209 = por %p207, %p208
      %p210 = scmp.ne.s32.totalorder %s202, %s204
      %p211 = scmp.eq.s32.totalorder %s105, 1
      %p212 = por %p210, %p211
      %p213 = scmp.ne.s32.totalorder %s204, %s205
      %p214 = scmp.eq.s32.totalorder %s105, 0
      %p215 = por %p213, %p214
      %p216 = scmp.ne.s32.totalorder %s204, %s205
      %p217 = scmp.eq.s32.totalorder %s106, 1
      %p218 = por %p216, %p217
      %p220 = scmp.ne.s32.totalorder %s205, %s219
      %p221 = scmp.eq.s32.totalorder %s106, 0
      %p222 = por %p220, %p221
      %s224 = sadd.s32 %s223, 1
      %p227 = scmp.eq.s32.totalorder %s100, 1
      %p228 = scmp.ne.s32.totalorder %s223, %s225
      %p229 = scmp.eq.s32.totalorder %s100, 0
      %p230 = por %p228, %p229
      %p231 = scmp.ne.s32.totalorder %s223, %s225
      %p232 = scmp.eq.s32.totalorder %s105, 1
      %p233 = por %p231, %p232
      %p234 = scmp.ne.s32.totalorder %s225, %s226
      %p235 = scmp.eq.s32.totalorder %s105, 0
      %p236 = por %p234, %p235
      %p237 = scmp.ne.s32.totalorder %s225, %s226
      %p238 = scmp.eq.s32.totalorder %s106, 1
      %p239 = por %p237, %p238
      %p241 = scmp.ne.s32.totalorder %s226, %s240
      %p242 = scmp.eq.s32.totalorder %s106, 0
      %p243 = por %p241, %p242
      %s245 = sadd.s32 %s244, 1
      %p248 = scmp.eq.s32.totalorder %s100, 1
      %p249 = scmp.ne.s32.totalorder %s244, %s246
      %p250 = scmp.eq.s32.totalorder %s100, 0
      %p251 = por %p249, %p250
      %p252 = scmp.ne.s32.totalorder %s244, %s246
      %p253 = scmp.eq.s32.totalorder %s105, 1
      %p254 = por %p252, %p253
      %p255 = scmp.ne.s32.totalorder %s246, %s247
      %p256 = scmp.eq.s32.totalorder %s105, 0
      %p257 = por %p255, %p256
      %p258 = scmp.ne.s32.totalorder %s246, %s247
      %p259 = scmp.eq.s32.totalorder %s106, 1
      %p260 = por %p258, %p259
      %p262 = scmp.ne.s32.totalorder %s247, %s261
      %p263 = scmp.eq.s32.totalorder %s106, 0
      %p264 = por %p262, %p263
      %s266 = sadd.s32 %s265, 1
      %p269 = scmp.eq.s32.totalorder %s100, 1
      %p270 = scmp.ne.s32.totalorder %s265, %s267
      %p271 = scmp.eq.s32.totalorder %s100, 0
      %p272 = por %p270, %p271
      %p273 = scmp.ne.s32.totalorder %s265, %s267
      %p274 = scmp.eq.s32.totalorder %s105, 1
      %p275 = por %p273, %p274
      %p276 = scmp.ne.s32.totalorder %s267, %s268
      %p277 = scmp.eq.s32.totalorder %s105, 0
      %p278 = por %p276, %p277
      %p279 = scmp.ne.s32.totalorder %s267, %s268
      %p280 = scmp.eq.s32.totalorder %s106, 1
      %p281 = por %p279, %p280
      %p283 = scmp.ne.s32.totalorder %s268, %s282
      %p284 = scmp.eq.s32.totalorder %s106, 0
      %p285 = por %p283, %p284
      %s287 = sadd.s32 %s286, 1
      %p290 = scmp.eq.s32.totalorder %s100, 1
      %p291 = scmp.ne.s32.totalorder %s286, %s288
      %p292 = scmp.eq.s32.totalorder %s100, 0
      %p293 = por %p291, %p292
      %p294 = scmp.ne.s32.totalorder %s286, %s288
      %p295 = scmp.eq.s32.totalorder %s105, 1
      %p296 = por %p294, %p295
      %p297 = scmp.ne.s32.totalorder %s288, %s289
      %p298 = scmp.eq.s32.totalorder %s105, 0
      %p299 = por %p297, %p298
      %p300 = scmp.ne.s32.totalorder %s288, %s289
      %p301 = scmp.eq.s32.totalorder %s106, 1
      %p302 = por %p300, %p301
      %p304 = scmp.ne.s32.totalorder %s289, %s303
      %p305 = scmp.eq.s32.totalorder %s106, 0
      %p306 = por %p304, %p305
      %s308 = sadd.s32 %s307, 1
      %p311 = scmp.eq.s32.totalorder %s100, 1
      %p312 = scmp.ne.s32.totalorder %s307, %s309
      %p313 = scmp.eq.s32.totalorder %s100, 0
      %p314 = por %p312, %p313
      %p315 = scmp.ne.s32.totalorder %s307, %s309
      %p316 = scmp.eq.s32.totalorder %s105, 1
      %p317 = por %p315, %p316
      %p318 = scmp.ne.s32.totalorder %s309, %s310
      %p319 = scmp.eq.s32.totalorder %s105, 0
      %p320 = por %p318, %p319
      %p321 = scmp.ne.s32.totalorder %s309, %s310
      %p322 = scmp.eq.s32.totalorder %s106, 1
      %p323 = por %p321, %p322
      %p325 = scmp.ne.s32.totalorder %s310, %s324
      %p326 = scmp.eq.s32.totalorder %s106, 0
      %p327 = por %p325, %p326
      %s329 = sadd.s32 %s328, 1
      %p332 = scmp.eq.s32.totalorder %s100, 1
      %p333 = scmp.ne.s32.totalorder %s328, %s330
      %p334 = scmp.eq.s32.totalorder %s100, 0
      %p335 = por %p333, %p334
      %p336 = scmp.ne.s32.totalorder %s328, %s330
      %p337 = scmp.eq.s32.totalorder %s105, 1
      %p338 = por %p336, %p337
      %p339 = scmp.ne.s32.totalorder %s330, %s331
      %p340 = scmp.eq.s32.totalorder %s105, 0
      %p341 = por %p339, %p340
      %p342 = scmp.ne.s32.totalorder %s330, %s331
      %p343 = scmp.eq.s32.totalorder %s106, 1
      %p344 = por %p342, %p343
      %p346 = scmp.ne.s32.totalorder %s331, %s345
      %p347 = scmp.eq.s32.totalorder %s106, 0
      %p348 = por %p346, %p347
      %s350 = sadd.s32 %s349, 1
      %p353 = scmp.eq.s32.totalorder %s100, 1
      %p354 = scmp.ne.s32.totalorder %s349, %s351
      %p355 = scmp.eq.s32.totalorder %s100, 0
      %p356 = por %p354, %p355
      %p357 = scmp.ne.s32.totalorder %s349, %s351
      %p358 = scmp.eq.s32.totalorder %s105, 1
      %p359 = por %p357, %p358
      %p360 = scmp.ne.s32.totalorder %s351, %s352
      %p361 = scmp.eq.s32.totalorder %s105, 0
      %p362 = por %p360, %p361
      %p363 = scmp.ne.s32.totalorder %s351, %s352
      %p364 = scmp.eq.s32.totalorder %s106, 1
      %p365 = por %p363, %p364
      %p367 = scmp.ne.s32.totalorder %s352, %s366
      %p368 = scmp.eq.s32.totalorder %s106, 0
      %p369 = por %p367, %p368
      %s371 = sadd.s32 %s370, 1
      %p374 = scmp.eq.s32.totalorder %s100, 1
      %p375 = scmp.ne.s32.totalorder %s370, %s372
      %p376 = scmp.eq.s32.totalorder %s100, 0
      %p377 = por %p375, %p376
      %p378 = scmp.ne.s32.totalorder %s370, %s372
      %p379 = scmp.eq.s32.totalorder %s105, 1
      %p380 = por %p378, %p379
      %p381 = scmp.ne.s32.totalorder %s372, %s373
      %p382 = scmp.eq.s32.totalorder %s105, 0
      %p383 = por %p381, %p382
      %p384 = scmp.ne.s32.totalorder %s372, %s373
      %p385 = scmp.eq.s32.totalorder %s106, 1
      %p386 = por %p384, %p385
      %p388 = scmp.ne.s32.totalorder %s373, %s387
      %p389 = scmp.eq.s32.totalorder %s106, 0
      %p390 = por %p388, %p389
      %s392 = sadd.s32 %s391, 1
      %p395 = scmp.eq.s32.totalorder %s100, 1
      %p396 = scmp.ne.s32.totalorder %s391, %s393
      %p397 = scmp.eq.s32.totalorder %s100, 0
      %p398 = por %p396, %p397
      %p399 = scmp.ne.s32.totalorder %s391, %s393
      %p400 = scmp.eq.s32.totalorder %s105, 1
      %p401 = por %p399, %p400
      %p402 = scmp.ne.s32.totalorder %s393, %s394
      %p403 = scmp.eq.s32.totalorder %s105, 0
      %p404 = por %p402, %p403
      %p405 = scmp.ne.s32.totalorder %s393, %s394
      %p406 = scmp.eq.s32.totalorder %s106, 1
      %p407 = por %p405, %p406
      %p409 = scmp.ne.s32.totalorder %s394, %s408
      %p410 = scmp.eq.s32.totalorder %s106, 0
      %p411 = por %p409, %p410
      %s413 = sadd.s32 %s412, 1
      %p416 = scmp.eq.s32.totalorder %s100, 1
      %p417 = scmp.ne.s32.totalorder %s412, %s414
      %p418 = scmp.eq.s32.totalorder %s100, 0
      %p419 = por %p417, %p418
      %p420 = scmp.ne.s32.totalorder %s412, %s414
      %p421 = scmp.eq.s32.totalorder %s105, 1
      %p422 = por %p420, %p421
      %p423 = scmp.ne.s32.totalorder %s414, %s415
      %p424 = scmp.eq.s32.totalorder %s105, 0
      %p425 = por %p423, %p424
      %p426 = scmp.ne.s32.totalorder %s414, %s415
      %p427 = scmp.eq.s32.totalorder %s106, 1
      %p428 = por %p426, %p427
      %p430 = scmp.ne.s32.totalorder %s415, %s429
      %p431 = scmp.eq.s32.totalorder %s106, 0
      %p432 = por %p430, %p431
      %s434 = sadd.s32 %s433, 1
      %p437 = scmp.eq.s32.totalorder %s100, 1
      %p438 = scmp.ne.s32.totalorder %s433, %s435
      %p439 = scmp.eq.s32.totalorder %s100, 0
      %p440 = por %p438, %p439
      %p441 = scmp.ne.s32.totalorder %s433, %s435
      %p442 = scmp.eq.s32.totalorder %s105, 1
      %p443 = por %p441, %p442
      %p444 = scmp.ne.s32.totalorder %s435, %s436
      %p445 = scmp.eq.s32.totalorder %s105, 0
      %p446 = por %p444, %p445
      %p447 = scmp.ne.s32.totalorder %s435, %s436
      %p448 = scmp.eq.s32.totalorder %s106, 1
      %p449 = por %p447, %p448
      %p451 = scmp.ne.s32.totalorder %s436, %s450
      %p452 = scmp.eq.s32.totalorder %s106, 0
      %p453 = por %p451, %p452
      %s455 = sadd.s32 %s454, 1
      %p458 = scmp.eq.s32.totalorder %s100, 1
      %p459 = scmp.ne.s32.totalorder %s454, %s456
      %p460 = scmp.eq.s32.totalorder %s100, 0
      %p461 = por %p459, %p460
      %p462 = scmp.ne.s32.totalorder %s454, %s456
      %p463 = scmp.eq.s32.totalorder %s105, 1
      %p464 = por %p462, %p463
      %p465 = scmp.ne.s32.totalorder %s456, %s457
      %p466 = scmp.eq.s32.totalorder %s105, 0
      %p467 = por %p465, %p466
      %p468 = scmp.ne.s32.totalorder %s456, %s457
      %p469 = scmp.eq.s32.totalorder %s106, 1
      %p470 = por %p468, %p469
      %p472 = scmp.ne.s32.totalorder %s457, %s471
      %p473 = scmp.eq.s32.totalorder %s106, 0
      %p474 = por %p472, %p473
      %s476 = sadd.s32 %s475, 1
      %p479 = scmp.eq.s32.totalorder %s100, 1
      %p480 = scmp.ne.s32.totalorder %s475, %s477
      %p481 = scmp.eq.s32.totalorder %s100, 0
      %p482 = por %p480, %p481
      %p483 = scmp.ne.s32.totalorder %s475, %s477
      %p484 = scmp.eq.s32.totalorder %s105, 1
      %p485 = por %p483, %p484
      %p486 = scmp.ne.s32.totalorder %s477, %s478
      %p487 = scmp.eq.s32.totalorder %s105, 0
      %p488 = por %p486, %p487
      %p489 = scmp.ne.s32.totalorder %s477, %s478
      %p490 = scmp.eq.s32.totalorder %s106, 1
      %p491 = por %p489, %p490
      %p493 = scmp.ne.s32.totalorder %s478, %s492
      %p494 = scmp.eq.s32.totalorder %s106, 0
      %p495 = por %p493, %p494
      %s497 = sadd.s32 %s496, 1
      %p500 = scmp.eq.s32.totalorder %s100, 1
      %p501 = scmp.ne.s32.totalorder %s496, %s498
      %p502 = scmp.eq.s32.totalorder %s100, 0
      %p503 = por %p501, %p502
      %p504 = scmp.ne.s32.totalorder %s496, %s498
      %p505 = scmp.eq.s32.totalorder %s105, 1
      %p506 = por %p504, %p505
      %p507 = scmp.ne.s32.totalorder %s498, %s499
      %p508 = scmp.eq.s32.totalorder %s105, 0
      %p509 = por %p507, %p508
      %p510 = scmp.ne.s32.totalorder %s498, %s499
      %p511 = scmp.eq.s32.totalorder %s106, 1
      %p512 = por %p510, %p511
      %p514 = scmp.ne.s32.totalorder %s499, %s513
      %p515 = scmp.eq.s32.totalorder %s106, 0
      %p516 = por %p514, %p515
      %s518 = sadd.s32 %s517, 1
      %p521 = scmp.eq.s32.totalorder %s100, 1
      %p522 = scmp.ne.s32.totalorder %s517, %s519
      %p523 = scmp.eq.s32.totalorder %s100, 0
      %p524 = por %p522, %p523
      %p525 = scmp.ne.s32.totalorder %s517, %s519
      %p526 = scmp.eq.s32.totalorder %s105, 1
      %p527 = por %p525, %p526
      %p528 = scmp.ne.s32.totalorder %s519, %s520
      %p529 = scmp.eq.s32.totalorder %s105, 0
      %p530 = por %p528, %p529
      %p531 = scmp.ne.s32.totalorder %s519, %s520
      %p532 = scmp.eq.s32.totalorder %s106, 1
      %p533 = por %p531, %p532
      %p535 = scmp.ne.s32.totalorder %s520, %s534
      %p536 = scmp.eq.s32.totalorder %s106, 0
      %p537 = por %p535, %p536
      %s539 = sadd.s32 %s538, 1
      %p542 = scmp.eq.s32.totalorder %s100, 1
      %p543 = scmp.ne.s32.totalorder %s538, %s540
      %p544 = scmp.eq.s32.totalorder %s100, 0
      %p545 = por %p543, %p544
      %p546 = scmp.ne.s32.totalorder %s538, %s540
      %p547 = scmp.eq.s32.totalorder %s105, 1
      %p548 = por %p546, %p547
      %p549 = scmp.ne.s32.totalorder %s540, %s541
      %p550 = scmp.eq.s32.totalorder %s105, 0
      %p551 = por %p549, %p550
      %p552 = scmp.ne.s32.totalorder %s540, %s541
      %p553 = scmp.eq.s32.totalorder %s106, 1
      %p554 = por %p552, %p553
      %p556 = scmp.ne.s32.totalorder %s541, %s555
      %p557 = scmp.eq.s32.totalorder %s106, 0
      %p558 = por %p556, %p557
      %s560 = sadd.s32 %s559, 1
      %p563 = scmp.eq.s32.totalorder %s100, 1
      %p564 = scmp.ne.s32.totalorder %s559, %s561
      %p565 = scmp.eq.s32.totalorder %s100, 0
      %p566 = por %p564, %p565
      %p567 = scmp.ne.s32.totalorder %s559, %s561
      %p568 = scmp.eq.s32.totalorder %s105, 1
      %p569 = por %p567, %p568
      %p570 = scmp.ne.s32.totalorder %s561, %s562
      %p571 = scmp.eq.s32.totalorder %s105, 0
      %p572 = por %p570, %p571
      %p573 = scmp.ne.s32.totalorder %s561, %s562
      %p574 = scmp.eq.s32.totalorder %s106, 1
      %p575 = por %p573, %p574
      %p577 = scmp.ne.s32.totalorder %s562, %s576
      %p578 = scmp.eq.s32.totalorder %s106, 0
      %p579 = por %p577, %p578
      %s581 = sadd.s32 %s580, 1
      %p584 = scmp.eq.s32.totalorder %s100, 1
      %p585 = scmp.ne.s32.totalorder %s580, %s582
      %p586 = scmp.eq.s32.totalorder %s100, 0
      %p587 = por %p585, %p586
      %p588 = scmp.ne.s32.totalorder %s580, %s582
      %p589 = scmp.eq.s32.totalorder %s105, 1
      %p590 = por %p588, %p589
      %p591 = scmp.ne.s32.totalorder %s582, %s583
      %p592 = scmp.eq.s32.totalorder %s105, 0
      %p593 = por %p591, %p592
      %p594 = scmp.ne.s32.totalorder %s582, %s583
      %p595 = scmp.eq.s32.totalorder %s106, 1
      %p596 = por %p594, %p595
      %p598 = scmp.ne.s32.totalorder %s583, %s597
      %p599 = scmp.eq.s32.totalorder %s106, 0
      %p600 = por %p598, %p599
      %s602 = sadd.s32 %s601, 1
      %p605 = scmp.eq.s32.totalorder %s100, 1
      %p606 = scmp.ne.s32.totalorder %s601, %s603
      %p607 = scmp.eq.s32.totalorder %s100, 0
      %p608 = por %p606, %p607
      %p609 = scmp.ne.s32.totalorder %s601, %s603
      %p610 = scmp.eq.s32.totalorder %s105, 1
      %p611 = por %p609, %p610
      %p612 = scmp.ne.s32.totalorder %s603, %s604
      %p613 = scmp.eq.s32.totalorder %s105, 0
      %p614 = por %p612, %p613
      %p615 = scmp.ne.s32.totalorder %s603, %s604
      %p616 = scmp.eq.s32.totalorder %s106, 1
      %p617 = por %p615, %p616
      %p619 = scmp.ne.s32.totalorder %s604, %s618
      %p620 = scmp.eq.s32.totalorder %s106, 0
      %p621 = por %p619, %p620
      %s623 = sadd.s32 %s622, 1
      %p626 = scmp.eq.s32.totalorder %s100, 1
      %p627 = scmp.ne.s32.totalorder %s622, %s624
      %p628 = scmp.eq.s32.totalorder %s100, 0
      %p629 = por %p627, %p628
      %p630 = scmp.ne.s32.totalorder %s622, %s624
      %p631 = scmp.eq.s32.totalorder %s105, 1
      %p632 = por %p630, %p631
      %p633 = scmp.ne.s32.totalorder %s624, %s625
      %p634 = scmp.eq.s32.totalorder %s105, 0
      %p635 = por %p633, %p634
      %p636 = scmp.ne.s32.totalorder %s624, %s625
      %p637 = scmp.eq.s32.totalorder %s106, 1
      %p638 = por %p636, %p637
      %p640 = scmp.ne.s32.totalorder %s625, %s639
      %p641 = scmp.eq.s32.totalorder %s106, 0
      %p642 = por %p640, %p641
      %s644 = sadd.s32 %s643, 1
      %p647 = scmp.eq.s32.totalorder %s100, 1
      %p648 = scmp.ne.s32.totalorder %s643, %s645
      %p649 = scmp.eq.s32.totalorder %s100, 0
      %p650 = por %p648, %p649
      %p651 = scmp.ne.s32.totalorder %s643, %s645
      %p652 = scmp.eq.s32.totalorder %s105, 1
      %p653 = por %p651, %p652
      %p654 = scmp.ne.s32.totalorder %s645, %s646
      %p655 = scmp.eq.s32.totalorder %s105, 0
      %p656 = por %p654, %p655
      %p657 = scmp.ne.s32.totalorder %s645, %s646
      %p658 = scmp.eq.s32.totalorder %s106, 1
      %p659 = por %p657, %p658
      %p661 = scmp.ne.s32.totalorder %s646, %s660
      %p662 = scmp.eq.s32.totalorder %s106, 0
      %p663 = por %p661, %p662
      %s665 = sadd.s32 %s664, 1
      %p668 = scmp.eq.s32.totalorder %s100, 1
      %p669 = scmp.ne.s32.totalorder %s664, %s666
      %p670 = scmp.eq.s32.totalorder %s100, 0
      %p671 = por %p669, %p670
      %p672 = scmp.ne.s32.totalorder %s664, %s666
      %p673 = scmp.eq.s32.totalorder %s105, 1
      %p674 = por %p672, %p673
      %p675 = scmp.ne.s32.totalorder %s666, %s667
      %p676 = scmp.eq.s32.totalorder %s105, 0
      %p677 = por %p675, %p676
      %p678 = scmp.ne.s32.totalorder %s666, %s667
      %p679 = scmp.eq.s32.totalorder %s106, 1
      %p680 = por %p678, %p679
      %p682 = scmp.ne.s32.totalorder %s667, %s681
      %p683 = scmp.eq.s32.totalorder %s106, 0
      %p684 = por %p682, %p683
      %s686 = sadd.s32 %s685, 1
      %p689 = scmp.eq.s32.totalorder %s100, 1
      %p690 = scmp.ne.s32.totalorder %s685, %s687
      %p691 = scmp.eq.s32.totalorder %s100, 0
      %p692 = por %p690, %p691
      %p693 = scmp.ne.s32.totalorder %s685, %s687
      %p694 = scmp.eq.s32.totalorder %s105, 1
      %p695 = por %p693, %p694
      %p696 = scmp.ne.s32.totalorder %s687, %s688
      %p697 = scmp.eq.s32.totalorder %s105, 0
      %p698 = por %p696, %p697
      %p699 = scmp.ne.s32.totalorder %s687, %s688
      %p700 = scmp.eq.s32.totalorder %s106, 1
      %p701 = por %p699, %p700
      %p703 = scmp.ne.s32.totalorder %s688, %s702
      %p704 = scmp.eq.s32.totalorder %s106, 0
      %p705 = por %p703, %p704
      %s707 = sadd.s32 %s706, 1
      %p710 = scmp.eq.s32.totalorder %s100, 1
      %p711 = scmp.ne.s32.totalorder %s706, %s708
      %p712 = scmp.eq.s32.totalorder %s100, 0
      %p713 = por %p711, %p712
      %p714 = scmp.ne.s32.totalorder %s706, %s708
      %p715 = scmp.eq.s32.totalorder %s105, 1
      %p716 = por %p714, %p715
      %p717 = scmp.ne.s32.totalorder %s708, %s709
      %p718 = scmp.eq.s32.totalorder %s105, 0
      %p719 = por %p717, %p718
      %p720 = scmp.ne.s32.totalorder %s708, %s709
      %p721 = scmp.eq.s32.totalorder %s106, 1
      %p722 = por %p720, %p721
      %p724 = scmp.ne.s32.totalorder %s709, %s723
      %p725 = scmp.eq.s32.totalorder %s106, 0
      %p726 = por %p724, %p725
      %s728 = sadd.s32 %s727, 1
      %p731 = scmp.eq.s32.totalorder %s100, 1
      %p732 = scmp.ne.s32.totalorder %s727, %s729
      %p733 = scmp.eq.s32.totalorder %s100, 0
      %p734 = por %p732, %p733
      %p735 = scmp.ne.s32.totalorder %s727, %s729
      %p736 = scmp.eq.s32.totalorder %s105, 1
      %p737 = por %p735, %p736
      %p738 = scmp.ne.s32.totalorder %s729, %s730
      %p739 = scmp.eq.s32.totalorder %s105, 0
      %p740 = por %p738, %p739
      %p741 = scmp.ne.s32.totalorder %s729, %s730
      %p742 = scmp.eq.s32.totalorder %s106, 1
      %p743 = por %p741, %p742
      %p745 = scmp.ne.s32.totalorder %s730, %s744
      %p746 = scmp.eq.s32.totalorder %s106, 0
      %p747 = por %p745, %p746
      %s749 = sadd.s32 %s748, 1
      %p752 = scmp.eq.s32.totalorder %s100, 1
      %p753 = scmp.ne.s32.totalorder %s748, %s750
      %p754 = scmp.eq.s32.totalorder %s100, 0
      %p755 = por %p753, %p754
      %p756 = scmp.ne.s32.totalorder %s748, %s750
      %p757 = scmp.eq.s32.totalorder %s105, 1
      %p758 = por %p756, %p757
      %p759 = scmp.ne.s32.totalorder %s750, %s751
      %p760 = scmp.eq.s32.totalorder %s105, 0
      %p761 = por %p759, %p760
      %p762 = scmp.ne.s32.totalorder %s750, %s751
      %p763 = scmp.eq.s32.totalorder %s106, 1
      %p764 = por %p762, %p763
      %p766 = scmp.ne.s32.totalorder %s751, %s765
      %p767 = scmp.eq.s32.totalorder %s106, 0
      %p768 = por %p766, %p767
      %s769 = ssub.s32 %s100, %s107
      %p770 = scmp.eq.s32.totalorder %s769, 0
      %s772 = sadd.s32 %s771, 1
      %s773 = scalar_select %p770, %s771, %s772
      %p776 = pneg %p770
      %p777 = scmp.eq.s32.totalorder %s100, 1
      %p778 = por %p776, %p777
      %p779 = scmp.ne.s32.totalorder %s771, %s774
      %p780 = scmp.eq.s32.totalorder %s100, 0
      %p781 = por %p779, %p780
      %p782 = scmp.ne.s32.totalorder %s771, %s774
      %p783 = scmp.eq.s32.totalorder %s105, 1
      %p784 = por %p782, %p783
      %p785 = scmp.ne.s32.totalorder %s774, %s775
      %p786 = scmp.eq.s32.totalorder %s105, 0
      %p787 = por %p785, %p786
      %p788 = scmp.ne.s32.totalorder %s774, %s775
      %p789 = scmp.eq.s32.totalorder %s106, 1
      %p790 = por %p788, %p789
      %p792 = scmp.ne.s32.totalorder %s775, %s791
      %p793 = scmp.eq.s32.totalorder %s106, 0
      %p794 = por %p792, %p793
      %s795 = ssub.s32 %s100, %s107
      %p796 = scmp.eq.s32.totalorder %s795, 0
      %s798 = sadd.s32 %s797, 1
      %s799 = scalar_select %p796, %s797, %s798
      %p802 = pneg %p796
      %p803 = scmp.eq.s32.totalorder %s100, 1
      %p804 = por %p802, %p803
      %p805 = scmp.ne.s32.totalorder %s797, %s800
      %p806 = scmp.eq.s32.totalorder %s100, 0
      %p807 = por %p805, %p806
      %p808 = scmp.ne.s32.totalorder %s797, %s800
      %p809 = scmp.eq.s32.totalorder %s105, 1
      %p810 = por %p808, %p809
      %p811 = scmp.ne.s32.totalorder %s800, %s801
      %p812 = scmp.eq.s32.totalorder %s105, 0
      %p813 = por %p811, %p812
      %p814 = scmp.ne.s32.totalorder %s800, %s801
      %p815 = scmp.eq.s32.totalorder %s106, 1
      %p816 = por %p814, %p815
      %p818 = scmp.ne.s32.totalorder %s801, %s817
      %p819 = scmp.eq.s32.totalorder %s106, 0
      %p820 = por %p818, %p819
      %s821 = ssub.s32 %s100, %s107
      %p822 = scmp.eq.s32.totalorder %s821, 0
      %s824 = sadd.s32 %s823, 1
      %s825 = scalar_select %p822, %s823, %s824
      %p828 = pneg %p822
      %p829 = scmp.eq.s32.totalorder %s100, 1
      %p830 = por %p828, %p829
      %p831 = scmp.ne.s32.totalorder %s823, %s826
      %p832 = scmp.eq.s32.totalorder %s100, 0
      %p833 = por %p831, %p832
      %p834 = scmp.ne.s32.totalorder %s823, %s826
      %p835 = scmp.eq.s32.totalorder %s105, 1
      %p836 = por %p834, %p835
      %p837 = scmp.ne.s32.totalorder %s826, %s827
      %p838 = scmp.eq.s32.totalorder %s105, 0
      %p839 = por %p837, %p838
      %p840 = scmp.ne.s32.totalorder %s826, %s827
      %p841 = scmp.eq.s32.totalorder %s106, 1
      %p842 = por %p840, %p841
      %p844 = scmp.ne.s32.totalorder %s827, %s843
      %p845 = scmp.eq.s32.totalorder %s106, 0
      %p846 = por %p844, %p845
      %s847 = ssub.s32 %s100, %s107
      %p848 = scmp.eq.s32.totalorder %s847, 0
      %s850 = sadd.s32 %s849, 1
      %s851 = scalar_select %p848, %s849, %s850
      %p854 = pneg %p848
      %p855 = scmp.eq.s32.totalorder %s100, 1
      %p856 = por %p854, %p855
      %p857 = scmp.ne.s32.totalorder %s849, %s852
      %p858 = scmp.eq.s32.totalorder %s100, 0
      %p859 = por %p857, %p858
      %p860 = scmp.ne.s32.totalorder %s849, %s852
      %p861 = scmp.eq.s32.totalorder %s105, 1
      %p862 = por %p860, %p861
      %p863 = scmp.ne.s32.totalorder %s852, %s853
      %p864 = scmp.eq.s32.totalorder %s105, 0
      %p865 = por %p863, %p864
      %p866 = scmp.ne.s32.totalorder %s852, %s853
      %p867 = scmp.eq.s32.totalorder %s106, 1
      %p868 = por %p866, %p867
      %p870 = scmp.ne.s32.totalorder %s853, %s869
      %p871 = scmp.eq.s32.totalorder %s106, 0
      %p872 = por %p870, %p871
      %p873 = scmp.le.s32.totalorder 1, %s100
      %p874 = scmp.lt.s32.totalorder %s100, 3
      %p875 = pnand %p873, %p874
      %p876 = pneg %p875
      // Predicated region
      $region9: #{tpu_custom_call.1} parent=5 // pred_check
        _
      $region10: #{tpu_custom_call.1} parent=5 // pred_check_branch
        %878 = sbr.rel (%p875) target = $region12
      $region11: #{tpu_custom_call.1} parent=5 // pred_region
        %s879 = ssub.s32 %s100, 1
        // Predicated region
        $region13: #{tpu_custom_call.1} parent=11 // pred_check
          %p880 = pneg %p173
        $region14: #{tpu_custom_call.1} parent=11 // pred_check_branch
          %882 = sbr.rel (%p880) target = $region16
        $region15: #{tpu_custom_call.1} parent=11 // pred_region
          _
        $region16: #{tpu_custom_call.1} parent=11 // pred_fallthru
          _
        // Predicated region
        $region17: #{tpu_custom_call.1} parent=11 // pred_check
          %p883 = pneg %p194
        $region18: #{tpu_custom_call.1} parent=11 // pred_check_branch
          %885 = sbr.rel (%p883) target = $region20
        $region19: #{tpu_custom_call.1} parent=11 // pred_region
          _
        $region20: #{tpu_custom_call.1} parent=11 // pred_fallthru
          _
        // Predicated region
        $region21: #{tpu_custom_call.1} parent=11 // pred_check
          %p886 = pneg %p215
        $region22: #{tpu_custom_call.1} parent=11 // pred_check_branch
          %888 = sbr.rel (%p886) target = $region24
        $region23: #{tpu_custom_call.1} parent=11 // pred_region
          _
        $region24: #{tpu_custom_call.1} parent=11 // pred_fallthru
          _
        // Predicated region
        $region25: #{tpu_custom_call.1} parent=11 // pred_check
          %p889 = pneg %p236
        $region26: #{tpu_custom_call.1} parent=11 // pred_check_branch
          %891 = sbr.rel (%p889) target = $region28
        $region27: #{tpu_custom_call.1} parent=11 // pred_region
          _
        $region28: #{tpu_custom_call.1} parent=11 // pred_fallthru
          _
        // Predicated region
        $region29: #{tpu_custom_call.1} parent=11 // pred_check
          %p892 = pneg %p257
        $region30: #{tpu_custom_call.1} parent=11 // pred_check_branch
          %894 = sbr.rel (%p892) target = $region32
        $region31: #{tpu_custom_call.1} parent=11 // pred_region
          %s896 = ssub.s32 16, 16
          %897 = vsyncadd [#allocation6], %s896
          %s899 = sshll.u32 [#allocation7], 4
          %s900 = int_to_ptr.vmem [resolvable:$true] %s899
          %902 = dma.hbm_to_vmem [thread:$0]  %s13, 16, %s900, [#allocation6]
        $region32: #{tpu_custom_call.1} parent=11 // pred_fallthru
          _
        // Predicated region
        $region33: #{tpu_custom_call.1} parent=11 // pred_check
          %p903 = pneg %p278
        $region34: #{tpu_custom_call.1} parent=11 // pred_check_branch
          %905 = sbr.rel (%p903) target = $region36
        $region35: #{tpu_custom_call.1} parent=11 // pred_region
          %s907 = ssub.s32 512, 512
          %908 = vsyncadd [#allocation9], %s907
          %s909 = sshll.u32 [#allocation8], 4
          %s910 = int_to_ptr.vmem [resolvable:$true] %s909
          %915 = dma.hbm_to_vmem [thread:$0]  %s15, 512, %s910, [#allocation9], 64, 64, 4
        $region36: #{tpu_custom_call.1} parent=11 // pred_fallthru
          _
        // Predicated region
        $region37: #{tpu_custom_call.1} parent=11 // pred_check
          %p916 = pneg %p299
        $region38: #{tpu_custom_call.1} parent=11 // pred_check_branch
          %918 = sbr.rel (%p916) target = $region40
        $region39: #{tpu_custom_call.1} parent=11 // pred_region
          %s920 = ssub.s32 16, 16
          %921 = vsyncadd [#allocation9], %s920
          %s923 = sshll.u32 [#allocation10], 4
          %s924 = int_to_ptr.vmem [resolvable:$true] %s923
          %926 = dma.hbm_to_vmem [thread:$0]  %s17, 16, %s924, [#allocation9]
        $region40: #{tpu_custom_call.1} parent=11 // pred_fallthru
          _
        // Predicated region
        $region41: #{tpu_custom_call.1} parent=11 // pred_check
          %p927 = pneg %p320
        $region42: #{tpu_custom_call.1} parent=11 // pred_check_branch
          %929 = sbr.rel (%p927) target = $region44
        $region43: #{tpu_custom_call.1} parent=11 // pred_region
          %s931 = ssub.s32 512, 512
          %932 = vsyncadd [#allocation12], %s931
          %s933 = sshll.u32 [#allocation11], 4
          %s934 = int_to_ptr.vmem [resolvable:$true] %s933
          %939 = dma.hbm_to_vmem [thread:$0]  %s19, 512, %s934, [#allocation12], 64, 64, 4
        $region44: #{tpu_custom_call.1} parent=11 // pred_fallthru
          _
        // Predicated region
        $region45: #{tpu_custom_call.1} parent=11 // pred_check
          %p940 = pneg %p341
        $region46: #{tpu_custom_call.1} parent=11 // pred_check_branch
          %942 = sbr.rel (%p940) target = $region48
        $region47: #{tpu_custom_call.1} parent=11 // pred_region
          %s944 = ssub.s32 16, 16
          %945 = vsyncadd [#allocation12], %s944
          %s947 = sshll.u32 [#allocation13], 4
          %s948 = int_to_ptr.vmem [resolvable:$true] %s947
          %950 = dma.hbm_to_vmem [thread:$0]  %s21, 16, %s948, [#allocation12]
        $region48: #{tpu_custom_call.1} parent=11 // pred_fallthru
          _
        // Predicated region
        $region49: #{tpu_custom_call.1} parent=11 // pred_check
          %p951 = pneg %p362
        $region50: #{tpu_custom_call.1} parent=11 // pred_check_branch
          %953 = sbr.rel (%p951) target = $region52
        $region51: #{tpu_custom_call.1} parent=11 // pred_region
          %s955 = ssub.s32 1024, 1024
          %956 = vsyncadd [#allocation15], %s955
          %s957 = sshll.u32 [#allocation14], 4
          %s958 = int_to_ptr.vmem [resolvable:$true] %s957
          %963 = dma.hbm_to_vmem [thread:$0]  %s23, 1024, %s958, [#allocation15], 128, 128, 8
        $region52: #{tpu_custom_call.1} parent=11 // pred_fallthru
          _
        // Predicated region
        $region53: #{tpu_custom_call.1} parent=11 // pred_check
          %p964 = pneg %p383
        $region54: #{tpu_custom_call.1} parent=11 // pred_check_branch
          %966 = sbr.rel (%p964) target = $region56
        $region55: #{tpu_custom_call.1} parent=11 // pred_region
          %s968 = ssub.s32 32, 32
          %969 = vsyncadd [#allocation15], %s968
          %s971 = sshll.u32 [#allocation16], 4
          %s972 = int_to_ptr.vmem [resolvable:$true] %s971
          %974 = dma.hbm_to_vmem [thread:$0]  %s25, 32, %s972, [#allocation15]
        $region56: #{tpu_custom_call.1} parent=11 // pred_fallthru
          _
        // Predicated region
        $region57: #{tpu_custom_call.1} parent=11 // pred_check
          %p975 = pneg %p404
        $region58: #{tpu_custom_call.1} parent=11 // pred_check_branch
          %977 = sbr.rel (%p975) target = $region60
        $region59: #{tpu_custom_call.1} parent=11 // pred_region
          %s979 = ssub.s32 4096, 4096
          %980 = vsyncadd [#allocation18], %s979
          %s981 = sshll.u32 [#allocation17], 4
          %s982 = int_to_ptr.vmem [resolvable:$true] %s981
          %987 = dma.hbm_to_vmem [thread:$0]  %s27, 4096, %s982, [#allocation18], 128, 128, 8
        $region60: #{tpu_custom_call.1} parent=11 // pred_fallthru
          _
        // Predicated region
        $region61: #{tpu_custom_call.1} parent=11 // pred_check
          %p988 = pneg %p425
        $region62: #{tpu_custom_call.1} parent=11 // pred_check_branch
          %990 = sbr.rel (%p988) target = $region64
        $region63: #{tpu_custom_call.1} parent=11 // pred_region
          %s992 = ssub.s32 32, 32
          %993 = vsyncadd [#allocation18], %s992
          %s995 = sshll.u32 [#allocation19], 4
          %s996 = int_to_ptr.vmem [resolvable:$true] %s995
          %998 = dma.hbm_to_vmem [thread:$0]  %s29, 32, %s996, [#allocation18]
        $region64: #{tpu_custom_call.1} parent=11 // pred_fallthru
          _
        // Predicated region
        $region65: #{tpu_custom_call.1} parent=11 // pred_check
          %p999 = pneg %p446
        $region66: #{tpu_custom_call.1} parent=11 // pred_check_branch
          %1001 = sbr.rel (%p999) target = $region68
        $region67: #{tpu_custom_call.1} parent=11 // pred_region
          _
        $region68: #{tpu_custom_call.1} parent=11 // pred_fallthru
          _
        // Predicated region
        $region69: #{tpu_custom_call.1} parent=11 // pred_check
          %p1002 = pneg %p467
        $region70: #{tpu_custom_call.1} parent=11 // pred_check_branch
          %1004 = sbr.rel (%p1002) target = $region72
        $region71: #{tpu_custom_call.1} parent=11 // pred_region
          %s1006 = ssub.s32 32, 32
          %1007 = vsyncadd [#allocation21], %s1006
          %s1009 = sshll.u32 [#allocation20], 4
          %s1010 = int_to_ptr.vmem [resolvable:$true] %s1009
          %1012 = dma.hbm_to_vmem [thread:$0]  %s33, 32, %s1010, [#allocation21]
        $region72: #{tpu_custom_call.1} parent=11 // pred_fallthru
          _
        // Predicated region
        $region73: #{tpu_custom_call.1} parent=11 // pred_check
          %p1013 = pneg %p488
        $region74: #{tpu_custom_call.1} parent=11 // pred_check_branch
          %1015 = sbr.rel (%p1013) target = $region76
        $region75: #{tpu_custom_call.1} parent=11 // pred_region
          _
        $region76: #{tpu_custom_call.1} parent=11 // pred_fallthru
          _
        // Predicated region
        $region77: #{tpu_custom_call.1} parent=11 // pred_check
          %p1016 = pneg %p509
        $region78: #{tpu_custom_call.1} parent=11 // pred_check_branch
          %1018 = sbr.rel (%p1016) target = $region80
        $region79: #{tpu_custom_call.1} parent=11 // pred_region
          %s1020 = ssub.s32 16, 16
          %1021 = vsyncadd [#allocation21], %s1020
          %s1023 = sshll.u32 [#allocation22], 4
          %s1024 = int_to_ptr.vmem [resolvable:$true] %s1023
          %1026 = dma.hbm_to_vmem [thread:$0]  %s37, 16, %s1024, [#allocation21]
        $region80: #{tpu_custom_call.1} parent=11 // pred_fallthru
          _
        // Predicated region
        $region81: #{tpu_custom_call.1} parent=11 // pred_check
          %p1027 = pneg %p530
        $region82: #{tpu_custom_call.1} parent=11 // pred_check_branch
          %1029 = sbr.rel (%p1027) target = $region84
        $region83: #{tpu_custom_call.1} parent=11 // pred_region
          %s1031 = ssub.s32 512, 512
          %1032 = vsyncadd [#allocation24], %s1031
          %s1033 = sshll.u32 [#allocation23], 4
          %s1034 = int_to_ptr.vmem [resolvable:$true] %s1033
          %1039 = dma.hbm_to_vmem [thread:$0]  %s39, 512, %s1034, [#allocation24], 64, 64, 4
        $region84: #{tpu_custom_call.1} parent=11 // pred_fallthru
          _
        // Predicated region
        $region85: #{tpu_custom_call.1} parent=11 // pred_check
          %p1040 = pneg %p551
        $region86: #{tpu_custom_call.1} parent=11 // pred_check_branch
          %1042 = sbr.rel (%p1040) target = $region88
        $region87: #{tpu_custom_call.1} parent=11 // pred_region
          %s1044 = ssub.s32 16, 16
          %1045 = vsyncadd [#allocation24], %s1044
          %s1047 = sshll.u32 [#allocation25], 4
          %s1048 = int_to_ptr.vmem [resolvable:$true] %s1047
          %1050 = dma.hbm_to_vmem [thread:$0]  %s41, 16, %s1048, [#allocation24]
        $region88: #{tpu_custom_call.1} parent=11 // pred_fallthru
          _
        // Predicated region
        $region89: #{tpu_custom_call.1} parent=11 // pred_check
          %p1051 = pneg %p572
        $region90: #{tpu_custom_call.1} parent=11 // pred_check_branch
          %1053 = sbr.rel (%p1051) target = $region92
        $region91: #{tpu_custom_call.1} parent=11 // pred_region
          %s1055 = ssub.s32 512, 512
          %1056 = vsyncadd [#allocation27], %s1055
          %s1057 = sshll.u32 [#allocation26], 4
          %s1058 = int_to_ptr.vmem [resolvable:$true] %s1057
          %1063 = dma.hbm_to_vmem [thread:$0]  %s43, 512, %s1058, [#allocation27], 64, 64, 4
        $region92: #{tpu_custom_call.1} parent=11 // pred_fallthru
          _
        // Predicated region
        $region93: #{tpu_custom_call.1} parent=11 // pred_check
          %p1064 = pneg %p593
        $region94: #{tpu_custom_call.1} parent=11 // pred_check_branch
          %1066 = sbr.rel (%p1064) target = $region96
        $region95: #{tpu_custom_call.1} parent=11 // pred_region
          %s1068 = ssub.s32 16, 16
          %1069 = vsyncadd [#allocation27], %s1068
          %s1071 = sshll.u32 [#allocation28], 4
          %s1072 = int_to_ptr.vmem [resolvable:$true] %s1071
          %1074 = dma.hbm_to_vmem [thread:$0]  %s45, 16, %s1072, [#allocation27]
        $region96: #{tpu_custom_call.1} parent=11 // pred_fallthru
          _
        // Predicated region
        $region97: #{tpu_custom_call.1} parent=11 // pred_check
          %p1075 = pneg %p614
        $region98: #{tpu_custom_call.1} parent=11 // pred_check_branch
          %1077 = sbr.rel (%p1075) target = $region100
        $region99: #{tpu_custom_call.1} parent=11 // pred_region
          %s1079 = ssub.s32 1024, 1024
          %1080 = vsyncadd [#allocation30], %s1079
          %s1081 = sshll.u32 [#allocation29], 4
          %s1082 = int_to_ptr.vmem [resolvable:$true] %s1081
          %1087 = dma.hbm_to_vmem [thread:$0]  %s47, 1024, %s1082, [#allocation30], 128, 128, 8
        $region100: #{tpu_custom_call.1} parent=11 // pred_fallthru
          _
        // Predicated region
        $region101: #{tpu_custom_call.1} parent=11 // pred_check
          %p1088 = pneg %p635
        $region102: #{tpu_custom_call.1} parent=11 // pred_check_branch
          %1090 = sbr.rel (%p1088) target = $region104
        $region103: #{tpu_custom_call.1} parent=11 // pred_region
          %s1092 = ssub.s32 32, 32
          %1093 = vsyncadd [#allocation30], %s1092
          %s1095 = sshll.u32 [#allocation31], 4
          %s1096 = int_to_ptr.vmem [resolvable:$true] %s1095
          %1098 = dma.hbm_to_vmem [thread:$0]  %s49, 32, %s1096, [#allocation30]
        $region104: #{tpu_custom_call.1} parent=11 // pred_fallthru
          _
        // Predicated region
        $region105: #{tpu_custom_call.1} parent=11 // pred_check
          %p1099 = pneg %p656
        $region106: #{tpu_custom_call.1} parent=11 // pred_check_branch
          %1101 = sbr.rel (%p1099) target = $region108
        $region107: #{tpu_custom_call.1} parent=11 // pred_region
          _
        $region108: #{tpu_custom_call.1} parent=11 // pred_fallthru
          _
        // Predicated region
        $region109: #{tpu_custom_call.1} parent=11 // pred_check
          %p1102 = pneg %p677
        $region110: #{tpu_custom_call.1} parent=11 // pred_check_branch
          %1104 = sbr.rel (%p1102) target = $region112
        $region111: #{tpu_custom_call.1} parent=11 // pred_region
          _
        $region112: #{tpu_custom_call.1} parent=11 // pred_fallthru
          _
        // Predicated region
        $region113: #{tpu_custom_call.1} parent=11 // pred_check
          %p1105 = pneg %p698
        $region114: #{tpu_custom_call.1} parent=11 // pred_check_branch
          %1107 = sbr.rel (%p1105) target = $region116
        $region115: #{tpu_custom_call.1} parent=11 // pred_region
          %s1109 = ssub.s32 512, 512
          %1110 = vsyncadd [#allocation33], %s1109
          %s1111 = sshll.u32 [#allocation32], 4
          %s1112 = int_to_ptr.vmem [resolvable:$true] %s1111
          %1117 = dma.hbm_to_vmem [thread:$0]  %s55, 512, %s1112, [#allocation33], 64, 64, 4
        $region116: #{tpu_custom_call.1} parent=11 // pred_fallthru
          _
        // Predicated region
        $region117: #{tpu_custom_call.1} parent=11 // pred_check
          %p1118 = pneg %p719
        $region118: #{tpu_custom_call.1} parent=11 // pred_check_branch
          %1120 = sbr.rel (%p1118) target = $region120
        $region119: #{tpu_custom_call.1} parent=11 // pred_region
          _
        $region120: #{tpu_custom_call.1} parent=11 // pred_fallthru
          _
        // Predicated region
        $region121: #{tpu_custom_call.1} parent=11 // pred_check
          %p1121 = pneg %p740
        $region122: #{tpu_custom_call.1} parent=11 // pred_check_branch
          %1123 = sbr.rel (%p1121) target = $region124
        $region123: #{tpu_custom_call.1} parent=11 // pred_region
          %s1125 = ssub.s32 512, 512
          %1126 = vsyncadd [#allocation33], %s1125
          %s1127 = sshll.u32 [#allocation34], 4
          %s1128 = int_to_ptr.vmem [resolvable:$true] %s1127
          %1133 = dma.hbm_to_vmem [thread:$0]  %s59, 512, %s1128, [#allocation33], 64, 64, 4
        $region124: #{tpu_custom_call.1} parent=11 // pred_fallthru
          _
        // Predicated region
        $region125: #{tpu_custom_call.1} parent=11 // pred_check
          %p1134 = pneg %p761
        $region126: #{tpu_custom_call.1} parent=11 // pred_check_branch
          %1136 = sbr.rel (%p1134) target = $region128
        $region127: #{tpu_custom_call.1} parent=11 // pred_region
          _
        $region128: #{tpu_custom_call.1} parent=11 // pred_fallthru
          _
      $region12: #{tpu_custom_call.1} parent=5 // pred_fallthru
        _
      %p1137 = scmp.lt.s32.totalorder %s100, 2
      // Predicated region
      $region129: #{tpu_custom_call.1} parent=5 // pred_check
        %p1138 = pneg %p1137
      $region130: #{tpu_custom_call.1} parent=5 // pred_check_branch
        %1140 = sbr.rel (%p1138) target = $region132
      $region131: #{tpu_custom_call.1} parent=5 // pred_region
        // Predicated region
        $region133: #{tpu_custom_call.1} parent=131 // pred_check
          %p1141 = pneg %p120
        $region134: #{tpu_custom_call.1} parent=131 // pred_check_branch
          %1143 = sbr.rel (%p1141) target = $region136
        $region135: #{tpu_custom_call.1} parent=131 // pred_region
          %s1144 = sand.u32 %s110, 1
          %s1145 = scalar_lea.sflag [#allocation3], %s1144
          %s1146 = sand.u32 %s110, 1
          %s1147 = smul.addr %s1146, 32
          %s1148 = scalar_lea.vmem [#allocation2], %s1147
          %s1149 = smul.u32 2, %s100
          %s1151 = ssub.s32 512, 512
          %1152 = vsyncadd %s1145, %s1151
          %s1153 = smul.addr %s1149, 2
          %s1154 = smul.addr %s1153, 128
          %s1155 = scalar_lea.hbm %s1, %s1154
          %s1156 = sshll.u32 %s1148, 4
          %s1157 = int_to_ptr.vmem [resolvable:$true] %s1156
          %1162 = dma.hbm_to_vmem [thread:$0]  %s1155, 512, %s1157, %s1145, 256, 256, 16
        $region136: #{tpu_custom_call.1} parent=131 // pred_fallthru
          _
        // Predicated region
        $region137: #{tpu_custom_call.1} parent=131 // pred_check
          %p1163 = pneg %p146
        $region138: #{tpu_custom_call.1} parent=131 // pred_check_branch
          %1165 = sbr.rel (%p1163) target = $region140
        $region139: #{tpu_custom_call.1} parent=131 // pred_region
          %s1166 = sand.u32 %s100, 1
          %s1167 = scalar_lea.sflag [#allocation6], %s1166
          %s1168 = sand.u32 %s136, 1
          %s1169 = smul.addr %s1168, 16
          %s1170 = scalar_lea.vmem [#allocation5], %s1169
          %s1171 = smul.u32 2, %s100
          %s1173 = ssub.s32 256, 256
          %1174 = vsyncadd %s1167, %s1173
          %s1175 = smul.addr %s1171, 128
          %s1176 = scalar_lea.hbm %s3, %s1175
          %s1177 = sshll.u32 %s1170, 4
          %s1178 = int_to_ptr.vmem [resolvable:$true] %s1177
          %1183 = dma.hbm_to_vmem [thread:$0]  %s1176, 256, %s1178, %s1167, 128, 128, 8
        $region140: #{tpu_custom_call.1} parent=131 // pred_fallthru
          _
      $region132: #{tpu_custom_call.1} parent=5 // pred_fallthru
        _
      %p1184 = scmp.le.s32.totalorder 1, %s100
      %p1185 = scmp.lt.s32.totalorder %s100, 3
      %p1186 = pnand %p1184, %p1185
      %p1187 = pneg %p1186
      // Predicated region
      $region141: #{tpu_custom_call.1} parent=5 // pred_check
        _
      $region142: #{tpu_custom_call.1} parent=5 // pred_check_branch
        %1189 = sbr.rel (%p1186) target = $region144
      $region143: #{tpu_custom_call.1} parent=5 // pred_region
        %s1190 = ssub.s32 %s100, 1
        %s1191 = sand.u32 %s113, 1
        %s1192 = scalar_lea.sflag [#allocation3], %s1191
        %s1193 = sand.u32 %s113, 1
        %s1194 = smul.addr %s1193, 32
        %s1195 = scalar_lea.vmem [#allocation2], %s1194
        // Predicated region
        $region145: #{tpu_custom_call.1} parent=143 // pred_check
          %p1196 = pneg %p126
        $region146: #{tpu_custom_call.1} parent=143 // pred_check_branch
          %1198 = sbr.rel (%p1196) target = $region148
        $region147: #{tpu_custom_call.1} parent=143 // pred_region
          %1199 = dma.done %s1192, 512
        $region148: #{tpu_custom_call.1} parent=143 // pred_fallthru
          _
        %s1200 = sand.u32 %s105, 1
        %s1201 = scalar_lea.sflag [#allocation6], %s1200
        %s1202 = sand.u32 %s139, 1
        %s1203 = smul.addr %s1202, 16
        %s1204 = scalar_lea.vmem [#allocation5], %s1203
        // Predicated region
        $region149: #{tpu_custom_call.1} parent=143 // pred_check
          %p1205 = pneg %p152
        $region150: #{tpu_custom_call.1} parent=143 // pred_check_branch
          %1207 = sbr.rel (%p1205) target = $region152
        $region151: #{tpu_custom_call.1} parent=143 // pred_region
          %1208 = dma.done %s1201, 256
        $region152: #{tpu_custom_call.1} parent=143 // pred_fallthru
          _
        // Predicated region
        $region153: #{tpu_custom_call.1} parent=143 // pred_check
          %p1209 = pneg %p257
        $region154: #{tpu_custom_call.1} parent=143 // pred_check_branch
          %1211 = sbr.rel (%p1209) target = $region156
        $region155: #{tpu_custom_call.1} parent=143 // pred_region
          %1212 = dma.done [#allocation6], 16
        $region156: #{tpu_custom_call.1} parent=143 // pred_fallthru
          _
        // Predicated region
        $region157: #{tpu_custom_call.1} parent=143 // pred_check
          %p1213 = pneg %p278
        $region158: #{tpu_custom_call.1} parent=143 // pred_check_branch
          %1215 = sbr.rel (%p1213) target = $region160
        $region159: #{tpu_custom_call.1} parent=143 // pred_region
          %1216 = dma.done [#allocation9], 512
        $region160: #{tpu_custom_call.1} parent=143 // pred_fallthru
          _
        // Predicated region
        $region161: #{tpu_custom_call.1} parent=143 // pred_check
          %p1217 = pneg %p299
        $region162: #{tpu_custom_call.1} parent=143 // pred_check_branch
          %1219 = sbr.rel (%p1217) target = $region164
        $region163: #{tpu_custom_call.1} parent=143 // pred_region
          %1220 = dma.done [#allocation9], 16
        $region164: #{tpu_custom_call.1} parent=143 // pred_fallthru
          _
        // Predicated region
        $region165: #{tpu_custom_call.1} parent=143 // pred_check
          %p1221 = pneg %p320
        $region166: #{tpu_custom_call.1} parent=143 // pred_check_branch
          %1223 = sbr.rel (%p1221) target = $region168
        $region167: #{tpu_custom_call.1} parent=143 // pred_region
          %1224 = dma.done [#allocation12], 512
        $region168: #{tpu_custom_call.1} parent=143 // pred_fallthru
          _
        // Predicated region
        $region169: #{tpu_custom_call.1} parent=143 // pred_check
          %p1225 = pneg %p341
        $region170: #{tpu_custom_call.1} parent=143 // pred_check_branch
          %1227 = sbr.rel (%p1225) target = $region172
        $region171: #{tpu_custom_call.1} parent=143 // pred_region
          %1228 = dma.done [#allocation12], 16
        $region172: #{tpu_custom_call.1} parent=143 // pred_fallthru
          _
        // Predicated region
        $region173: #{tpu_custom_call.1} parent=143 // pred_check
          %p1229 = pneg %p362
        $region174: #{tpu_custom_call.1} parent=143 // pred_check_branch
          %1231 = sbr.rel (%p1229) target = $region176
        $region175: #{tpu_custom_call.1} parent=143 // pred_region
          %1232 = dma.done [#allocation15], 1024
        $region176: #{tpu_custom_call.1} parent=143 // pred_fallthru
          _
        // Predicated region
        $region177: #{tpu_custom_call.1} parent=143 // pred_check
          %p1233 = pneg %p383
        $region178: #{tpu_custom_call.1} parent=143 // pred_check_branch
          %1235 = sbr.rel (%p1233) target = $region180
        $region179: #{tpu_custom_call.1} parent=143 // pred_region
          %1236 = dma.done [#allocation15], 32
        $region180: #{tpu_custom_call.1} parent=143 // pred_fallthru
          _
        // Predicated region
        $region181: #{tpu_custom_call.1} parent=143 // pred_check
          %p1237 = pneg %p404
        $region182: #{tpu_custom_call.1} parent=143 // pred_check_branch
          %1239 = sbr.rel (%p1237) target = $region184
        $region183: #{tpu_custom_call.1} parent=143 // pred_region
          %1240 = dma.done [#allocation18], 4096
        $region184: #{tpu_custom_call.1} parent=143 // pred_fallthru
          _
        // Predicated region
        $region185: #{tpu_custom_call.1} parent=143 // pred_check
          %p1241 = pneg %p425
        $region186: #{tpu_custom_call.1} parent=143 // pred_check_branch
          %1243 = sbr.rel (%p1241) target = $region188
        $region187: #{tpu_custom_call.1} parent=143 // pred_region
          %1244 = dma.done [#allocation18], 32
        $region188: #{tpu_custom_call.1} parent=143 // pred_fallthru
          _
        // Predicated region
        $region189: #{tpu_custom_call.1} parent=143 // pred_check
          %p1245 = pneg %p467
        $region190: #{tpu_custom_call.1} parent=143 // pred_check_branch
          %1247 = sbr.rel (%p1245) target = $region192
        $region191: #{tpu_custom_call.1} parent=143 // pred_region
          %1248 = dma.done [#allocation21], 32
        $region192: #{tpu_custom_call.1} parent=143 // pred_fallthru
          _
        // Predicated region
        $region193: #{tpu_custom_call.1} parent=143 // pred_check
          %p1249 = pneg %p509
        $region194: #{tpu_custom_call.1} parent=143 // pred_check_branch
          %1251 = sbr.rel (%p1249) target = $region196
        $region195: #{tpu_custom_call.1} parent=143 // pred_region
          %1252 = dma.done [#allocation21], 16
        $region196: #{tpu_custom_call.1} parent=143 // pred_fallthru
          _
        // Predicated region
        $region197: #{tpu_custom_call.1} parent=143 // pred_check
          %p1253 = pneg %p530
        $region198: #{tpu_custom_call.1} parent=143 // pred_check_branch
          %1255 = sbr.rel (%p1253) target = $region200
        $region199: #{tpu_custom_call.1} parent=143 // pred_region
          %1256 = dma.done [#allocation24], 512
        $region200: #{tpu_custom_call.1} parent=143 // pred_fallthru
          _
        // Predicated region
        $region201: #{tpu_custom_call.1} parent=143 // pred_check
          %p1257 = pneg %p551
        $region202: #{tpu_custom_call.1} parent=143 // pred_check_branch
          %1259 = sbr.rel (%p1257) target = $region204
        $region203: #{tpu_custom_call.1} parent=143 // pred_region
          %1260 = dma.done [#allocation24], 16
        $region204: #{tpu_custom_call.1} parent=143 // pred_fallthru
          _
        // Predicated region
        $region205: #{tpu_custom_call.1} parent=143 // pred_check
          %p1261 = pneg %p572
        $region206: #{tpu_custom_call.1} parent=143 // pred_check_branch
          %1263 = sbr.rel (%p1261) target = $region208
        $region207: #{tpu_custom_call.1} parent=143 // pred_region
          %1264 = dma.done [#allocation27], 512
        $region208: #{tpu_custom_call.1} parent=143 // pred_fallthru
          _
        // Predicated region
        $region209: #{tpu_custom_call.1} parent=143 // pred_check
          %p1265 = pneg %p593
        $region210: #{tpu_custom_call.1} parent=143 // pred_check_branch
          %1267 = sbr.rel (%p1265) target = $region212
        $region211: #{tpu_custom_call.1} parent=143 // pred_region
          %1268 = dma.done [#allocation27], 16
        $region212: #{tpu_custom_call.1} parent=143 // pred_fallthru
          _
        // Predicated region
        $region213: #{tpu_custom_call.1} parent=143 // pred_check
          %p1269 = pneg %p614
        $region214: #{tpu_custom_call.1} parent=143 // pred_check_branch
          %1271 = sbr.rel (%p1269) target = $region216
        $region215: #{tpu_custom_call.1} parent=143 // pred_region
          %1272 = dma.done [#allocation30], 1024
        $region216: #{tpu_custom_call.1} parent=143 // pred_fallthru
          _
        // Predicated region
        $region217: #{tpu_custom_call.1} parent=143 // pred_check
          %p1273 = pneg %p635
        $region218: #{tpu_custom_call.1} parent=143 // pred_check_branch
          %1275 = sbr.rel (%p1273) target = $region220
        $region219: #{tpu_custom_call.1} parent=143 // pred_region
          %1276 = dma.done [#allocation30], 32
        $region220: #{tpu_custom_call.1} parent=143 // pred_fallthru
          _
        // Predicated region
        $region221: #{tpu_custom_call.1} parent=143 // pred_check
          %p1277 = pneg %p698
        $region222: #{tpu_custom_call.1} parent=143 // pred_check_branch
          %1279 = sbr.rel (%p1277) target = $region224
        $region223: #{tpu_custom_call.1} parent=143 // pred_region
          %1280 = dma.done [#allocation33], 512
        $region224: #{tpu_custom_call.1} parent=143 // pred_fallthru
          _
        // Predicated region
        $region225: #{tpu_custom_call.1} parent=143 // pred_check
          %p1281 = pneg %p740
        $region226: #{tpu_custom_call.1} parent=143 // pred_check_branch
          %1283 = sbr.rel (%p1281) target = $region228
        $region227: #{tpu_custom_call.1} parent=143 // pred_region
          %1284 = dma.done [#allocation33], 512
        $region228: #{tpu_custom_call.1} parent=143 // pred_fallthru
          _
        %s1285 = sand.u32 %s113, 1
        %s1286 = scalar_lea.sflag [#allocation3], %s1285
        %s1287 = sand.u32 %s113, 1
        %s1288 = smul.addr %s1287, 32
        %s1289 = scalar_lea.vmem [#allocation2], %s1288
        %p1290 = pneg %p126
        %p1291 = pneg %p123
        %s1292 = sand.u32 %s105, 1
        %s1293 = scalar_lea.sflag [#allocation6], %s1292
        %s1294 = sand.u32 %s139, 1
        %s1295 = smul.addr %s1294, 16
        %s1296 = scalar_lea.vmem [#allocation5], %s1295
        %p1297 = pneg %p152
        %p1298 = pneg %p149
        %p1299 = pneg %p173
        %p1300 = pneg %p170
        %p1301 = pneg %p194
        %p1302 = pneg %p191
        %p1303 = pneg %p215
        %p1304 = pneg %p212
        %p1305 = pneg %p236
        %p1306 = pneg %p233
        %p1307 = pneg %p257
        %p1308 = pneg %p254
        %p1309 = pneg %p278
        %p1310 = pneg %p275
        %p1311 = pneg %p299
        %p1312 = pneg %p296
        %p1313 = pneg %p320
        %p1314 = pneg %p317
        %p1315 = pneg %p341
        %p1316 = pneg %p338
        %p1317 = pneg %p362
        %p1318 = pneg %p359
        %p1319 = pneg %p383
        %p1320 = pneg %p380
        %p1321 = pneg %p404
        %p1322 = pneg %p401
        %p1323 = pneg %p425
        %p1324 = pneg %p422
        %p1325 = pneg %p446
        %p1326 = pneg %p443
        %p1327 = pneg %p467
        %p1328 = pneg %p464
        %p1329 = pneg %p488
        %p1330 = pneg %p485
        %p1331 = pneg %p509
        %p1332 = pneg %p506
        %p1333 = pneg %p530
        %p1334 = pneg %p527
        %p1335 = pneg %p551
        %p1336 = pneg %p548
        %p1337 = pneg %p572
        %p1338 = pneg %p569
        %p1339 = pneg %p593
        %p1340 = pneg %p590
        %p1341 = pneg %p614
        %p1342 = pneg %p611
        %p1343 = pneg %p635
        %p1344 = pneg %p632
        %p1345 = pneg %p656
        %p1346 = pneg %p653
        %p1347 = pneg %p677
        %p1348 = pneg %p674
        %p1349 = pneg %p698
        %p1350 = pneg %p695
        %p1351 = pneg %p719
        %p1352 = pneg %p716
        %p1353 = pneg %p740
        %p1354 = pneg %p737
        %p1355 = pneg %p761
        %p1356 = pneg %p758
        %p1357 = pneg %p787
        %p1358 = pneg %p784
        %s1359 = sand.u32 %s774, 1
        %s1360 = scalar_lea.sflag [#allocation4], %s1359
        %s1361 = sand.u32 %s774, 1
        %s1362 = smul.addr %s1361, 32
        %s1363 = scalar_lea.vmem [#allocation35], %s1362
        %p1364 = pneg %p813
        %p1365 = pneg %p810
        %s1366 = sand.u32 %s105, 1
        %s1367 = scalar_lea.sflag [#allocation37], %s1366
        %s1368 = sand.u32 %s800, 1
        %s1369 = smul.addr %s1368, 16
        %s1370 = scalar_lea.vmem [#allocation36], %s1369
        %p1371 = pneg %p839
        %p1372 = pneg %p836
        %s1373 = sand.u32 %s105, 1
        %s1374 = scalar_lea.sflag [#allocation37], %s1373
        %s1375 = sand.u32 %s826, 1
        %s1376 = smul.addr %s1375, 8
        %s1377 = scalar_lea.vmem [#allocation38], %s1376
        %p1378 = pneg %p865
        %p1379 = pneg %p862
        %s1380 = sand.u32 %s852, 1
        %s1381 = scalar_lea.sflag [#allocation40], %s1380
        %s1382 = sand.u32 %s852, 1
        %s1383 = smul.addr %s1382, 16
        %s1384 = scalar_lea.vmem [#allocation39], %s1383
        %s1385 = smul.u32 2, %s105
        %s1386 = smul.u32 2, %s105
        %s1387 = smul.u32 2, %s105
        %s1388 = smul.u32 2, %s105
        %s1389 = smul.u32 2, %s105
        %s1390 = smul.u32 2, %s105
        %v1392 = vld [vmem:[%s1195] sm:$0xff]
        %v1393 = vld [vmem:[%s1195 + $0x8] sm:$0xff]
        %v1394 = vld [vmem:[%s1195 + $0x10] sm:$0xff]
        %v1395 = vld [vmem:[%s1195 + $0x18] sm:$0xff]
        %v1396 = vpack.c.bf16 %v1394, %v1392
        %v1397 = vpack.c.bf16 %v1395, %v1393
        %v1398 = vld [vmem:[%s1204] sm:$0xff]
        %v1399 = vld [vmem:[%s1204 + $0x8] sm:$0xff]
        %v1400 = vpack.c.bf16 %v1399, %v1398
        %v1401 = vld [vmem:[%s7] sm:$0xff]
        %v1402 = vld [vmem:[%s7 + $0x8] sm:$0xff]
        %v1403 = vld [vmem:[%s7 + $0x10] sm:$0xff]
        %v1404 = vld [vmem:[%s7 + $0x18] sm:$0xff]
        %v1405 = vld [vmem:[%s7 + $0x20] sm:$0xff]
        %v1406 = vld [vmem:[%s7 + $0x28] sm:$0xff]
        %v1407 = vld [vmem:[%s7 + $0x30] sm:$0xff]
        %v1408 = vld [vmem:[%s7 + $0x38] sm:$0xff]
        %v1409 = vld [vmem:[%s7 + $0x40] sm:$0xff]
        %v1410 = vld [vmem:[%s7 + $0x48] sm:$0xff]
        %v1411 = vld [vmem:[%s7 + $0x50] sm:$0xff]
        %v1412 = vld [vmem:[%s7 + $0x58] sm:$0xff]
        %v1413 = vld [vmem:[%s7 + $0x60] sm:$0xff]
        %v1414 = vld [vmem:[%s7 + $0x68] sm:$0xff]
        %v1415 = vld [vmem:[%s7 + $0x70] sm:$0xff]
        %v1416 = vld [vmem:[%s7 + $0x78] sm:$0xff]
        %v1417 = vld [vmem:[%s7 + $0x80] sm:$0xff]
        %v1418 = vld [vmem:[%s7 + $0x88] sm:$0xff]
        %v1419 = vld [vmem:[%s7 + $0x90] sm:$0xff]
        %v1420 = vld [vmem:[%s7 + $0x98] sm:$0xff]
        %v1421 = vld [vmem:[%s7 + $0xa0] sm:$0xff]
        %v1422 = vld [vmem:[%s7 + $0xa8] sm:$0xff]
        %v1423 = vld [vmem:[%s7 + $0xb0] sm:$0xff]
        %v1424 = vld [vmem:[%s7 + $0xb8] sm:$0xff]
        %v1425 = vld [vmem:[%s7 + $0xc0] sm:$0xff]
        %v1426 = vld [vmem:[%s7 + $0xc8] sm:$0xff]
        %v1427 = vld [vmem:[%s7 + $0xd0] sm:$0xff]
        %v1428 = vld [vmem:[%s7 + $0xd8] sm:$0xff]
        %v1429 = vld [vmem:[%s7 + $0xe0] sm:$0xff]
        %v1430 = vld [vmem:[%s7 + $0xe8] sm:$0xff]
        %v1431 = vld [vmem:[%s7 + $0xf0] sm:$0xff]
        %v1432 = vld [vmem:[%s7 + $0xf8] sm:$0xff]
        %v1433 = vld [vmem:[%s9] sm:$0x3]
        %v1435 = vlaneseq
        %v1436 = vshrl.u32 %v1435, 7
        %v1437 = vsub.s32 0, %v1436
        %v1438 = vrot.slane %v1433, %v1437
        %v1439 = vlaneseq
        %v1440 = vshrl.u32 %v1439, 7
        %v1441 = vsub.s32 1, %v1440
        %v1442 = vrot.slane %v1433, %v1441
        %v1477 = vunpack.c.l.b16 %v1401
        %v1478 = vunpack.c.h.b16 %v1401
        %v1479 = vunpack.c.l.b16 %v1402
        %v1480 = vunpack.c.h.b16 %v1402
        %v1481 = vunpack.c.l.b16 %v1403
        %v1482 = vunpack.c.h.b16 %v1403
        %v1483 = vunpack.c.l.b16 %v1404
        %v1484 = vunpack.c.h.b16 %v1404
        %v1485 = vunpack.c.l.b16 %v1405
        %v1486 = vunpack.c.h.b16 %v1405
        %v1487 = vunpack.c.l.b16 %v1406
        %v1488 = vunpack.c.h.b16 %v1406
        %v1489 = vunpack.c.l.b16 %v1407
        %v1490 = vunpack.c.h.b16 %v1407
        %v1491 = vunpack.c.l.b16 %v1408
        %v1492 = vunpack.c.h.b16 %v1408
        %v1493 = vunpack.c.l.b16 %v1409
        %v1494 = vunpack.c.h.b16 %v1409
        %v1495 = vunpack.c.l.b16 %v1410
        %v1496 = vunpack.c.h.b16 %v1410
        %v1497 = vunpack.c.l.b16 %v1411
        %v1498 = vunpack.c.h.b16 %v1411
        %v1499 = vunpack.c.l.b16 %v1412
        %v1500 = vunpack.c.h.b16 %v1412
        %v1501 = vunpack.c.l.b16 %v1413
        %v1502 = vunpack.c.h.b16 %v1413
        %v1503 = vunpack.c.l.b16 %v1414
        %v1504 = vunpack.c.h.b16 %v1414
        %v1505 = vunpack.c.l.b16 %v1415
        %v1506 = vunpack.c.h.b16 %v1415
        %v1507 = vunpack.c.l.b16 %v1416
        %v1508 = vunpack.c.h.b16 %v1416
        %v1509 = vunpack.c.l.b16 %v1417
        %v1510 = vunpack.c.h.b16 %v1417
        %v1511 = vunpack.c.l.b16 %v1418
        %v1512 = vunpack.c.h.b16 %v1418
        %v1513 = vunpack.c.l.b16 %v1419
        %v1514 = vunpack.c.h.b16 %v1419
        %v1515 = vunpack.c.l.b16 %v1420
        %v1516 = vunpack.c.h.b16 %v1420
        %v1517 = vunpack.c.l.b16 %v1421
        %v1518 = vunpack.c.h.b16 %v1421
        %v1519 = vunpack.c.l.b16 %v1422
        %v1520 = vunpack.c.h.b16 %v1422
        %v1521 = vunpack.c.l.b16 %v1423
        %v1522 = vunpack.c.h.b16 %v1423
        %v1523 = vunpack.c.l.b16 %v1424
        %v1524 = vunpack.c.h.b16 %v1424
        %v1525 = vunpack.c.l.b16 %v1425
        %v1526 = vunpack.c.h.b16 %v1425
        %v1527 = vunpack.c.l.b16 %v1426
        %v1528 = vunpack.c.h.b16 %v1426
        %v1529 = vunpack.c.l.b16 %v1427
        %v1530 = vunpack.c.h.b16 %v1427
        %v1531 = vunpack.c.l.b16 %v1428
        %v1532 = vunpack.c.h.b16 %v1428
        %v1533 = vunpack.c.l.b16 %v1429
        %v1534 = vunpack.c.h.b16 %v1429
        %v1535 = vunpack.c.l.b16 %v1430
        %v1536 = vunpack.c.h.b16 %v1430
        %v1537 = vunpack.c.l.b16 %v1431
        %v1538 = vunpack.c.h.b16 %v1431
        %v1539 = vunpack.c.l.b16 %v1432
        %v1540 = vunpack.c.h.b16 %v1432
        %v1541 = vpack.c.b16 %v1479, %v1477
        %v1542 = vpack.c.b16 %v1480, %v1478
        %v1543 = vpack.c.b16 %v1483, %v1481
        %v1544 = vpack.c.b16 %v1484, %v1482
        %v1545 = vpack.c.b16 %v1487, %v1485
        %v1546 = vpack.c.b16 %v1488, %v1486
        %v1547 = vpack.c.b16 %v1491, %v1489
        %v1548 = vpack.c.b16 %v1492, %v1490
        %v1549 = vpack.c.b16 %v1495, %v1493
        %v1550 = vpack.c.b16 %v1496, %v1494
        %v1551 = vpack.c.b16 %v1499, %v1497
        %v1552 = vpack.c.b16 %v1500, %v1498
        %v1553 = vpack.c.b16 %v1503, %v1501
        %v1554 = vpack.c.b16 %v1504, %v1502
        %v1555 = vpack.c.b16 %v1507, %v1505
        %v1556 = vpack.c.b16 %v1508, %v1506
        %v1557 = vpack.c.b16 %v1511, %v1509
        %v1558 = vpack.c.b16 %v1512, %v1510
        %v1559 = vpack.c.b16 %v1515, %v1513
        %v1560 = vpack.c.b16 %v1516, %v1514
        %v1561 = vpack.c.b16 %v1519, %v1517
        %v1562 = vpack.c.b16 %v1520, %v1518
        %v1563 = vpack.c.b16 %v1523, %v1521
        %v1564 = vpack.c.b16 %v1524, %v1522
        %v1565 = vpack.c.b16 %v1527, %v1525
        %v1566 = vpack.c.b16 %v1528, %v1526
        %v1567 = vpack.c.b16 %v1531, %v1529
        %v1568 = vpack.c.b16 %v1532, %v1530
        %v1569 = vpack.c.b16 %v1535, %v1533
        %v1570 = vpack.c.b16 %v1536, %v1534
        %v1571 = vpack.c.b16 %v1539, %v1537
        %v1572 = vpack.c.b16 %v1540, %v1538
        %1605 = vmatprep.subr.bf16.mxu0 %v1542
        %1606 = vmatpush1.bf16.msra.mxu0 %v1541
        %1607 = vmatprep.subr.bf16.mxu0 %v1544
        %1608 = vmatpush1.bf16.msra.mxu0 %v1543
        %1609 = vmatprep.subr.bf16.mxu0 %v1546
        %1610 = vmatpush1.bf16.msra.mxu0 %v1545
        %1611 = vmatprep.subr.bf16.mxu0 %v1548
        %1612 = vmatpush1.bf16.msra.mxu0 %v1547
        %1613 = vmatprep.subr.bf16.mxu0 %v1550
        %1614 = vmatpush1.bf16.msra.mxu0 %v1549
        %1615 = vmatprep.subr.bf16.mxu0 %v1552
        %1616 = vmatpush1.bf16.msra.mxu0 %v1551
        %1617 = vmatprep.subr.bf16.mxu0 %v1554
        %1618 = vmatpush1.bf16.msra.mxu0 %v1553
        %1619 = vmatprep.subr.bf16.mxu0 %v1556
        %1620 = vmatpush1.bf16.msra.mxu0 %v1555
        %1621 = vmatprep.subr.bf16.mxu0 %v1558
        %1622 = vmatpush1.bf16.msra.mxu0 %v1557
        %1623 = vmatprep.subr.bf16.mxu0 %v1560
        %1624 = vmatpush1.bf16.msra.mxu0 %v1559
        %1625 = vmatprep.subr.bf16.mxu0 %v1562
        %1626 = vmatpush1.bf16.msra.mxu0 %v1561
        %1627 = vmatprep.subr.bf16.mxu0 %v1564
        %1628 = vmatpush1.bf16.msra.mxu0 %v1563
        %1629 = vmatprep.subr.bf16.mxu0 %v1566
        %1630 = vmatpush1.bf16.msra.mxu0 %v1565
        %1631 = vmatprep.subr.bf16.mxu0 %v1568
        %1632 = vmatpush1.bf16.msra.mxu0 %v1567
        %1633 = vmatprep.subr.bf16.mxu0 %v1570
        %1634 = vmatpush1.bf16.msra.mxu0 %v1569
        %1635 = vmatprep.subr.bf16.mxu0 %v1572
        %1636 = vmatpush1.bf16.msra.mxu0 %v1571
        %1637 = vmatprep.mubr.bf16.mxu0 %v1397
        %1638 = vmatmul.mubr.bf16.gmra.mrb[0].mxu0 %v1396
        %v1639 = vpop.f32.mrb[0].mxu0
        %v1640 = vadd.f32 %v1438, %v1639
        %v1641 = vpop.f32.mrb[0].mxu0
        %v1642 = vadd.f32 %v1442, %v1641
        %v1643 = vpop.f32.mrb[0].mxu0
        %v1644 = vadd.f32 %v1438, %v1643
        %v1645 = vpop.f32.mrb[0].mxu0
        %v1646 = vadd.f32 %v1442, %v1645
        %1647 = vdwg.mxu0
        %v1648 = vmax.f32 %v1640, 0.0
        %v1649 = vmax.f32 %v1642, 0.0
        %v1650 = vmax.f32 %v1644, 0.0
        %v1651 = vmax.f32 %v1646, 0.0
        %v1652 = vpack.c.bf16 %v1650, %v1648
        %v1653 = vpack.c.bf16 %v1651, %v1649
        %v1654 = vld [vmem:[%s11] sm:$0xf]
        %v1655 = vld [vmem:[%s11 + $0x4] sm:$0xf]
        %v1656 = vld [vmem:[%s11 + $0x8] sm:$0xf]
        %v1657 = vld [vmem:[%s11 + $0xc] sm:$0xf]
        %v1658 = vld [vmem:[%s11 + $0x10] sm:$0xf]
        %v1659 = vld [vmem:[%s11 + $0x14] sm:$0xf]
        %v1660 = vld [vmem:[%s11 + $0x18] sm:$0xf]
        %v1661 = vld [vmem:[%s11 + $0x1c] sm:$0xf]
        %v1662 = vld [vmem:[%s11 + $0x20] sm:$0xf]
        %v1663 = vld [vmem:[%s11 + $0x24] sm:$0xf]
        %v1664 = vld [vmem:[%s11 + $0x28] sm:$0xf]
        %v1665 = vld [vmem:[%s11 + $0x2c] sm:$0xf]
        %v1666 = vld [vmem:[%s11 + $0x30] sm:$0xf]
        %v1667 = vld [vmem:[%s11 + $0x34] sm:$0xf]
        %v1668 = vld [vmem:[%s11 + $0x38] sm:$0xf]
        %v1669 = vld [vmem:[%s11 + $0x3c] sm:$0xf]
        %v1670 = vld [vmem:[%s11 + $0x40] sm:$0xf]
        %v1671 = vld [vmem:[%s11 + $0x44] sm:$0xf]
        %v1672 = vld [vmem:[%s11 + $0x48] sm:$0xf]
        %v1673 = vld [vmem:[%s11 + $0x4c] sm:$0xf]
        %v1674 = vld [vmem:[%s11 + $0x50] sm:$0xf]
        %v1675 = vld [vmem:[%s11 + $0x54] sm:$0xf]
        %v1676 = vld [vmem:[%s11 + $0x58] sm:$0xf]
        %v1677 = vld [vmem:[%s11 + $0x5c] sm:$0xf]
        %v1678 = vld [vmem:[%s11 + $0x60] sm:$0xf]
        %v1679 = vld [vmem:[%s11 + $0x64] sm:$0xf]
        %v1680 = vld [vmem:[%s11 + $0x68] sm:$0xf]
        %v1681 = vld [vmem:[%s11 + $0x6c] sm:$0xf]
        %v1682 = vld [vmem:[%s11 + $0x70] sm:$0xf]
        %v1683 = vld [vmem:[%s11 + $0x74] sm:$0xf]
        %v1684 = vld [vmem:[%s11 + $0x78] sm:$0xf]
        %v1685 = vld [vmem:[%s11 + $0x7c] sm:$0xf]
        %v1686 = vld [vmem:[#allocation7] sm:$0x1]
        %v1688 = vlaneseq
        %v1689 = vshrl.u32 %v1688, 7
        %v1690 = vsub.s32 0, %v1689
        %v1691 = vrot.slane %v1686, %v1690
        %v1725 = vunpack.c.l.b16 %v1654
        %v1726 = vunpack.c.l.b16 %v1655
        %v1727 = vunpack.c.l.b16 %v1656
        %v1728 = vunpack.c.l.b16 %v1657
        %v1729 = vunpack.c.l.b16 %v1658
        %v1730 = vunpack.c.l.b16 %v1659
        %v1731 = vunpack.c.l.b16 %v1660
        %v1732 = vunpack.c.l.b16 %v1661
        %v1733 = vunpack.c.l.b16 %v1662
        %v1734 = vunpack.c.l.b16 %v1663
        %v1735 = vunpack.c.l.b16 %v1664
        %v1736 = vunpack.c.l.b16 %v1665
        %v1737 = vunpack.c.l.b16 %v1666
        %v1738 = vunpack.c.l.b16 %v1667
        %v1739 = vunpack.c.l.b16 %v1668
        %v1740 = vunpack.c.l.b16 %v1669
        %v1741 = vunpack.c.l.b16 %v1670
        %v1742 = vunpack.c.l.b16 %v1671
        %v1743 = vunpack.c.l.b16 %v1672
        %v1744 = vunpack.c.l.b16 %v1673
        %v1745 = vunpack.c.l.b16 %v1674
        %v1746 = vunpack.c.l.b16 %v1675
        %v1747 = vunpack.c.l.b16 %v1676
        %v1748 = vunpack.c.l.b16 %v1677
        %v1749 = vunpack.c.l.b16 %v1678
        %v1750 = vunpack.c.l.b16 %v1679
        %v1751 = vunpack.c.l.b16 %v1680
        %v1752 = vunpack.c.l.b16 %v1681
        %v1753 = vunpack.c.l.b16 %v1682
        %v1754 = vunpack.c.l.b16 %v1683
        %v1755 = vunpack.c.l.b16 %v1684
        %v1756 = vunpack.c.l.b16 %v1685
        %v1757 = vpack.c.b16 %v1726, %v1725
        %v1758 = vpack.c.b16 %v1728, %v1727
        %v1759 = vpack.c.b16 %v1730, %v1729
        %v1760 = vpack.c.b16 %v1732, %v1731
        %v1761 = vpack.c.b16 %v1734, %v1733
        %v1762 = vpack.c.b16 %v1736, %v1735
        %v1763 = vpack.c.b16 %v1738, %v1737
        %v1764 = vpack.c.b16 %v1740, %v1739
        %v1765 = vpack.c.b16 %v1742, %v1741
        %v1766 = vpack.c.b16 %v1744, %v1743
        %v1767 = vpack.c.b16 %v1746, %v1745
        %v1768 = vpack.c.b16 %v1748, %v1747
        %v1769 = vpack.c.b16 %v1750, %v1749
        %v1770 = vpack.c.b16 %v1752, %v1751
        %v1771 = vpack.c.b16 %v1754, %v1753
        %v1772 = vpack.c.b16 %v1756, %v1755
        %1789 = vmatprep.subr.bf16.mxu0 0
        %1790 = vmatpush1.bf16.msra.mxu0 %v1757
        %1791 = vmatprep.subr.bf16.mxu0 0
        %1792 = vmatpush1.bf16.msra.mxu0 %v1758
        %1793 = vmatprep.subr.bf16.mxu0 0
        %1794 = vmatpush1.bf16.msra.mxu0 %v1759
        %1795 = vmatprep.subr.bf16.mxu0 0
        %1796 = vmatpush1.bf16.msra.mxu0 %v1760
        %1797 = vmatprep.subr.bf16.mxu0 0
        %1798 = vmatpush1.bf16.msra.mxu0 %v1761
        %1799 = vmatprep.subr.bf16.mxu0 0
        %1800 = vmatpush1.bf16.msra.mxu0 %v1762
        %1801 = vmatprep.subr.bf16.mxu0 0
        %1802 = vmatpush1.bf16.msra.mxu0 %v1763
        %1803 = vmatprep.subr.bf16.mxu0 0
        %1804 = vmatpush1.bf16.msra.mxu0 %v1764
        %1805 = vmatprep.subr.bf16.mxu0 0
        %1806 = vmatpush1.bf16.msra.mxu0 %v1765
        %1807 = vmatprep.subr.bf16.mxu0 0
        %1808 = vmatpush1.bf16.msra.mxu0 %v1766
        %1809 = vmatprep.subr.bf16.mxu0 0
        %1810 = vmatpush1.bf16.msra.mxu0 %v1767
        %1811 = vmatprep.subr.bf16.mxu0 0
        %1812 = vmatpush1.bf16.msra.mxu0 %v1768
        %1813 = vmatprep.subr.bf16.mxu0 0
        %1814 = vmatpush1.bf16.msra.mxu0 %v1769
        %1815 = vmatprep.subr.bf16.mxu0 0
        %1816 = vmatpush1.bf16.msra.mxu0 %v1770
        %1817 = vmatprep.subr.bf16.mxu0 0
        %1818 = vmatpush1.bf16.msra.mxu0 %v1771
        %1819 = vmatprep.subr.bf16.mxu0 0
        %1820 = vmatpush1.bf16.msra.mxu0 %v1772
        %1821 = vmatprep.mubr.bf16.mxu0 %v1653
        %1822 = vmatmul.mubr.bf16.gmra.mrb[0].mxu0 %v1652
        %v1823 = vpop.f32.mrb[0].mxu0
        %v1824 = vadd.f32 %v1691, %v1823
        %v1825 = vpop.f32.mrb[0].mxu0
        %v1826 = vpop.f32.mrb[0].mxu0
        %v1827 = vadd.f32 %v1691, %v1826
        %v1828 = vpop.f32.mrb[0].mxu0
        %1829 = vdwg.mxu0
        %v1830 = vmax.f32 %v1824, 0.0
        %v1831 = vmax.f32 %v1827, 0.0
        %v1832 = vpack.c.bf16 %v1831, %v1830
        %v1833 = vld [vmem:[#allocation8] sm:$0xf]
        %v1834 = vld [vmem:[#allocation8 + $0x4] sm:$0xf]
        %v1835 = vld [vmem:[#allocation8 + $0x8] sm:$0xf]
        %v1836 = vld [vmem:[#allocation8 + $0xc] sm:$0xf]
        %v1837 = vld [vmem:[#allocation8 + $0x10] sm:$0xf]
        %v1838 = vld [vmem:[#allocation8 + $0x14] sm:$0xf]
        %v1839 = vld [vmem:[#allocation8 + $0x18] sm:$0xf]
        %v1840 = vld [vmem:[#allocation8 + $0x1c] sm:$0xf]
        %v1841 = vld [vmem:[#allocation10] sm:$0x1]
        %v1843 = vlaneseq
        %v1844 = vshrl.u32 %v1843, 7
        %v1845 = vsub.s32 0, %v1844
        %v1846 = vrot.slane %v1841, %v1845
        %v1856 = vunpack.c.l.b16 %v1833
        %v1857 = vunpack.c.l.b16 %v1834
        %v1858 = vunpack.c.l.b16 %v1835
        %v1859 = vunpack.c.l.b16 %v1836
        %v1860 = vunpack.c.l.b16 %v1837
        %v1861 = vunpack.c.l.b16 %v1838
        %v1862 = vunpack.c.l.b16 %v1839
        %v1863 = vunpack.c.l.b16 %v1840
        %v1864 = vpack.c.b16 %v1857, %v1856
        %v1865 = vpack.c.b16 %v1859, %v1858
        %v1866 = vpack.c.b16 %v1861, %v1860
        %v1867 = vpack.c.b16 %v1863, %v1862
        %vm1872 = vcmask 523264
        %v1874 = vsel %vm1872, %v1832, 0
        %1876 = vmatprep.subr.bf16.mxu0 0
        %1877 = vmatpush1.bf16.msra.mxu0 %v1864
        %1878 = vmatprep.subr.bf16.mxu0 0
        %1879 = vmatpush1.bf16.msra.mxu0 %v1865
        %1880 = vmatprep.subr.bf16.mxu0 0
        %1881 = vmatpush1.bf16.msra.mxu0 %v1866
        %1882 = vmatprep.subr.bf16.mxu0 0
        %1883 = vmatpush1.bf16.msra.mxu0 %v1867
        %1884 = vmatprep.subr.bf16.mxu0 0
        %1885 = vmatpush1.bf16.msra.mxu0 0
        %1886 = vmatprep.subr.bf16.mxu0 0
        %1887 = vmatpush1.bf16.msra.mxu0 0
        %1888 = vmatprep.subr.bf16.mxu0 0
        %1889 = vmatpush1.bf16.msra.mxu0 0
        %1890 = vmatprep.subr.bf16.mxu0 0
        %1891 = vmatpush1.bf16.msra.mxu0 0
        %1892 = vmatprep.subr.bf16.mxu0 0
        %1893 = vmatpush1.bf16.msra.mxu0 0
        %1894 = vmatprep.subr.bf16.mxu0 0
        %1895 = vmatpush1.bf16.msra.mxu0 0
        %1896 = vmatprep.subr.bf16.mxu0 0
        %1897 = vmatpush1.bf16.msra.mxu0 0
        %1898 = vmatprep.subr.bf16.mxu0 0
        %1899 = vmatpush1.bf16.msra.mxu0 0
        %1900 = vmatprep.subr.bf16.mxu0 0
        %1901 = vmatpush1.bf16.msra.mxu0 0
        %1902 = vmatprep.subr.bf16.mxu0 0
        %1903 = vmatpush1.bf16.msra.mxu0 0
        %1904 = vmatprep.subr.bf16.mxu0 0
        %1905 = vmatpush1.bf16.msra.mxu0 0
        %1906 = vmatprep.subr.bf16.mxu0 0
        %1907 = vmatpush1.bf16.msra.mxu0 0
        %1908 = vmatprep.mubr.bf16.mxu0 0
        %1909 = vmatmul.mubr.bf16.gmra.mrb[0].mxu0 %v1874
        %v1910 = vpop.f32.mrb[0].mxu0
        %v1911 = vadd.f32 %v1846, %v1910
        %v1912 = vpop.f32.mrb[0].mxu0
        %v1913 = vpop.f32.mrb[0].mxu0
        %v1914 = vadd.f32 %v1846, %v1913
        %v1915 = vpop.f32.mrb[0].mxu0
        %1916 = vdwg.mxu0
        %v1917 = vpack.c.bf16 %v1914, %v1911
        %v1918 = vld [vmem:[#allocation11] sm:$0xf]
        %v1919 = vld [vmem:[#allocation11 + $0x4] sm:$0xf]
        %v1920 = vld [vmem:[#allocation11 + $0x8] sm:$0xf]
        %v1921 = vld [vmem:[#allocation11 + $0xc] sm:$0xf]
        %v1922 = vld [vmem:[#allocation11 + $0x10] sm:$0xf]
        %v1923 = vld [vmem:[#allocation11 + $0x14] sm:$0xf]
        %v1924 = vld [vmem:[#allocation11 + $0x18] sm:$0xf]
        %v1925 = vld [vmem:[#allocation11 + $0x1c] sm:$0xf]
        %v1926 = vld [vmem:[#allocation13] sm:$0x1]
        %v1928 = vlaneseq
        %v1929 = vshrl.u32 %v1928, 7
        %v1930 = vsub.s32 0, %v1929
        %v1931 = vrot.slane %v1926, %v1930
        %v1941 = vunpack.c.l.b16 %v1918
        %v1942 = vunpack.c.l.b16 %v1919
        %v1943 = vunpack.c.l.b16 %v1920
        %v1944 = vunpack.c.l.b16 %v1921
        %v1945 = vunpack.c.l.b16 %v1922
        %v1946 = vunpack.c.l.b16 %v1923
        %v1947 = vunpack.c.l.b16 %v1924
        %v1948 = vunpack.c.l.b16 %v1925
        %v1949 = vpack.c.b16 %v1942, %v1941
        %v1950 = vpack.c.b16 %v1944, %v1943
        %v1951 = vpack.c.b16 %v1946, %v1945
        %v1952 = vpack.c.b16 %v1948, %v1947
        %v1958 = vsel %vm1872, %v1917, 0
        %1960 = vmatprep.subr.bf16.mxu0 0
        %1961 = vmatpush1.bf16.msra.mxu0 %v1949
        %1962 = vmatprep.subr.bf16.mxu0 0
        %1963 = vmatpush1.bf16.msra.mxu0 %v1950
        %1964 = vmatprep.subr.bf16.mxu0 0
        %1965 = vmatpush1.bf16.msra.mxu0 %v1951
        %1966 = vmatprep.subr.bf16.mxu0 0
        %1967 = vmatpush1.bf16.msra.mxu0 %v1952
        %1968 = vmatprep.subr.bf16.mxu0 0
        %1969 = vmatpush1.bf16.msra.mxu0 0
        %1970 = vmatprep.subr.bf16.mxu0 0
        %1971 = vmatpush1.bf16.msra.mxu0 0
        %1972 = vmatprep.subr.bf16.mxu0 0
        %1973 = vmatpush1.bf16.msra.mxu0 0
        %1974 = vmatprep.subr.bf16.mxu0 0
        %1975 = vmatpush1.bf16.msra.mxu0 0
        %1976 = vmatprep.subr.bf16.mxu0 0
        %1977 = vmatpush1.bf16.msra.mxu0 0
        %1978 = vmatprep.subr.bf16.mxu0 0
        %1979 = vmatpush1.bf16.msra.mxu0 0
        %1980 = vmatprep.subr.bf16.mxu0 0
        %1981 = vmatpush1.bf16.msra.mxu0 0
        %1982 = vmatprep.subr.bf16.mxu0 0
        %1983 = vmatpush1.bf16.msra.mxu0 0
        %1984 = vmatprep.subr.bf16.mxu0 0
        %1985 = vmatpush1.bf16.msra.mxu0 0
        %1986 = vmatprep.subr.bf16.mxu0 0
        %1987 = vmatpush1.bf16.msra.mxu0 0
        %1988 = vmatprep.subr.bf16.mxu0 0
        %1989 = vmatpush1.bf16.msra.mxu0 0
        %1990 = vmatprep.subr.bf16.mxu0 0
        %1991 = vmatpush1.bf16.msra.mxu0 0
        %1992 = vmatprep.mubr.bf16.mxu0 0
        %1993 = vmatmul.mubr.bf16.gmra.mrb[0].mxu0 %v1958
        %v1994 = vpop.f32.mrb[0].mxu0
        %v1995 = vadd.f32 %v1931, %v1994
        %v1996 = vpop.f32.mrb[0].mxu0
        %v1997 = vpop.f32.mrb[0].mxu0
        %v1998 = vadd.f32 %v1931, %v1997
        %v1999 = vpop.f32.mrb[0].mxu0
        %2000 = vdwg.mxu0
        %v2001 = vmax.f32 %v1995, 0.0
        %v2002 = vmax.f32 %v1998, 0.0
        %v2003 = vpack.c.bf16 %v2002, %v2001
        %v2004 = vld [vmem:[#allocation14] sm:$0xff]
        %v2005 = vld [vmem:[#allocation14 + $0x8] sm:$0xff]
        %v2006 = vld [vmem:[#allocation14 + $0x10] sm:$0xff]
        %v2007 = vld [vmem:[#allocation14 + $0x18] sm:$0xff]
        %v2008 = vld [vmem:[#allocation14 + $0x20] sm:$0xff]
        %v2009 = vld [vmem:[#allocation14 + $0x28] sm:$0xff]
        %v2010 = vld [vmem:[#allocation14 + $0x30] sm:$0xff]
        %v2011 = vld [vmem:[#allocation14 + $0x38] sm:$0xff]
        %v2012 = vld [vmem:[#allocation16] sm:$0x3]
        %v2014 = vlaneseq
        %v2015 = vshrl.u32 %v2014, 7
        %v2016 = vsub.s32 0, %v2015
        %v2017 = vrot.slane %v2012, %v2016
        %v2018 = vlaneseq
        %v2019 = vshrl.u32 %v2018, 7
        %v2020 = vsub.s32 1, %v2019
        %v2021 = vrot.slane %v2012, %v2020
        %v2032 = vunpack.c.l.b16 %v2004
        %v2033 = vunpack.c.h.b16 %v2004
        %v2034 = vunpack.c.l.b16 %v2005
        %v2035 = vunpack.c.h.b16 %v2005
        %v2036 = vunpack.c.l.b16 %v2006
        %v2037 = vunpack.c.h.b16 %v2006
        %v2038 = vunpack.c.l.b16 %v2007
        %v2039 = vunpack.c.h.b16 %v2007
        %v2040 = vunpack.c.l.b16 %v2008
        %v2041 = vunpack.c.h.b16 %v2008
        %v2042 = vunpack.c.l.b16 %v2009
        %v2043 = vunpack.c.h.b16 %v2009
        %v2044 = vunpack.c.l.b16 %v2010
        %v2045 = vunpack.c.h.b16 %v2010
        %v2046 = vunpack.c.l.b16 %v2011
        %v2047 = vunpack.c.h.b16 %v2011
        %v2048 = vpack.c.b16 %v2034, %v2032
        %v2049 = vpack.c.b16 %v2035, %v2033
        %v2050 = vpack.c.b16 %v2038, %v2036
        %v2051 = vpack.c.b16 %v2039, %v2037
        %v2052 = vpack.c.b16 %v2042, %v2040
        %v2053 = vpack.c.b16 %v2043, %v2041
        %v2054 = vpack.c.b16 %v2046, %v2044
        %v2055 = vpack.c.b16 %v2047, %v2045
        %v2065 = vsel %vm1872, %v2003, 0
        %2067 = vmatprep.subr.bf16.mxu0 %v2049
        %2068 = vmatpush1.bf16.msra.mxu0 %v2048
        %2069 = vmatprep.subr.bf16.mxu0 %v2051
        %2070 = vmatpush1.bf16.msra.mxu0 %v2050
        %2071 = vmatprep.subr.bf16.mxu0 %v2053
        %2072 = vmatpush1.bf16.msra.mxu0 %v2052
        %2073 = vmatprep.subr.bf16.mxu0 %v2055
        %2074 = vmatpush1.bf16.msra.mxu0 %v2054
        %2075 = vmatprep.subr.bf16.mxu0 0
        %2076 = vmatpush1.bf16.msra.mxu0 0
        %2077 = vmatprep.subr.bf16.mxu0 0
        %2078 = vmatpush1.bf16.msra.mxu0 0
        %2079 = vmatprep.subr.bf16.mxu0 0
        %2080 = vmatpush1.bf16.msra.mxu0 0
        %2081 = vmatprep.subr.bf16.mxu0 0
        %2082 = vmatpush1.bf16.msra.mxu0 0
        %2083 = vmatprep.subr.bf16.mxu0 0
        %2084 = vmatpush1.bf16.msra.mxu0 0
        %2085 = vmatprep.subr.bf16.mxu0 0
        %2086 = vmatpush1.bf16.msra.mxu0 0
        %2087 = vmatprep.subr.bf16.mxu0 0
        %2088 = vmatpush1.bf16.msra.mxu0 0
        %2089 = vmatprep.subr.bf16.mxu0 0
        %2090 = vmatpush1.bf16.msra.mxu0 0
        %2091 = vmatprep.subr.bf16.mxu0 0
        %2092 = vmatpush1.bf16.msra.mxu0 0
        %2093 = vmatprep.subr.bf16.mxu0 0
        %2094 = vmatpush1.bf16.msra.mxu0 0
        %2095 = vmatprep.subr.bf16.mxu0 0
        %2096 = vmatpush1.bf16.msra.mxu0 0
        %2097 = vmatprep.subr.bf16.mxu0 0
        %2098 = vmatpush1.bf16.msra.mxu0 0
        %2099 = vmatprep.mubr.bf16.mxu0 0
        %2100 = vmatmul.mubr.bf16.gmra.mrb[0].mxu0 %v2065
        %v2101 = vpop.f32.mrb[0].mxu0
        %v2102 = vadd.f32 %v2017, %v2101
        %v2103 = vpop.f32.mrb[0].mxu0
        %v2104 = vadd.f32 %v2021, %v2103
        %v2105 = vpop.f32.mrb[0].mxu0
        %v2106 = vadd.f32 %v2017, %v2105
        %v2107 = vpop.f32.mrb[0].mxu0
        %v2108 = vadd.f32 %v2021, %v2107
        %2109 = vdwg.mxu0
        %v2110 = vmax.f32 %v2102, 0.0
        %v2111 = vmax.f32 %v2104, 0.0
        %v2112 = vmax.f32 %v2106, 0.0
        %v2113 = vmax.f32 %v2108, 0.0
        %v2114 = vpack.c.bf16 %v2112, %v2110
        %v2115 = vpack.c.bf16 %v2113, %v2111
        %v2116 = vld [vmem:[#allocation17] sm:$0xff]
        %v2117 = vld [vmem:[#allocation17 + $0x8] sm:$0xff]
        %v2118 = vld [vmem:[#allocation17 + $0x10] sm:$0xff]
        %v2119 = vld [vmem:[#allocation17 + $0x18] sm:$0xff]
        %v2120 = vld [vmem:[#allocation17 + $0x20] sm:$0xff]
        %v2121 = vld [vmem:[#allocation17 + $0x28] sm:$0xff]
        %v2122 = vld [vmem:[#allocation17 + $0x30] sm:$0xff]
        %v2123 = vld [vmem:[#allocation17 + $0x38] sm:$0xff]
        %v2124 = vld [vmem:[#allocation17 + $0x40] sm:$0xff]
        %v2125 = vld [vmem:[#allocation17 + $0x48] sm:$0xff]
        %v2126 = vld [vmem:[#allocation17 + $0x50] sm:$0xff]
        %v2127 = vld [vmem:[#allocation17 + $0x58] sm:$0xff]
        %v2128 = vld [vmem:[#allocation17 + $0x60] sm:$0xff]
        %v2129 = vld [vmem:[#allocation17 + $0x68] sm:$0xff]
        %v2130 = vld [vmem:[#allocation17 + $0x70] sm:$0xff]
        %v2131 = vld [vmem:[#allocation17 + $0x78] sm:$0xff]
        %v2132 = vld [vmem:[#allocation17 + $0x80] sm:$0xff]
        %v2133 = vld [vmem:[#allocation17 + $0x88] sm:$0xff]
        %v2134 = vld [vmem:[#allocation17 + $0x90] sm:$0xff]
        %v2135 = vld [vmem:[#allocation17 + $0x98] sm:$0xff]
        %v2136 = vld [vmem:[#allocation17 + $0xa0] sm:$0xff]
        %v2137 = vld [vmem:[#allocation17 + $0xa8] sm:$0xff]
        %v2138 = vld [vmem:[#allocation17 + $0xb0] sm:$0xff]
        %v2139 = vld [vmem:[#allocation17 + $0xb8] sm:$0xff]
        %v2140 = vld [vmem:[#allocation17 + $0xc0] sm:$0xff]
        %v2141 = vld [vmem:[#allocation17 + $0xc8] sm:$0xff]
        %v2142 = vld [vmem:[#allocation17 + $0xd0] sm:$0xff]
        %v2143 = vld [vmem:[#allocation17 + $0xd8] sm:$0xff]
        %v2144 = vld [vmem:[#allocation17 + $0xe0] sm:$0xff]
        %v2145 = vld [vmem:[#allocation17 + $0xe8] sm:$0xff]
        %v2146 = vld [vmem:[#allocation17 + $0xf0] sm:$0xff]
        %v2147 = vld [vmem:[#allocation17 + $0xf8] sm:$0xff]
        %v2148 = vld [vmem:[#allocation19] sm:$0x3]
        %v2150 = vlaneseq
        %v2151 = vshrl.u32 %v2150, 7
        %v2152 = vsub.s32 0, %v2151
        %v2153 = vrot.slane %v2148, %v2152
        %v2154 = vlaneseq
        %v2155 = vshrl.u32 %v2154, 7
        %v2156 = vsub.s32 1, %v2155
        %v2157 = vrot.slane %v2148, %v2156
        %v2192 = vunpack.c.l.b16 %v2116
        %v2193 = vunpack.c.h.b16 %v2116
        %v2194 = vunpack.c.l.b16 %v2117
        %v2195 = vunpack.c.h.b16 %v2117
        %v2196 = vunpack.c.l.b16 %v2118
        %v2197 = vunpack.c.h.b16 %v2118
        %v2198 = vunpack.c.l.b16 %v2119
        %v2199 = vunpack.c.h.b16 %v2119
        %v2200 = vunpack.c.l.b16 %v2120
        %v2201 = vunpack.c.h.b16 %v2120
        %v2202 = vunpack.c.l.b16 %v2121
        %v2203 = vunpack.c.h.b16 %v2121
        %v2204 = vunpack.c.l.b16 %v2122
        %v2205 = vunpack.c.h.b16 %v2122
        %v2206 = vunpack.c.l.b16 %v2123
        %v2207 = vunpack.c.h.b16 %v2123
        %v2208 = vunpack.c.l.b16 %v2124
        %v2209 = vunpack.c.h.b16 %v2124
        %v2210 = vunpack.c.l.b16 %v2125
        %v2211 = vunpack.c.h.b16 %v2125
        %v2212 = vunpack.c.l.b16 %v2126
        %v2213 = vunpack.c.h.b16 %v2126
        %v2214 = vunpack.c.l.b16 %v2127
        %v2215 = vunpack.c.h.b16 %v2127
        %v2216 = vunpack.c.l.b16 %v2128
        %v2217 = vunpack.c.h.b16 %v2128
        %v2218 = vunpack.c.l.b16 %v2129
        %v2219 = vunpack.c.h.b16 %v2129
        %v2220 = vunpack.c.l.b16 %v2130
        %v2221 = vunpack.c.h.b16 %v2130
        %v2222 = vunpack.c.l.b16 %v2131
        %v2223 = vunpack.c.h.b16 %v2131
        %v2224 = vunpack.c.l.b16 %v2132
        %v2225 = vunpack.c.h.b16 %v2132
        %v2226 = vunpack.c.l.b16 %v2133
        %v2227 = vunpack.c.h.b16 %v2133
        %v2228 = vunpack.c.l.b16 %v2134
        %v2229 = vunpack.c.h.b16 %v2134
        %v2230 = vunpack.c.l.b16 %v2135
        %v2231 = vunpack.c.h.b16 %v2135
        %v2232 = vunpack.c.l.b16 %v2136
        %v2233 = vunpack.c.h.b16 %v2136
        %v2234 = vunpack.c.l.b16 %v2137
        %v2235 = vunpack.c.h.b16 %v2137
        %v2236 = vunpack.c.l.b16 %v2138
        %v2237 = vunpack.c.h.b16 %v2138
        %v2238 = vunpack.c.l.b16 %v2139
        %v2239 = vunpack.c.h.b16 %v2139
        %v2240 = vunpack.c.l.b16 %v2140
        %v2241 = vunpack.c.h.b16 %v2140
        %v2242 = vunpack.c.l.b16 %v2141
        %v2243 = vunpack.c.h.b16 %v2141
        %v2244 = vunpack.c.l.b16 %v2142
        %v2245 = vunpack.c.h.b16 %v2142
        %v2246 = vunpack.c.l.b16 %v2143
        %v2247 = vunpack.c.h.b16 %v2143
        %v2248 = vunpack.c.l.b16 %v2144
        %v2249 = vunpack.c.h.b16 %v2144
        %v2250 = vunpack.c.l.b16 %v2145
        %v2251 = vunpack.c.h.b16 %v2145
        %v2252 = vunpack.c.l.b16 %v2146
        %v2253 = vunpack.c.h.b16 %v2146
        %v2254 = vunpack.c.l.b16 %v2147
        %v2255 = vunpack.c.h.b16 %v2147
        %v2256 = vpack.c.b16 %v2194, %v2192
        %v2257 = vpack.c.b16 %v2195, %v2193
        %v2258 = vpack.c.b16 %v2198, %v2196
        %v2259 = vpack.c.b16 %v2199, %v2197
        %v2260 = vpack.c.b16 %v2202, %v2200
        %v2261 = vpack.c.b16 %v2203, %v2201
        %v2262 = vpack.c.b16 %v2206, %v2204
        %v2263 = vpack.c.b16 %v2207, %v2205
        %v2264 = vpack.c.b16 %v2210, %v2208
        %v2265 = vpack.c.b16 %v2211, %v2209
        %v2266 = vpack.c.b16 %v2214, %v2212
        %v2267 = vpack.c.b16 %v2215, %v2213
        %v2268 = vpack.c.b16 %v2218, %v2216
        %v2269 = vpack.c.b16 %v2219, %v2217
        %v2270 = vpack.c.b16 %v2222, %v2220
        %v2271 = vpack.c.b16 %v2223, %v2221
        %v2272 = vpack.c.b16 %v2226, %v2224
        %v2273 = vpack.c.b16 %v2227, %v2225
        %v2274 = vpack.c.b16 %v2230, %v2228
        %v2275 = vpack.c.b16 %v2231, %v2229
        %v2276 = vpack.c.b16 %v2234, %v2232
        %v2277 = vpack.c.b16 %v2235, %v2233
        %v2278 = vpack.c.b16 %v2238, %v2236
        %v2279 = vpack.c.b16 %v2239, %v2237
        %v2280 = vpack.c.b16 %v2242, %v2240
        %v2281 = vpack.c.b16 %v2243, %v2241
        %v2282 = vpack.c.b16 %v2246, %v2244
        %v2283 = vpack.c.b16 %v2247, %v2245
        %v2284 = vpack.c.b16 %v2250, %v2248
        %v2285 = vpack.c.b16 %v2251, %v2249
        %v2286 = vpack.c.b16 %v2254, %v2252
        %v2287 = vpack.c.b16 %v2255, %v2253
        %2320 = vmatprep.subr.bf16.mxu0 %v2257
        %2321 = vmatpush1.bf16.msra.mxu0 %v2256
        %2322 = vmatprep.subr.bf16.mxu0 %v2259
        %2323 = vmatpush1.bf16.msra.mxu0 %v2258
        %2324 = vmatprep.subr.bf16.mxu0 %v2261
        %2325 = vmatpush1.bf16.msra.mxu0 %v2260
        %2326 = vmatprep.subr.bf16.mxu0 %v2263
        %2327 = vmatpush1.bf16.msra.mxu0 %v2262
        %2328 = vmatprep.subr.bf16.mxu0 %v2265
        %2329 = vmatpush1.bf16.msra.mxu0 %v2264
        %2330 = vmatprep.subr.bf16.mxu0 %v2267
        %2331 = vmatpush1.bf16.msra.mxu0 %v2266
        %2332 = vmatprep.subr.bf16.mxu0 %v2269
        %2333 = vmatpush1.bf16.msra.mxu0 %v2268
        %2334 = vmatprep.subr.bf16.mxu0 %v2271
        %2335 = vmatpush1.bf16.msra.mxu0 %v2270
        %2336 = vmatprep.subr.bf16.mxu0 %v2273
        %2337 = vmatpush1.bf16.msra.mxu0 %v2272
        %2338 = vmatprep.subr.bf16.mxu0 %v2275
        %2339 = vmatpush1.bf16.msra.mxu0 %v2274
        %2340 = vmatprep.subr.bf16.mxu0 %v2277
        %2341 = vmatpush1.bf16.msra.mxu0 %v2276
        %2342 = vmatprep.subr.bf16.mxu0 %v2279
        %2343 = vmatpush1.bf16.msra.mxu0 %v2278
        %2344 = vmatprep.subr.bf16.mxu0 %v2281
        %2345 = vmatpush1.bf16.msra.mxu0 %v2280
        %2346 = vmatprep.subr.bf16.mxu0 %v2283
        %2347 = vmatpush1.bf16.msra.mxu0 %v2282
        %2348 = vmatprep.subr.bf16.mxu0 %v2285
        %2349 = vmatpush1.bf16.msra.mxu0 %v2284
        %2350 = vmatprep.subr.bf16.mxu0 %v2287
        %2351 = vmatpush1.bf16.msra.mxu0 %v2286
        %2352 = vmatprep.mubr.bf16.mxu0 %v2115
        %2353 = vmatmul.mubr.bf16.gmra.mrb[0].mxu0 %v2114
        %v2354 = vpop.f32.mrb[0].mxu0
        %v2355 = vadd.f32 %v2153, %v2354
        %v2356 = vpop.f32.mrb[0].mxu0
        %v2357 = vadd.f32 %v2157, %v2356
        %v2358 = vpop.f32.mrb[0].mxu0
        %v2359 = vadd.f32 %v2153, %v2358
        %v2360 = vpop.f32.mrb[0].mxu0
        %v2361 = vadd.f32 %v2157, %v2360
        %2362 = vdwg.mxu0
        %v2363 = vxor.u32 %v2355, 2147483648
        %v2364 = vxor.u32 %v2357, 2147483648
        %v2365 = vxor.u32 %v2359, 2147483648
        %v2366 = vxor.u32 %v2361, 2147483648
        %v2367 = vmul.f32 %v2363, 1.442695
        %v2368 = vpow.pop %v2367
        %v2369 = vmul.f32 %v2364, 1.442695
        %v2370 = vpow.pop %v2369
        %v2371 = vmul.f32 %v2365, 1.442695
        %v2372 = vpow.pop %v2371
        %v2373 = vmul.f32 %v2366, 1.442695
        %v2374 = vpow.pop %v2373
        %v2375 = vadd.f32 %v2368, 1.0
        %v2376 = vadd.f32 %v2370, 1.0
        %v2377 = vadd.f32 %v2372, 1.0
        %v2378 = vadd.f32 %v2374, 1.0
        %v2379 = vrcp.pop %v2375
        %v2380 = vmul.f32 1.0, %v2379
        %v2381 = vrcp.pop %v2376
        %v2382 = vmul.f32 1.0, %v2381
        %v2383 = vrcp.pop %v2377
        %v2384 = vmul.f32 1.0, %v2383
        %v2385 = vrcp.pop %v2378
        %v2386 = vmul.f32 1.0, %v2385
        %2387 = vst [vmem:[%s1363] sm:$0xff] %v2380
        %2388 = vst [vmem:[%s1363 + $0x8] sm:$0xff] %v2382
        %2389 = vst [vmem:[%s1363 + $0x10] sm:$0xff] %v2384
        %2390 = vst [vmem:[%s1363 + $0x18] sm:$0xff] %v2386
        %v2391 = vld [vmem:[%s31] sm:$0xff]
        %v2392 = vld [vmem:[%s31 + $0x8] sm:$0xff]
        %v2393 = vld [vmem:[%s31 + $0x10] sm:$0xff]
        %v2394 = vld [vmem:[%s31 + $0x18] sm:$0xff]
        %v2395 = vld [vmem:[%s31 + $0x20] sm:$0xff]
        %v2396 = vld [vmem:[%s31 + $0x28] sm:$0xff]
        %v2397 = vld [vmem:[%s31 + $0x30] sm:$0xff]
        %v2398 = vld [vmem:[%s31 + $0x38] sm:$0xff]
        %v2399 = vld [vmem:[%s31 + $0x40] sm:$0xff]
        %v2400 = vld [vmem:[%s31 + $0x48] sm:$0xff]
        %v2401 = vld [vmem:[%s31 + $0x50] sm:$0xff]
        %v2402 = vld [vmem:[%s31 + $0x58] sm:$0xff]
        %v2403 = vld [vmem:[%s31 + $0x60] sm:$0xff]
        %v2404 = vld [vmem:[%s31 + $0x68] sm:$0xff]
        %v2405 = vld [vmem:[%s31 + $0x70] sm:$0xff]
        %v2406 = vld [vmem:[%s31 + $0x78] sm:$0xff]
        %v2407 = vld [vmem:[#allocation20] sm:$0x3]
        %v2409 = vlaneseq
        %v2410 = vshrl.u32 %v2409, 7
        %v2411 = vsub.s32 0, %v2410
        %v2412 = vrot.slane %v2407, %v2411
        %v2413 = vlaneseq
        %v2414 = vshrl.u32 %v2413, 7
        %v2415 = vsub.s32 1, %v2414
        %v2416 = vrot.slane %v2407, %v2415
        %v2435 = vunpack.c.l.b16 %v2391
        %v2436 = vunpack.c.h.b16 %v2391
        %v2437 = vunpack.c.l.b16 %v2392
        %v2438 = vunpack.c.h.b16 %v2392
        %v2439 = vunpack.c.l.b16 %v2393
        %v2440 = vunpack.c.h.b16 %v2393
        %v2441 = vunpack.c.l.b16 %v2394
        %v2442 = vunpack.c.h.b16 %v2394
        %v2443 = vunpack.c.l.b16 %v2395
        %v2444 = vunpack.c.h.b16 %v2395
        %v2445 = vunpack.c.l.b16 %v2396
        %v2446 = vunpack.c.h.b16 %v2396
        %v2447 = vunpack.c.l.b16 %v2397
        %v2448 = vunpack.c.h.b16 %v2397
        %v2449 = vunpack.c.l.b16 %v2398
        %v2450 = vunpack.c.h.b16 %v2398
        %v2451 = vunpack.c.l.b16 %v2399
        %v2452 = vunpack.c.h.b16 %v2399
        %v2453 = vunpack.c.l.b16 %v2400
        %v2454 = vunpack.c.h.b16 %v2400
        %v2455 = vunpack.c.l.b16 %v2401
        %v2456 = vunpack.c.h.b16 %v2401
        %v2457 = vunpack.c.l.b16 %v2402
        %v2458 = vunpack.c.h.b16 %v2402
        %v2459 = vunpack.c.l.b16 %v2403
        %v2460 = vunpack.c.h.b16 %v2403
        %v2461 = vunpack.c.l.b16 %v2404
        %v2462 = vunpack.c.h.b16 %v2404
        %v2463 = vunpack.c.l.b16 %v2405
        %v2464 = vunpack.c.h.b16 %v2405
        %v2465 = vunpack.c.l.b16 %v2406
        %v2466 = vunpack.c.h.b16 %v2406
        %v2467 = vpack.c.b16 %v2437, %v2435
        %v2468 = vpack.c.b16 %v2438, %v2436
        %v2469 = vpack.c.b16 %v2441, %v2439
        %v2470 = vpack.c.b16 %v2442, %v2440
        %v2471 = vpack.c.b16 %v2445, %v2443
        %v2472 = vpack.c.b16 %v2446, %v2444
        %v2473 = vpack.c.b16 %v2449, %v2447
        %v2474 = vpack.c.b16 %v2450, %v2448
        %v2475 = vpack.c.b16 %v2453, %v2451
        %v2476 = vpack.c.b16 %v2454, %v2452
        %v2477 = vpack.c.b16 %v2457, %v2455
        %v2478 = vpack.c.b16 %v2458, %v2456
        %v2479 = vpack.c.b16 %v2461, %v2459
        %v2480 = vpack.c.b16 %v2462, %v2460
        %v2481 = vpack.c.b16 %v2465, %v2463
        %v2482 = vpack.c.b16 %v2466, %v2464
        %2499 = vmatprep.subr.bf16.mxu0 %v2468
        %2500 = vmatpush1.bf16.msra.mxu0 %v2467
        %2501 = vmatprep.subr.bf16.mxu0 %v2470
        %2502 = vmatpush1.bf16.msra.mxu0 %v2469
        %2503 = vmatprep.subr.bf16.mxu0 %v2472
        %2504 = vmatpush1.bf16.msra.mxu0 %v2471
        %2505 = vmatprep.subr.bf16.mxu0 %v2474
        %2506 = vmatpush1.bf16.msra.mxu0 %v2473
        %2507 = vmatprep.subr.bf16.mxu0 %v2476
        %2508 = vmatpush1.bf16.msra.mxu0 %v2475
        %2509 = vmatprep.subr.bf16.mxu0 %v2478
        %2510 = vmatpush1.bf16.msra.mxu0 %v2477
        %2511 = vmatprep.subr.bf16.mxu0 %v2480
        %2512 = vmatpush1.bf16.msra.mxu0 %v2479
        %2513 = vmatprep.subr.bf16.mxu0 %v2482
        %2514 = vmatpush1.bf16.msra.mxu0 %v2481
        %2515 = vmatprep.subr.bf16.mxu0 0
        %2516 = vmatpush1.bf16.msra.mxu0 0
        %2517 = vmatprep.subr.bf16.mxu0 0
        %2518 = vmatpush1.bf16.msra.mxu0 0
        %2519 = vmatprep.subr.bf16.mxu0 0
        %2520 = vmatpush1.bf16.msra.mxu0 0
        %2521 = vmatprep.subr.bf16.mxu0 0
        %2522 = vmatpush1.bf16.msra.mxu0 0
        %2523 = vmatprep.subr.bf16.mxu0 0
        %2524 = vmatpush1.bf16.msra.mxu0 0
        %2525 = vmatprep.subr.bf16.mxu0 0
        %2526 = vmatpush1.bf16.msra.mxu0 0
        %2527 = vmatprep.subr.bf16.mxu0 0
        %2528 = vmatpush1.bf16.msra.mxu0 0
        %2529 = vmatprep.subr.bf16.mxu0 0
        %2530 = vmatpush1.bf16.msra.mxu0 0
        %2531 = vmatprep.mubr.bf16.mxu0 0
        %2532 = vmatmul.mubr.bf16.gmra.mrb[0].mxu0 %v1400
        %v2533 = vpop.f32.mrb[0].mxu0
        %v2534 = vadd.f32 %v2412, %v2533
        %v2535 = vpop.f32.mrb[0].mxu0
        %v2536 = vadd.f32 %v2416, %v2535
        %v2537 = vpop.f32.mrb[0].mxu0
        %v2538 = vadd.f32 %v2412, %v2537
        %v2539 = vpop.f32.mrb[0].mxu0
        %v2540 = vadd.f32 %v2416, %v2539
        %2541 = vdwg.mxu0
        %v2542 = vmax.f32 %v2534, 0.0
        %v2543 = vmax.f32 %v2536, 0.0
        %v2544 = vmax.f32 %v2538, 0.0
        %v2545 = vmax.f32 %v2540, 0.0
        %v2546 = vpack.c.bf16 %v2544, %v2542
        %v2547 = vpack.c.bf16 %v2545, %v2543
        %v2548 = vld [vmem:[%s35] sm:$0xf]
        %v2549 = vld [vmem:[%s35 + $0x4] sm:$0xf]
        %v2550 = vld [vmem:[%s35 + $0x8] sm:$0xf]
        %v2551 = vld [vmem:[%s35 + $0xc] sm:$0xf]
        %v2552 = vld [vmem:[%s35 + $0x10] sm:$0xf]
        %v2553 = vld [vmem:[%s35 + $0x14] sm:$0xf]
        %v2554 = vld [vmem:[%s35 + $0x18] sm:$0xf]
        %v2555 = vld [vmem:[%s35 + $0x1c] sm:$0xf]
        %v2556 = vld [vmem:[%s35 + $0x20] sm:$0xf]
        %v2557 = vld [vmem:[%s35 + $0x24] sm:$0xf]
        %v2558 = vld [vmem:[%s35 + $0x28] sm:$0xf]
        %v2559 = vld [vmem:[%s35 + $0x2c] sm:$0xf]
        %v2560 = vld [vmem:[%s35 + $0x30] sm:$0xf]
        %v2561 = vld [vmem:[%s35 + $0x34] sm:$0xf]
        %v2562 = vld [vmem:[%s35 + $0x38] sm:$0xf]
        %v2563 = vld [vmem:[%s35 + $0x3c] sm:$0xf]
        %v2564 = vld [vmem:[%s35 + $0x40] sm:$0xf]
        %v2565 = vld [vmem:[%s35 + $0x44] sm:$0xf]
        %v2566 = vld [vmem:[%s35 + $0x48] sm:$0xf]
        %v2567 = vld [vmem:[%s35 + $0x4c] sm:$0xf]
        %v2568 = vld [vmem:[%s35 + $0x50] sm:$0xf]
        %v2569 = vld [vmem:[%s35 + $0x54] sm:$0xf]
        %v2570 = vld [vmem:[%s35 + $0x58] sm:$0xf]
        %v2571 = vld [vmem:[%s35 + $0x5c] sm:$0xf]
        %v2572 = vld [vmem:[%s35 + $0x60] sm:$0xf]
        %v2573 = vld [vmem:[%s35 + $0x64] sm:$0xf]
        %v2574 = vld [vmem:[%s35 + $0x68] sm:$0xf]
        %v2575 = vld [vmem:[%s35 + $0x6c] sm:$0xf]
        %v2576 = vld [vmem:[%s35 + $0x70] sm:$0xf]
        %v2577 = vld [vmem:[%s35 + $0x74] sm:$0xf]
        %v2578 = vld [vmem:[%s35 + $0x78] sm:$0xf]
        %v2579 = vld [vmem:[%s35 + $0x7c] sm:$0xf]
        %v2580 = vld [vmem:[#allocation22] sm:$0x1]
        %v2582 = vlaneseq
        %v2583 = vshrl.u32 %v2582, 7
        %v2584 = vsub.s32 0, %v2583
        %v2585 = vrot.slane %v2580, %v2584
        %v2619 = vunpack.c.l.b16 %v2548
        %v2620 = vunpack.c.l.b16 %v2549
        %v2621 = vunpack.c.l.b16 %v2550
        %v2622 = vunpack.c.l.b16 %v2551
        %v2623 = vunpack.c.l.b16 %v2552
        %v2624 = vunpack.c.l.b16 %v2553
        %v2625 = vunpack.c.l.b16 %v2554
        %v2626 = vunpack.c.l.b16 %v2555
        %v2627 = vunpack.c.l.b16 %v2556
        %v2628 = vunpack.c.l.b16 %v2557
        %v2629 = vunpack.c.l.b16 %v2558
        %v2630 = vunpack.c.l.b16 %v2559
        %v2631 = vunpack.c.l.b16 %v2560
        %v2632 = vunpack.c.l.b16 %v2561
        %v2633 = vunpack.c.l.b16 %v2562
        %v2634 = vunpack.c.l.b16 %v2563
        %v2635 = vunpack.c.l.b16 %v2564
        %v2636 = vunpack.c.l.b16 %v2565
        %v2637 = vunpack.c.l.b16 %v2566
        %v2638 = vunpack.c.l.b16 %v2567
        %v2639 = vunpack.c.l.b16 %v2568
        %v2640 = vunpack.c.l.b16 %v2569
        %v2641 = vunpack.c.l.b16 %v2570
        %v2642 = vunpack.c.l.b16 %v2571
        %v2643 = vunpack.c.l.b16 %v2572
        %v2644 = vunpack.c.l.b16 %v2573
        %v2645 = vunpack.c.l.b16 %v2574
        %v2646 = vunpack.c.l.b16 %v2575
        %v2647 = vunpack.c.l.b16 %v2576
        %v2648 = vunpack.c.l.b16 %v2577
        %v2649 = vunpack.c.l.b16 %v2578
        %v2650 = vunpack.c.l.b16 %v2579
        %v2651 = vpack.c.b16 %v2620, %v2619
        %v2652 = vpack.c.b16 %v2622, %v2621
        %v2653 = vpack.c.b16 %v2624, %v2623
        %v2654 = vpack.c.b16 %v2626, %v2625
        %v2655 = vpack.c.b16 %v2628, %v2627
        %v2656 = vpack.c.b16 %v2630, %v2629
        %v2657 = vpack.c.b16 %v2632, %v2631
        %v2658 = vpack.c.b16 %v2634, %v2633
        %v2659 = vpack.c.b16 %v2636, %v2635
        %v2660 = vpack.c.b16 %v2638, %v2637
        %v2661 = vpack.c.b16 %v2640, %v2639
        %v2662 = vpack.c.b16 %v2642, %v2641
        %v2663 = vpack.c.b16 %v2644, %v2643
        %v2664 = vpack.c.b16 %v2646, %v2645
        %v2665 = vpack.c.b16 %v2648, %v2647
        %v2666 = vpack.c.b16 %v2650, %v2649
        %2683 = vmatprep.subr.bf16.mxu0 0
        %2684 = vmatpush1.bf16.msra.mxu0 %v2651
        %2685 = vmatprep.subr.bf16.mxu0 0
        %2686 = vmatpush1.bf16.msra.mxu0 %v2652
        %2687 = vmatprep.subr.bf16.mxu0 0
        %2688 = vmatpush1.bf16.msra.mxu0 %v2653
        %2689 = vmatprep.subr.bf16.mxu0 0
        %2690 = vmatpush1.bf16.msra.mxu0 %v2654
        %2691 = vmatprep.subr.bf16.mxu0 0
        %2692 = vmatpush1.bf16.msra.mxu0 %v2655
        %2693 = vmatprep.subr.bf16.mxu0 0
        %2694 = vmatpush1.bf16.msra.mxu0 %v2656
        %2695 = vmatprep.subr.bf16.mxu0 0
        %2696 = vmatpush1.bf16.msra.mxu0 %v2657
        %2697 = vmatprep.subr.bf16.mxu0 0
        %2698 = vmatpush1.bf16.msra.mxu0 %v2658
        %2699 = vmatprep.subr.bf16.mxu0 0
        %2700 = vmatpush1.bf16.msra.mxu0 %v2659
        %2701 = vmatprep.subr.bf16.mxu0 0
        %2702 = vmatpush1.bf16.msra.mxu0 %v2660
        %2703 = vmatprep.subr.bf16.mxu0 0
        %2704 = vmatpush1.bf16.msra.mxu0 %v2661
        %2705 = vmatprep.subr.bf16.mxu0 0
        %2706 = vmatpush1.bf16.msra.mxu0 %v2662
        %2707 = vmatprep.subr.bf16.mxu0 0
        %2708 = vmatpush1.bf16.msra.mxu0 %v2663
        %2709 = vmatprep.subr.bf16.mxu0 0
        %2710 = vmatpush1.bf16.msra.mxu0 %v2664
        %2711 = vmatprep.subr.bf16.mxu0 0
        %2712 = vmatpush1.bf16.msra.mxu0 %v2665
        %2713 = vmatprep.subr.bf16.mxu0 0
        %2714 = vmatpush1.bf16.msra.mxu0 %v2666
        %2715 = vmatprep.mubr.bf16.mxu0 %v2547
        %2716 = vmatmul.mubr.bf16.gmra.mrb[0].mxu0 %v2546
        %v2717 = vpop.f32.mrb[0].mxu0
        %v2718 = vadd.f32 %v2585, %v2717
        %v2719 = vpop.f32.mrb[0].mxu0
        %v2720 = vpop.f32.mrb[0].mxu0
        %v2721 = vadd.f32 %v2585, %v2720
        %v2722 = vpop.f32.mrb[0].mxu0
        %2723 = vdwg.mxu0
        %v2724 = vmax.f32 %v2718, 0.0
        %v2725 = vmax.f32 %v2721, 0.0
        %v2726 = vpack.c.bf16 %v2725, %v2724
        %v2727 = vld [vmem:[#allocation23] sm:$0xf]
        %v2728 = vld [vmem:[#allocation23 + $0x4] sm:$0xf]
        %v2729 = vld [vmem:[#allocation23 + $0x8] sm:$0xf]
        %v2730 = vld [vmem:[#allocation23 + $0xc] sm:$0xf]
        %v2731 = vld [vmem:[#allocation23 + $0x10] sm:$0xf]
        %v2732 = vld [vmem:[#allocation23 + $0x14] sm:$0xf]
        %v2733 = vld [vmem:[#allocation23 + $0x18] sm:$0xf]
        %v2734 = vld [vmem:[#allocation23 + $0x1c] sm:$0xf]
        %v2735 = vld [vmem:[#allocation25] sm:$0x1]
        %v2737 = vlaneseq
        %v2738 = vshrl.u32 %v2737, 7
        %v2739 = vsub.s32 0, %v2738
        %v2740 = vrot.slane %v2735, %v2739
        %v2750 = vunpack.c.l.b16 %v2727
        %v2751 = vunpack.c.l.b16 %v2728
        %v2752 = vunpack.c.l.b16 %v2729
        %v2753 = vunpack.c.l.b16 %v2730
        %v2754 = vunpack.c.l.b16 %v2731
        %v2755 = vunpack.c.l.b16 %v2732
        %v2756 = vunpack.c.l.b16 %v2733
        %v2757 = vunpack.c.l.b16 %v2734
        %v2758 = vpack.c.b16 %v2751, %v2750
        %v2759 = vpack.c.b16 %v2753, %v2752
        %v2760 = vpack.c.b16 %v2755, %v2754
        %v2761 = vpack.c.b16 %v2757, %v2756
        %v2767 = vsel %vm1872, %v2726, 0
        %2769 = vmatprep.subr.bf16.mxu0 0
        %2770 = vmatpush1.bf16.msra.mxu0 %v2758
        %2771 = vmatprep.subr.bf16.mxu0 0
        %2772 = vmatpush1.bf16.msra.mxu0 %v2759
        %2773 = vmatprep.subr.bf16.mxu0 0
        %2774 = vmatpush1.bf16.msra.mxu0 %v2760
        %2775 = vmatprep.subr.bf16.mxu0 0
        %2776 = vmatpush1.bf16.msra.mxu0 %v2761
        %2777 = vmatprep.subr.bf16.mxu0 0
        %2778 = vmatpush1.bf16.msra.mxu0 0
        %2779 = vmatprep.subr.bf16.mxu0 0
        %2780 = vmatpush1.bf16.msra.mxu0 0
        %2781 = vmatprep.subr.bf16.mxu0 0
        %2782 = vmatpush1.bf16.msra.mxu0 0
        %2783 = vmatprep.subr.bf16.mxu0 0
        %2784 = vmatpush1.bf16.msra.mxu0 0
        %2785 = vmatprep.subr.bf16.mxu0 0
        %2786 = vmatpush1.bf16.msra.mxu0 0
        %2787 = vmatprep.subr.bf16.mxu0 0
        %2788 = vmatpush1.bf16.msra.mxu0 0
        %2789 = vmatprep.subr.bf16.mxu0 0
        %2790 = vmatpush1.bf16.msra.mxu0 0
        %2791 = vmatprep.subr.bf16.mxu0 0
        %2792 = vmatpush1.bf16.msra.mxu0 0
        %2793 = vmatprep.subr.bf16.mxu0 0
        %2794 = vmatpush1.bf16.msra.mxu0 0
        %2795 = vmatprep.subr.bf16.mxu0 0
        %2796 = vmatpush1.bf16.msra.mxu0 0
        %2797 = vmatprep.subr.bf16.mxu0 0
        %2798 = vmatpush1.bf16.msra.mxu0 0
        %2799 = vmatprep.subr.bf16.mxu0 0
        %2800 = vmatpush1.bf16.msra.mxu0 0
        %2801 = vmatprep.mubr.bf16.mxu0 0
        %2802 = vmatmul.mubr.bf16.gmra.mrb[0].mxu0 %v2767
        %v2803 = vpop.f32.mrb[0].mxu0
        %v2804 = vadd.f32 %v2740, %v2803
        %v2805 = vpop.f32.mrb[0].mxu0
        %v2806 = vpop.f32.mrb[0].mxu0
        %v2807 = vadd.f32 %v2740, %v2806
        %v2808 = vpop.f32.mrb[0].mxu0
        %2809 = vdwg.mxu0
        %v2810 = vpack.c.bf16 %v2807, %v2804
        %v2811 = vld [vmem:[#allocation26] sm:$0xf]
        %v2812 = vld [vmem:[#allocation26 + $0x4] sm:$0xf]
        %v2813 = vld [vmem:[#allocation26 + $0x8] sm:$0xf]
        %v2814 = vld [vmem:[#allocation26 + $0xc] sm:$0xf]
        %v2815 = vld [vmem:[#allocation26 + $0x10] sm:$0xf]
        %v2816 = vld [vmem:[#allocation26 + $0x14] sm:$0xf]
        %v2817 = vld [vmem:[#allocation26 + $0x18] sm:$0xf]
        %v2818 = vld [vmem:[#allocation26 + $0x1c] sm:$0xf]
        %v2819 = vld [vmem:[#allocation28] sm:$0x1]
        %v2821 = vlaneseq
        %v2822 = vshrl.u32 %v2821, 7
        %v2823 = vsub.s32 0, %v2822
        %v2824 = vrot.slane %v2819, %v2823
        %v2834 = vunpack.c.l.b16 %v2811
        %v2835 = vunpack.c.l.b16 %v2812
        %v2836 = vunpack.c.l.b16 %v2813
        %v2837 = vunpack.c.l.b16 %v2814
        %v2838 = vunpack.c.l.b16 %v2815
        %v2839 = vunpack.c.l.b16 %v2816
        %v2840 = vunpack.c.l.b16 %v2817
        %v2841 = vunpack.c.l.b16 %v2818
        %v2842 = vpack.c.b16 %v2835, %v2834
        %v2843 = vpack.c.b16 %v2837, %v2836
        %v2844 = vpack.c.b16 %v2839, %v2838
        %v2845 = vpack.c.b16 %v2841, %v2840
        %v2851 = vsel %vm1872, %v2810, 0
        %2853 = vmatprep.subr.bf16.mxu0 0
        %2854 = vmatpush1.bf16.msra.mxu0 %v2842
        %2855 = vmatprep.subr.bf16.mxu0 0
        %2856 = vmatpush1.bf16.msra.mxu0 %v2843
        %2857 = vmatprep.subr.bf16.mxu0 0
        %2858 = vmatpush1.bf16.msra.mxu0 %v2844
        %2859 = vmatprep.subr.bf16.mxu0 0
        %2860 = vmatpush1.bf16.msra.mxu0 %v2845
        %2861 = vmatprep.subr.bf16.mxu0 0
        %2862 = vmatpush1.bf16.msra.mxu0 0
        %2863 = vmatprep.subr.bf16.mxu0 0
        %2864 = vmatpush1.bf16.msra.mxu0 0
        %2865 = vmatprep.subr.bf16.mxu0 0
        %2866 = vmatpush1.bf16.msra.mxu0 0
        %2867 = vmatprep.subr.bf16.mxu0 0
        %2868 = vmatpush1.bf16.msra.mxu0 0
        %2869 = vmatprep.subr.bf16.mxu0 0
        %2870 = vmatpush1.bf16.msra.mxu0 0
        %2871 = vmatprep.subr.bf16.mxu0 0
        %2872 = vmatpush1.bf16.msra.mxu0 0
        %2873 = vmatprep.subr.bf16.mxu0 0
        %2874 = vmatpush1.bf16.msra.mxu0 0
        %2875 = vmatprep.subr.bf16.mxu0 0
        %2876 = vmatpush1.bf16.msra.mxu0 0
        %2877 = vmatprep.subr.bf16.mxu0 0
        %2878 = vmatpush1.bf16.msra.mxu0 0
        %2879 = vmatprep.subr.bf16.mxu0 0
        %2880 = vmatpush1.bf16.msra.mxu0 0
        %2881 = vmatprep.subr.bf16.mxu0 0
        %2882 = vmatpush1.bf16.msra.mxu0 0
        %2883 = vmatprep.subr.bf16.mxu0 0
        %2884 = vmatpush1.bf16.msra.mxu0 0
        %2885 = vmatprep.mubr.bf16.mxu0 0
        %2886 = vmatmul.mubr.bf16.gmra.mrb[0].mxu0 %v2851
        %v2887 = vpop.f32.mrb[0].mxu0
        %v2888 = vadd.f32 %v2824, %v2887
        %v2889 = vpop.f32.mrb[0].mxu0
        %v2890 = vpop.f32.mrb[0].mxu0
        %v2891 = vadd.f32 %v2824, %v2890
        %v2892 = vpop.f32.mrb[0].mxu0
        %2893 = vdwg.mxu0
        %v2894 = vmax.f32 %v2888, 0.0
        %v2895 = vmax.f32 %v2891, 0.0
        %v2896 = vpack.c.bf16 %v2895, %v2894
        %v2897 = vld [vmem:[#allocation29] sm:$0xff]
        %v2898 = vld [vmem:[#allocation29 + $0x8] sm:$0xff]
        %v2899 = vld [vmem:[#allocation29 + $0x10] sm:$0xff]
        %v2900 = vld [vmem:[#allocation29 + $0x18] sm:$0xff]
        %v2901 = vld [vmem:[#allocation29 + $0x20] sm:$0xff]
        %v2902 = vld [vmem:[#allocation29 + $0x28] sm:$0xff]
        %v2903 = vld [vmem:[#allocation29 + $0x30] sm:$0xff]
        %v2904 = vld [vmem:[#allocation29 + $0x38] sm:$0xff]
        %v2905 = vld [vmem:[#allocation31] sm:$0x3]
        %v2907 = vlaneseq
        %v2908 = vshrl.u32 %v2907, 7
        %v2909 = vsub.s32 0, %v2908
        %v2910 = vrot.slane %v2905, %v2909
        %v2911 = vlaneseq
        %v2912 = vshrl.u32 %v2911, 7
        %v2913 = vsub.s32 1, %v2912
        %v2914 = vrot.slane %v2905, %v2913
        %v2925 = vunpack.c.l.b16 %v2897
        %v2926 = vunpack.c.h.b16 %v2897
        %v2927 = vunpack.c.l.b16 %v2898
        %v2928 = vunpack.c.h.b16 %v2898
        %v2929 = vunpack.c.l.b16 %v2899
        %v2930 = vunpack.c.h.b16 %v2899
        %v2931 = vunpack.c.l.b16 %v2900
        %v2932 = vunpack.c.h.b16 %v2900
        %v2933 = vunpack.c.l.b16 %v2901
        %v2934 = vunpack.c.h.b16 %v2901
        %v2935 = vunpack.c.l.b16 %v2902
        %v2936 = vunpack.c.h.b16 %v2902
        %v2937 = vunpack.c.l.b16 %v2903
        %v2938 = vunpack.c.h.b16 %v2903
        %v2939 = vunpack.c.l.b16 %v2904
        %v2940 = vunpack.c.h.b16 %v2904
        %v2941 = vpack.c.b16 %v2927, %v2925
        %v2942 = vpack.c.b16 %v2928, %v2926
        %v2943 = vpack.c.b16 %v2931, %v2929
        %v2944 = vpack.c.b16 %v2932, %v2930
        %v2945 = vpack.c.b16 %v2935, %v2933
        %v2946 = vpack.c.b16 %v2936, %v2934
        %v2947 = vpack.c.b16 %v2939, %v2937
        %v2948 = vpack.c.b16 %v2940, %v2938
        %v2958 = vsel %vm1872, %v2896, 0
        %2960 = vmatprep.subr.bf16.mxu0 %v2942
        %2961 = vmatpush1.bf16.msra.mxu0 %v2941
        %2962 = vmatprep.subr.bf16.mxu0 %v2944
        %2963 = vmatpush1.bf16.msra.mxu0 %v2943
        %2964 = vmatprep.subr.bf16.mxu0 %v2946
        %2965 = vmatpush1.bf16.msra.mxu0 %v2945
        %2966 = vmatprep.subr.bf16.mxu0 %v2948
        %2967 = vmatpush1.bf16.msra.mxu0 %v2947
        %2968 = vmatprep.subr.bf16.mxu0 0
        %2969 = vmatpush1.bf16.msra.mxu0 0
        %2970 = vmatprep.subr.bf16.mxu0 0
        %2971 = vmatpush1.bf16.msra.mxu0 0
        %2972 = vmatprep.subr.bf16.mxu0 0
        %2973 = vmatpush1.bf16.msra.mxu0 0
        %2974 = vmatprep.subr.bf16.mxu0 0
        %2975 = vmatpush1.bf16.msra.mxu0 0
        %2976 = vmatprep.subr.bf16.mxu0 0
        %2977 = vmatpush1.bf16.msra.mxu0 0
        %2978 = vmatprep.subr.bf16.mxu0 0
        %2979 = vmatpush1.bf16.msra.mxu0 0
        %2980 = vmatprep.subr.bf16.mxu0 0
        %2981 = vmatpush1.bf16.msra.mxu0 0
        %2982 = vmatprep.subr.bf16.mxu0 0
        %2983 = vmatpush1.bf16.msra.mxu0 0
        %2984 = vmatprep.subr.bf16.mxu0 0
        %2985 = vmatpush1.bf16.msra.mxu0 0
        %2986 = vmatprep.subr.bf16.mxu0 0
        %2987 = vmatpush1.bf16.msra.mxu0 0
        %2988 = vmatprep.subr.bf16.mxu0 0
        %2989 = vmatpush1.bf16.msra.mxu0 0
        %2990 = vmatprep.subr.bf16.mxu0 0
        %2991 = vmatpush1.bf16.msra.mxu0 0
        %2992 = vmatprep.mubr.bf16.mxu0 0
        %2993 = vmatmul.mubr.bf16.gmra.mrb[0].mxu0 %v2958
        %v2994 = vpop.f32.mrb[0].mxu0
        %v2995 = vadd.f32 %v2910, %v2994
        %v2996 = vpop.f32.mrb[0].mxu0
        %v2997 = vadd.f32 %v2914, %v2996
        %v2998 = vpop.f32.mrb[0].mxu0
        %v2999 = vadd.f32 %v2910, %v2998
        %v3000 = vpop.f32.mrb[0].mxu0
        %v3001 = vadd.f32 %v2914, %v3000
        %3002 = vdwg.mxu0
        %v3003 = vmax.f32 %v2995, 0.0
        %v3004 = vmax.f32 %v2997, 0.0
        %v3005 = vmax.f32 %v2999, 0.0
        %v3006 = vmax.f32 %v3001, 0.0
        %v3007 = vpack.c.bf16 %v3005, %v3003
        %v3008 = vpack.c.bf16 %v3006, %v3004
        %v3009 = vld [vmem:[%s51] sm:$0xf]
        %v3010 = vld [vmem:[%s51 + $0x4] sm:$0xf]
        %v3011 = vld [vmem:[%s51 + $0x8] sm:$0xf]
        %v3012 = vld [vmem:[%s51 + $0xc] sm:$0xf]
        %v3013 = vld [vmem:[%s51 + $0x10] sm:$0xf]
        %v3014 = vld [vmem:[%s51 + $0x14] sm:$0xf]
        %v3015 = vld [vmem:[%s51 + $0x18] sm:$0xf]
        %v3016 = vld [vmem:[%s51 + $0x1c] sm:$0xf]
        %v3017 = vld [vmem:[%s51 + $0x20] sm:$0xf]
        %v3018 = vld [vmem:[%s51 + $0x24] sm:$0xf]
        %v3019 = vld [vmem:[%s51 + $0x28] sm:$0xf]
        %v3020 = vld [vmem:[%s51 + $0x2c] sm:$0xf]
        %v3021 = vld [vmem:[%s51 + $0x30] sm:$0xf]
        %v3022 = vld [vmem:[%s51 + $0x34] sm:$0xf]
        %v3023 = vld [vmem:[%s51 + $0x38] sm:$0xf]
        %v3024 = vld [vmem:[%s51 + $0x3c] sm:$0xf]
        %v3025 = vld [vmem:[%s51 + $0x40] sm:$0xf]
        %v3026 = vld [vmem:[%s51 + $0x44] sm:$0xf]
        %v3027 = vld [vmem:[%s51 + $0x48] sm:$0xf]
        %v3028 = vld [vmem:[%s51 + $0x4c] sm:$0xf]
        %v3029 = vld [vmem:[%s51 + $0x50] sm:$0xf]
        %v3030 = vld [vmem:[%s51 + $0x54] sm:$0xf]
        %v3031 = vld [vmem:[%s51 + $0x58] sm:$0xf]
        %v3032 = vld [vmem:[%s51 + $0x5c] sm:$0xf]
        %v3033 = vld [vmem:[%s51 + $0x60] sm:$0xf]
        %v3034 = vld [vmem:[%s51 + $0x64] sm:$0xf]
        %v3035 = vld [vmem:[%s51 + $0x68] sm:$0xf]
        %v3036 = vld [vmem:[%s51 + $0x6c] sm:$0xf]
        %v3037 = vld [vmem:[%s51 + $0x70] sm:$0xf]
        %v3038 = vld [vmem:[%s51 + $0x74] sm:$0xf]
        %v3039 = vld [vmem:[%s51 + $0x78] sm:$0xf]
        %v3040 = vld [vmem:[%s51 + $0x7c] sm:$0xf]
        %v3041 = vld [vmem:[%s53] sm:$0x1]
        %v3043 = vlaneseq
        %v3044 = vshrl.u32 %v3043, 7
        %v3045 = vsub.s32 0, %v3044
        %v3046 = vrot.slane %v3041, %v3045
        %v3080 = vunpack.c.l.b16 %v3009
        %v3081 = vunpack.c.l.b16 %v3010
        %v3082 = vunpack.c.l.b16 %v3011
        %v3083 = vunpack.c.l.b16 %v3012
        %v3084 = vunpack.c.l.b16 %v3013
        %v3085 = vunpack.c.l.b16 %v3014
        %v3086 = vunpack.c.l.b16 %v3015
        %v3087 = vunpack.c.l.b16 %v3016
        %v3088 = vunpack.c.l.b16 %v3017
        %v3089 = vunpack.c.l.b16 %v3018
        %v3090 = vunpack.c.l.b16 %v3019
        %v3091 = vunpack.c.l.b16 %v3020
        %v3092 = vunpack.c.l.b16 %v3021
        %v3093 = vunpack.c.l.b16 %v3022
        %v3094 = vunpack.c.l.b16 %v3023
        %v3095 = vunpack.c.l.b16 %v3024
        %v3096 = vunpack.c.l.b16 %v3025
        %v3097 = vunpack.c.l.b16 %v3026
        %v3098 = vunpack.c.l.b16 %v3027
        %v3099 = vunpack.c.l.b16 %v3028
        %v3100 = vunpack.c.l.b16 %v3029
        %v3101 = vunpack.c.l.b16 %v3030
        %v3102 = vunpack.c.l.b16 %v3031
        %v3103 = vunpack.c.l.b16 %v3032
        %v3104 = vunpack.c.l.b16 %v3033
        %v3105 = vunpack.c.l.b16 %v3034
        %v3106 = vunpack.c.l.b16 %v3035
        %v3107 = vunpack.c.l.b16 %v3036
        %v3108 = vunpack.c.l.b16 %v3037
        %v3109 = vunpack.c.l.b16 %v3038
        %v3110 = vunpack.c.l.b16 %v3039
        %v3111 = vunpack.c.l.b16 %v3040
        %v3112 = vpack.c.b16 %v3081, %v3080
        %v3113 = vpack.c.b16 %v3083, %v3082
        %v3114 = vpack.c.b16 %v3085, %v3084
        %v3115 = vpack.c.b16 %v3087, %v3086
        %v3116 = vpack.c.b16 %v3089, %v3088
        %v3117 = vpack.c.b16 %v3091, %v3090
        %v3118 = vpack.c.b16 %v3093, %v3092
        %v3119 = vpack.c.b16 %v3095, %v3094
        %v3120 = vpack.c.b16 %v3097, %v3096
        %v3121 = vpack.c.b16 %v3099, %v3098
        %v3122 = vpack.c.b16 %v3101, %v3100
        %v3123 = vpack.c.b16 %v3103, %v3102
        %v3124 = vpack.c.b16 %v3105, %v3104
        %v3125 = vpack.c.b16 %v3107, %v3106
        %v3126 = vpack.c.b16 %v3109, %v3108
        %v3127 = vpack.c.b16 %v3111, %v3110
        %3144 = vmatprep.subr.bf16.mxu0 0
        %3145 = vmatpush1.bf16.msra.mxu0 %v3112
        %3146 = vmatprep.subr.bf16.mxu0 0
        %3147 = vmatpush1.bf16.msra.mxu0 %v3113
        %3148 = vmatprep.subr.bf16.mxu0 0
        %3149 = vmatpush1.bf16.msra.mxu0 %v3114
        %3150 = vmatprep.subr.bf16.mxu0 0
        %3151 = vmatpush1.bf16.msra.mxu0 %v3115
        %3152 = vmatprep.subr.bf16.mxu0 0
        %3153 = vmatpush1.bf16.msra.mxu0 %v3116
        %3154 = vmatprep.subr.bf16.mxu0 0
        %3155 = vmatpush1.bf16.msra.mxu0 %v3117
        %3156 = vmatprep.subr.bf16.mxu0 0
        %3157 = vmatpush1.bf16.msra.mxu0 %v3118
        %3158 = vmatprep.subr.bf16.mxu0 0
        %3159 = vmatpush1.bf16.msra.mxu0 %v3119
        %3160 = vmatprep.subr.bf16.mxu0 0
        %3161 = vmatpush1.bf16.msra.mxu0 %v3120
        %3162 = vmatprep.subr.bf16.mxu0 0
        %3163 = vmatpush1.bf16.msra.mxu0 %v3121
        %3164 = vmatprep.subr.bf16.mxu0 0
        %3165 = vmatpush1.bf16.msra.mxu0 %v3122
        %3166 = vmatprep.subr.bf16.mxu0 0
        %3167 = vmatpush1.bf16.msra.mxu0 %v3123
        %3168 = vmatprep.subr.bf16.mxu0 0
        %3169 = vmatpush1.bf16.msra.mxu0 %v3124
        %3170 = vmatprep.subr.bf16.mxu0 0
        %3171 = vmatpush1.bf16.msra.mxu0 %v3125
        %3172 = vmatprep.subr.bf16.mxu0 0
        %3173 = vmatpush1.bf16.msra.mxu0 %v3126
        %3174 = vmatprep.subr.bf16.mxu0 0
        %3175 = vmatpush1.bf16.msra.mxu0 %v3127
        %3176 = vmatprep.mubr.bf16.mxu0 %v3008
        %3177 = vmatmul.mubr.bf16.gmra.mrb[0].mxu0 %v3007
        %v3178 = vpop.f32.mrb[0].mxu0
        %v3179 = vadd.f32 %v3046, %v3178
        %v3180 = vpop.f32.mrb[0].mxu0
        %v3181 = vpop.f32.mrb[0].mxu0
        %v3182 = vadd.f32 %v3046, %v3181
        %v3183 = vpop.f32.mrb[0].mxu0
        %3184 = vdwg.mxu0
        %v3185 = vxor.u32 %v3179, 2147483648
        %v3186 = vxor.u32 %v3182, 2147483648
        %v3187 = vmul.f32 %v3185, 1.442695
        %v3188 = vpow.pop %v3187
        %v3189 = vmul.f32 %v3186, 1.442695
        %v3190 = vpow.pop %v3189
        %v3191 = vadd.f32 %v3188, 1.0
        %v3192 = vadd.f32 %v3190, 1.0
        %v3193 = vrcp.pop %v3191
        %v3194 = vmul.f32 1.0, %v3193
        %v3195 = vrcp.pop %v3192
        %v3196 = vmul.f32 1.0, %v3195
        %3197 = vst [vmem:[%s1370] sm:$0xff] %v3194
        %3198 = vst [vmem:[%s1370 + $0x8] sm:$0xff] %v3196
        %3200 = vrot.lane.b32.xlu0 %v2810, 64
        %v3201 = vpop.permute.xlu0 %3200
        %v3203 = vsel %vm1872, %v1917, %v3201
        %v3205 = vunpack.c.l.b16 %v3203
        %v3206 = vunpack.c.h.b16 %v3203
        %v3207 = vpack.c.b16 %v3205, %v3205
        %v3208 = vpack.c.b16 %v3206, %v3206
        %3211 = vst [vmem:[%s1377] sm:$0xf] %v3207
        %3212 = vst [vmem:[%s1377 + $0x4] sm:$0xf] %v3208
        %v3213 = vld [vmem:[#allocation32] sm:$0xf]
        %v3214 = vld [vmem:[#allocation32 + $0x4] sm:$0xf]
        %v3215 = vld [vmem:[#allocation32 + $0x8] sm:$0xf]
        %v3216 = vld [vmem:[#allocation32 + $0xc] sm:$0xf]
        %v3217 = vld [vmem:[#allocation32 + $0x10] sm:$0xf]
        %v3218 = vld [vmem:[#allocation32 + $0x14] sm:$0xf]
        %v3219 = vld [vmem:[#allocation32 + $0x18] sm:$0xf]
        %v3220 = vld [vmem:[#allocation32 + $0x1c] sm:$0xf]
        %v3221 = vld [vmem:[%s57] sm:$0x1]
        %v3223 = vlaneseq
        %v3224 = vshrl.u32 %v3223, 7
        %v3225 = vsub.s32 0, %v3224
        %v3226 = vrot.slane %v3221, %v3225
        %v3236 = vunpack.c.l.b16 %v3213
        %v3237 = vunpack.c.l.b16 %v3214
        %v3238 = vunpack.c.l.b16 %v3215
        %v3239 = vunpack.c.l.b16 %v3216
        %v3240 = vunpack.c.l.b16 %v3217
        %v3241 = vunpack.c.l.b16 %v3218
        %v3242 = vunpack.c.l.b16 %v3219
        %v3243 = vunpack.c.l.b16 %v3220
        %v3244 = vpack.c.b16 %v3237, %v3236
        %v3245 = vpack.c.b16 %v3239, %v3238
        %v3246 = vpack.c.b16 %v3241, %v3240
        %v3247 = vpack.c.b16 %v3243, %v3242
        %3252 = vmatprep.subr.bf16.mxu0 0
        %3253 = vmatpush1.bf16.msra.mxu0 %v3244
        %3254 = vmatprep.subr.bf16.mxu0 0
        %3255 = vmatpush1.bf16.msra.mxu0 %v3245
        %3256 = vmatprep.subr.bf16.mxu0 0
        %3257 = vmatpush1.bf16.msra.mxu0 %v3246
        %3258 = vmatprep.subr.bf16.mxu0 0
        %3259 = vmatpush1.bf16.msra.mxu0 %v3247
        %3260 = vmatprep.subr.bf16.mxu0 0
        %3261 = vmatpush1.bf16.msra.mxu0 0
        %3262 = vmatprep.subr.bf16.mxu0 0
        %3263 = vmatpush1.bf16.msra.mxu0 0
        %3264 = vmatprep.subr.bf16.mxu0 0
        %3265 = vmatpush1.bf16.msra.mxu0 0
        %3266 = vmatprep.subr.bf16.mxu0 0
        %3267 = vmatpush1.bf16.msra.mxu0 0
        %3268 = vmatprep.subr.bf16.mxu0 0
        %3269 = vmatpush1.bf16.msra.mxu0 0
        %3270 = vmatprep.subr.bf16.mxu0 0
        %3271 = vmatpush1.bf16.msra.mxu0 0
        %3272 = vmatprep.subr.bf16.mxu0 0
        %3273 = vmatpush1.bf16.msra.mxu0 0
        %3274 = vmatprep.subr.bf16.mxu0 0
        %3275 = vmatpush1.bf16.msra.mxu0 0
        %3276 = vmatprep.subr.bf16.mxu0 0
        %3277 = vmatpush1.bf16.msra.mxu0 0
        %3278 = vmatprep.subr.bf16.mxu0 0
        %3279 = vmatpush1.bf16.msra.mxu0 0
        %3280 = vmatprep.subr.bf16.mxu0 0
        %3281 = vmatpush1.bf16.msra.mxu0 0
        %3282 = vmatprep.subr.bf16.mxu0 0
        %3283 = vmatpush1.bf16.msra.mxu0 0
        %3284 = vmatprep.mubr.bf16.mxu0 0
        %3285 = vmatmul.mubr.bf16.gmra.mrb[0].mxu0 %v1958
        %v3286 = vpop.f32.mrb[0].mxu0
        %v3287 = vadd.f32 %v3226, %v3286
        %v3288 = vpop.f32.mrb[0].mxu0
        %v3289 = vpop.f32.mrb[0].mxu0
        %v3290 = vadd.f32 %v3226, %v3289
        %v3291 = vpop.f32.mrb[0].mxu0
        %3292 = vdwg.mxu0
        %v3293 = vld [vmem:[#allocation34] sm:$0xf]
        %v3294 = vld [vmem:[#allocation34 + $0x4] sm:$0xf]
        %v3295 = vld [vmem:[#allocation34 + $0x8] sm:$0xf]
        %v3296 = vld [vmem:[#allocation34 + $0xc] sm:$0xf]
        %v3297 = vld [vmem:[#allocation34 + $0x10] sm:$0xf]
        %v3298 = vld [vmem:[#allocation34 + $0x14] sm:$0xf]
        %v3299 = vld [vmem:[#allocation34 + $0x18] sm:$0xf]
        %v3300 = vld [vmem:[#allocation34 + $0x1c] sm:$0xf]
        %v3301 = vld [vmem:[%s61] sm:$0x1]
        %v3303 = vlaneseq
        %v3304 = vshrl.u32 %v3303, 7
        %v3305 = vsub.s32 0, %v3304
        %v3306 = vrot.slane %v3301, %v3305
        %v3316 = vunpack.c.l.b16 %v3293
        %v3317 = vunpack.c.l.b16 %v3294
        %v3318 = vunpack.c.l.b16 %v3295
        %v3319 = vunpack.c.l.b16 %v3296
        %v3320 = vunpack.c.l.b16 %v3297
        %v3321 = vunpack.c.l.b16 %v3298
        %v3322 = vunpack.c.l.b16 %v3299
        %v3323 = vunpack.c.l.b16 %v3300
        %v3324 = vpack.c.b16 %v3317, %v3316
        %v3325 = vpack.c.b16 %v3319, %v3318
        %v3326 = vpack.c.b16 %v3321, %v3320
        %v3327 = vpack.c.b16 %v3323, %v3322
        %3332 = vmatprep.subr.bf16.mxu0 0
        %3333 = vmatpush1.bf16.msra.mxu0 %v3324
        %3334 = vmatprep.subr.bf16.mxu0 0
        %3335 = vmatpush1.bf16.msra.mxu0 %v3325
        %3336 = vmatprep.subr.bf16.mxu0 0
        %3337 = vmatpush1.bf16.msra.mxu0 %v3326
        %3338 = vmatprep.subr.bf16.mxu0 0
        %3339 = vmatpush1.bf16.msra.mxu0 %v3327
        %3340 = vmatprep.subr.bf16.mxu0 0
        %3341 = vmatpush1.bf16.msra.mxu0 0
        %3342 = vmatprep.subr.bf16.mxu0 0
        %3343 = vmatpush1.bf16.msra.mxu0 0
        %3344 = vmatprep.subr.bf16.mxu0 0
        %3345 = vmatpush1.bf16.msra.mxu0 0
        %3346 = vmatprep.subr.bf16.mxu0 0
        %3347 = vmatpush1.bf16.msra.mxu0 0
        %3348 = vmatprep.subr.bf16.mxu0 0
        %3349 = vmatpush1.bf16.msra.mxu0 0
        %3350 = vmatprep.subr.bf16.mxu0 0
        %3351 = vmatpush1.bf16.msra.mxu0 0
        %3352 = vmatprep.subr.bf16.mxu0 0
        %3353 = vmatpush1.bf16.msra.mxu0 0
        %3354 = vmatprep.subr.bf16.mxu0 0
        %3355 = vmatpush1.bf16.msra.mxu0 0
        %3356 = vmatprep.subr.bf16.mxu0 0
        %3357 = vmatpush1.bf16.msra.mxu0 0
        %3358 = vmatprep.subr.bf16.mxu0 0
        %3359 = vmatpush1.bf16.msra.mxu0 0
        %3360 = vmatprep.subr.bf16.mxu0 0
        %3361 = vmatpush1.bf16.msra.mxu0 0
        %3362 = vmatprep.subr.bf16.mxu0 0
        %3363 = vmatpush1.bf16.msra.mxu0 0
        %3364 = vmatprep.mubr.bf16.mxu0 0
        %3365 = vmatmul.mubr.bf16.gmra.mrb[0].mxu0 %v2851
        %v3366 = vpop.f32.mrb[0].mxu0
        %v3367 = vadd.f32 %v3306, %v3366
        %v3368 = vpop.f32.mrb[0].mxu0
        %v3369 = vpop.f32.mrb[0].mxu0
        %v3370 = vadd.f32 %v3306, %v3369
        %v3371 = vpop.f32.mrb[0].mxu0
        %3372 = vdwg.mxu0
        %v3373 = vmul.f32 %v3287, %v3367
        %v3374 = vmul.f32 %v3290, %v3370
        %v3375 = vpack.c.bf16 %v3374, %v3373
        %v3376 = vld [vmem:[%s5] sm:$0xf]
        %v3377 = vld [vmem:[%s5 + $0x4] sm:$0xf]
        %v3378 = vld [vmem:[%s5 + $0x8] sm:$0xf]
        %v3379 = vld [vmem:[%s5 + $0xc] sm:$0xf]
        %v3380 = vld [vmem:[%s5 + $0x10] sm:$0xf]
        %v3381 = vld [vmem:[%s5 + $0x14] sm:$0xf]
        %v3382 = vld [vmem:[%s5 + $0x18] sm:$0xf]
        %v3383 = vld [vmem:[%s5 + $0x1c] sm:$0xf]
        %v3392 = vunpack.c.l.b16 %v3376
        %v3393 = vunpack.c.l.b16 %v3377
        %v3394 = vunpack.c.l.b16 %v3378
        %v3395 = vunpack.c.l.b16 %v3379
        %v3396 = vunpack.c.l.b16 %v3380
        %v3397 = vunpack.c.l.b16 %v3381
        %v3398 = vunpack.c.l.b16 %v3382
        %v3399 = vunpack.c.l.b16 %v3383
        %v3400 = vpack.c.b16 %v3393, %v3392
        %v3401 = vpack.c.b16 %v3395, %v3394
        %v3402 = vpack.c.b16 %v3397, %v3396
        %v3403 = vpack.c.b16 %v3399, %v3398
        %v3409 = vsel %vm1872, %v3375, 0
        %3411 = vmatprep.subr.bf16.mxu0 0
        %3412 = vmatpush1.bf16.msra.mxu0 %v3400
        %3413 = vmatprep.subr.bf16.mxu0 0
        %3414 = vmatpush1.bf16.msra.mxu0 %v3401
        %3415 = vmatprep.subr.bf16.mxu0 0
        %3416 = vmatpush1.bf16.msra.mxu0 %v3402
        %3417 = vmatprep.subr.bf16.mxu0 0
        %3418 = vmatpush1.bf16.msra.mxu0 %v3403
        %3419 = vmatprep.subr.bf16.mxu0 0
        %3420 = vmatpush1.bf16.msra.mxu0 0
        %3421 = vmatprep.subr.bf16.mxu0 0
        %3422 = vmatpush1.bf16.msra.mxu0 0
        %3423 = vmatprep.subr.bf16.mxu0 0
        %3424 = vmatpush1.bf16.msra.mxu0 0
        %3425 = vmatprep.subr.bf16.mxu0 0
        %3426 = vmatpush1.bf16.msra.mxu0 0
        %3427 = vmatprep.subr.bf16.mxu0 0
        %3428 = vmatpush1.bf16.msra.mxu0 0
        %3429 = vmatprep.subr.bf16.mxu0 0
        %3430 = vmatpush1.bf16.msra.mxu0 0
        %3431 = vmatprep.subr.bf16.mxu0 0
        %3432 = vmatpush1.bf16.msra.mxu0 0
        %3433 = vmatprep.subr.bf16.mxu0 0
        %3434 = vmatpush1.bf16.msra.mxu0 0
        %3435 = vmatprep.subr.bf16.mxu0 0
        %3436 = vmatpush1.bf16.msra.mxu0 0
        %3437 = vmatprep.subr.bf16.mxu0 0
        %3438 = vmatpush1.bf16.msra.mxu0 0
        %3439 = vmatprep.subr.bf16.mxu0 0
        %3440 = vmatpush1.bf16.msra.mxu0 0
        %3441 = vmatprep.subr.bf16.mxu0 0
        %3442 = vmatpush1.bf16.msra.mxu0 0
        %3443 = vmatprep.mubr.bf16.mxu0 0
        %3444 = vmatmul.mubr.bf16.gmra.mrb[0].mxu0 %v3409
        %v3445 = vpop.f32.mrb[0].mxu0
        %v3446 = vadd.f32 0.0, %v3445
        %v3447 = vpop.f32.mrb[0].mxu0
        %v3448 = vpop.f32.mrb[0].mxu0
        %v3449 = vadd.f32 0.0, %v3448
        %v3450 = vpop.f32.mrb[0].mxu0
        %3451 = vdwg.mxu0
        %vm3452 = vcmp.lt.f32.partialorder %v3446, 0.0
        %vm3453 = vcmp.lt.f32.partialorder %v3449, 0.0
        %v3454 = vsel %vm3452, -1.0, 1.0
        %v3455 = vsel %vm3453, -1.0, 1.0
        %v3456 = vand.u32 2147483647, %v3446
        %v3457 = vand.u32 2147483647, %v3449
        %v3458 = vrsqrt.pop %v3456
        %v3459 = vmul.f32 %v3456, %v3458
        %vm3460 = vcmp.eq.f32.partialorder %v3456, inf
        %v3461 = vsel %vm3460, %v3456, %v3459
        %vm3462 = vcmp.eq.f32.partialorder %v3456, 0.0
        %v3463 = vand.u32 %v3456, 2147483648
        %v3464 = vsel %vm3462, %v3463, %v3461
        %v3465 = vrsqrt.pop %v3457
        %v3466 = vmul.f32 %v3457, %v3465
        %vm3467 = vcmp.eq.f32.partialorder %v3457, inf
        %v3468 = vsel %vm3467, %v3457, %v3466
        %vm3469 = vcmp.eq.f32.partialorder %v3457, 0.0
        %v3470 = vand.u32 %v3457, 2147483648
        %v3471 = vsel %vm3469, %v3470, %v3468
        %v3472 = vmul.f32 %v3454, %v3464
        %v3473 = vmul.f32 %v3455, %v3471
        %v3474 = vadd.f32 %v1911, %v2804
        %v3475 = vadd.f32 %v1914, %v2807
        %v3476 = vmul.f32 %v3474, %v3474
        %v3477 = vmul.f32 %v3475, %v3475
        %v3478 = vsel %vm1872, %v3476, 0.0
        %3479 = vadd.xlane.f32.xlu0 %v3478
        %v3480 = vpop.xlane.xlu0 %3479
        %v3481 = vsel %vm1872, %v3477, 0.0
        %3482 = vadd.xlane.f32.xlu0 %v3481
        %v3483 = vpop.xlane.xlu0 %3482
        %v3484 = vmax.f32 %v3480, 1e-24
        %v3485 = vmax.f32 %v3483, 1e-24
        %v3486 = vrsqrt.pop %v3484
        %v3487 = vrsqrt.pop %v3485
        %v3488 = vmul.f32 %v1911, %v2804
        %v3489 = vmul.f32 %v1914, %v2807
        %v3490 = vsel %vm1872, %v3488, 0.0
        %3491 = vadd.xlane.f32.xlu0 %v3490
        %v3492 = vpop.xlane.xlu0 %3491
        %v3493 = vsel %vm1872, %v3489, 0.0
        %3494 = vadd.xlane.f32.xlu0 %v3493
        %v3495 = vpop.xlane.xlu0 %3494
        %v3496 = vmul.f32 %v3474, %v3486
        %v3497 = vmul.f32 %v3475, %v3487
        %3500 = vrot.lane.b32.xlu0 %v3472, 64
        %v3501 = vpop.permute.xlu0 %3500
        %3502 = vrot.lane.b32.xlu0 %v3473, 64
        %v3503 = vpop.permute.xlu0 %3502
        %v3506 = vsel %vm1872, %v3496, %v3501
        %v3507 = vsel %vm1872, %v3497, %v3503
        %vm3508 = vcmask 654336
        %v3509 = vsel %vm3508, %v3506, %v3492
        %v3510 = vsel %vm3508, %v3507, %v3495
        %vm3511 = vcmask 662528
        %v3512 = vsel %vm3511, %v3509, 0.0
        %v3513 = vsel %vm3511, %v3510, 0.0
        %3514 = vst [vmem:[%s1384] sm:$0xff] %v3512
        %3515 = vst [vmem:[%s1384 + $0x8] sm:$0xff] %v3513
        %s3516 = sand.u32 %s774, 1
        %s3517 = scalar_lea.sflag [#allocation4], %s3516
        %s3518 = sand.u32 %s774, 1
        %s3519 = smul.addr %s3518, 32
        %s3520 = scalar_lea.vmem [#allocation35], %s3519
        %s3521 = sand.u32 %s105, 1
        %s3522 = scalar_lea.sflag [#allocation37], %s3521
        %s3523 = sand.u32 %s800, 1
        %s3524 = smul.addr %s3523, 16
        %s3525 = scalar_lea.vmem [#allocation36], %s3524
        %s3526 = sand.u32 %s105, 1
        %s3527 = scalar_lea.sflag [#allocation37], %s3526
        %s3528 = sand.u32 %s826, 1
        %s3529 = smul.addr %s3528, 8
        %s3530 = scalar_lea.vmem [#allocation38], %s3529
        %s3531 = sand.u32 %s852, 1
        %s3532 = scalar_lea.sflag [#allocation40], %s3531
        %s3533 = sand.u32 %s852, 1
        %s3534 = smul.addr %s3533, 16
        %s3535 = scalar_lea.vmem [#allocation39], %s3534
        // Predicated region
        $region229: #{tpu_custom_call.1} parent=143 // pred_check
          %p3536 = pneg %p784
        $region230: #{tpu_custom_call.1} parent=143 // pred_check_branch
          %3538 = sbr.rel (%p3536) target = $region232
        $region231: #{tpu_custom_call.1} parent=143 // pred_region
          %s3539 = smul.u32 2, %s105
          %s3541 = ssub.s32 512, 512
          %3542 = vsyncadd %s3517, %s3541
          %s3543 = smul.addr %s3539, 2
          %s3544 = smul.addr %s3543, 128
          %s3545 = scalar_lea.hbm %s63, %s3544
          %s3546 = sshll.u32 %s3520, 4
          %s3547 = int_to_ptr.vmem [resolvable:$true] %s3546
          %3552 = dma.vmem_to_hbm [thread:$0]  %s3547, 512, %s3545, %s3517, 256, 256, 16
        $region232: #{tpu_custom_call.1} parent=143 // pred_fallthru
          _
        // Predicated region
        $region233: #{tpu_custom_call.1} parent=143 // pred_check
          %p3553 = pneg %p810
        $region234: #{tpu_custom_call.1} parent=143 // pred_check_branch
          %3555 = sbr.rel (%p3553) target = $region236
        $region235: #{tpu_custom_call.1} parent=143 // pred_region
          %s3556 = smul.u32 2, %s105
          %s3558 = ssub.s32 256, 256
          %3559 = vsyncadd %s3522, %s3558
          %s3560 = smul.addr %s3556, 128
          %s3561 = scalar_lea.hbm %s65, %s3560
          %s3562 = sshll.u32 %s3525, 4
          %s3563 = int_to_ptr.vmem [resolvable:$true] %s3562
          %3568 = dma.vmem_to_hbm [thread:$0]  %s3563, 256, %s3561, %s3522, 128, 128, 8
        $region236: #{tpu_custom_call.1} parent=143 // pred_fallthru
          _
        // Predicated region
        $region237: #{tpu_custom_call.1} parent=143 // pred_check
          %p3569 = pneg %p836
        $region238: #{tpu_custom_call.1} parent=143 // pred_check_branch
          %3571 = sbr.rel (%p3569) target = $region240
        $region239: #{tpu_custom_call.1} parent=143 // pred_region
          %s3572 = smul.u32 2, %s105
          %s3574 = ssub.s32 128, 128
          %3575 = vsyncadd %s3527, %s3574
          %s3576 = smul.addr %s3572, 64
          %s3577 = scalar_lea.hbm %s67, %s3576
          %s3578 = sshll.u32 %s3530, 4
          %s3579 = int_to_ptr.vmem [resolvable:$true] %s3578
          %3584 = dma.vmem_to_hbm [thread:$0]  %s3579, 128, %s3577, %s3527, 64, 64, 4
        $region240: #{tpu_custom_call.1} parent=143 // pred_fallthru
          _
        // Predicated region
        $region241: #{tpu_custom_call.1} parent=143 // pred_check
          %p3585 = pneg %p862
        $region242: #{tpu_custom_call.1} parent=143 // pred_check_branch
          %3587 = sbr.rel (%p3585) target = $region244
        $region243: #{tpu_custom_call.1} parent=143 // pred_region
          %s3588 = smul.u32 2, %s105
          %s3590 = ssub.s32 256, 256
          %3591 = vsyncadd %s3532, %s3590
          %s3592 = smul.addr %s3588, 128
          %s3593 = scalar_lea.hbm %s69, %s3592
          %s3594 = sshll.u32 %s3535, 4
          %s3595 = int_to_ptr.vmem [resolvable:$true] %s3594
          %3600 = dma.vmem_to_hbm [thread:$0]  %s3595, 256, %s3593, %s3532, 128, 128, 8
        $region244: #{tpu_custom_call.1} parent=143 // pred_fallthru
          _
      $region144: #{tpu_custom_call.1} parent=5 // pred_fallthru
        _
      %p3601 = scmp.le.s32.totalorder 2, %s100
      // Predicated region
      $region245: #{tpu_custom_call.1} parent=5 // pred_check
        %p3602 = pneg %p3601
      $region246: #{tpu_custom_call.1} parent=5 // pred_check_branch
        %3604 = sbr.rel (%p3602) target = $region248
      $region247: #{tpu_custom_call.1} parent=5 // pred_region
        %s3605 = ssub.s32 %s100, 2
        // Predicated region
        $region249: #{tpu_custom_call.1} parent=247 // pred_check
          %p3606 = pneg %p790
        $region250: #{tpu_custom_call.1} parent=247 // pred_check_branch
          %3608 = sbr.rel (%p3606) target = $region252
        $region251: #{tpu_custom_call.1} parent=247 // pred_region
          %s3609 = sand.u32 %s775, 1
          %s3610 = scalar_lea.sflag [#allocation4], %s3609
          %s3611 = sand.u32 %s775, 1
          %s3612 = smul.addr %s3611, 32
          %s3613 = scalar_lea.vmem [#allocation35], %s3612
          %3614 = dma.done %s3610, 512
        $region252: #{tpu_custom_call.1} parent=247 // pred_fallthru
          _
        // Predicated region
        $region253: #{tpu_custom_call.1} parent=247 // pred_check
          %p3615 = pneg %p816
        $region254: #{tpu_custom_call.1} parent=247 // pred_check_branch
          %3617 = sbr.rel (%p3615) target = $region256
        $region255: #{tpu_custom_call.1} parent=247 // pred_region
          %s3618 = sand.u32 %s106, 1
          %s3619 = scalar_lea.sflag [#allocation37], %s3618
          %s3620 = sand.u32 %s801, 1
          %s3621 = smul.addr %s3620, 16
          %s3622 = scalar_lea.vmem [#allocation36], %s3621
          %3623 = dma.done %s3619, 256
        $region256: #{tpu_custom_call.1} parent=247 // pred_fallthru
          _
        // Predicated region
        $region257: #{tpu_custom_call.1} parent=247 // pred_check
          %p3624 = pneg %p842
        $region258: #{tpu_custom_call.1} parent=247 // pred_check_branch
          %3626 = sbr.rel (%p3624) target = $region260
        $region259: #{tpu_custom_call.1} parent=247 // pred_region
          %s3627 = sand.u32 %s106, 1
          %s3628 = scalar_lea.sflag [#allocation37], %s3627
          %s3629 = sand.u32 %s827, 1
          %s3630 = smul.addr %s3629, 8
          %s3631 = scalar_lea.vmem [#allocation38], %s3630
          %3632 = dma.done %s3628, 128
        $region260: #{tpu_custom_call.1} parent=247 // pred_fallthru
          _
        // Predicated region
        $region261: #{tpu_custom_call.1} parent=247 // pred_check
          %p3633 = pneg %p868
        $region262: #{tpu_custom_call.1} parent=247 // pred_check_branch
          %3635 = sbr.rel (%p3633) target = $region264
        $region263: #{tpu_custom_call.1} parent=247 // pred_region
          %s3636 = sand.u32 %s853, 1
          %s3637 = scalar_lea.sflag [#allocation40], %s3636
          %s3638 = sand.u32 %s853, 1
          %s3639 = smul.addr %s3638, 16
          %s3640 = scalar_lea.vmem [#allocation39], %s3639
          %3641 = dma.done %s3637, 256
        $region264: #{tpu_custom_call.1} parent=247 // pred_fallthru
          _
      $region248: #{tpu_custom_call.1} parent=5 // pred_fallthru
        _
    $region6: #{tpu_custom_call.1} parent=1 // loop_footer
      %s104 = sadd.s32 1, %s100
    $region7: #{tpu_custom_call.1} parent=1 // loop_footer_branch
      %99 = sbr.rel target = $region3
    $region8: #{tpu_custom_call.1} parent=1 // loop_exit
      _
    %3642 = vsyncpa [#allocation3], 1
    %s3643 = scalar_lea.sflag [#allocation3], 1
    %3644 = vsyncpa %s3643, 1
    %3645 = vsyncpa [#allocation6], 1
    %s3646 = scalar_lea.sflag [#allocation6], 1
    %3647 = vsyncpa %s3646, 1
    %3648 = vsyncpa [#allocation9], 1
    %3649 = vsyncpa [#allocation12], 1
    %3650 = vsyncpa [#allocation15], 1
    %3651 = vsyncpa [#allocation18], 1
    %3652 = vsyncpa [#allocation21], 1
    %3653 = vsyncpa [#allocation24], 1
    %3654 = vsyncpa [#allocation27], 1
    %3655 = vsyncpa [#allocation30], 1
    %3656 = vsyncpa [#allocation33], 1
    %3657 = vsyncpa [#allocation4], 1
    %s3658 = scalar_lea.sflag [#allocation4], 1
    %3659 = vsyncpa %s3658, 1
    %3660 = vsyncpa [#allocation37], 1
    %s3661 = scalar_lea.sflag [#allocation37], 1
    %3662 = vsyncpa %s3661, 1
    %3663 = vsyncpa [#allocation40], 1
    %s3664 = scalar_lea.sflag [#allocation40], 1
    %3665 = vsyncpa %s3664, 1

</llo_original>
